<compile_context>
chip_gen: v7x
topology: tpu7x:2x2x1
jax: 0.10.0
libtpu: 0.0.40
codegen_flags: <defaults>
</compile_context>

<pallas_src>
import functools

import jax
import jax.numpy as jnp
from jax.experimental import pallas as pl
from jax.experimental.pallas import tpu as pltpu

hidden_size = 256
input_size = 64
num_classes = 40


def lstm_fc_kernel(x_ref, wih0_ref, whh0_ref, b0_ref,
                   w12_ref, b1_ref, wfc_ref, bfc_ref,
                   out_ref, *, T, B):
    """Full LSTMModel forward for one batch group (one grid point).

    x_ref:    (T*B, D)  time-major rows (row t*B+j = timestep t, seq j of group), f32
    wih0_ref: (D, 4H)   layer-1 input->gates weights, bf16, gate order (i, f, o, g)
    whh0_ref: (H, 4H)   layer-1 hidden->gates weights, bf16
    b0_ref:   (1, 4H)   layer-1 combined bias (b_ih + b_hh), f32
    w12_ref:  (2H, 4H)  layer-2 [Wih1; Whh1] concatenated along K, bf16
    b1_ref:   (1, 4H)   layer-2 combined bias, f32
    wfc_ref:  (H, Cpad) fc weight (transposed, lane-padded), bf16
    bfc_ref:  (1, Cpad) fc bias (lane-padded), f32
    out_ref:  (B, Cpad) logits (lane-padded), f32
    """
    H = whh0_ref.shape[0]
    bf16 = jnp.bfloat16

    # Hoist weight loads out of the recurrence.
    whh0 = whh0_ref[...]
    w12 = w12_ref[...]
    b1 = b1_ref[...]

    # ---- Hoisted layer-1 input projection: one batched matmul over all timesteps ----
    x_all = x_ref[...].astype(bf16)                                    # (T*B, D)
    xw = (jnp.dot(x_all, wih0_ref[...], preferred_element_type=jnp.float32)
          + b0_ref[...])                                               # (T*B, 4H) f32

    def gates_to_hc(gates, c):
        # Packed gate order (i, f, o, g): one wide sigmoid slab, one tanh slab.
        sg = jax.nn.sigmoid(gates[:, :3 * H])
        i = sg[:, 0 * H:1 * H]
        f = sg[:, 1 * H:2 * H]
        o = sg[:, 2 * H:3 * H]
        g = jnp.tanh(gates[:, 3 * H:4 * H])
        c_new = f * c + i * g
        h_new = o * jnp.tanh(c_new)
        # h is only ever consumed as a matmul LHS -> produce it in bf16 once here.
        return h_new.astype(bf16), c_new

    def cell1(t, h1, c1):
        gates = xw[t * B:(t + 1) * B] + jnp.dot(
            h1, whh0, preferred_element_type=jnp.float32)
        return gates_to_hc(gates, c1)

    def cell2(h1_in, h2, c2):
        # Single fused dot over the concatenated [h1 | h2] state (K = 2H).
        h12 = jnp.concatenate([h1_in, h2], axis=-1)                    # (B, 2H) bf16
        gates = jnp.dot(h12, w12, preferred_element_type=jnp.float32) + b1
        return gates_to_hc(gates, c2)

    zeros_h = jnp.zeros((B, H), bf16)
    zeros_c = jnp.zeros((B, H), jnp.float32)

    # One-step skew: iteration t advances layer 1 to step t and layer 2 to step t-1,
    # so the per-iteration layer-1 and layer-2 chains are independent.
    # T is a static Python int -> the loop is fully unrolled at trace time.
    h1, c1 = cell1(0, zeros_h, zeros_c)    # layer-1 step 0
    h2, c2 = zeros_h, zeros_c
    for t in range(1, T):
        h1_new, c1_new = cell1(t, h1, c1)  # layer-1 step t
        h2, c2 = cell2(h1, h2, c2)         # layer-2 step t-1 (uses previous h1)
        h1, c1 = h1_new, c1_new
    h_last, _ = cell2(h1, h2, c2)          # layer-2 final step T-1

    # ---- fc head on the last timestep (bf16 matmul, lane-padded unmasked store) ----
    out_ref[...] = (jnp.dot(h_last, wfc_ref[...],
                            preferred_element_type=jnp.float32)
                    + bfc_ref[...])


def lstm_model_forward(x, params, *, batch_tile=None):
    """x: (B, T, input_size) float32, batch_first (PyTorch convention).

    batch_tile: sequences per grid point. Independent batch groups are iterated on a
    "parallel" grid axis (sharded across TensorCores on v7x). Default: one group.
    """
    B, T, D = x.shape
    H = params["whh0"].shape[0]
    C = params["wfc"].shape[1]
    C_pad = max(128, ((C + 127) // 128) * 128)

    Bt = B if batch_tile is None else batch_tile
    assert B % Bt == 0, "batch_tile must divide batch"
    G = B // Bt

    # (B, T, D) -> (G, T*Bt, D): within a group, row t*Bt + j = (timestep t, seq g*Bt+j).
    x_g = (x.reshape(G, Bt, T, D)
             .transpose(0, 2, 1, 3)
             .reshape(G, T * Bt, D))

    # Layer-2 fused weight [Wih1; Whh1] -> (2H, 4H); free at trace time.
    w12 = jnp.concatenate([params["wih1"], params["whh1"]], axis=0)

    # Lane-pad the fc head (bf16 weight) so the output store is lane-dense.
    wfc_pad = (jnp.zeros((H, C_pad), jnp.bfloat16)
               .at[:, :C].set(params["wfc"].astype(jnp.bfloat16)))
    bfc_pad = jnp.zeros((1, C_pad), jnp.float32).at[:, :C].set(params["bfc"])

    def full(shape):
        return pl.BlockSpec(shape, lambda g: (0,) * len(shape))

    out_g = pl.pallas_call(
        functools.partial(lstm_fc_kernel, T=T, B=Bt),
        out_shape=jax.ShapeDtypeStruct((G, Bt, C_pad), jnp.float32),
        grid=(G,),
        in_specs=[
            pl.BlockSpec((None, T * Bt, D), lambda g: (g, 0, 0)),   # x (per group)
            full((D, 4 * H)),        # wih0
            full((H, 4 * H)),        # whh0
            full((1, 4 * H)),        # b0
            full((2 * H, 4 * H)),    # w12 = [wih1; whh1]
            full((1, 4 * H)),        # b1
            full((H, C_pad)),        # wfc (padded, bf16)
            full((1, C_pad)),        # bfc (padded)
        ],
        out_specs=pl.BlockSpec((None, Bt, C_pad), lambda g: (g, 0, 0)),
        compiler_params=pltpu.CompilerParams(
            dimension_semantics=("parallel",)),
    )(x_g, params["wih0"], params["whh0"], params["b0"],
      w12, params["b1"], wfc_pad, bfc_pad)

    return out_g.reshape(B, C_pad)[:, :C]


def init_params(key, D, H, C):
    """Deterministic init mimicking PyTorch's U(-1/sqrt(H), 1/sqrt(H)).

    PyTorch stores weight_ih_l{n}: (4H, in) and weight_hh_l{n}: (4H, H) with gate
    order (i, f, g, o).  We transpose to (in, 4H) for row-major MXU matmuls,
    repack the gate columns to (i, f, o, g), and keep recurrent weights in bf16.
    """
    k = 1.0 / jnp.sqrt(jnp.float32(H))
    keys = jax.random.split(key, 10)

    def u(kk, shape):
        return jax.random.uniform(kk, shape, jnp.float32, -k, k)

    def reorder(w_t):  # columns (i, f, g, o) -> (i, f, o, g)
        i, f, g, o = jnp.split(w_t, 4, axis=-1)
        return jnp.concatenate([i, f, o, g], axis=-1)

    wih0 = reorder(u(keys[0], (4 * H, D)).T).astype(jnp.bfloat16)    # (D, 4H)
    whh0 = reorder(u(keys[1], (4 * H, H)).T).astype(jnp.bfloat16)    # (H, 4H)
    b0 = reorder((u(keys[2], (4 * H,)) + u(keys[3], (4 * H,)))[None, :])  # b_ih + b_hh
    wih1 = reorder(u(keys[4], (4 * H, H)).T).astype(jnp.bfloat16)    # (H, 4H)
    whh1 = reorder(u(keys[5], (4 * H, H)).T).astype(jnp.bfloat16)    # (H, 4H)
    b1 = reorder((u(keys[6], (4 * H,)) + u(keys[7], (4 * H,)))[None, :])

    wfc = u(keys[8], (C, H)).T            # (H, C) f32
    bfc = u(keys[9], (C,))[None, :]       # (1, C) f32

    return dict(wih0=wih0, whh0=whh0, b0=b0,
                wih1=wih1, whh1=whh1, b1=b1,
                wfc=wfc, bfc=bfc)


def reference_forward(x, p):
    """Pure-JAX reference of the same forward (same bf16-at-matmul convention)."""
    B, T, D = x.shape
    H = p["whh0"].shape[0]
    bf16 = jnp.bfloat16

    def gates_to_hc(gates, c):
        sg = jax.nn.sigmoid(gates[:, :3 * H])
        i, f, o = sg[:, :H], sg[:, H:2 * H], sg[:, 2 * H:3 * H]
        g = jnp.tanh(gates[:, 3 * H:])
        c = f * c + i * g
        return (o * jnp.tanh(c)).astype(bf16), c

    h1 = jnp.zeros((B, H), bf16)
    c1 = jnp.zeros((B, H), jnp.float32)
    h2 = jnp.zeros((B, H), bf16)
    c2 = jnp.zeros((B, H), jnp.float32)
    for t in range(T):
        g1 = (jnp.dot(x[:, t, :].astype(bf16), p["wih0"],
                      preferred_element_type=jnp.float32)
              + jnp.dot(h1, p["whh0"], preferred_element_type=jnp.float32)
              + p["b0"])
        h1, c1 = gates_to_hc(g1, c1)
        g2 = (jnp.dot(h1, p["wih1"], preferred_element_type=jnp.float32)
              + jnp.dot(h2, p["whh1"], preferred_element_type=jnp.float32)
              + p["b1"])
        h2, c2 = gates_to_hc(g2, c2)
    return (jnp.dot(h2, p["wfc"].astype(bf16), preferred_element_type=jnp.float32)
            + p["bfc"])


if __name__ == "__main__":
    B, T = 2, 8
    key = jax.random.PRNGKey(0)
    kx, kx2, kp = jax.random.split(key, 3)
    x = jax.random.normal(kx, (B, T, input_size), jnp.float32)
    params = init_params(kp, input_size, hidden_size, num_classes)

    # Small case: single batch group, grid=(1,).
    out = lstm_model_forward(x, params)
    out = jax.block_until_ready(out)
    ref = reference_forward(x, params)
    assert out.shape == (B, num_classes)
    assert jnp.allclose(out, ref, atol=1e-2, rtol=1e-2), "mismatch vs reference (B=2)"

    # Larger batch, sharded over 2 "parallel" batch groups (second TC on v7x).
    B2 = 16
    x2 = jax.random.normal(kx2, (B2, T, input_size), jnp.float32)
    out2 = jax.block_until_ready(lstm_model_forward(x2, params, batch_tile=8))
    ref2 = reference_forward(x2, params)
    assert out2.shape == (B2, num_classes)
    assert jnp.allclose(out2, ref2, atol=1e-2, rtol=1e-2), "mismatch vs reference (B=16)"

    print("KERNEL_OK")
</pallas_src>

<mosaic_0001>
module attributes {stable_mosaic.version = 11 : i64} {
  func.func @lstm_fc_kernel(%arg0: i32, %arg1: memref<1x16x64xf32, #tpu.memory_space<vmem>>, %arg2: memref<64x1024xbf16, #tpu.memory_space<vmem>>, %arg3: memref<256x1024xbf16, #tpu.memory_space<vmem>>, %arg4: memref<1x1024xf32, #tpu.memory_space<vmem>>, %arg5: memref<512x1024xbf16, #tpu.memory_space<vmem>>, %arg6: memref<1x1024xf32, #tpu.memory_space<vmem>>, %arg7: memref<256x128xbf16, #tpu.memory_space<vmem>>, %arg8: memref<1x128xf32, #tpu.memory_space<vmem>>, %arg9: memref<1x2x128xf32, #tpu.memory_space<vmem>>) attributes {dimension_semantics = [#tpu.dimension_semantics<parallel>], iteration_bounds = array<i64: 1>, scalar_prefetch = 0 : i64, scratch_operands = 0 : i64, tpu.core_type = #tpu.core_type<tc>, window_params = [{transform_indices = @transform_0, window_bounds = array<i64: 1, 16, 64>}, {pipeline_mode = #tpu.pipeline_mode<synchronous>, transform_indices = @transform_1, window_bounds = array<i64: 64, 1024>}, {pipeline_mode = #tpu.pipeline_mode<synchronous>, transform_indices = @transform_2, window_bounds = array<i64: 256, 1024>}, {pipeline_mode = #tpu.pipeline_mode<synchronous>, transform_indices = @transform_3, window_bounds = array<i64: 1, 1024>}, {pipeline_mode = #tpu.pipeline_mode<synchronous>, transform_indices = @transform_4, window_bounds = array<i64: 512, 1024>}, {pipeline_mode = #tpu.pipeline_mode<synchronous>, transform_indices = @transform_5, window_bounds = array<i64: 1, 1024>}, {pipeline_mode = #tpu.pipeline_mode<synchronous>, transform_indices = @transform_6, window_bounds = array<i64: 256, 128>}, {pipeline_mode = #tpu.pipeline_mode<synchronous>, transform_indices = @transform_7, window_bounds = array<i64: 1, 128>}, {transform_indices = @transform_8, window_bounds = array<i64: 1, 2, 128>}]} {
    %c0 = arith.constant 0 : index
    %c0_0 = arith.constant 0 : index
    %0 = vector.load %arg3[%c0, %c0_0] : memref<256x1024xbf16, #tpu.memory_space<vmem>>, vector<256x1024xbf16>
    %c0_1 = arith.constant 0 : index
    %c0_2 = arith.constant 0 : index
    %1 = vector.load %arg5[%c0_1, %c0_2] : memref<512x1024xbf16, #tpu.memory_space<vmem>>, vector<512x1024xbf16>
    %c0_3 = arith.constant 0 : index
    %c0_4 = arith.constant 0 : index
    %2 = vector.load %arg6[%c0_3, %c0_4] : memref<1x1024xf32, #tpu.memory_space<vmem>>, vector<1x1024xf32>
    %c0_5 = arith.constant 0 : index
    %c0_6 = arith.constant 0 : index
    %c0_7 = arith.constant 0 : index
    %3 = vector.load %arg1[%c0_5, %c0_6, %c0_7] : memref<1x16x64xf32, #tpu.memory_space<vmem>>, vector<1x16x64xf32>
    %4 = vector.shape_cast %3 : vector<1x16x64xf32> to vector<16x64xf32>
    %5 = arith.truncf %4 : vector<16x64xf32> to vector<16x64xbf16>
    %c0_8 = arith.constant 0 : index
    %c0_9 = arith.constant 0 : index
    %6 = vector.load %arg2[%c0_8, %c0_9] : memref<64x1024xbf16, #tpu.memory_space<vmem>>, vector<64x1024xbf16>
    %cst = arith.constant dense<0.000000e+00> : vector<16x1024xf32>
    %7 = tpu.matmul %5, %6, %cst {dimension_numbers = #tpu.dot_dimension_numbers<[1], [0], [0], [1], [0, 0, 1, 1], [], []>} : vector<16x64xbf16>, vector<64x1024xbf16>, vector<16x1024xf32> -> vector<16x1024xf32>
    %c0_10 = arith.constant 0 : index
    %c0_11 = arith.constant 0 : index
    %8 = vector.load %arg4[%c0_10, %c0_11] : memref<1x1024xf32, #tpu.memory_space<vmem>>, vector<1x1024xf32>
    %9 = vector.broadcast %8 : vector<1x1024xf32> to vector<16x1024xf32>
    %10 = arith.addf %7, %9 : vector<16x1024xf32>
    %cst_12 = arith.constant 0.000000e+00 : bf16
    %11 = vector.broadcast %cst_12 : bf16 to vector<2x256xbf16>
    %cst_13 = arith.constant 0.000000e+00 : f32
    %12 = vector.broadcast %cst_13 : f32 to vector<2x256xf32>
    %13 = vector.extract_strided_slice %10 {offsets = [0, 0], sizes = [2, 1024], strides = [1, 1]} : vector<16x1024xf32> to vector<2x1024xf32>
    %cst_14 = arith.constant dense<0.000000e+00> : vector<2x1024xf32>
    %14 = tpu.matmul %11, %0, %cst_14 {dimension_numbers = #tpu.dot_dimension_numbers<[1], [0], [0], [1], [0, 0, 1, 1], [], []>} : vector<2x256xbf16>, vector<256x1024xbf16>, vector<2x1024xf32> -> vector<2x1024xf32>
    %15 = arith.addf %13, %14 : vector<2x1024xf32>
    %16 = vector.extract_strided_slice %15 {offsets = [0, 0], sizes = [2, 768], strides = [1, 1]} : vector<2x1024xf32> to vector<2x768xf32>
    %17 = arith.negf %16 : vector<2x768xf32>
    %18 = math.exp %17 : vector<2x768xf32>
    %cst_15 = arith.constant 1.000000e+00 : f32
    %19 = vector.broadcast %cst_15 : f32 to vector<2x768xf32>
    %20 = arith.addf %19, %18 : vector<2x768xf32>
    %21 = arith.divf %19, %20 : vector<2x768xf32>
    %22 = vector.extract_strided_slice %21 {offsets = [0, 0], sizes = [2, 256], strides = [1, 1]} : vector<2x768xf32> to vector<2x256xf32>
    %23 = vector.extract_strided_slice %21 {offsets = [0, 256], sizes = [2, 256], strides = [1, 1]} : vector<2x768xf32> to vector<2x256xf32>
    %24 = vector.extract_strided_slice %21 {offsets = [0, 512], sizes = [2, 256], strides = [1, 1]} : vector<2x768xf32> to vector<2x256xf32>
    %25 = vector.extract_strided_slice %15 {offsets = [0, 768], sizes = [2, 256], strides = [1, 1]} : vector<2x1024xf32> to vector<2x256xf32>
    %26 = math.tanh %25 : vector<2x256xf32>
    %27 = arith.mulf %23, %12 : vector<2x256xf32>
    %28 = arith.mulf %22, %26 : vector<2x256xf32>
    %29 = arith.addf %27, %28 : vector<2x256xf32>
    %30 = math.tanh %29 : vector<2x256xf32>
    %31 = arith.mulf %24, %30 : vector<2x256xf32>
    %32 = arith.truncf %31 : vector<2x256xf32> to vector<2x256xbf16>
    %33 = vector.extract_strided_slice %10 {offsets = [2, 0], sizes = [2, 1024], strides = [1, 1]} : vector<16x1024xf32> to vector<2x1024xf32>
    %cst_16 = arith.constant dense<0.000000e+00> : vector<2x1024xf32>
    %34 = tpu.matmul %32, %0, %cst_16 {dimension_numbers = #tpu.dot_dimension_numbers<[1], [0], [0], [1], [0, 0, 1, 1], [], []>} : vector<2x256xbf16>, vector<256x1024xbf16>, vector<2x1024xf32> -> vector<2x1024xf32>
    %35 = arith.addf %33, %34 : vector<2x1024xf32>
    %36 = vector.extract_strided_slice %35 {offsets = [0, 0], sizes = [2, 768], strides = [1, 1]} : vector<2x1024xf32> to vector<2x768xf32>
    %37 = arith.negf %36 : vector<2x768xf32>
    %38 = math.exp %37 : vector<2x768xf32>
    %cst_17 = arith.constant 1.000000e+00 : f32
    %39 = vector.broadcast %cst_17 : f32 to vector<2x768xf32>
    %40 = arith.addf %39, %38 : vector<2x768xf32>
    %41 = arith.divf %39, %40 : vector<2x768xf32>
    %42 = vector.extract_strided_slice %41 {offsets = [0, 0], sizes = [2, 256], strides = [1, 1]} : vector<2x768xf32> to vector<2x256xf32>
    %43 = vector.extract_strided_slice %41 {offsets = [0, 256], sizes = [2, 256], strides = [1, 1]} : vector<2x768xf32> to vector<2x256xf32>
    %44 = vector.extract_strided_slice %41 {offsets = [0, 512], sizes = [2, 256], strides = [1, 1]} : vector<2x768xf32> to vector<2x256xf32>
    %45 = vector.extract_strided_slice %35 {offsets = [0, 768], sizes = [2, 256], strides = [1, 1]} : vector<2x1024xf32> to vector<2x256xf32>
    %46 = math.tanh %45 : vector<2x256xf32>
    %47 = arith.mulf %43, %29 : vector<2x256xf32>
    %48 = arith.mulf %42, %46 : vector<2x256xf32>
    %49 = arith.addf %47, %48 : vector<2x256xf32>
    %50 = math.tanh %49 : vector<2x256xf32>
    %51 = arith.mulf %44, %50 : vector<2x256xf32>
    %52 = arith.truncf %51 : vector<2x256xf32> to vector<2x256xbf16>
    %53 = tpu.concatenate %32, %11 in 1 : vector<2x256xbf16>, vector<2x256xbf16> -> vector<2x512xbf16>
    %cst_18 = arith.constant dense<0.000000e+00> : vector<2x1024xf32>
    %54 = tpu.matmul %53, %1, %cst_18 {dimension_numbers = #tpu.dot_dimension_numbers<[1], [0], [0], [1], [0, 0, 1, 1], [], []>} : vector<2x512xbf16>, vector<512x1024xbf16>, vector<2x1024xf32> -> vector<2x1024xf32>
    %55 = vector.broadcast %2 : vector<1x1024xf32> to vector<2x1024xf32>
    %56 = arith.addf %54, %55 : vector<2x1024xf32>
    %57 = vector.extract_strided_slice %56 {offsets = [0, 0], sizes = [2, 768], strides = [1, 1]} : vector<2x1024xf32> to vector<2x768xf32>
    %58 = arith.negf %57 : vector<2x768xf32>
    %59 = math.exp %58 : vector<2x768xf32>
    %cst_19 = arith.constant 1.000000e+00 : f32
    %60 = vector.broadcast %cst_19 : f32 to vector<2x768xf32>
    %61 = arith.addf %60, %59 : vector<2x768xf32>
    %62 = arith.divf %60, %61 : vector<2x768xf32>
    %63 = vector.extract_strided_slice %62 {offsets = [0, 0], sizes = [2, 256], strides = [1, 1]} : vector<2x768xf32> to vector<2x256xf32>
    %64 = vector.extract_strided_slice %62 {offsets = [0, 256], sizes = [2, 256], strides = [1, 1]} : vector<2x768xf32> to vector<2x256xf32>
    %65 = vector.extract_strided_slice %62 {offsets = [0, 512], sizes = [2, 256], strides = [1, 1]} : vector<2x768xf32> to vector<2x256xf32>
    %66 = vector.extract_strided_slice %56 {offsets = [0, 768], sizes = [2, 256], strides = [1, 1]} : vector<2x1024xf32> to vector<2x256xf32>
    %67 = math.tanh %66 : vector<2x256xf32>
    %68 = arith.mulf %64, %12 : vector<2x256xf32>
    %69 = arith.mulf %63, %67 : vector<2x256xf32>
    %70 = arith.addf %68, %69 : vector<2x256xf32>
    %71 = math.tanh %70 : vector<2x256xf32>
    %72 = arith.mulf %65, %71 : vector<2x256xf32>
    %73 = arith.truncf %72 : vector<2x256xf32> to vector<2x256xbf16>
    %74 = vector.extract_strided_slice %10 {offsets = [4, 0], sizes = [2, 1024], strides = [1, 1]} : vector<16x1024xf32> to vector<2x1024xf32>
    %cst_20 = arith.constant dense<0.000000e+00> : vector<2x1024xf32>
    %75 = tpu.matmul %52, %0, %cst_20 {dimension_numbers = #tpu.dot_dimension_numbers<[1], [0], [0], [1], [0, 0, 1, 1], [], []>} : vector<2x256xbf16>, vector<256x1024xbf16>, vector<2x1024xf32> -> vector<2x1024xf32>
    %76 = arith.addf %74, %75 : vector<2x1024xf32>
    %77 = vector.extract_strided_slice %76 {offsets = [0, 0], sizes = [2, 768], strides = [1, 1]} : vector<2x1024xf32> to vector<2x768xf32>
    %78 = arith.negf %77 : vector<2x768xf32>
    %79 = math.exp %78 : vector<2x768xf32>
    %cst_21 = arith.constant 1.000000e+00 : f32
    %80 = vector.broadcast %cst_21 : f32 to vector<2x768xf32>
    %81 = arith.addf %80, %79 : vector<2x768xf32>
    %82 = arith.divf %80, %81 : vector<2x768xf32>
    %83 = vector.extract_strided_slice %82 {offsets = [0, 0], sizes = [2, 256], strides = [1, 1]} : vector<2x768xf32> to vector<2x256xf32>
    %84 = vector.extract_strided_slice %82 {offsets = [0, 256], sizes = [2, 256], strides = [1, 1]} : vector<2x768xf32> to vector<2x256xf32>
    %85 = vector.extract_strided_slice %82 {offsets = [0, 512], sizes = [2, 256], strides = [1, 1]} : vector<2x768xf32> to vector<2x256xf32>
    %86 = vector.extract_strided_slice %76 {offsets = [0, 768], sizes = [2, 256], strides = [1, 1]} : vector<2x1024xf32> to vector<2x256xf32>
    %87 = math.tanh %86 : vector<2x256xf32>
    %88 = arith.mulf %84, %49 : vector<2x256xf32>
    %89 = arith.mulf %83, %87 : vector<2x256xf32>
    %90 = arith.addf %88, %89 : vector<2x256xf32>
    %91 = math.tanh %90 : vector<2x256xf32>
    %92 = arith.mulf %85, %91 : vector<2x256xf32>
    %93 = arith.truncf %92 : vector<2x256xf32> to vector<2x256xbf16>
    %94 = tpu.concatenate %52, %73 in 1 : vector<2x256xbf16>, vector<2x256xbf16> -> vector<2x512xbf16>
    %cst_22 = arith.constant dense<0.000000e+00> : vector<2x1024xf32>
    %95 = tpu.matmul %94, %1, %cst_22 {dimension_numbers = #tpu.dot_dimension_numbers<[1], [0], [0], [1], [0, 0, 1, 1], [], []>} : vector<2x512xbf16>, vector<512x1024xbf16>, vector<2x1024xf32> -> vector<2x1024xf32>
    %96 = vector.broadcast %2 : vector<1x1024xf32> to vector<2x1024xf32>
    %97 = arith.addf %95, %96 : vector<2x1024xf32>
    %98 = vector.extract_strided_slice %97 {offsets = [0, 0], sizes = [2, 768], strides = [1, 1]} : vector<2x1024xf32> to vector<2x768xf32>
    %99 = arith.negf %98 : vector<2x768xf32>
    %100 = math.exp %99 : vector<2x768xf32>
    %cst_23 = arith.constant 1.000000e+00 : f32
    %101 = vector.broadcast %cst_23 : f32 to vector<2x768xf32>
    %102 = arith.addf %101, %100 : vector<2x768xf32>
    %103 = arith.divf %101, %102 : vector<2x768xf32>
    %104 = vector.extract_strided_slice %103 {offsets = [0, 0], sizes = [2, 256], strides = [1, 1]} : vector<2x768xf32> to vector<2x256xf32>
    %105 = vector.extract_strided_slice %103 {offsets = [0, 256], sizes = [2, 256], strides = [1, 1]} : vector<2x768xf32> to vector<2x256xf32>
    %106 = vector.extract_strided_slice %103 {offsets = [0, 512], sizes = [2, 256], strides = [1, 1]} : vector<2x768xf32> to vector<2x256xf32>
    %107 = vector.extract_strided_slice %97 {offsets = [0, 768], sizes = [2, 256], strides = [1, 1]} : vector<2x1024xf32> to vector<2x256xf32>
    %108 = math.tanh %107 : vector<2x256xf32>
    %109 = arith.mulf %105, %70 : vector<2x256xf32>
    %110 = arith.mulf %104, %108 : vector<2x256xf32>
    %111 = arith.addf %109, %110 : vector<2x256xf32>
    %112 = math.tanh %111 : vector<2x256xf32>
    %113 = arith.mulf %106, %112 : vector<2x256xf32>
    %114 = arith.truncf %113 : vector<2x256xf32> to vector<2x256xbf16>
    %115 = vector.extract_strided_slice %10 {offsets = [6, 0], sizes = [2, 1024], strides = [1, 1]} : vector<16x1024xf32> to vector<2x1024xf32>
    %cst_24 = arith.constant dense<0.000000e+00> : vector<2x1024xf32>
    %116 = tpu.matmul %93, %0, %cst_24 {dimension_numbers = #tpu.dot_dimension_numbers<[1], [0], [0], [1], [0, 0, 1, 1], [], []>} : vector<2x256xbf16>, vector<256x1024xbf16>, vector<2x1024xf32> -> vector<2x1024xf32>
    %117 = arith.addf %115, %116 : vector<2x1024xf32>
    %118 = vector.extract_strided_slice %117 {offsets = [0, 0], sizes = [2, 768], strides = [1, 1]} : vector<2x1024xf32> to vector<2x768xf32>
    %119 = arith.negf %118 : vector<2x768xf32>
    %120 = math.exp %119 : vector<2x768xf32>
    %cst_25 = arith.constant 1.000000e+00 : f32
    %121 = vector.broadcast %cst_25 : f32 to vector<2x768xf32>
    %122 = arith.addf %121, %120 : vector<2x768xf32>
    %123 = arith.divf %121, %122 : vector<2x768xf32>
    %124 = vector.extract_strided_slice %123 {offsets = [0, 0], sizes = [2, 256], strides = [1, 1]} : vector<2x768xf32> to vector<2x256xf32>
    %125 = vector.extract_strided_slice %123 {offsets = [0, 256], sizes = [2, 256], strides = [1, 1]} : vector<2x768xf32> to vector<2x256xf32>
    %126 = vector.extract_strided_slice %123 {offsets = [0, 512], sizes = [2, 256], strides = [1, 1]} : vector<2x768xf32> to vector<2x256xf32>
    %127 = vector.extract_strided_slice %117 {offsets = [0, 768], sizes = [2, 256], strides = [1, 1]} : vector<2x1024xf32> to vector<2x256xf32>
    %128 = math.tanh %127 : vector<2x256xf32>
    %129 = arith.mulf %125, %90 : vector<2x256xf32>
    %130 = arith.mulf %124, %128 : vector<2x256xf32>
    %131 = arith.addf %129, %130 : vector<2x256xf32>
    %132 = math.tanh %131 : vector<2x256xf32>
    %133 = arith.mulf %126, %132 : vector<2x256xf32>
    %134 = arith.truncf %133 : vector<2x256xf32> to vector<2x256xbf16>
    %135 = tpu.concatenate %93, %114 in 1 : vector<2x256xbf16>, vector<2x256xbf16> -> vector<2x512xbf16>
    %cst_26 = arith.constant dense<0.000000e+00> : vector<2x1024xf32>
    %136 = tpu.matmul %135, %1, %cst_26 {dimension_numbers = #tpu.dot_dimension_numbers<[1], [0], [0], [1], [0, 0, 1, 1], [], []>} : vector<2x512xbf16>, vector<512x1024xbf16>, vector<2x1024xf32> -> vector<2x1024xf32>
    %137 = vector.broadcast %2 : vector<1x1024xf32> to vector<2x1024xf32>
    %138 = arith.addf %136, %137 : vector<2x1024xf32>
    %139 = vector.extract_strided_slice %138 {offsets = [0, 0], sizes = [2, 768], strides = [1, 1]} : vector<2x1024xf32> to vector<2x768xf32>
    %140 = arith.negf %139 : vector<2x768xf32>
    %141 = math.exp %140 : vector<2x768xf32>
    %cst_27 = arith.constant 1.000000e+00 : f32
    %142 = vector.broadcast %cst_27 : f32 to vector<2x768xf32>
    %143 = arith.addf %142, %141 : vector<2x768xf32>
    %144 = arith.divf %142, %143 : vector<2x768xf32>
    %145 = vector.extract_strided_slice %144 {offsets = [0, 0], sizes = [2, 256], strides = [1, 1]} : vector<2x768xf32> to vector<2x256xf32>
    %146 = vector.extract_strided_slice %144 {offsets = [0, 256], sizes = [2, 256], strides = [1, 1]} : vector<2x768xf32> to vector<2x256xf32>
    %147 = vector.extract_strided_slice %144 {offsets = [0, 512], sizes = [2, 256], strides = [1, 1]} : vector<2x768xf32> to vector<2x256xf32>
    %148 = vector.extract_strided_slice %138 {offsets = [0, 768], sizes = [2, 256], strides = [1, 1]} : vector<2x1024xf32> to vector<2x256xf32>
    %149 = math.tanh %148 : vector<2x256xf32>
    %150 = arith.mulf %146, %111 : vector<2x256xf32>
    %151 = arith.mulf %145, %149 : vector<2x256xf32>
    %152 = arith.addf %150, %151 : vector<2x256xf32>
    %153 = math.tanh %152 : vector<2x256xf32>
    %154 = arith.mulf %147, %153 : vector<2x256xf32>
    %155 = arith.truncf %154 : vector<2x256xf32> to vector<2x256xbf16>
    %156 = vector.extract_strided_slice %10 {offsets = [8, 0], sizes = [2, 1024], strides = [1, 1]} : vector<16x1024xf32> to vector<2x1024xf32>
    %cst_28 = arith.constant dense<0.000000e+00> : vector<2x1024xf32>
    %157 = tpu.matmul %134, %0, %cst_28 {dimension_numbers = #tpu.dot_dimension_numbers<[1], [0], [0], [1], [0, 0, 1, 1], [], []>} : vector<2x256xbf16>, vector<256x1024xbf16>, vector<2x1024xf32> -> vector<2x1024xf32>
    %158 = arith.addf %156, %157 : vector<2x1024xf32>
    %159 = vector.extract_strided_slice %158 {offsets = [0, 0], sizes = [2, 768], strides = [1, 1]} : vector<2x1024xf32> to vector<2x768xf32>
    %160 = arith.negf %159 : vector<2x768xf32>
    %161 = math.exp %160 : vector<2x768xf32>
    %cst_29 = arith.constant 1.000000e+00 : f32
    %162 = vector.broadcast %cst_29 : f32 to vector<2x768xf32>
    %163 = arith.addf %162, %161 : vector<2x768xf32>
    %164 = arith.divf %162, %163 : vector<2x768xf32>
    %165 = vector.extract_strided_slice %164 {offsets = [0, 0], sizes = [2, 256], strides = [1, 1]} : vector<2x768xf32> to vector<2x256xf32>
    %166 = vector.extract_strided_slice %164 {offsets = [0, 256], sizes = [2, 256], strides = [1, 1]} : vector<2x768xf32> to vector<2x256xf32>
    %167 = vector.extract_strided_slice %164 {offsets = [0, 512], sizes = [2, 256], strides = [1, 1]} : vector<2x768xf32> to vector<2x256xf32>
    %168 = vector.extract_strided_slice %158 {offsets = [0, 768], sizes = [2, 256], strides = [1, 1]} : vector<2x1024xf32> to vector<2x256xf32>
    %169 = math.tanh %168 : vector<2x256xf32>
    %170 = arith.mulf %166, %131 : vector<2x256xf32>
    %171 = arith.mulf %165, %169 : vector<2x256xf32>
    %172 = arith.addf %170, %171 : vector<2x256xf32>
    %173 = math.tanh %172 : vector<2x256xf32>
    %174 = arith.mulf %167, %173 : vector<2x256xf32>
    %175 = arith.truncf %174 : vector<2x256xf32> to vector<2x256xbf16>
    %176 = tpu.concatenate %134, %155 in 1 : vector<2x256xbf16>, vector<2x256xbf16> -> vector<2x512xbf16>
    %cst_30 = arith.constant dense<0.000000e+00> : vector<2x1024xf32>
    %177 = tpu.matmul %176, %1, %cst_30 {dimension_numbers = #tpu.dot_dimension_numbers<[1], [0], [0], [1], [0, 0, 1, 1], [], []>} : vector<2x512xbf16>, vector<512x1024xbf16>, vector<2x1024xf32> -> vector<2x1024xf32>
    %178 = vector.broadcast %2 : vector<1x1024xf32> to vector<2x1024xf32>
    %179 = arith.addf %177, %178 : vector<2x1024xf32>
    %180 = vector.extract_strided_slice %179 {offsets = [0, 0], sizes = [2, 768], strides = [1, 1]} : vector<2x1024xf32> to vector<2x768xf32>
    %181 = arith.negf %180 : vector<2x768xf32>
    %182 = math.exp %181 : vector<2x768xf32>
    %cst_31 = arith.constant 1.000000e+00 : f32
    %183 = vector.broadcast %cst_31 : f32 to vector<2x768xf32>
    %184 = arith.addf %183, %182 : vector<2x768xf32>
    %185 = arith.divf %183, %184 : vector<2x768xf32>
    %186 = vector.extract_strided_slice %185 {offsets = [0, 0], sizes = [2, 256], strides = [1, 1]} : vector<2x768xf32> to vector<2x256xf32>
    %187 = vector.extract_strided_slice %185 {offsets = [0, 256], sizes = [2, 256], strides = [1, 1]} : vector<2x768xf32> to vector<2x256xf32>
    %188 = vector.extract_strided_slice %185 {offsets = [0, 512], sizes = [2, 256], strides = [1, 1]} : vector<2x768xf32> to vector<2x256xf32>
    %189 = vector.extract_strided_slice %179 {offsets = [0, 768], sizes = [2, 256], strides = [1, 1]} : vector<2x1024xf32> to vector<2x256xf32>
    %190 = math.tanh %189 : vector<2x256xf32>
    %191 = arith.mulf %187, %152 : vector<2x256xf32>
    %192 = arith.mulf %186, %190 : vector<2x256xf32>
    %193 = arith.addf %191, %192 : vector<2x256xf32>
    %194 = math.tanh %193 : vector<2x256xf32>
    %195 = arith.mulf %188, %194 : vector<2x256xf32>
    %196 = arith.truncf %195 : vector<2x256xf32> to vector<2x256xbf16>
    %197 = vector.extract_strided_slice %10 {offsets = [10, 0], sizes = [2, 1024], strides = [1, 1]} : vector<16x1024xf32> to vector<2x1024xf32>
    %cst_32 = arith.constant dense<0.000000e+00> : vector<2x1024xf32>
    %198 = tpu.matmul %175, %0, %cst_32 {dimension_numbers = #tpu.dot_dimension_numbers<[1], [0], [0], [1], [0, 0, 1, 1], [], []>} : vector<2x256xbf16>, vector<256x1024xbf16>, vector<2x1024xf32> -> vector<2x1024xf32>
    %199 = arith.addf %197, %198 : vector<2x1024xf32>
    %200 = vector.extract_strided_slice %199 {offsets = [0, 0], sizes = [2, 768], strides = [1, 1]} : vector<2x1024xf32> to vector<2x768xf32>
    %201 = arith.negf %200 : vector<2x768xf32>
    %202 = math.exp %201 : vector<2x768xf32>
    %cst_33 = arith.constant 1.000000e+00 : f32
    %203 = vector.broadcast %cst_33 : f32 to vector<2x768xf32>
    %204 = arith.addf %203, %202 : vector<2x768xf32>
    %205 = arith.divf %203, %204 : vector<2x768xf32>
    %206 = vector.extract_strided_slice %205 {offsets = [0, 0], sizes = [2, 256], strides = [1, 1]} : vector<2x768xf32> to vector<2x256xf32>
    %207 = vector.extract_strided_slice %205 {offsets = [0, 256], sizes = [2, 256], strides = [1, 1]} : vector<2x768xf32> to vector<2x256xf32>
    %208 = vector.extract_strided_slice %205 {offsets = [0, 512], sizes = [2, 256], strides = [1, 1]} : vector<2x768xf32> to vector<2x256xf32>
    %209 = vector.extract_strided_slice %199 {offsets = [0, 768], sizes = [2, 256], strides = [1, 1]} : vector<2x1024xf32> to vector<2x256xf32>
    %210 = math.tanh %209 : vector<2x256xf32>
    %211 = arith.mulf %207, %172 : vector<2x256xf32>
    %212 = arith.mulf %206, %210 : vector<2x256xf32>
    %213 = arith.addf %211, %212 : vector<2x256xf32>
    %214 = math.tanh %213 : vector<2x256xf32>
    %215 = arith.mulf %208, %214 : vector<2x256xf32>
    %216 = arith.truncf %215 : vector<2x256xf32> to vector<2x256xbf16>
    %217 = tpu.concatenate %175, %196 in 1 : vector<2x256xbf16>, vector<2x256xbf16> -> vector<2x512xbf16>
    %cst_34 = arith.constant dense<0.000000e+00> : vector<2x1024xf32>
    %218 = tpu.matmul %217, %1, %cst_34 {dimension_numbers = #tpu.dot_dimension_numbers<[1], [0], [0], [1], [0, 0, 1, 1], [], []>} : vector<2x512xbf16>, vector<512x1024xbf16>, vector<2x1024xf32> -> vector<2x1024xf32>
    %219 = vector.broadcast %2 : vector<1x1024xf32> to vector<2x1024xf32>
    %220 = arith.addf %218, %219 : vector<2x1024xf32>
    %221 = vector.extract_strided_slice %220 {offsets = [0, 0], sizes = [2, 768], strides = [1, 1]} : vector<2x1024xf32> to vector<2x768xf32>
    %222 = arith.negf %221 : vector<2x768xf32>
    %223 = math.exp %222 : vector<2x768xf32>
    %cst_35 = arith.constant 1.000000e+00 : f32
    %224 = vector.broadcast %cst_35 : f32 to vector<2x768xf32>
    %225 = arith.addf %224, %223 : vector<2x768xf32>
    %226 = arith.divf %224, %225 : vector<2x768xf32>
    %227 = vector.extract_strided_slice %226 {offsets = [0, 0], sizes = [2, 256], strides = [1, 1]} : vector<2x768xf32> to vector<2x256xf32>
    %228 = vector.extract_strided_slice %226 {offsets = [0, 256], sizes = [2, 256], strides = [1, 1]} : vector<2x768xf32> to vector<2x256xf32>
    %229 = vector.extract_strided_slice %226 {offsets = [0, 512], sizes = [2, 256], strides = [1, 1]} : vector<2x768xf32> to vector<2x256xf32>
    %230 = vector.extract_strided_slice %220 {offsets = [0, 768], sizes = [2, 256], strides = [1, 1]} : vector<2x1024xf32> to vector<2x256xf32>
    %231 = math.tanh %230 : vector<2x256xf32>
    %232 = arith.mulf %228, %193 : vector<2x256xf32>
    %233 = arith.mulf %227, %231 : vector<2x256xf32>
    %234 = arith.addf %232, %233 : vector<2x256xf32>
    %235 = math.tanh %234 : vector<2x256xf32>
    %236 = arith.mulf %229, %235 : vector<2x256xf32>
    %237 = arith.truncf %236 : vector<2x256xf32> to vector<2x256xbf16>
    %238 = vector.extract_strided_slice %10 {offsets = [12, 0], sizes = [2, 1024], strides = [1, 1]} : vector<16x1024xf32> to vector<2x1024xf32>
    %cst_36 = arith.constant dense<0.000000e+00> : vector<2x1024xf32>
    %239 = tpu.matmul %216, %0, %cst_36 {dimension_numbers = #tpu.dot_dimension_numbers<[1], [0], [0], [1], [0, 0, 1, 1], [], []>} : vector<2x256xbf16>, vector<256x1024xbf16>, vector<2x1024xf32> -> vector<2x1024xf32>
    %240 = arith.addf %238, %239 : vector<2x1024xf32>
    %241 = vector.extract_strided_slice %240 {offsets = [0, 0], sizes = [2, 768], strides = [1, 1]} : vector<2x1024xf32> to vector<2x768xf32>
    %242 = arith.negf %241 : vector<2x768xf32>
    %243 = math.exp %242 : vector<2x768xf32>
    %cst_37 = arith.constant 1.000000e+00 : f32
    %244 = vector.broadcast %cst_37 : f32 to vector<2x768xf32>
    %245 = arith.addf %244, %243 : vector<2x768xf32>
    %246 = arith.divf %244, %245 : vector<2x768xf32>
    %247 = vector.extract_strided_slice %246 {offsets = [0, 0], sizes = [2, 256], strides = [1, 1]} : vector<2x768xf32> to vector<2x256xf32>
    %248 = vector.extract_strided_slice %246 {offsets = [0, 256], sizes = [2, 256], strides = [1, 1]} : vector<2x768xf32> to vector<2x256xf32>
    %249 = vector.extract_strided_slice %246 {offsets = [0, 512], sizes = [2, 256], strides = [1, 1]} : vector<2x768xf32> to vector<2x256xf32>
    %250 = vector.extract_strided_slice %240 {offsets = [0, 768], sizes = [2, 256], strides = [1, 1]} : vector<2x1024xf32> to vector<2x256xf32>
    %251 = math.tanh %250 : vector<2x256xf32>
    %252 = arith.mulf %248, %213 : vector<2x256xf32>
    %253 = arith.mulf %247, %251 : vector<2x256xf32>
    %254 = arith.addf %252, %253 : vector<2x256xf32>
    %255 = math.tanh %254 : vector<2x256xf32>
    %256 = arith.mulf %249, %255 : vector<2x256xf32>
    %257 = arith.truncf %256 : vector<2x256xf32> to vector<2x256xbf16>
    %258 = tpu.concatenate %216, %237 in 1 : vector<2x256xbf16>, vector<2x256xbf16> -> vector<2x512xbf16>
    %cst_38 = arith.constant dense<0.000000e+00> : vector<2x1024xf32>
    %259 = tpu.matmul %258, %1, %cst_38 {dimension_numbers = #tpu.dot_dimension_numbers<[1], [0], [0], [1], [0, 0, 1, 1], [], []>} : vector<2x512xbf16>, vector<512x1024xbf16>, vector<2x1024xf32> -> vector<2x1024xf32>
    %260 = vector.broadcast %2 : vector<1x1024xf32> to vector<2x1024xf32>
    %261 = arith.addf %259, %260 : vector<2x1024xf32>
    %262 = vector.extract_strided_slice %261 {offsets = [0, 0], sizes = [2, 768], strides = [1, 1]} : vector<2x1024xf32> to vector<2x768xf32>
    %263 = arith.negf %262 : vector<2x768xf32>
    %264 = math.exp %263 : vector<2x768xf32>
    %cst_39 = arith.constant 1.000000e+00 : f32
    %265 = vector.broadcast %cst_39 : f32 to vector<2x768xf32>
    %266 = arith.addf %265, %264 : vector<2x768xf32>
    %267 = arith.divf %265, %266 : vector<2x768xf32>
    %268 = vector.extract_strided_slice %267 {offsets = [0, 0], sizes = [2, 256], strides = [1, 1]} : vector<2x768xf32> to vector<2x256xf32>
    %269 = vector.extract_strided_slice %267 {offsets = [0, 256], sizes = [2, 256], strides = [1, 1]} : vector<2x768xf32> to vector<2x256xf32>
    %270 = vector.extract_strided_slice %267 {offsets = [0, 512], sizes = [2, 256], strides = [1, 1]} : vector<2x768xf32> to vector<2x256xf32>
    %271 = vector.extract_strided_slice %261 {offsets = [0, 768], sizes = [2, 256], strides = [1, 1]} : vector<2x1024xf32> to vector<2x256xf32>
    %272 = math.tanh %271 : vector<2x256xf32>
    %273 = arith.mulf %269, %234 : vector<2x256xf32>
    %274 = arith.mulf %268, %272 : vector<2x256xf32>
    %275 = arith.addf %273, %274 : vector<2x256xf32>
    %276 = math.tanh %275 : vector<2x256xf32>
    %277 = arith.mulf %270, %276 : vector<2x256xf32>
    %278 = arith.truncf %277 : vector<2x256xf32> to vector<2x256xbf16>
    %279 = vector.extract_strided_slice %10 {offsets = [14, 0], sizes = [2, 1024], strides = [1, 1]} : vector<16x1024xf32> to vector<2x1024xf32>
    %cst_40 = arith.constant dense<0.000000e+00> : vector<2x1024xf32>
    %280 = tpu.matmul %257, %0, %cst_40 {dimension_numbers = #tpu.dot_dimension_numbers<[1], [0], [0], [1], [0, 0, 1, 1], [], []>} : vector<2x256xbf16>, vector<256x1024xbf16>, vector<2x1024xf32> -> vector<2x1024xf32>
    %281 = arith.addf %279, %280 : vector<2x1024xf32>
    %282 = vector.extract_strided_slice %281 {offsets = [0, 0], sizes = [2, 768], strides = [1, 1]} : vector<2x1024xf32> to vector<2x768xf32>
    %283 = arith.negf %282 : vector<2x768xf32>
    %284 = math.exp %283 : vector<2x768xf32>
    %cst_41 = arith.constant 1.000000e+00 : f32
    %285 = vector.broadcast %cst_41 : f32 to vector<2x768xf32>
    %286 = arith.addf %285, %284 : vector<2x768xf32>
    %287 = arith.divf %285, %286 : vector<2x768xf32>
    %288 = vector.extract_strided_slice %287 {offsets = [0, 0], sizes = [2, 256], strides = [1, 1]} : vector<2x768xf32> to vector<2x256xf32>
    %289 = vector.extract_strided_slice %287 {offsets = [0, 256], sizes = [2, 256], strides = [1, 1]} : vector<2x768xf32> to vector<2x256xf32>
    %290 = vector.extract_strided_slice %287 {offsets = [0, 512], sizes = [2, 256], strides = [1, 1]} : vector<2x768xf32> to vector<2x256xf32>
    %291 = vector.extract_strided_slice %281 {offsets = [0, 768], sizes = [2, 256], strides = [1, 1]} : vector<2x1024xf32> to vector<2x256xf32>
    %292 = math.tanh %291 : vector<2x256xf32>
    %293 = arith.mulf %289, %254 : vector<2x256xf32>
    %294 = arith.mulf %288, %292 : vector<2x256xf32>
    %295 = arith.addf %293, %294 : vector<2x256xf32>
    %296 = math.tanh %295 : vector<2x256xf32>
    %297 = arith.mulf %290, %296 : vector<2x256xf32>
    %298 = arith.truncf %297 : vector<2x256xf32> to vector<2x256xbf16>
    %299 = tpu.concatenate %257, %278 in 1 : vector<2x256xbf16>, vector<2x256xbf16> -> vector<2x512xbf16>
    %cst_42 = arith.constant dense<0.000000e+00> : vector<2x1024xf32>
    %300 = tpu.matmul %299, %1, %cst_42 {dimension_numbers = #tpu.dot_dimension_numbers<[1], [0], [0], [1], [0, 0, 1, 1], [], []>} : vector<2x512xbf16>, vector<512x1024xbf16>, vector<2x1024xf32> -> vector<2x1024xf32>
    %301 = vector.broadcast %2 : vector<1x1024xf32> to vector<2x1024xf32>
    %302 = arith.addf %300, %301 : vector<2x1024xf32>
    %303 = vector.extract_strided_slice %302 {offsets = [0, 0], sizes = [2, 768], strides = [1, 1]} : vector<2x1024xf32> to vector<2x768xf32>
    %304 = arith.negf %303 : vector<2x768xf32>
    %305 = math.exp %304 : vector<2x768xf32>
    %cst_43 = arith.constant 1.000000e+00 : f32
    %306 = vector.broadcast %cst_43 : f32 to vector<2x768xf32>
    %307 = arith.addf %306, %305 : vector<2x768xf32>
    %308 = arith.divf %306, %307 : vector<2x768xf32>
    %309 = vector.extract_strided_slice %308 {offsets = [0, 0], sizes = [2, 256], strides = [1, 1]} : vector<2x768xf32> to vector<2x256xf32>
    %310 = vector.extract_strided_slice %308 {offsets = [0, 256], sizes = [2, 256], strides = [1, 1]} : vector<2x768xf32> to vector<2x256xf32>
    %311 = vector.extract_strided_slice %308 {offsets = [0, 512], sizes = [2, 256], strides = [1, 1]} : vector<2x768xf32> to vector<2x256xf32>
    %312 = vector.extract_strided_slice %302 {offsets = [0, 768], sizes = [2, 256], strides = [1, 1]} : vector<2x1024xf32> to vector<2x256xf32>
    %313 = math.tanh %312 : vector<2x256xf32>
    %314 = arith.mulf %310, %275 : vector<2x256xf32>
    %315 = arith.mulf %309, %313 : vector<2x256xf32>
    %316 = arith.addf %314, %315 : vector<2x256xf32>
    %317 = math.tanh %316 : vector<2x256xf32>
    %318 = arith.mulf %311, %317 : vector<2x256xf32>
    %319 = arith.truncf %318 : vector<2x256xf32> to vector<2x256xbf16>
    %320 = tpu.concatenate %298, %319 in 1 : vector<2x256xbf16>, vector<2x256xbf16> -> vector<2x512xbf16>
    %cst_44 = arith.constant dense<0.000000e+00> : vector<2x1024xf32>
    %321 = tpu.matmul %320, %1, %cst_44 {dimension_numbers = #tpu.dot_dimension_numbers<[1], [0], [0], [1], [0, 0, 1, 1], [], []>} : vector<2x512xbf16>, vector<512x1024xbf16>, vector<2x1024xf32> -> vector<2x1024xf32>
    %322 = vector.broadcast %2 : vector<1x1024xf32> to vector<2x1024xf32>
    %323 = arith.addf %321, %322 : vector<2x1024xf32>
    %324 = vector.extract_strided_slice %323 {offsets = [0, 0], sizes = [2, 768], strides = [1, 1]} : vector<2x1024xf32> to vector<2x768xf32>
    %325 = arith.negf %324 : vector<2x768xf32>
    %326 = math.exp %325 : vector<2x768xf32>
    %cst_45 = arith.constant 1.000000e+00 : f32
    %327 = vector.broadcast %cst_45 : f32 to vector<2x768xf32>
    %328 = arith.addf %327, %326 : vector<2x768xf32>
    %329 = arith.divf %327, %328 : vector<2x768xf32>
    %330 = vector.extract_strided_slice %329 {offsets = [0, 0], sizes = [2, 256], strides = [1, 1]} : vector<2x768xf32> to vector<2x256xf32>
    %331 = vector.extract_strided_slice %329 {offsets = [0, 256], sizes = [2, 256], strides = [1, 1]} : vector<2x768xf32> to vector<2x256xf32>
    %332 = vector.extract_strided_slice %329 {offsets = [0, 512], sizes = [2, 256], strides = [1, 1]} : vector<2x768xf32> to vector<2x256xf32>
    %333 = vector.extract_strided_slice %323 {offsets = [0, 768], sizes = [2, 256], strides = [1, 1]} : vector<2x1024xf32> to vector<2x256xf32>
    %334 = math.tanh %333 : vector<2x256xf32>
    %335 = arith.mulf %331, %316 : vector<2x256xf32>
    %336 = arith.mulf %330, %334 : vector<2x256xf32>
    %337 = arith.addf %335, %336 : vector<2x256xf32>
    %338 = math.tanh %337 : vector<2x256xf32>
    %339 = arith.mulf %332, %338 : vector<2x256xf32>
    %340 = arith.truncf %339 : vector<2x256xf32> to vector<2x256xbf16>
    %c0_46 = arith.constant 0 : index
    %c0_47 = arith.constant 0 : index
    %341 = vector.load %arg7[%c0_46, %c0_47] : memref<256x128xbf16, #tpu.memory_space<vmem>>, vector<256x128xbf16>
    %cst_48 = arith.constant dense<0.000000e+00> : vector<2x128xf32>
    %342 = tpu.matmul %340, %341, %cst_48 {dimension_numbers = #tpu.dot_dimension_numbers<[1], [0], [0], [1], [0, 0, 1, 1], [], []>} : vector<2x256xbf16>, vector<256x128xbf16>, vector<2x128xf32> -> vector<2x128xf32>
    %c0_49 = arith.constant 0 : index
    %c0_50 = arith.constant 0 : index
    %343 = vector.load %arg8[%c0_49, %c0_50] : memref<1x128xf32, #tpu.memory_space<vmem>>, vector<1x128xf32>
    %344 = vector.broadcast %343 : vector<1x128xf32> to vector<2x128xf32>
    %345 = arith.addf %342, %344 : vector<2x128xf32>
    %c0_51 = arith.constant 0 : index
    %c0_52 = arith.constant 0 : index
    %c0_53 = arith.constant 0 : index
    %346 = vector.load %arg9[%c0_51, %c0_52, %c0_53] : memref<1x2x128xf32, #tpu.memory_space<vmem>>, vector<1x2x128xf32>
    %347 = vector.shape_cast %346 : vector<1x2x128xf32> to vector<2x128xf32>
    %348 = vector.shape_cast %345 : vector<2x128xf32> to vector<1x2x128xf32>
    tpu.vector_store %arg9[%c0_51, %c0_52, %c0_53], %348 {strides = array<i32>} : memref<1x2x128xf32, #tpu.memory_space<vmem>>, vector<1x2x128xf32>,
    return
  }
  func.func @transform_0(%arg0: i32) -> (i32, i32, i32) {
    %c0_i32 = arith.constant 0 : i32
    %c0_i32_0 = arith.constant 0 : i32
    %c0_i32_1 = arith.constant 0 : i32
    return %arg0, %c0_i32, %c0_i32_0 : i32, i32, i32
  }
  func.func @transform_1(%arg0: i32) -> (i32, i32) {
    %c0_i32 = arith.constant 0 : i32
    %c0_i32_0 = arith.constant 0 : i32
    %c0_i32_1 = arith.constant 0 : i32
    return %c0_i32, %c0_i32_0 : i32, i32
  }
  func.func @transform_2(%arg0: i32) -> (i32, i32) {
    %c0_i32 = arith.constant 0 : i32
    %c0_i32_0 = arith.constant 0 : i32
    %c0_i32_1 = arith.constant 0 : i32
    return %c0_i32, %c0_i32_0 : i32, i32
  }
  func.func @transform_3(%arg0: i32) -> (i32, i32) {
    %c0_i32 = arith.constant 0 : i32
    %c0_i32_0 = arith.constant 0 : i32
    %c0_i32_1 = arith.constant 0 : i32
    return %c0_i32, %c0_i32_0 : i32, i32
  }
  func.func @transform_4(%arg0: i32) -> (i32, i32) {
    %c0_i32 = arith.constant 0 : i32
    %c0_i32_0 = arith.constant 0 : i32
    %c0_i32_1 = arith.constant 0 : i32
    return %c0_i32, %c0_i32_0 : i32, i32
  }
  func.func @transform_5(%arg0: i32) -> (i32, i32) {
    %c0_i32 = arith.constant 0 : i32
    %c0_i32_0 = arith.constant 0 : i32
    %c0_i32_1 = arith.constant 0 : i32
    return %c0_i32, %c0_i32_0 : i32, i32
  }
  func.func @transform_6(%arg0: i32) -> (i32, i32) {
    %c0_i32 = arith.constant 0 : i32
    %c0_i32_0 = arith.constant 0 : i32
    %c0_i32_1 = arith.constant 0 : i32
    return %c0_i32, %c0_i32_0 : i32, i32
  }
  func.func @transform_7(%arg0: i32) -> (i32, i32) {
    %c0_i32 = arith.constant 0 : i32
    %c0_i32_0 = arith.constant 0 : i32
    %c0_i32_1 = arith.constant 0 : i32
    return %c0_i32, %c0_i32_0 : i32, i32
  }
  func.func @transform_8(%arg0: i32) -> (i32, i32, i32) {
    %c0_i32 = arith.constant 0 : i32
    %c0_i32_0 = arith.constant 0 : i32
    %c0_i32_1 = arith.constant 0 : i32
    return %arg0, %c0_i32, %c0_i32_0 : i32, i32, i32
  }
}

</mosaic_0001>

<llo_original>
// kernel: tpu_custom_call.1
$region0: #{tpu_custom_call.1}
  #allocation0 [shape = 'u32[]', space=smem, size = 0x4, offset = 0x4, fixed_abs, tag = 'smem constant byte address 0x4 - core index']
  #allocation1 [shape = 'u32[144,128]{1,0:T(1,128)}', space=vmem, size = 0x12000, scoped, tag = 'internal scratch']
  %s0 = inlined_call_operand.hbm [shape: f32[1,16,64], index: 0, kind: input, shape index: {}]
  %s1 = inlined_call_operand.hbm [shape: bf16[64,1024], index: 1, kind: input, shape index: {}]
  %s2 = inlined_call_operand.hbm [shape: bf16[256,1024], index: 2, kind: input, shape index: {}]
  %s3 = inlined_call_operand.vmem [shape: f32[1,1024], index: 3, kind: input, shape index: {}]
  %s4 = inlined_call_operand.hbm [shape: bf16[512,1024], index: 4, kind: input, shape index: {}]
  %s5 = inlined_call_operand.vmem [shape: f32[1,1024], index: 5, kind: input, shape index: {}]
  %s6 = inlined_call_operand.hbm [shape: bf16[256,128], index: 6, kind: input, shape index: {}]
  %s7 = inlined_call_operand.vmem [shape: f32[1,128], index: 7, kind: input, shape index: {}]
  %s8 = inlined_call_operand.hbm [shape: f32[1,2,128], index: 8, kind: output, shape index: {}]
  %s9 = sld [smem:[#allocation0]]
  $region62: #{tpu_custom_call.1} parent=0
    _
  %s11 = ssub.s32 1, %s9
  %s12 = scalar_select 0, %s11, %s9
  $region1: #{tpu_custom_call.1} parent=0
    #allocation2 [shape = 'u8[8192]{0}', space=vmem, size = 0x2000, scoped, tag = 'input window, operand 0, single buffered']
    #allocation3 [shape = 's32[1]{0}', space=sflag, size = 0x4, scoped, tag = 'scoped memory for tpu_custom_call.1']
    #allocation4 [shape = 's32[1]{0}', space=sflag, size = 0x4, scoped, tag = 'scoped memory for tpu_custom_call.1']
    #allocation5 [shape = 'u8[131072]{0}', space=vmem, size = 0x20000, scoped, tag = 'input window, operand 1, single buffered']
    #allocation6 [shape = 's32[1]{0}', space=sflag, size = 0x4, scoped, tag = 'scoped memory for tpu_custom_call.1']
    #allocation7 [shape = 'u8[524288]{0}', space=vmem, size = 0x80000, scoped, tag = 'input window, operand 2, single buffered']
    #allocation8 [shape = 'u8[1048576]{0}', space=vmem, size = 0x100000, scoped, tag = 'input window, operand 4, single buffered']
    #allocation9 [shape = 's32[1]{0}', space=sflag, size = 0x4, scoped, tag = 'scoped memory for tpu_custom_call.1']
    #allocation10 [shape = 'u8[65536]{0}', space=vmem, size = 0x10000, scoped, tag = 'input window, operand 6, single buffered']
    #allocation11 [shape = 'u8[1024]{0}', space=vmem, size = 0x400, scoped, tag = 'output window, operand 0, single buffered']
    %13 = vsyncpa [#allocation3], 0
    %14 = vsyncpa [#allocation6], 0
    %15 = vsyncpa [#allocation9], 0
    %16 = vsyncpa [#allocation4], 0
    // Predicated region
    $region2: #{tpu_custom_call.1} parent=1 // pred_check
      _
    $region3: #{tpu_custom_call.1} parent=1 // pred_check_branch
      %18 = sbr.rel (0) target = $region5
    $region4: #{tpu_custom_call.1} parent=1 // pred_region
      %s20 = ssub.s32 256, 256
      %21 = vsyncadd [#allocation3], %s20
      %s22 = sshll.u32 [#allocation2], 4
      %s23 = int_to_ptr.vmem [resolvable:$true] %s22
      %28 = dma.hbm_to_vmem [thread:$0]  %s0, 256, %s23, [#allocation3], 128, 128, 8
    $region5: #{tpu_custom_call.1} parent=1 // pred_fallthru
      _
    // Predicated region
    $region6: #{tpu_custom_call.1} parent=1 // pred_check
      _
    $region7: #{tpu_custom_call.1} parent=1 // pred_check_branch
      %30 = sbr.rel (0) target = $region9
    $region8: #{tpu_custom_call.1} parent=1 // pred_region
      %s32 = ssub.s32 4096, 4096
      %33 = vsyncadd [#allocation6], %s32
      %s34 = sshll.u32 [#allocation5], 4
      %s35 = int_to_ptr.vmem [resolvable:$true] %s34
      %40 = dma.hbm_to_vmem [thread:$0]  %s1, 4096, %s35, [#allocation6], 512, 512, 32
    $region9: #{tpu_custom_call.1} parent=1 // pred_fallthru
      _
    // Predicated region
    $region10: #{tpu_custom_call.1} parent=1 // pred_check
      _
    $region11: #{tpu_custom_call.1} parent=1 // pred_check_branch
      %42 = sbr.rel (0) target = $region13
    $region12: #{tpu_custom_call.1} parent=1 // pred_region
      %s44 = ssub.s32 16384, 16384
      %45 = vsyncadd [#allocation6], %s44
      %s46 = sshll.u32 [#allocation7], 4
      %s47 = int_to_ptr.vmem [resolvable:$true] %s46
      %52 = dma.hbm_to_vmem [thread:$0]  %s2, 16384, %s47, [#allocation6], 512, 512, 32
    $region13: #{tpu_custom_call.1} parent=1 // pred_fallthru
      _
    // Predicated region
    $region14: #{tpu_custom_call.1} parent=1 // pred_check
      _
    $region15: #{tpu_custom_call.1} parent=1 // pred_check_branch
      %54 = sbr.rel (0) target = $region17
    $region16: #{tpu_custom_call.1} parent=1 // pred_region
      _
    $region17: #{tpu_custom_call.1} parent=1 // pred_fallthru
      _
    // Predicated region
    $region18: #{tpu_custom_call.1} parent=1 // pred_check
      _
    $region19: #{tpu_custom_call.1} parent=1 // pred_check_branch
      %56 = sbr.rel (0) target = $region21
    $region20: #{tpu_custom_call.1} parent=1 // pred_region
      %s58 = ssub.s32 32768, 32768
      %59 = vsyncadd [#allocation9], %s58
      %s60 = sshll.u32 [#allocation8], 4
      %s61 = int_to_ptr.vmem [resolvable:$true] %s60
      %66 = dma.hbm_to_vmem [thread:$0]  %s4, 32768, %s61, [#allocation9], 512, 512, 32
    $region21: #{tpu_custom_call.1} parent=1 // pred_fallthru
      _
    // Predicated region
    $region22: #{tpu_custom_call.1} parent=1 // pred_check
      _
    $region23: #{tpu_custom_call.1} parent=1 // pred_check_branch
      %68 = sbr.rel (0) target = $region25
    $region24: #{tpu_custom_call.1} parent=1 // pred_region
      _
    $region25: #{tpu_custom_call.1} parent=1 // pred_fallthru
      _
    // Predicated region
    $region26: #{tpu_custom_call.1} parent=1 // pred_check
      _
    $region27: #{tpu_custom_call.1} parent=1 // pred_check_branch
      %70 = sbr.rel (0) target = $region29
    $region28: #{tpu_custom_call.1} parent=1 // pred_region
      %s72 = ssub.s32 2048, 2048
      %73 = vsyncadd [#allocation9], %s72
      %s74 = sshll.u32 [#allocation10], 4
      %s75 = int_to_ptr.vmem [resolvable:$true] %s74
      %80 = dma.hbm_to_vmem [thread:$0]  %s6, 2048, %s75, [#allocation9], 64, 64, 4
    $region29: #{tpu_custom_call.1} parent=1 // pred_fallthru
      _
    // Predicated region
    $region30: #{tpu_custom_call.1} parent=1 // pred_check
      _
    $region31: #{tpu_custom_call.1} parent=1 // pred_check_branch
      %82 = sbr.rel (0) target = $region33
    $region32: #{tpu_custom_call.1} parent=1 // pred_region
      _
    $region33: #{tpu_custom_call.1} parent=1 // pred_fallthru
      _
    // Predicated region
    $region34: #{tpu_custom_call.1} parent=1 // pred_check
      _
    $region35: #{tpu_custom_call.1} parent=1 // pred_check_branch
      %84 = sbr.rel (0) target = $region37
    $region36: #{tpu_custom_call.1} parent=1 // pred_region
      %85 = dma.done [#allocation3], 256
    $region37: #{tpu_custom_call.1} parent=1 // pred_fallthru
      _
    // Predicated region
    $region38: #{tpu_custom_call.1} parent=1 // pred_check
      _
    $region39: #{tpu_custom_call.1} parent=1 // pred_check_branch
      %87 = sbr.rel (0) target = $region41
    $region40: #{tpu_custom_call.1} parent=1 // pred_region
      %88 = dma.done [#allocation6], 4096
    $region41: #{tpu_custom_call.1} parent=1 // pred_fallthru
      _
    // Predicated region
    $region42: #{tpu_custom_call.1} parent=1 // pred_check
      _
    $region43: #{tpu_custom_call.1} parent=1 // pred_check_branch
      %90 = sbr.rel (0) target = $region45
    $region44: #{tpu_custom_call.1} parent=1 // pred_region
      %91 = dma.done [#allocation6], 16384
    $region45: #{tpu_custom_call.1} parent=1 // pred_fallthru
      _
    // Predicated region
    $region46: #{tpu_custom_call.1} parent=1 // pred_check
      _
    $region47: #{tpu_custom_call.1} parent=1 // pred_check_branch
      %93 = sbr.rel (0) target = $region49
    $region48: #{tpu_custom_call.1} parent=1 // pred_region
      %94 = dma.done [#allocation9], 32768
    $region49: #{tpu_custom_call.1} parent=1 // pred_fallthru
      _
    // Predicated region
    $region50: #{tpu_custom_call.1} parent=1 // pred_check
      _
    $region51: #{tpu_custom_call.1} parent=1 // pred_check_branch
      %96 = sbr.rel (0) target = $region53
    $region52: #{tpu_custom_call.1} parent=1 // pred_region
      %97 = dma.done [#allocation9], 2048
    $region53: #{tpu_custom_call.1} parent=1 // pred_fallthru
      _
    %v99 = vld [vmem:[#allocation7] sm:$0xff]
    %v100 = vld [vmem:[#allocation7 + $0x8] sm:$0xff]
    %v101 = vld [vmem:[#allocation7 + $0x10] sm:$0xff]
    %v102 = vld [vmem:[#allocation7 + $0x18] sm:$0xff]
    %v103 = vld [vmem:[#allocation7 + $0x20] sm:$0xff]
    %v104 = vld [vmem:[#allocation7 + $0x28] sm:$0xff]
    %v105 = vld [vmem:[#allocation7 + $0x30] sm:$0xff]
    %v106 = vld [vmem:[#allocation7 + $0x38] sm:$0xff]
    %v107 = vld [vmem:[#allocation7 + $0x40] sm:$0xff]
    %v108 = vld [vmem:[#allocation7 + $0x48] sm:$0xff]
    %v109 = vld [vmem:[#allocation7 + $0x50] sm:$0xff]
    %v110 = vld [vmem:[#allocation7 + $0x58] sm:$0xff]
    %v111 = vld [vmem:[#allocation7 + $0x60] sm:$0xff]
    %v112 = vld [vmem:[#allocation7 + $0x68] sm:$0xff]
    %v113 = vld [vmem:[#allocation7 + $0x70] sm:$0xff]
    %v114 = vld [vmem:[#allocation7 + $0x78] sm:$0xff]
    %v115 = vld [vmem:[#allocation7 + $0x80] sm:$0xff]
    %v116 = vld [vmem:[#allocation7 + $0x88] sm:$0xff]
    %v117 = vld [vmem:[#allocation7 + $0x90] sm:$0xff]
    %v118 = vld [vmem:[#allocation7 + $0x98] sm:$0xff]
    %v119 = vld [vmem:[#allocation7 + $0xa0] sm:$0xff]
    %v120 = vld [vmem:[#allocation7 + $0xa8] sm:$0xff]
    %v121 = vld [vmem:[#allocation7 + $0xb0] sm:$0xff]
    %v122 = vld [vmem:[#allocation7 + $0xb8] sm:$0xff]
    %v123 = vld [vmem:[#allocation7 + $0xc0] sm:$0xff]
    %v124 = vld [vmem:[#allocation7 + $0xc8] sm:$0xff]
    %v125 = vld [vmem:[#allocation7 + $0xd0] sm:$0xff]
    %v126 = vld [vmem:[#allocation7 + $0xd8] sm:$0xff]
    %v127 = vld [vmem:[#allocation7 + $0xe0] sm:$0xff]
    %v128 = vld [vmem:[#allocation7 + $0xe8] sm:$0xff]
    %v129 = vld [vmem:[#allocation7 + $0xf0] sm:$0xff]
    %v130 = vld [vmem:[#allocation7 + $0xf8] sm:$0xff]
    %v131 = vld [vmem:[#allocation7 + $0x100] sm:$0xff]
    %v132 = vld [vmem:[#allocation7 + $0x108] sm:$0xff]
    %v133 = vld [vmem:[#allocation7 + $0x110] sm:$0xff]
    %v134 = vld [vmem:[#allocation7 + $0x118] sm:$0xff]
    %v135 = vld [vmem:[#allocation7 + $0x120] sm:$0xff]
    %v136 = vld [vmem:[#allocation7 + $0x128] sm:$0xff]
    %v137 = vld [vmem:[#allocation7 + $0x130] sm:$0xff]
    %v138 = vld [vmem:[#allocation7 + $0x138] sm:$0xff]
    %v139 = vld [vmem:[#allocation7 + $0x140] sm:$0xff]
    %v140 = vld [vmem:[#allocation7 + $0x148] sm:$0xff]
    %v141 = vld [vmem:[#allocation7 + $0x150] sm:$0xff]
    %v142 = vld [vmem:[#allocation7 + $0x158] sm:$0xff]
    %v143 = vld [vmem:[#allocation7 + $0x160] sm:$0xff]
    %v144 = vld [vmem:[#allocation7 + $0x168] sm:$0xff]
    %v145 = vld [vmem:[#allocation7 + $0x170] sm:$0xff]
    %v146 = vld [vmem:[#allocation7 + $0x178] sm:$0xff]
    %v147 = vld [vmem:[#allocation7 + $0x180] sm:$0xff]
    %v148 = vld [vmem:[#allocation7 + $0x188] sm:$0xff]
    %v149 = vld [vmem:[#allocation7 + $0x190] sm:$0xff]
    %v150 = vld [vmem:[#allocation7 + $0x198] sm:$0xff]
    %v151 = vld [vmem:[#allocation7 + $0x1a0] sm:$0xff]
    %v152 = vld [vmem:[#allocation7 + $0x1a8] sm:$0xff]
    %v153 = vld [vmem:[#allocation7 + $0x1b0] sm:$0xff]
    %v154 = vld [vmem:[#allocation7 + $0x1b8] sm:$0xff]
    %v155 = vld [vmem:[#allocation7 + $0x1c0] sm:$0xff]
    %v156 = vld [vmem:[#allocation7 + $0x1c8] sm:$0xff]
    %v157 = vld [vmem:[#allocation7 + $0x1d0] sm:$0xff]
    %v158 = vld [vmem:[#allocation7 + $0x1d8] sm:$0xff]
    %v159 = vld [vmem:[#allocation7 + $0x1e0] sm:$0xff]
    %v160 = vld [vmem:[#allocation7 + $0x1e8] sm:$0xff]
    %v161 = vld [vmem:[#allocation7 + $0x1f0] sm:$0xff]
    %v162 = vld [vmem:[#allocation7 + $0x1f8] sm:$0xff]
    %v163 = vld [vmem:[#allocation7 + $0x200] sm:$0xff]
    %v164 = vld [vmem:[#allocation7 + $0x208] sm:$0xff]
    %v165 = vld [vmem:[#allocation7 + $0x210] sm:$0xff]
    %v166 = vld [vmem:[#allocation7 + $0x218] sm:$0xff]
    %v167 = vld [vmem:[#allocation7 + $0x220] sm:$0xff]
    %v168 = vld [vmem:[#allocation7 + $0x228] sm:$0xff]
    %v169 = vld [vmem:[#allocation7 + $0x230] sm:$0xff]
    %v170 = vld [vmem:[#allocation7 + $0x238] sm:$0xff]
    %v171 = vld [vmem:[#allocation7 + $0x240] sm:$0xff]
    %v172 = vld [vmem:[#allocation7 + $0x248] sm:$0xff]
    %v173 = vld [vmem:[#allocation7 + $0x250] sm:$0xff]
    %v174 = vld [vmem:[#allocation7 + $0x258] sm:$0xff]
    %v175 = vld [vmem:[#allocation7 + $0x260] sm:$0xff]
    %v176 = vld [vmem:[#allocation7 + $0x268] sm:$0xff]
    %v177 = vld [vmem:[#allocation7 + $0x270] sm:$0xff]
    %v178 = vld [vmem:[#allocation7 + $0x278] sm:$0xff]
    %v179 = vld [vmem:[#allocation7 + $0x280] sm:$0xff]
    %v180 = vld [vmem:[#allocation7 + $0x288] sm:$0xff]
    %v181 = vld [vmem:[#allocation7 + $0x290] sm:$0xff]
    %v182 = vld [vmem:[#allocation7 + $0x298] sm:$0xff]
    %v183 = vld [vmem:[#allocation7 + $0x2a0] sm:$0xff]
    %v184 = vld [vmem:[#allocation7 + $0x2a8] sm:$0xff]
    %v185 = vld [vmem:[#allocation7 + $0x2b0] sm:$0xff]
    %v186 = vld [vmem:[#allocation7 + $0x2b8] sm:$0xff]
    %v187 = vld [vmem:[#allocation7 + $0x2c0] sm:$0xff]
    %v188 = vld [vmem:[#allocation7 + $0x2c8] sm:$0xff]
    %v189 = vld [vmem:[#allocation7 + $0x2d0] sm:$0xff]
    %v190 = vld [vmem:[#allocation7 + $0x2d8] sm:$0xff]
    %v191 = vld [vmem:[#allocation7 + $0x2e0] sm:$0xff]
    %v192 = vld [vmem:[#allocation7 + $0x2e8] sm:$0xff]
    %v193 = vld [vmem:[#allocation7 + $0x2f0] sm:$0xff]
    %v194 = vld [vmem:[#allocation7 + $0x2f8] sm:$0xff]
    %v195 = vld [vmem:[#allocation7 + $0x300] sm:$0xff]
    %v196 = vld [vmem:[#allocation7 + $0x308] sm:$0xff]
    %v197 = vld [vmem:[#allocation7 + $0x310] sm:$0xff]
    %v198 = vld [vmem:[#allocation7 + $0x318] sm:$0xff]
    %v199 = vld [vmem:[#allocation7 + $0x320] sm:$0xff]
    %v200 = vld [vmem:[#allocation7 + $0x328] sm:$0xff]
    %v201 = vld [vmem:[#allocation7 + $0x330] sm:$0xff]
    %v202 = vld [vmem:[#allocation7 + $0x338] sm:$0xff]
    %v203 = vld [vmem:[#allocation7 + $0x340] sm:$0xff]
    %v204 = vld [vmem:[#allocation7 + $0x348] sm:$0xff]
    %v205 = vld [vmem:[#allocation7 + $0x350] sm:$0xff]
    %v206 = vld [vmem:[#allocation7 + $0x358] sm:$0xff]
    %v207 = vld [vmem:[#allocation7 + $0x360] sm:$0xff]
    %v208 = vld [vmem:[#allocation7 + $0x368] sm:$0xff]
    %v209 = vld [vmem:[#allocation7 + $0x370] sm:$0xff]
    %v210 = vld [vmem:[#allocation7 + $0x378] sm:$0xff]
    %v211 = vld [vmem:[#allocation7 + $0x380] sm:$0xff]
    %v212 = vld [vmem:[#allocation7 + $0x388] sm:$0xff]
    %v213 = vld [vmem:[#allocation7 + $0x390] sm:$0xff]
    %v214 = vld [vmem:[#allocation7 + $0x398] sm:$0xff]
    %v215 = vld [vmem:[#allocation7 + $0x3a0] sm:$0xff]
    %v216 = vld [vmem:[#allocation7 + $0x3a8] sm:$0xff]
    %v217 = vld [vmem:[#allocation7 + $0x3b0] sm:$0xff]
    %v218 = vld [vmem:[#allocation7 + $0x3b8] sm:$0xff]
    %v219 = vld [vmem:[#allocation7 + $0x3c0] sm:$0xff]
    %v220 = vld [vmem:[#allocation7 + $0x3c8] sm:$0xff]
    %v221 = vld [vmem:[#allocation7 + $0x3d0] sm:$0xff]
    %v222 = vld [vmem:[#allocation7 + $0x3d8] sm:$0xff]
    %v223 = vld [vmem:[#allocation7 + $0x3e0] sm:$0xff]
    %v224 = vld [vmem:[#allocation7 + $0x3e8] sm:$0xff]
    %v225 = vld [vmem:[#allocation7 + $0x3f0] sm:$0xff]
    %v226 = vld [vmem:[#allocation7 + $0x3f8] sm:$0xff]
    %v227 = vld [vmem:[#allocation8] sm:$0xff]
    %v228 = vld [vmem:[#allocation8 + $0x8] sm:$0xff]
    %v229 = vld [vmem:[#allocation8 + $0x10] sm:$0xff]
    %v230 = vld [vmem:[#allocation8 + $0x18] sm:$0xff]
    %v231 = vld [vmem:[#allocation8 + $0x20] sm:$0xff]
    %v232 = vld [vmem:[#allocation8 + $0x28] sm:$0xff]
    %v233 = vld [vmem:[#allocation8 + $0x30] sm:$0xff]
    %v234 = vld [vmem:[#allocation8 + $0x38] sm:$0xff]
    %v235 = vld [vmem:[#allocation8 + $0x40] sm:$0xff]
    %v236 = vld [vmem:[#allocation8 + $0x48] sm:$0xff]
    %v237 = vld [vmem:[#allocation8 + $0x50] sm:$0xff]
    %v238 = vld [vmem:[#allocation8 + $0x58] sm:$0xff]
    %v239 = vld [vmem:[#allocation8 + $0x60] sm:$0xff]
    %v240 = vld [vmem:[#allocation8 + $0x68] sm:$0xff]
    %v241 = vld [vmem:[#allocation8 + $0x70] sm:$0xff]
    %v242 = vld [vmem:[#allocation8 + $0x78] sm:$0xff]
    %v243 = vld [vmem:[#allocation8 + $0x80] sm:$0xff]
    %v244 = vld [vmem:[#allocation8 + $0x88] sm:$0xff]
    %v245 = vld [vmem:[#allocation8 + $0x90] sm:$0xff]
    %v246 = vld [vmem:[#allocation8 + $0x98] sm:$0xff]
    %v247 = vld [vmem:[#allocation8 + $0xa0] sm:$0xff]
    %v248 = vld [vmem:[#allocation8 + $0xa8] sm:$0xff]
    %v249 = vld [vmem:[#allocation8 + $0xb0] sm:$0xff]
    %v250 = vld [vmem:[#allocation8 + $0xb8] sm:$0xff]
    %v251 = vld [vmem:[#allocation8 + $0xc0] sm:$0xff]
    %v252 = vld [vmem:[#allocation8 + $0xc8] sm:$0xff]
    %v253 = vld [vmem:[#allocation8 + $0xd0] sm:$0xff]
    %v254 = vld [vmem:[#allocation8 + $0xd8] sm:$0xff]
    %v255 = vld [vmem:[#allocation8 + $0xe0] sm:$0xff]
    %v256 = vld [vmem:[#allocation8 + $0xe8] sm:$0xff]
    %v257 = vld [vmem:[#allocation8 + $0xf0] sm:$0xff]
    %v258 = vld [vmem:[#allocation8 + $0xf8] sm:$0xff]
    %v259 = vld [vmem:[#allocation8 + $0x100] sm:$0xff]
    %v260 = vld [vmem:[#allocation8 + $0x108] sm:$0xff]
    %v261 = vld [vmem:[#allocation8 + $0x110] sm:$0xff]
    %v262 = vld [vmem:[#allocation8 + $0x118] sm:$0xff]
    %v263 = vld [vmem:[#allocation8 + $0x120] sm:$0xff]
    %v264 = vld [vmem:[#allocation8 + $0x128] sm:$0xff]
    %v265 = vld [vmem:[#allocation8 + $0x130] sm:$0xff]
    %v266 = vld [vmem:[#allocation8 + $0x138] sm:$0xff]
    %v267 = vld [vmem:[#allocation8 + $0x140] sm:$0xff]
    %v268 = vld [vmem:[#allocation8 + $0x148] sm:$0xff]
    %v269 = vld [vmem:[#allocation8 + $0x150] sm:$0xff]
    %v270 = vld [vmem:[#allocation8 + $0x158] sm:$0xff]
    %v271 = vld [vmem:[#allocation8 + $0x160] sm:$0xff]
    %v272 = vld [vmem:[#allocation8 + $0x168] sm:$0xff]
    %v273 = vld [vmem:[#allocation8 + $0x170] sm:$0xff]
    %v274 = vld [vmem:[#allocation8 + $0x178] sm:$0xff]
    %v275 = vld [vmem:[#allocation8 + $0x180] sm:$0xff]
    %v276 = vld [vmem:[#allocation8 + $0x188] sm:$0xff]
    %v277 = vld [vmem:[#allocation8 + $0x190] sm:$0xff]
    %v278 = vld [vmem:[#allocation8 + $0x198] sm:$0xff]
    %v279 = vld [vmem:[#allocation8 + $0x1a0] sm:$0xff]
    %v280 = vld [vmem:[#allocation8 + $0x1a8] sm:$0xff]
    %v281 = vld [vmem:[#allocation8 + $0x1b0] sm:$0xff]
    %v282 = vld [vmem:[#allocation8 + $0x1b8] sm:$0xff]
    %v283 = vld [vmem:[#allocation8 + $0x1c0] sm:$0xff]
    %v284 = vld [vmem:[#allocation8 + $0x1c8] sm:$0xff]
    %v285 = vld [vmem:[#allocation8 + $0x1d0] sm:$0xff]
    %v286 = vld [vmem:[#allocation8 + $0x1d8] sm:$0xff]
    %v287 = vld [vmem:[#allocation8 + $0x1e0] sm:$0xff]
    %v288 = vld [vmem:[#allocation8 + $0x1e8] sm:$0xff]
    %v289 = vld [vmem:[#allocation8 + $0x1f0] sm:$0xff]
    %v290 = vld [vmem:[#allocation8 + $0x1f8] sm:$0xff]
    %v291 = vld [vmem:[#allocation8 + $0x200] sm:$0xff]
    %v292 = vld [vmem:[#allocation8 + $0x208] sm:$0xff]
    %v293 = vld [vmem:[#allocation8 + $0x210] sm:$0xff]
    %v294 = vld [vmem:[#allocation8 + $0x218] sm:$0xff]
    %v295 = vld [vmem:[#allocation8 + $0x220] sm:$0xff]
    %v296 = vld [vmem:[#allocation8 + $0x228] sm:$0xff]
    %v297 = vld [vmem:[#allocation8 + $0x230] sm:$0xff]
    %v298 = vld [vmem:[#allocation8 + $0x238] sm:$0xff]
    %v299 = vld [vmem:[#allocation8 + $0x240] sm:$0xff]
    %v300 = vld [vmem:[#allocation8 + $0x248] sm:$0xff]
    %v301 = vld [vmem:[#allocation8 + $0x250] sm:$0xff]
    %v302 = vld [vmem:[#allocation8 + $0x258] sm:$0xff]
    %v303 = vld [vmem:[#allocation8 + $0x260] sm:$0xff]
    %v304 = vld [vmem:[#allocation8 + $0x268] sm:$0xff]
    %v305 = vld [vmem:[#allocation8 + $0x270] sm:$0xff]
    %v306 = vld [vmem:[#allocation8 + $0x278] sm:$0xff]
    %v307 = vld [vmem:[#allocation8 + $0x280] sm:$0xff]
    %v308 = vld [vmem:[#allocation8 + $0x288] sm:$0xff]
    %v309 = vld [vmem:[#allocation8 + $0x290] sm:$0xff]
    %v310 = vld [vmem:[#allocation8 + $0x298] sm:$0xff]
    %v311 = vld [vmem:[#allocation8 + $0x2a0] sm:$0xff]
    %v312 = vld [vmem:[#allocation8 + $0x2a8] sm:$0xff]
    %v313 = vld [vmem:[#allocation8 + $0x2b0] sm:$0xff]
    %v314 = vld [vmem:[#allocation8 + $0x2b8] sm:$0xff]
    %v315 = vld [vmem:[#allocation8 + $0x2c0] sm:$0xff]
    %v316 = vld [vmem:[#allocation8 + $0x2c8] sm:$0xff]
    %v317 = vld [vmem:[#allocation8 + $0x2d0] sm:$0xff]
    %v318 = vld [vmem:[#allocation8 + $0x2d8] sm:$0xff]
    %v319 = vld [vmem:[#allocation8 + $0x2e0] sm:$0xff]
    %v320 = vld [vmem:[#allocation8 + $0x2e8] sm:$0xff]
    %v321 = vld [vmem:[#allocation8 + $0x2f0] sm:$0xff]
    %v322 = vld [vmem:[#allocation8 + $0x2f8] sm:$0xff]
    %v323 = vld [vmem:[#allocation8 + $0x300] sm:$0xff]
    %v324 = vld [vmem:[#allocation8 + $0x308] sm:$0xff]
    %v325 = vld [vmem:[#allocation8 + $0x310] sm:$0xff]
    %v326 = vld [vmem:[#allocation8 + $0x318] sm:$0xff]
    %v327 = vld [vmem:[#allocation8 + $0x320] sm:$0xff]
    %v328 = vld [vmem:[#allocation8 + $0x328] sm:$0xff]
    %v329 = vld [vmem:[#allocation8 + $0x330] sm:$0xff]
    %v330 = vld [vmem:[#allocation8 + $0x338] sm:$0xff]
    %v331 = vld [vmem:[#allocation8 + $0x340] sm:$0xff]
    %v332 = vld [vmem:[#allocation8 + $0x348] sm:$0xff]
    %v333 = vld [vmem:[#allocation8 + $0x350] sm:$0xff]
    %v334 = vld [vmem:[#allocation8 + $0x358] sm:$0xff]
    %v335 = vld [vmem:[#allocation8 + $0x360] sm:$0xff]
    %v336 = vld [vmem:[#allocation8 + $0x368] sm:$0xff]
    %v337 = vld [vmem:[#allocation8 + $0x370] sm:$0xff]
    %v338 = vld [vmem:[#allocation8 + $0x378] sm:$0xff]
    %v339 = vld [vmem:[#allocation8 + $0x380] sm:$0xff]
    %v340 = vld [vmem:[#allocation8 + $0x388] sm:$0xff]
    %v341 = vld [vmem:[#allocation8 + $0x390] sm:$0xff]
    %v342 = vld [vmem:[#allocation8 + $0x398] sm:$0xff]
    %v343 = vld [vmem:[#allocation8 + $0x3a0] sm:$0xff]
    %v344 = vld [vmem:[#allocation8 + $0x3a8] sm:$0xff]
    %v345 = vld [vmem:[#allocation8 + $0x3b0] sm:$0xff]
    %v346 = vld [vmem:[#allocation8 + $0x3b8] sm:$0xff]
    %v347 = vld [vmem:[#allocation8 + $0x3c0] sm:$0xff]
    %v348 = vld [vmem:[#allocation8 + $0x3c8] sm:$0xff]
    %v349 = vld [vmem:[#allocation8 + $0x3d0] sm:$0xff]
    %v350 = vld [vmem:[#allocation8 + $0x3d8] sm:$0xff]
    %v351 = vld [vmem:[#allocation8 + $0x3e0] sm:$0xff]
    %v352 = vld [vmem:[#allocation8 + $0x3e8] sm:$0xff]
    %v353 = vld [vmem:[#allocation8 + $0x3f0] sm:$0xff]
    %v354 = vld [vmem:[#allocation8 + $0x3f8] sm:$0xff]
    %v355 = vld [vmem:[#allocation8 + $0x400] sm:$0xff]
    %v356 = vld [vmem:[#allocation8 + $0x408] sm:$0xff]
    %v357 = vld [vmem:[#allocation8 + $0x410] sm:$0xff]
    %v358 = vld [vmem:[#allocation8 + $0x418] sm:$0xff]
    %v359 = vld [vmem:[#allocation8 + $0x420] sm:$0xff]
    %v360 = vld [vmem:[#allocation8 + $0x428] sm:$0xff]
    %v361 = vld [vmem:[#allocation8 + $0x430] sm:$0xff]
    %v362 = vld [vmem:[#allocation8 + $0x438] sm:$0xff]
    %v363 = vld [vmem:[#allocation8 + $0x440] sm:$0xff]
    %v364 = vld [vmem:[#allocation8 + $0x448] sm:$0xff]
    %v365 = vld [vmem:[#allocation8 + $0x450] sm:$0xff]
    %v366 = vld [vmem:[#allocation8 + $0x458] sm:$0xff]
    %v367 = vld [vmem:[#allocation8 + $0x460] sm:$0xff]
    %v368 = vld [vmem:[#allocation8 + $0x468] sm:$0xff]
    %v369 = vld [vmem:[#allocation8 + $0x470] sm:$0xff]
    %v370 = vld [vmem:[#allocation8 + $0x478] sm:$0xff]
    %v371 = vld [vmem:[#allocation8 + $0x480] sm:$0xff]
    %v372 = vld [vmem:[#allocation8 + $0x488] sm:$0xff]
    %v373 = vld [vmem:[#allocation8 + $0x490] sm:$0xff]
    %v374 = vld [vmem:[#allocation8 + $0x498] sm:$0xff]
    %v375 = vld [vmem:[#allocation8 + $0x4a0] sm:$0xff]
    %v376 = vld [vmem:[#allocation8 + $0x4a8] sm:$0xff]
    %v377 = vld [vmem:[#allocation8 + $0x4b0] sm:$0xff]
    %v378 = vld [vmem:[#allocation8 + $0x4b8] sm:$0xff]
    %v379 = vld [vmem:[#allocation8 + $0x4c0] sm:$0xff]
    %v380 = vld [vmem:[#allocation8 + $0x4c8] sm:$0xff]
    %v381 = vld [vmem:[#allocation8 + $0x4d0] sm:$0xff]
    %v382 = vld [vmem:[#allocation8 + $0x4d8] sm:$0xff]
    %v383 = vld [vmem:[#allocation8 + $0x4e0] sm:$0xff]
    %v384 = vld [vmem:[#allocation8 + $0x4e8] sm:$0xff]
    %v385 = vld [vmem:[#allocation8 + $0x4f0] sm:$0xff]
    %v386 = vld [vmem:[#allocation8 + $0x4f8] sm:$0xff]
    %v387 = vld [vmem:[#allocation8 + $0x500] sm:$0xff]
    %v388 = vld [vmem:[#allocation8 + $0x508] sm:$0xff]
    %v389 = vld [vmem:[#allocation8 + $0x510] sm:$0xff]
    %v390 = vld [vmem:[#allocation8 + $0x518] sm:$0xff]
    %v391 = vld [vmem:[#allocation8 + $0x520] sm:$0xff]
    %v392 = vld [vmem:[#allocation8 + $0x528] sm:$0xff]
    %v393 = vld [vmem:[#allocation8 + $0x530] sm:$0xff]
    %v394 = vld [vmem:[#allocation8 + $0x538] sm:$0xff]
    %v395 = vld [vmem:[#allocation8 + $0x540] sm:$0xff]
    %v396 = vld [vmem:[#allocation8 + $0x548] sm:$0xff]
    %v397 = vld [vmem:[#allocation8 + $0x550] sm:$0xff]
    %v398 = vld [vmem:[#allocation8 + $0x558] sm:$0xff]
    %v399 = vld [vmem:[#allocation8 + $0x560] sm:$0xff]
    %v400 = vld [vmem:[#allocation8 + $0x568] sm:$0xff]
    %v401 = vld [vmem:[#allocation8 + $0x570] sm:$0xff]
    %v402 = vld [vmem:[#allocation8 + $0x578] sm:$0xff]
    %v403 = vld [vmem:[#allocation8 + $0x580] sm:$0xff]
    %v404 = vld [vmem:[#allocation8 + $0x588] sm:$0xff]
    %v405 = vld [vmem:[#allocation8 + $0x590] sm:$0xff]
    %v406 = vld [vmem:[#allocation8 + $0x598] sm:$0xff]
    %v407 = vld [vmem:[#allocation8 + $0x5a0] sm:$0xff]
    %v408 = vld [vmem:[#allocation8 + $0x5a8] sm:$0xff]
    %v409 = vld [vmem:[#allocation8 + $0x5b0] sm:$0xff]
    %v410 = vld [vmem:[#allocation8 + $0x5b8] sm:$0xff]
    %v411 = vld [vmem:[#allocation8 + $0x5c0] sm:$0xff]
    %v412 = vld [vmem:[#allocation8 + $0x5c8] sm:$0xff]
    %v413 = vld [vmem:[#allocation8 + $0x5d0] sm:$0xff]
    %v414 = vld [vmem:[#allocation8 + $0x5d8] sm:$0xff]
    %v415 = vld [vmem:[#allocation8 + $0x5e0] sm:$0xff]
    %v416 = vld [vmem:[#allocation8 + $0x5e8] sm:$0xff]
    %v417 = vld [vmem:[#allocation8 + $0x5f0] sm:$0xff]
    %v418 = vld [vmem:[#allocation8 + $0x5f8] sm:$0xff]
    %v419 = vld [vmem:[#allocation8 + $0x600] sm:$0xff]
    %v420 = vld [vmem:[#allocation8 + $0x608] sm:$0xff]
    %v421 = vld [vmem:[#allocation8 + $0x610] sm:$0xff]
    %v422 = vld [vmem:[#allocation8 + $0x618] sm:$0xff]
    %v423 = vld [vmem:[#allocation8 + $0x620] sm:$0xff]
    %v424 = vld [vmem:[#allocation8 + $0x628] sm:$0xff]
    %v425 = vld [vmem:[#allocation8 + $0x630] sm:$0xff]
    %v426 = vld [vmem:[#allocation8 + $0x638] sm:$0xff]
    %v427 = vld [vmem:[#allocation8 + $0x640] sm:$0xff]
    %v428 = vld [vmem:[#allocation8 + $0x648] sm:$0xff]
    %v429 = vld [vmem:[#allocation8 + $0x650] sm:$0xff]
    %v430 = vld [vmem:[#allocation8 + $0x658] sm:$0xff]
    %v431 = vld [vmem:[#allocation8 + $0x660] sm:$0xff]
    %v432 = vld [vmem:[#allocation8 + $0x668] sm:$0xff]
    %v433 = vld [vmem:[#allocation8 + $0x670] sm:$0xff]
    %v434 = vld [vmem:[#allocation8 + $0x678] sm:$0xff]
    %v435 = vld [vmem:[#allocation8 + $0x680] sm:$0xff]
    %v436 = vld [vmem:[#allocation8 + $0x688] sm:$0xff]
    %v437 = vld [vmem:[#allocation8 + $0x690] sm:$0xff]
    %v438 = vld [vmem:[#allocation8 + $0x698] sm:$0xff]
    %v439 = vld [vmem:[#allocation8 + $0x6a0] sm:$0xff]
    %v440 = vld [vmem:[#allocation8 + $0x6a8] sm:$0xff]
    %v441 = vld [vmem:[#allocation8 + $0x6b0] sm:$0xff]
    %v442 = vld [vmem:[#allocation8 + $0x6b8] sm:$0xff]
    %v443 = vld [vmem:[#allocation8 + $0x6c0] sm:$0xff]
    %v444 = vld [vmem:[#allocation8 + $0x6c8] sm:$0xff]
    %v445 = vld [vmem:[#allocation8 + $0x6d0] sm:$0xff]
    %v446 = vld [vmem:[#allocation8 + $0x6d8] sm:$0xff]
    %v447 = vld [vmem:[#allocation8 + $0x6e0] sm:$0xff]
    %v448 = vld [vmem:[#allocation8 + $0x6e8] sm:$0xff]
    %v449 = vld [vmem:[#allocation8 + $0x6f0] sm:$0xff]
    %v450 = vld [vmem:[#allocation8 + $0x6f8] sm:$0xff]
    %v451 = vld [vmem:[#allocation8 + $0x700] sm:$0xff]
    %v452 = vld [vmem:[#allocation8 + $0x708] sm:$0xff]
    %v453 = vld [vmem:[#allocation8 + $0x710] sm:$0xff]
    %v454 = vld [vmem:[#allocation8 + $0x718] sm:$0xff]
    %v455 = vld [vmem:[#allocation8 + $0x720] sm:$0xff]
    %v456 = vld [vmem:[#allocation8 + $0x728] sm:$0xff]
    %v457 = vld [vmem:[#allocation8 + $0x730] sm:$0xff]
    %v458 = vld [vmem:[#allocation8 + $0x738] sm:$0xff]
    %v459 = vld [vmem:[#allocation8 + $0x740] sm:$0xff]
    %v460 = vld [vmem:[#allocation8 + $0x748] sm:$0xff]
    %v461 = vld [vmem:[#allocation8 + $0x750] sm:$0xff]
    %v462 = vld [vmem:[#allocation8 + $0x758] sm:$0xff]
    %v463 = vld [vmem:[#allocation8 + $0x760] sm:$0xff]
    %v464 = vld [vmem:[#allocation8 + $0x768] sm:$0xff]
    %v465 = vld [vmem:[#allocation8 + $0x770] sm:$0xff]
    %v466 = vld [vmem:[#allocation8 + $0x778] sm:$0xff]
    %v467 = vld [vmem:[#allocation8 + $0x780] sm:$0xff]
    %v468 = vld [vmem:[#allocation8 + $0x788] sm:$0xff]
    %v469 = vld [vmem:[#allocation8 + $0x790] sm:$0xff]
    %v470 = vld [vmem:[#allocation8 + $0x798] sm:$0xff]
    %v471 = vld [vmem:[#allocation8 + $0x7a0] sm:$0xff]
    %v472 = vld [vmem:[#allocation8 + $0x7a8] sm:$0xff]
    %v473 = vld [vmem:[#allocation8 + $0x7b0] sm:$0xff]
    %v474 = vld [vmem:[#allocation8 + $0x7b8] sm:$0xff]
    %v475 = vld [vmem:[#allocation8 + $0x7c0] sm:$0xff]
    %v476 = vld [vmem:[#allocation8 + $0x7c8] sm:$0xff]
    %v477 = vld [vmem:[#allocation8 + $0x7d0] sm:$0xff]
    %v478 = vld [vmem:[#allocation8 + $0x7d8] sm:$0xff]
    %v479 = vld [vmem:[#allocation8 + $0x7e0] sm:$0xff]
    %v480 = vld [vmem:[#allocation8 + $0x7e8] sm:$0xff]
    %v481 = vld [vmem:[#allocation8 + $0x7f0] sm:$0xff]
    %v482 = vld [vmem:[#allocation8 + $0x7f8] sm:$0xff]
    %v483 = vld [vmem:[%s5] sm:$0xff]
    %v484 = vld [vmem:[#allocation2] sm:$0xff]
    %v485 = vld [vmem:[#allocation2 + $0x8] sm:$0xff]
    %v486 = vpack.c.bf16 %v485, %v484
    %v487 = vld [vmem:[#allocation5] sm:$0xff]
    %v488 = vld [vmem:[#allocation5 + $0x8] sm:$0xff]
    %v489 = vld [vmem:[#allocation5 + $0x10] sm:$0xff]
    %v490 = vld [vmem:[#allocation5 + $0x18] sm:$0xff]
    %v491 = vld [vmem:[#allocation5 + $0x20] sm:$0xff]
    %v492 = vld [vmem:[#allocation5 + $0x28] sm:$0xff]
    %v493 = vld [vmem:[#allocation5 + $0x30] sm:$0xff]
    %v494 = vld [vmem:[#allocation5 + $0x38] sm:$0xff]
    %v495 = vld [vmem:[#allocation5 + $0x40] sm:$0xff]
    %v496 = vld [vmem:[#allocation5 + $0x48] sm:$0xff]
    %v497 = vld [vmem:[#allocation5 + $0x50] sm:$0xff]
    %v498 = vld [vmem:[#allocation5 + $0x58] sm:$0xff]
    %v499 = vld [vmem:[#allocation5 + $0x60] sm:$0xff]
    %v500 = vld [vmem:[#allocation5 + $0x68] sm:$0xff]
    %v501 = vld [vmem:[#allocation5 + $0x70] sm:$0xff]
    %v502 = vld [vmem:[#allocation5 + $0x78] sm:$0xff]
    %v503 = vld [vmem:[#allocation5 + $0x80] sm:$0xff]
    %v504 = vld [vmem:[#allocation5 + $0x88] sm:$0xff]
    %v505 = vld [vmem:[#allocation5 + $0x90] sm:$0xff]
    %v506 = vld [vmem:[#allocation5 + $0x98] sm:$0xff]
    %v507 = vld [vmem:[#allocation5 + $0xa0] sm:$0xff]
    %v508 = vld [vmem:[#allocation5 + $0xa8] sm:$0xff]
    %v509 = vld [vmem:[#allocation5 + $0xb0] sm:$0xff]
    %v510 = vld [vmem:[#allocation5 + $0xb8] sm:$0xff]
    %v511 = vld [vmem:[#allocation5 + $0xc0] sm:$0xff]
    %v512 = vld [vmem:[#allocation5 + $0xc8] sm:$0xff]
    %v513 = vld [vmem:[#allocation5 + $0xd0] sm:$0xff]
    %v514 = vld [vmem:[#allocation5 + $0xd8] sm:$0xff]
    %v515 = vld [vmem:[#allocation5 + $0xe0] sm:$0xff]
    %v516 = vld [vmem:[#allocation5 + $0xe8] sm:$0xff]
    %v517 = vld [vmem:[#allocation5 + $0xf0] sm:$0xff]
    %v518 = vld [vmem:[#allocation5 + $0xf8] sm:$0xff]
    %v519 = vld [vmem:[%s3] sm:$0xff]
    %v521 = vlaneseq
    %v522 = vshrl.u32 %v521, 7
    %v523 = vsub.s32 0, %v522
    %v524 = vrot.slane %v519, %v523
    %v525 = vlaneseq
    %v526 = vshrl.u32 %v525, 7
    %v527 = vsub.s32 1, %v526
    %v528 = vrot.slane %v519, %v527
    %v529 = vlaneseq
    %v530 = vshrl.u32 %v529, 7
    %v531 = vsub.s32 2, %v530
    %v532 = vrot.slane %v519, %v531
    %v533 = vlaneseq
    %v534 = vshrl.u32 %v533, 7
    %v535 = vsub.s32 3, %v534
    %v536 = vrot.slane %v519, %v535
    %v537 = vlaneseq
    %v538 = vshrl.u32 %v537, 7
    %v539 = vsub.s32 4, %v538
    %v540 = vrot.slane %v519, %v539
    %v541 = vlaneseq
    %v542 = vshrl.u32 %v541, 7
    %v543 = vsub.s32 5, %v542
    %v544 = vrot.slane %v519, %v543
    %v545 = vlaneseq
    %v546 = vshrl.u32 %v545, 7
    %v547 = vsub.s32 6, %v546
    %v548 = vrot.slane %v519, %v547
    %v549 = vlaneseq
    %v550 = vshrl.u32 %v549, 7
    %v551 = vsub.s32 7, %v550
    %v552 = vrot.slane %v519, %v551
    %v593 = vunpack.c.l.b16 %v487
    %v594 = vunpack.c.h.b16 %v487
    %v595 = vunpack.c.l.b16 %v488
    %v596 = vunpack.c.h.b16 %v488
    %v597 = vunpack.c.l.b16 %v489
    %v598 = vunpack.c.h.b16 %v489
    %v599 = vunpack.c.l.b16 %v490
    %v600 = vunpack.c.h.b16 %v490
    %v601 = vunpack.c.l.b16 %v491
    %v602 = vunpack.c.h.b16 %v491
    %v603 = vunpack.c.l.b16 %v492
    %v604 = vunpack.c.h.b16 %v492
    %v605 = vunpack.c.l.b16 %v493
    %v606 = vunpack.c.h.b16 %v493
    %v607 = vunpack.c.l.b16 %v494
    %v608 = vunpack.c.h.b16 %v494
    %v609 = vunpack.c.l.b16 %v495
    %v610 = vunpack.c.h.b16 %v495
    %v611 = vunpack.c.l.b16 %v496
    %v612 = vunpack.c.h.b16 %v496
    %v613 = vunpack.c.l.b16 %v497
    %v614 = vunpack.c.h.b16 %v497
    %v615 = vunpack.c.l.b16 %v498
    %v616 = vunpack.c.h.b16 %v498
    %v617 = vunpack.c.l.b16 %v499
    %v618 = vunpack.c.h.b16 %v499
    %v619 = vunpack.c.l.b16 %v500
    %v620 = vunpack.c.h.b16 %v500
    %v621 = vunpack.c.l.b16 %v501
    %v622 = vunpack.c.h.b16 %v501
    %v623 = vunpack.c.l.b16 %v502
    %v624 = vunpack.c.h.b16 %v502
    %v625 = vunpack.c.l.b16 %v503
    %v626 = vunpack.c.h.b16 %v503
    %v627 = vunpack.c.l.b16 %v504
    %v628 = vunpack.c.h.b16 %v504
    %v629 = vunpack.c.l.b16 %v505
    %v630 = vunpack.c.h.b16 %v505
    %v631 = vunpack.c.l.b16 %v506
    %v632 = vunpack.c.h.b16 %v506
    %v633 = vunpack.c.l.b16 %v507
    %v634 = vunpack.c.h.b16 %v507
    %v635 = vunpack.c.l.b16 %v508
    %v636 = vunpack.c.h.b16 %v508
    %v637 = vunpack.c.l.b16 %v509
    %v638 = vunpack.c.h.b16 %v509
    %v639 = vunpack.c.l.b16 %v510
    %v640 = vunpack.c.h.b16 %v510
    %v641 = vunpack.c.l.b16 %v511
    %v642 = vunpack.c.h.b16 %v511
    %v643 = vunpack.c.l.b16 %v512
    %v644 = vunpack.c.h.b16 %v512
    %v645 = vunpack.c.l.b16 %v513
    %v646 = vunpack.c.h.b16 %v513
    %v647 = vunpack.c.l.b16 %v514
    %v648 = vunpack.c.h.b16 %v514
    %v649 = vunpack.c.l.b16 %v515
    %v650 = vunpack.c.h.b16 %v515
    %v651 = vunpack.c.l.b16 %v516
    %v652 = vunpack.c.h.b16 %v516
    %v653 = vunpack.c.l.b16 %v517
    %v654 = vunpack.c.h.b16 %v517
    %v655 = vunpack.c.l.b16 %v518
    %v656 = vunpack.c.h.b16 %v518
    %v657 = vpack.c.b16 %v601, %v593
    %v658 = vpack.c.b16 %v602, %v594
    %v659 = vpack.c.b16 %v603, %v595
    %v660 = vpack.c.b16 %v604, %v596
    %v661 = vpack.c.b16 %v605, %v597
    %v662 = vpack.c.b16 %v606, %v598
    %v663 = vpack.c.b16 %v607, %v599
    %v664 = vpack.c.b16 %v608, %v600
    %v665 = vpack.c.b16 %v617, %v609
    %v666 = vpack.c.b16 %v618, %v610
    %v667 = vpack.c.b16 %v619, %v611
    %v668 = vpack.c.b16 %v620, %v612
    %v669 = vpack.c.b16 %v621, %v613
    %v670 = vpack.c.b16 %v622, %v614
    %v671 = vpack.c.b16 %v623, %v615
    %v672 = vpack.c.b16 %v624, %v616
    %v673 = vpack.c.b16 %v633, %v625
    %v674 = vpack.c.b16 %v634, %v626
    %v675 = vpack.c.b16 %v635, %v627
    %v676 = vpack.c.b16 %v636, %v628
    %v677 = vpack.c.b16 %v637, %v629
    %v678 = vpack.c.b16 %v638, %v630
    %v679 = vpack.c.b16 %v639, %v631
    %v680 = vpack.c.b16 %v640, %v632
    %v681 = vpack.c.b16 %v649, %v641
    %v682 = vpack.c.b16 %v650, %v642
    %v683 = vpack.c.b16 %v651, %v643
    %v684 = vpack.c.b16 %v652, %v644
    %v685 = vpack.c.b16 %v653, %v645
    %v686 = vpack.c.b16 %v654, %v646
    %v687 = vpack.c.b16 %v655, %v647
    %v688 = vpack.c.b16 %v656, %v648
    %vm721 = vcmask 523264
    %v723 = vsel %vm721, %v486, 0
    %725 = vmatprep.subr.bf16.mxu0 %v658
    %726 = vmatpush1.bf16.msra.mxu0 %v657
    %727 = vmatprep.subr.bf16.mxu0 %v666
    %728 = vmatpush1.bf16.msra.mxu0 %v665
    %729 = vmatprep.subr.bf16.mxu0 %v674
    %730 = vmatpush1.bf16.msra.mxu0 %v673
    %731 = vmatprep.subr.bf16.mxu0 %v682
    %732 = vmatpush1.bf16.msra.mxu0 %v681
    %733 = vmatprep.subr.bf16.mxu0 0
    %734 = vmatpush1.bf16.msra.mxu0 0
    %735 = vmatprep.subr.bf16.mxu0 0
    %736 = vmatpush1.bf16.msra.mxu0 0
    %737 = vmatprep.subr.bf16.mxu0 0
    %738 = vmatpush1.bf16.msra.mxu0 0
    %739 = vmatprep.subr.bf16.mxu0 0
    %740 = vmatpush1.bf16.msra.mxu0 0
    %741 = vmatprep.subr.bf16.mxu0 0
    %742 = vmatpush1.bf16.msra.mxu0 0
    %743 = vmatprep.subr.bf16.mxu0 0
    %744 = vmatpush1.bf16.msra.mxu0 0
    %745 = vmatprep.subr.bf16.mxu0 0
    %746 = vmatpush1.bf16.msra.mxu0 0
    %747 = vmatprep.subr.bf16.mxu0 0
    %748 = vmatpush1.bf16.msra.mxu0 0
    %749 = vmatprep.subr.bf16.mxu0 0
    %750 = vmatpush1.bf16.msra.mxu0 0
    %751 = vmatprep.subr.bf16.mxu0 0
    %752 = vmatpush1.bf16.msra.mxu0 0
    %753 = vmatprep.subr.bf16.mxu0 0
    %754 = vmatpush1.bf16.msra.mxu0 0
    %755 = vmatprep.subr.bf16.mxu0 0
    %756 = vmatpush1.bf16.msra.mxu0 0
    %757 = vmatprep.mubr.bf16.mxu0 0
    %758 = vmatmul.mubr.bf16.gmra.mrb[0].mxu0 %v723
    %v759 = vpop.f32.mrb[0].mxu0
    %v760 = vadd.f32 %v524, %v759
    %v761 = vpop.f32.mrb[0].mxu0
    %v762 = vadd.f32 %v528, %v761
    %v763 = vpop.f32.mrb[0].mxu0
    %v764 = vadd.f32 %v524, %v763
    %v765 = vpop.f32.mrb[0].mxu0
    %v766 = vadd.f32 %v528, %v765
    %767 = vdwg.mxu0
    %768 = vmatprep.subr.bf16.mxu0 %v660
    %769 = vmatpush1.bf16.msra.mxu0 %v659
    %770 = vmatprep.subr.bf16.mxu0 %v668
    %771 = vmatpush1.bf16.msra.mxu0 %v667
    %772 = vmatprep.subr.bf16.mxu0 %v676
    %773 = vmatpush1.bf16.msra.mxu0 %v675
    %774 = vmatprep.subr.bf16.mxu0 %v684
    %775 = vmatpush1.bf16.msra.mxu0 %v683
    %776 = vmatprep.subr.bf16.mxu0 0
    %777 = vmatpush1.bf16.msra.mxu0 0
    %778 = vmatprep.subr.bf16.mxu0 0
    %779 = vmatpush1.bf16.msra.mxu0 0
    %780 = vmatprep.subr.bf16.mxu0 0
    %781 = vmatpush1.bf16.msra.mxu0 0
    %782 = vmatprep.subr.bf16.mxu0 0
    %783 = vmatpush1.bf16.msra.mxu0 0
    %784 = vmatprep.subr.bf16.mxu0 0
    %785 = vmatpush1.bf16.msra.mxu0 0
    %786 = vmatprep.subr.bf16.mxu0 0
    %787 = vmatpush1.bf16.msra.mxu0 0
    %788 = vmatprep.subr.bf16.mxu0 0
    %789 = vmatpush1.bf16.msra.mxu0 0
    %790 = vmatprep.subr.bf16.mxu0 0
    %791 = vmatpush1.bf16.msra.mxu0 0
    %792 = vmatprep.subr.bf16.mxu0 0
    %793 = vmatpush1.bf16.msra.mxu0 0
    %794 = vmatprep.subr.bf16.mxu0 0
    %795 = vmatpush1.bf16.msra.mxu0 0
    %796 = vmatprep.subr.bf16.mxu0 0
    %797 = vmatpush1.bf16.msra.mxu0 0
    %798 = vmatprep.subr.bf16.mxu0 0
    %799 = vmatpush1.bf16.msra.mxu0 0
    %800 = vmatprep.mubr.bf16.mxu0 0
    %801 = vmatmul.mubr.bf16.gmra.mrb[0].mxu0 %v723
    %v802 = vpop.f32.mrb[0].mxu0
    %v803 = vadd.f32 %v532, %v802
    %v804 = vpop.f32.mrb[0].mxu0
    %v805 = vadd.f32 %v536, %v804
    %v806 = vpop.f32.mrb[0].mxu0
    %v807 = vadd.f32 %v532, %v806
    %v808 = vpop.f32.mrb[0].mxu0
    %v809 = vadd.f32 %v536, %v808
    %810 = vdwg.mxu0
    %811 = vmatprep.subr.bf16.mxu0 %v662
    %812 = vmatpush1.bf16.msra.mxu0 %v661
    %813 = vmatprep.subr.bf16.mxu0 %v670
    %814 = vmatpush1.bf16.msra.mxu0 %v669
    %815 = vmatprep.subr.bf16.mxu0 %v678
    %816 = vmatpush1.bf16.msra.mxu0 %v677
    %817 = vmatprep.subr.bf16.mxu0 %v686
    %818 = vmatpush1.bf16.msra.mxu0 %v685
    %819 = vmatprep.subr.bf16.mxu0 0
    %820 = vmatpush1.bf16.msra.mxu0 0
    %821 = vmatprep.subr.bf16.mxu0 0
    %822 = vmatpush1.bf16.msra.mxu0 0
    %823 = vmatprep.subr.bf16.mxu0 0
    %824 = vmatpush1.bf16.msra.mxu0 0
    %825 = vmatprep.subr.bf16.mxu0 0
    %826 = vmatpush1.bf16.msra.mxu0 0
    %827 = vmatprep.subr.bf16.mxu0 0
    %828 = vmatpush1.bf16.msra.mxu0 0
    %829 = vmatprep.subr.bf16.mxu0 0
    %830 = vmatpush1.bf16.msra.mxu0 0
    %831 = vmatprep.subr.bf16.mxu0 0
    %832 = vmatpush1.bf16.msra.mxu0 0
    %833 = vmatprep.subr.bf16.mxu0 0
    %834 = vmatpush1.bf16.msra.mxu0 0
    %835 = vmatprep.subr.bf16.mxu0 0
    %836 = vmatpush1.bf16.msra.mxu0 0
    %837 = vmatprep.subr.bf16.mxu0 0
    %838 = vmatpush1.bf16.msra.mxu0 0
    %839 = vmatprep.subr.bf16.mxu0 0
    %840 = vmatpush1.bf16.msra.mxu0 0
    %841 = vmatprep.subr.bf16.mxu0 0
    %842 = vmatpush1.bf16.msra.mxu0 0
    %843 = vmatprep.mubr.bf16.mxu0 0
    %844 = vmatmul.mubr.bf16.gmra.mrb[0].mxu0 %v723
    %v845 = vpop.f32.mrb[0].mxu0
    %v846 = vadd.f32 %v540, %v845
    %v847 = vpop.f32.mrb[0].mxu0
    %v848 = vadd.f32 %v544, %v847
    %v849 = vpop.f32.mrb[0].mxu0
    %v850 = vadd.f32 %v540, %v849
    %v851 = vpop.f32.mrb[0].mxu0
    %v852 = vadd.f32 %v544, %v851
    %853 = vdwg.mxu0
    %854 = vmatprep.subr.bf16.mxu0 %v664
    %855 = vmatpush1.bf16.msra.mxu0 %v663
    %856 = vmatprep.subr.bf16.mxu0 %v672
    %857 = vmatpush1.bf16.msra.mxu0 %v671
    %858 = vmatprep.subr.bf16.mxu0 %v680
    %859 = vmatpush1.bf16.msra.mxu0 %v679
    %860 = vmatprep.subr.bf16.mxu0 %v688
    %861 = vmatpush1.bf16.msra.mxu0 %v687
    %862 = vmatprep.subr.bf16.mxu0 0
    %863 = vmatpush1.bf16.msra.mxu0 0
    %864 = vmatprep.subr.bf16.mxu0 0
    %865 = vmatpush1.bf16.msra.mxu0 0
    %866 = vmatprep.subr.bf16.mxu0 0
    %867 = vmatpush1.bf16.msra.mxu0 0
    %868 = vmatprep.subr.bf16.mxu0 0
    %869 = vmatpush1.bf16.msra.mxu0 0
    %870 = vmatprep.subr.bf16.mxu0 0
    %871 = vmatpush1.bf16.msra.mxu0 0
    %872 = vmatprep.subr.bf16.mxu0 0
    %873 = vmatpush1.bf16.msra.mxu0 0
    %874 = vmatprep.subr.bf16.mxu0 0
    %875 = vmatpush1.bf16.msra.mxu0 0
    %876 = vmatprep.subr.bf16.mxu0 0
    %877 = vmatpush1.bf16.msra.mxu0 0
    %878 = vmatprep.subr.bf16.mxu0 0
    %879 = vmatpush1.bf16.msra.mxu0 0
    %880 = vmatprep.subr.bf16.mxu0 0
    %881 = vmatpush1.bf16.msra.mxu0 0
    %882 = vmatprep.subr.bf16.mxu0 0
    %883 = vmatpush1.bf16.msra.mxu0 0
    %884 = vmatprep.subr.bf16.mxu0 0
    %885 = vmatpush1.bf16.msra.mxu0 0
    %886 = vmatprep.mubr.bf16.mxu0 0
    %887 = vmatmul.mubr.bf16.gmra.mrb[0].mxu0 %v723
    %v888 = vpop.f32.mrb[0].mxu0
    %v889 = vadd.f32 %v548, %v888
    %v890 = vpop.f32.mrb[0].mxu0
    %v891 = vadd.f32 %v552, %v890
    %v892 = vpop.f32.mrb[0].mxu0
    %v893 = vadd.f32 %v548, %v892
    %v894 = vpop.f32.mrb[0].mxu0
    %v895 = vadd.f32 %v552, %v894
    %896 = vdwg.mxu0
    %v1025 = vunpack.c.l.b16 %v99
    %v1026 = vunpack.c.h.b16 %v99
    %v1027 = vunpack.c.l.b16 %v100
    %v1028 = vunpack.c.h.b16 %v100
    %v1029 = vunpack.c.l.b16 %v101
    %v1030 = vunpack.c.h.b16 %v101
    %v1031 = vunpack.c.l.b16 %v102
    %v1032 = vunpack.c.h.b16 %v102
    %v1033 = vunpack.c.l.b16 %v103
    %v1034 = vunpack.c.h.b16 %v103
    %v1035 = vunpack.c.l.b16 %v104
    %v1036 = vunpack.c.h.b16 %v104
    %v1037 = vunpack.c.l.b16 %v105
    %v1038 = vunpack.c.h.b16 %v105
    %v1039 = vunpack.c.l.b16 %v106
    %v1040 = vunpack.c.h.b16 %v106
    %v1041 = vunpack.c.l.b16 %v107
    %v1042 = vunpack.c.h.b16 %v107
    %v1043 = vunpack.c.l.b16 %v108
    %v1044 = vunpack.c.h.b16 %v108
    %v1045 = vunpack.c.l.b16 %v109
    %v1046 = vunpack.c.h.b16 %v109
    %v1047 = vunpack.c.l.b16 %v110
    %v1048 = vunpack.c.h.b16 %v110
    %v1049 = vunpack.c.l.b16 %v111
    %v1050 = vunpack.c.h.b16 %v111
    %v1051 = vunpack.c.l.b16 %v112
    %v1052 = vunpack.c.h.b16 %v112
    %v1053 = vunpack.c.l.b16 %v113
    %v1054 = vunpack.c.h.b16 %v113
    %v1055 = vunpack.c.l.b16 %v114
    %v1056 = vunpack.c.h.b16 %v114
    %v1057 = vunpack.c.l.b16 %v115
    %v1058 = vunpack.c.h.b16 %v115
    %v1059 = vunpack.c.l.b16 %v116
    %v1060 = vunpack.c.h.b16 %v116
    %v1061 = vunpack.c.l.b16 %v117
    %v1062 = vunpack.c.h.b16 %v117
    %v1063 = vunpack.c.l.b16 %v118
    %v1064 = vunpack.c.h.b16 %v118
    %v1065 = vunpack.c.l.b16 %v119
    %v1066 = vunpack.c.h.b16 %v119
    %v1067 = vunpack.c.l.b16 %v120
    %v1068 = vunpack.c.h.b16 %v120
    %v1069 = vunpack.c.l.b16 %v121
    %v1070 = vunpack.c.h.b16 %v121
    %v1071 = vunpack.c.l.b16 %v122
    %v1072 = vunpack.c.h.b16 %v122
    %v1073 = vunpack.c.l.b16 %v123
    %v1074 = vunpack.c.h.b16 %v123
    %v1075 = vunpack.c.l.b16 %v124
    %v1076 = vunpack.c.h.b16 %v124
    %v1077 = vunpack.c.l.b16 %v125
    %v1078 = vunpack.c.h.b16 %v125
    %v1079 = vunpack.c.l.b16 %v126
    %v1080 = vunpack.c.h.b16 %v126
    %v1081 = vunpack.c.l.b16 %v127
    %v1082 = vunpack.c.h.b16 %v127
    %v1083 = vunpack.c.l.b16 %v128
    %v1084 = vunpack.c.h.b16 %v128
    %v1085 = vunpack.c.l.b16 %v129
    %v1086 = vunpack.c.h.b16 %v129
    %v1087 = vunpack.c.l.b16 %v130
    %v1088 = vunpack.c.h.b16 %v130
    %v1089 = vunpack.c.l.b16 %v131
    %v1090 = vunpack.c.h.b16 %v131
    %v1091 = vunpack.c.l.b16 %v132
    %v1092 = vunpack.c.h.b16 %v132
    %v1093 = vunpack.c.l.b16 %v133
    %v1094 = vunpack.c.h.b16 %v133
    %v1095 = vunpack.c.l.b16 %v134
    %v1096 = vunpack.c.h.b16 %v134
    %v1097 = vunpack.c.l.b16 %v135
    %v1098 = vunpack.c.h.b16 %v135
    %v1099 = vunpack.c.l.b16 %v136
    %v1100 = vunpack.c.h.b16 %v136
    %v1101 = vunpack.c.l.b16 %v137
    %v1102 = vunpack.c.h.b16 %v137
    %v1103 = vunpack.c.l.b16 %v138
    %v1104 = vunpack.c.h.b16 %v138
    %v1105 = vunpack.c.l.b16 %v139
    %v1106 = vunpack.c.h.b16 %v139
    %v1107 = vunpack.c.l.b16 %v140
    %v1108 = vunpack.c.h.b16 %v140
    %v1109 = vunpack.c.l.b16 %v141
    %v1110 = vunpack.c.h.b16 %v141
    %v1111 = vunpack.c.l.b16 %v142
    %v1112 = vunpack.c.h.b16 %v142
    %v1113 = vunpack.c.l.b16 %v143
    %v1114 = vunpack.c.h.b16 %v143
    %v1115 = vunpack.c.l.b16 %v144
    %v1116 = vunpack.c.h.b16 %v144
    %v1117 = vunpack.c.l.b16 %v145
    %v1118 = vunpack.c.h.b16 %v145
    %v1119 = vunpack.c.l.b16 %v146
    %v1120 = vunpack.c.h.b16 %v146
    %v1121 = vunpack.c.l.b16 %v147
    %v1122 = vunpack.c.h.b16 %v147
    %v1123 = vunpack.c.l.b16 %v148
    %v1124 = vunpack.c.h.b16 %v148
    %v1125 = vunpack.c.l.b16 %v149
    %v1126 = vunpack.c.h.b16 %v149
    %v1127 = vunpack.c.l.b16 %v150
    %v1128 = vunpack.c.h.b16 %v150
    %v1129 = vunpack.c.l.b16 %v151
    %v1130 = vunpack.c.h.b16 %v151
    %v1131 = vunpack.c.l.b16 %v152
    %v1132 = vunpack.c.h.b16 %v152
    %v1133 = vunpack.c.l.b16 %v153
    %v1134 = vunpack.c.h.b16 %v153
    %v1135 = vunpack.c.l.b16 %v154
    %v1136 = vunpack.c.h.b16 %v154
    %v1137 = vunpack.c.l.b16 %v155
    %v1138 = vunpack.c.h.b16 %v155
    %v1139 = vunpack.c.l.b16 %v156
    %v1140 = vunpack.c.h.b16 %v156
    %v1141 = vunpack.c.l.b16 %v157
    %v1142 = vunpack.c.h.b16 %v157
    %v1143 = vunpack.c.l.b16 %v158
    %v1144 = vunpack.c.h.b16 %v158
    %v1145 = vunpack.c.l.b16 %v159
    %v1146 = vunpack.c.h.b16 %v159
    %v1147 = vunpack.c.l.b16 %v160
    %v1148 = vunpack.c.h.b16 %v160
    %v1149 = vunpack.c.l.b16 %v161
    %v1150 = vunpack.c.h.b16 %v161
    %v1151 = vunpack.c.l.b16 %v162
    %v1152 = vunpack.c.h.b16 %v162
    %v1153 = vunpack.c.l.b16 %v163
    %v1154 = vunpack.c.h.b16 %v163
    %v1155 = vunpack.c.l.b16 %v164
    %v1156 = vunpack.c.h.b16 %v164
    %v1157 = vunpack.c.l.b16 %v165
    %v1158 = vunpack.c.h.b16 %v165
    %v1159 = vunpack.c.l.b16 %v166
    %v1160 = vunpack.c.h.b16 %v166
    %v1161 = vunpack.c.l.b16 %v167
    %v1162 = vunpack.c.h.b16 %v167
    %v1163 = vunpack.c.l.b16 %v168
    %v1164 = vunpack.c.h.b16 %v168
    %v1165 = vunpack.c.l.b16 %v169
    %v1166 = vunpack.c.h.b16 %v169
    %v1167 = vunpack.c.l.b16 %v170
    %v1168 = vunpack.c.h.b16 %v170
    %v1169 = vunpack.c.l.b16 %v171
    %v1170 = vunpack.c.h.b16 %v171
    %v1171 = vunpack.c.l.b16 %v172
    %v1172 = vunpack.c.h.b16 %v172
    %v1173 = vunpack.c.l.b16 %v173
    %v1174 = vunpack.c.h.b16 %v173
    %v1175 = vunpack.c.l.b16 %v174
    %v1176 = vunpack.c.h.b16 %v174
    %v1177 = vunpack.c.l.b16 %v175
    %v1178 = vunpack.c.h.b16 %v175
    %v1179 = vunpack.c.l.b16 %v176
    %v1180 = vunpack.c.h.b16 %v176
    %v1181 = vunpack.c.l.b16 %v177
    %v1182 = vunpack.c.h.b16 %v177
    %v1183 = vunpack.c.l.b16 %v178
    %v1184 = vunpack.c.h.b16 %v178
    %v1185 = vunpack.c.l.b16 %v179
    %v1186 = vunpack.c.h.b16 %v179
    %v1187 = vunpack.c.l.b16 %v180
    %v1188 = vunpack.c.h.b16 %v180
    %v1189 = vunpack.c.l.b16 %v181
    %v1190 = vunpack.c.h.b16 %v181
    %v1191 = vunpack.c.l.b16 %v182
    %v1192 = vunpack.c.h.b16 %v182
    %v1193 = vunpack.c.l.b16 %v183
    %v1194 = vunpack.c.h.b16 %v183
    %v1195 = vunpack.c.l.b16 %v184
    %v1196 = vunpack.c.h.b16 %v184
    %v1197 = vunpack.c.l.b16 %v185
    %v1198 = vunpack.c.h.b16 %v185
    %v1199 = vunpack.c.l.b16 %v186
    %v1200 = vunpack.c.h.b16 %v186
    %v1201 = vunpack.c.l.b16 %v187
    %v1202 = vunpack.c.h.b16 %v187
    %v1203 = vunpack.c.l.b16 %v188
    %v1204 = vunpack.c.h.b16 %v188
    %v1205 = vunpack.c.l.b16 %v189
    %v1206 = vunpack.c.h.b16 %v189
    %v1207 = vunpack.c.l.b16 %v190
    %v1208 = vunpack.c.h.b16 %v190
    %v1209 = vunpack.c.l.b16 %v191
    %v1210 = vunpack.c.h.b16 %v191
    %v1211 = vunpack.c.l.b16 %v192
    %v1212 = vunpack.c.h.b16 %v192
    %v1213 = vunpack.c.l.b16 %v193
    %v1214 = vunpack.c.h.b16 %v193
    %v1215 = vunpack.c.l.b16 %v194
    %v1216 = vunpack.c.h.b16 %v194
    %v1217 = vunpack.c.l.b16 %v195
    %v1218 = vunpack.c.h.b16 %v195
    %v1219 = vunpack.c.l.b16 %v196
    %v1220 = vunpack.c.h.b16 %v196
    %v1221 = vunpack.c.l.b16 %v197
    %v1222 = vunpack.c.h.b16 %v197
    %v1223 = vunpack.c.l.b16 %v198
    %v1224 = vunpack.c.h.b16 %v198
    %v1225 = vunpack.c.l.b16 %v199
    %v1226 = vunpack.c.h.b16 %v199
    %v1227 = vunpack.c.l.b16 %v200
    %v1228 = vunpack.c.h.b16 %v200
    %v1229 = vunpack.c.l.b16 %v201
    %v1230 = vunpack.c.h.b16 %v201
    %v1231 = vunpack.c.l.b16 %v202
    %v1232 = vunpack.c.h.b16 %v202
    %v1233 = vunpack.c.l.b16 %v203
    %v1234 = vunpack.c.h.b16 %v203
    %v1235 = vunpack.c.l.b16 %v204
    %v1236 = vunpack.c.h.b16 %v204
    %v1237 = vunpack.c.l.b16 %v205
    %v1238 = vunpack.c.h.b16 %v205
    %v1239 = vunpack.c.l.b16 %v206
    %v1240 = vunpack.c.h.b16 %v206
    %v1241 = vunpack.c.l.b16 %v207
    %v1242 = vunpack.c.h.b16 %v207
    %v1243 = vunpack.c.l.b16 %v208
    %v1244 = vunpack.c.h.b16 %v208
    %v1245 = vunpack.c.l.b16 %v209
    %v1246 = vunpack.c.h.b16 %v209
    %v1247 = vunpack.c.l.b16 %v210
    %v1248 = vunpack.c.h.b16 %v210
    %v1249 = vunpack.c.l.b16 %v211
    %v1250 = vunpack.c.h.b16 %v211
    %v1251 = vunpack.c.l.b16 %v212
    %v1252 = vunpack.c.h.b16 %v212
    %v1253 = vunpack.c.l.b16 %v213
    %v1254 = vunpack.c.h.b16 %v213
    %v1255 = vunpack.c.l.b16 %v214
    %v1256 = vunpack.c.h.b16 %v214
    %v1257 = vunpack.c.l.b16 %v215
    %v1258 = vunpack.c.h.b16 %v215
    %v1259 = vunpack.c.l.b16 %v216
    %v1260 = vunpack.c.h.b16 %v216
    %v1261 = vunpack.c.l.b16 %v217
    %v1262 = vunpack.c.h.b16 %v217
    %v1263 = vunpack.c.l.b16 %v218
    %v1264 = vunpack.c.h.b16 %v218
    %v1265 = vunpack.c.l.b16 %v219
    %v1266 = vunpack.c.h.b16 %v219
    %v1267 = vunpack.c.l.b16 %v220
    %v1268 = vunpack.c.h.b16 %v220
    %v1269 = vunpack.c.l.b16 %v221
    %v1270 = vunpack.c.h.b16 %v221
    %v1271 = vunpack.c.l.b16 %v222
    %v1272 = vunpack.c.h.b16 %v222
    %v1273 = vunpack.c.l.b16 %v223
    %v1274 = vunpack.c.h.b16 %v223
    %v1275 = vunpack.c.l.b16 %v224
    %v1276 = vunpack.c.h.b16 %v224
    %v1277 = vunpack.c.l.b16 %v225
    %v1278 = vunpack.c.h.b16 %v225
    %v1279 = vunpack.c.l.b16 %v226
    %v1280 = vunpack.c.h.b16 %v226
    %v1281 = vpack.c.b16 %v1033, %v1025
    %v1282 = vpack.c.b16 %v1034, %v1026
    %v1283 = vpack.c.b16 %v1035, %v1027
    %v1284 = vpack.c.b16 %v1036, %v1028
    %v1285 = vpack.c.b16 %v1037, %v1029
    %v1286 = vpack.c.b16 %v1038, %v1030
    %v1287 = vpack.c.b16 %v1039, %v1031
    %v1288 = vpack.c.b16 %v1040, %v1032
    %v1289 = vpack.c.b16 %v1049, %v1041
    %v1290 = vpack.c.b16 %v1050, %v1042
    %v1291 = vpack.c.b16 %v1051, %v1043
    %v1292 = vpack.c.b16 %v1052, %v1044
    %v1293 = vpack.c.b16 %v1053, %v1045
    %v1294 = vpack.c.b16 %v1054, %v1046
    %v1295 = vpack.c.b16 %v1055, %v1047
    %v1296 = vpack.c.b16 %v1056, %v1048
    %v1297 = vpack.c.b16 %v1065, %v1057
    %v1298 = vpack.c.b16 %v1066, %v1058
    %v1299 = vpack.c.b16 %v1067, %v1059
    %v1300 = vpack.c.b16 %v1068, %v1060
    %v1301 = vpack.c.b16 %v1069, %v1061
    %v1302 = vpack.c.b16 %v1070, %v1062
    %v1303 = vpack.c.b16 %v1071, %v1063
    %v1304 = vpack.c.b16 %v1072, %v1064
    %v1305 = vpack.c.b16 %v1081, %v1073
    %v1306 = vpack.c.b16 %v1082, %v1074
    %v1307 = vpack.c.b16 %v1083, %v1075
    %v1308 = vpack.c.b16 %v1084, %v1076
    %v1309 = vpack.c.b16 %v1085, %v1077
    %v1310 = vpack.c.b16 %v1086, %v1078
    %v1311 = vpack.c.b16 %v1087, %v1079
    %v1312 = vpack.c.b16 %v1088, %v1080
    %v1313 = vpack.c.b16 %v1097, %v1089
    %v1314 = vpack.c.b16 %v1098, %v1090
    %v1315 = vpack.c.b16 %v1099, %v1091
    %v1316 = vpack.c.b16 %v1100, %v1092
    %v1317 = vpack.c.b16 %v1101, %v1093
    %v1318 = vpack.c.b16 %v1102, %v1094
    %v1319 = vpack.c.b16 %v1103, %v1095
    %v1320 = vpack.c.b16 %v1104, %v1096
    %v1321 = vpack.c.b16 %v1113, %v1105
    %v1322 = vpack.c.b16 %v1114, %v1106
    %v1323 = vpack.c.b16 %v1115, %v1107
    %v1324 = vpack.c.b16 %v1116, %v1108
    %v1325 = vpack.c.b16 %v1117, %v1109
    %v1326 = vpack.c.b16 %v1118, %v1110
    %v1327 = vpack.c.b16 %v1119, %v1111
    %v1328 = vpack.c.b16 %v1120, %v1112
    %v1329 = vpack.c.b16 %v1129, %v1121
    %v1330 = vpack.c.b16 %v1130, %v1122
    %v1331 = vpack.c.b16 %v1131, %v1123
    %v1332 = vpack.c.b16 %v1132, %v1124
    %v1333 = vpack.c.b16 %v1133, %v1125
    %v1334 = vpack.c.b16 %v1134, %v1126
    %v1335 = vpack.c.b16 %v1135, %v1127
    %v1336 = vpack.c.b16 %v1136, %v1128
    %v1337 = vpack.c.b16 %v1145, %v1137
    %v1338 = vpack.c.b16 %v1146, %v1138
    %v1339 = vpack.c.b16 %v1147, %v1139
    %v1340 = vpack.c.b16 %v1148, %v1140
    %v1341 = vpack.c.b16 %v1149, %v1141
    %v1342 = vpack.c.b16 %v1150, %v1142
    %v1343 = vpack.c.b16 %v1151, %v1143
    %v1344 = vpack.c.b16 %v1152, %v1144
    %v1345 = vpack.c.b16 %v1161, %v1153
    %v1346 = vpack.c.b16 %v1162, %v1154
    %v1347 = vpack.c.b16 %v1163, %v1155
    %v1348 = vpack.c.b16 %v1164, %v1156
    %v1349 = vpack.c.b16 %v1165, %v1157
    %v1350 = vpack.c.b16 %v1166, %v1158
    %v1351 = vpack.c.b16 %v1167, %v1159
    %v1352 = vpack.c.b16 %v1168, %v1160
    %v1353 = vpack.c.b16 %v1177, %v1169
    %v1354 = vpack.c.b16 %v1178, %v1170
    %v1355 = vpack.c.b16 %v1179, %v1171
    %v1356 = vpack.c.b16 %v1180, %v1172
    %v1357 = vpack.c.b16 %v1181, %v1173
    %v1358 = vpack.c.b16 %v1182, %v1174
    %v1359 = vpack.c.b16 %v1183, %v1175
    %v1360 = vpack.c.b16 %v1184, %v1176
    %v1361 = vpack.c.b16 %v1193, %v1185
    %v1362 = vpack.c.b16 %v1194, %v1186
    %v1363 = vpack.c.b16 %v1195, %v1187
    %v1364 = vpack.c.b16 %v1196, %v1188
    %v1365 = vpack.c.b16 %v1197, %v1189
    %v1366 = vpack.c.b16 %v1198, %v1190
    %v1367 = vpack.c.b16 %v1199, %v1191
    %v1368 = vpack.c.b16 %v1200, %v1192
    %v1369 = vpack.c.b16 %v1209, %v1201
    %v1370 = vpack.c.b16 %v1210, %v1202
    %v1371 = vpack.c.b16 %v1211, %v1203
    %v1372 = vpack.c.b16 %v1212, %v1204
    %v1373 = vpack.c.b16 %v1213, %v1205
    %v1374 = vpack.c.b16 %v1214, %v1206
    %v1375 = vpack.c.b16 %v1215, %v1207
    %v1376 = vpack.c.b16 %v1216, %v1208
    %v1377 = vpack.c.b16 %v1225, %v1217
    %v1378 = vpack.c.b16 %v1226, %v1218
    %v1379 = vpack.c.b16 %v1227, %v1219
    %v1380 = vpack.c.b16 %v1228, %v1220
    %v1381 = vpack.c.b16 %v1229, %v1221
    %v1382 = vpack.c.b16 %v1230, %v1222
    %v1383 = vpack.c.b16 %v1231, %v1223
    %v1384 = vpack.c.b16 %v1232, %v1224
    %v1385 = vpack.c.b16 %v1241, %v1233
    %v1386 = vpack.c.b16 %v1242, %v1234
    %v1387 = vpack.c.b16 %v1243, %v1235
    %v1388 = vpack.c.b16 %v1244, %v1236
    %v1389 = vpack.c.b16 %v1245, %v1237
    %v1390 = vpack.c.b16 %v1246, %v1238
    %v1391 = vpack.c.b16 %v1247, %v1239
    %v1392 = vpack.c.b16 %v1248, %v1240
    %v1393 = vpack.c.b16 %v1257, %v1249
    %v1394 = vpack.c.b16 %v1258, %v1250
    %v1395 = vpack.c.b16 %v1259, %v1251
    %v1396 = vpack.c.b16 %v1260, %v1252
    %v1397 = vpack.c.b16 %v1261, %v1253
    %v1398 = vpack.c.b16 %v1262, %v1254
    %v1399 = vpack.c.b16 %v1263, %v1255
    %v1400 = vpack.c.b16 %v1264, %v1256
    %v1401 = vpack.c.b16 %v1273, %v1265
    %v1402 = vpack.c.b16 %v1274, %v1266
    %v1403 = vpack.c.b16 %v1275, %v1267
    %v1404 = vpack.c.b16 %v1276, %v1268
    %v1405 = vpack.c.b16 %v1277, %v1269
    %v1406 = vpack.c.b16 %v1278, %v1270
    %v1407 = vpack.c.b16 %v1279, %v1271
    %v1408 = vpack.c.b16 %v1280, %v1272
    %1537 = vmatprep.subr.bf16.mxu0 %v1282
    %1538 = vmatpush1.bf16.msra.mxu0 %v1281
    %1539 = vmatprep.subr.bf16.mxu0 %v1290
    %1540 = vmatpush1.bf16.msra.mxu0 %v1289
    %1541 = vmatprep.subr.bf16.mxu0 %v1298
    %1542 = vmatpush1.bf16.msra.mxu0 %v1297
    %1543 = vmatprep.subr.bf16.mxu0 %v1306
    %1544 = vmatpush1.bf16.msra.mxu0 %v1305
    %1545 = vmatprep.subr.bf16.mxu0 %v1314
    %1546 = vmatpush1.bf16.msra.mxu0 %v1313
    %1547 = vmatprep.subr.bf16.mxu0 %v1322
    %1548 = vmatpush1.bf16.msra.mxu0 %v1321
    %1549 = vmatprep.subr.bf16.mxu0 %v1330
    %1550 = vmatpush1.bf16.msra.mxu0 %v1329
    %1551 = vmatprep.subr.bf16.mxu0 %v1338
    %1552 = vmatpush1.bf16.msra.mxu0 %v1337
    %1553 = vmatprep.subr.bf16.mxu0 %v1346
    %1554 = vmatpush1.bf16.msra.mxu0 %v1345
    %1555 = vmatprep.subr.bf16.mxu0 %v1354
    %1556 = vmatpush1.bf16.msra.mxu0 %v1353
    %1557 = vmatprep.subr.bf16.mxu0 %v1362
    %1558 = vmatpush1.bf16.msra.mxu0 %v1361
    %1559 = vmatprep.subr.bf16.mxu0 %v1370
    %1560 = vmatpush1.bf16.msra.mxu0 %v1369
    %1561 = vmatprep.subr.bf16.mxu0 %v1378
    %1562 = vmatpush1.bf16.msra.mxu0 %v1377
    %1563 = vmatprep.subr.bf16.mxu0 %v1386
    %1564 = vmatpush1.bf16.msra.mxu0 %v1385
    %1565 = vmatprep.subr.bf16.mxu0 %v1394
    %1566 = vmatpush1.bf16.msra.mxu0 %v1393
    %1567 = vmatprep.subr.bf16.mxu0 %v1402
    %1568 = vmatpush1.bf16.msra.mxu0 %v1401
    %1569 = vmatprep.mubr.bf16.mxu0 0
    %1570 = vmatmul.mubr.bf16.gmra.mrb[0].mxu0 0
    %v1571 = vpop.f32.mrb[0].mxu0
    %v1572 = vadd.f32 0.0, %v1571
    %v1573 = vpop.f32.mrb[0].mxu0
    %v1574 = vadd.f32 0.0, %v1573
    %v1575 = vpop.f32.mrb[0].mxu0
    %v1576 = vpop.f32.mrb[0].mxu0
    %1577 = vdwg.mxu0
    %1578 = vmatprep.subr.bf16.mxu0 %v1284
    %1579 = vmatpush1.bf16.msra.mxu0 %v1283
    %1580 = vmatprep.subr.bf16.mxu0 %v1292
    %1581 = vmatpush1.bf16.msra.mxu0 %v1291
    %1582 = vmatprep.subr.bf16.mxu0 %v1300
    %1583 = vmatpush1.bf16.msra.mxu0 %v1299
    %1584 = vmatprep.subr.bf16.mxu0 %v1308
    %1585 = vmatpush1.bf16.msra.mxu0 %v1307
    %1586 = vmatprep.subr.bf16.mxu0 %v1316
    %1587 = vmatpush1.bf16.msra.mxu0 %v1315
    %1588 = vmatprep.subr.bf16.mxu0 %v1324
    %1589 = vmatpush1.bf16.msra.mxu0 %v1323
    %1590 = vmatprep.subr.bf16.mxu0 %v1332
    %1591 = vmatpush1.bf16.msra.mxu0 %v1331
    %1592 = vmatprep.subr.bf16.mxu0 %v1340
    %1593 = vmatpush1.bf16.msra.mxu0 %v1339
    %1594 = vmatprep.subr.bf16.mxu0 %v1348
    %1595 = vmatpush1.bf16.msra.mxu0 %v1347
    %1596 = vmatprep.subr.bf16.mxu0 %v1356
    %1597 = vmatpush1.bf16.msra.mxu0 %v1355
    %1598 = vmatprep.subr.bf16.mxu0 %v1364
    %1599 = vmatpush1.bf16.msra.mxu0 %v1363
    %1600 = vmatprep.subr.bf16.mxu0 %v1372
    %1601 = vmatpush1.bf16.msra.mxu0 %v1371
    %1602 = vmatprep.subr.bf16.mxu0 %v1380
    %1603 = vmatpush1.bf16.msra.mxu0 %v1379
    %1604 = vmatprep.subr.bf16.mxu0 %v1388
    %1605 = vmatpush1.bf16.msra.mxu0 %v1387
    %1606 = vmatprep.subr.bf16.mxu0 %v1396
    %1607 = vmatpush1.bf16.msra.mxu0 %v1395
    %1608 = vmatprep.subr.bf16.mxu0 %v1404
    %1609 = vmatpush1.bf16.msra.mxu0 %v1403
    %1610 = vmatprep.mubr.bf16.mxu0 0
    %1611 = vmatmul.mubr.bf16.gmra.mrb[0].mxu0 0
    %v1612 = vpop.f32.mrb[0].mxu0
    %v1613 = vadd.f32 0.0, %v1612
    %v1614 = vpop.f32.mrb[0].mxu0
    %v1615 = vadd.f32 0.0, %v1614
    %v1616 = vpop.f32.mrb[0].mxu0
    %v1617 = vpop.f32.mrb[0].mxu0
    %1618 = vdwg.mxu0
    %1619 = vmatprep.subr.bf16.mxu0 %v1286
    %1620 = vmatpush1.bf16.msra.mxu0 %v1285
    %1621 = vmatprep.subr.bf16.mxu0 %v1294
    %1622 = vmatpush1.bf16.msra.mxu0 %v1293
    %1623 = vmatprep.subr.bf16.mxu0 %v1302
    %1624 = vmatpush1.bf16.msra.mxu0 %v1301
    %1625 = vmatprep.subr.bf16.mxu0 %v1310
    %1626 = vmatpush1.bf16.msra.mxu0 %v1309
    %1627 = vmatprep.subr.bf16.mxu0 %v1318
    %1628 = vmatpush1.bf16.msra.mxu0 %v1317
    %1629 = vmatprep.subr.bf16.mxu0 %v1326
    %1630 = vmatpush1.bf16.msra.mxu0 %v1325
    %1631 = vmatprep.subr.bf16.mxu0 %v1334
    %1632 = vmatpush1.bf16.msra.mxu0 %v1333
    %1633 = vmatprep.subr.bf16.mxu0 %v1342
    %1634 = vmatpush1.bf16.msra.mxu0 %v1341
    %1635 = vmatprep.subr.bf16.mxu0 %v1350
    %1636 = vmatpush1.bf16.msra.mxu0 %v1349
    %1637 = vmatprep.subr.bf16.mxu0 %v1358
    %1638 = vmatpush1.bf16.msra.mxu0 %v1357
    %1639 = vmatprep.subr.bf16.mxu0 %v1366
    %1640 = vmatpush1.bf16.msra.mxu0 %v1365
    %1641 = vmatprep.subr.bf16.mxu0 %v1374
    %1642 = vmatpush1.bf16.msra.mxu0 %v1373
    %1643 = vmatprep.subr.bf16.mxu0 %v1382
    %1644 = vmatpush1.bf16.msra.mxu0 %v1381
    %1645 = vmatprep.subr.bf16.mxu0 %v1390
    %1646 = vmatpush1.bf16.msra.mxu0 %v1389
    %1647 = vmatprep.subr.bf16.mxu0 %v1398
    %1648 = vmatpush1.bf16.msra.mxu0 %v1397
    %1649 = vmatprep.subr.bf16.mxu0 %v1406
    %1650 = vmatpush1.bf16.msra.mxu0 %v1405
    %1651 = vmatprep.mubr.bf16.mxu0 0
    %1652 = vmatmul.mubr.bf16.gmra.mrb[0].mxu0 0
    %v1653 = vpop.f32.mrb[0].mxu0
    %v1654 = vadd.f32 0.0, %v1653
    %v1655 = vpop.f32.mrb[0].mxu0
    %v1656 = vadd.f32 0.0, %v1655
    %v1657 = vpop.f32.mrb[0].mxu0
    %v1658 = vpop.f32.mrb[0].mxu0
    %1659 = vdwg.mxu0
    %1660 = vmatprep.subr.bf16.mxu0 %v1288
    %1661 = vmatpush1.bf16.msra.mxu0 %v1287
    %1662 = vmatprep.subr.bf16.mxu0 %v1296
    %1663 = vmatpush1.bf16.msra.mxu0 %v1295
    %1664 = vmatprep.subr.bf16.mxu0 %v1304
    %1665 = vmatpush1.bf16.msra.mxu0 %v1303
    %1666 = vmatprep.subr.bf16.mxu0 %v1312
    %1667 = vmatpush1.bf16.msra.mxu0 %v1311
    %1668 = vmatprep.subr.bf16.mxu0 %v1320
    %1669 = vmatpush1.bf16.msra.mxu0 %v1319
    %1670 = vmatprep.subr.bf16.mxu0 %v1328
    %1671 = vmatpush1.bf16.msra.mxu0 %v1327
    %1672 = vmatprep.subr.bf16.mxu0 %v1336
    %1673 = vmatpush1.bf16.msra.mxu0 %v1335
    %1674 = vmatprep.subr.bf16.mxu0 %v1344
    %1675 = vmatpush1.bf16.msra.mxu0 %v1343
    %1676 = vmatprep.subr.bf16.mxu0 %v1352
    %1677 = vmatpush1.bf16.msra.mxu0 %v1351
    %1678 = vmatprep.subr.bf16.mxu0 %v1360
    %1679 = vmatpush1.bf16.msra.mxu0 %v1359
    %1680 = vmatprep.subr.bf16.mxu0 %v1368
    %1681 = vmatpush1.bf16.msra.mxu0 %v1367
    %1682 = vmatprep.subr.bf16.mxu0 %v1376
    %1683 = vmatpush1.bf16.msra.mxu0 %v1375
    %1684 = vmatprep.subr.bf16.mxu0 %v1384
    %1685 = vmatpush1.bf16.msra.mxu0 %v1383
    %1686 = vmatprep.subr.bf16.mxu0 %v1392
    %1687 = vmatpush1.bf16.msra.mxu0 %v1391
    %1688 = vmatprep.subr.bf16.mxu0 %v1400
    %1689 = vmatpush1.bf16.msra.mxu0 %v1399
    %1690 = vmatprep.subr.bf16.mxu0 %v1408
    %1691 = vmatpush1.bf16.msra.mxu0 %v1407
    %1692 = vmatprep.mubr.bf16.mxu0 0
    %1693 = vmatmul.mubr.bf16.gmra.mrb[0].mxu0 0
    %v1694 = vpop.f32.mrb[0].mxu0
    %v1695 = vadd.f32 0.0, %v1694
    %v1696 = vpop.f32.mrb[0].mxu0
    %v1697 = vadd.f32 0.0, %v1696
    %v1698 = vpop.f32.mrb[0].mxu0
    %v1699 = vpop.f32.mrb[0].mxu0
    %1700 = vdwg.mxu0
    %v1701 = vadd.f32 %v760, %v1572
    %v1702 = vadd.f32 %v762, %v1574
    %v1703 = vadd.f32 %v803, %v1613
    %v1704 = vadd.f32 %v805, %v1615
    %v1705 = vadd.f32 %v846, %v1654
    %v1706 = vadd.f32 %v848, %v1656
    %v1707 = vadd.f32 %v889, %v1695
    %v1708 = vadd.f32 %v891, %v1697
    %v1709 = vxor.u32 %v1701, 2147483648
    %v1710 = vxor.u32 %v1702, 2147483648
    %v1711 = vxor.u32 %v1703, 2147483648
    %v1712 = vxor.u32 %v1704, 2147483648
    %v1713 = vxor.u32 %v1705, 2147483648
    %v1714 = vxor.u32 %v1706, 2147483648
    %v1715 = vmul.f32 %v1709, 1.442695
    %v1716 = vpow.pop %v1715
    %v1717 = vmul.f32 %v1710, 1.442695
    %v1718 = vpow.pop %v1717
    %v1719 = vmul.f32 %v1711, 1.442695
    %v1720 = vpow.pop %v1719
    %v1721 = vmul.f32 %v1712, 1.442695
    %v1722 = vpow.pop %v1721
    %v1723 = vmul.f32 %v1713, 1.442695
    %v1724 = vpow.pop %v1723
    %v1725 = vmul.f32 %v1714, 1.442695
    %v1726 = vpow.pop %v1725
    %v1727 = vadd.f32 %v1716, 1.0
    %v1728 = vadd.f32 %v1718, 1.0
    %v1729 = vadd.f32 %v1720, 1.0
    %v1730 = vadd.f32 %v1722, 1.0
    %v1731 = vadd.f32 %v1724, 1.0
    %v1732 = vadd.f32 %v1726, 1.0
    %v1733 = vrcp.pop %v1727
    %v1734 = vmul.f32 1.0, %v1733
    %v1735 = vrcp.pop %v1728
    %v1736 = vmul.f32 1.0, %v1735
    %v1737 = vrcp.pop %v1729
    %v1738 = vmul.f32 1.0, %v1737
    %v1739 = vrcp.pop %v1730
    %v1740 = vmul.f32 1.0, %v1739
    %v1741 = vrcp.pop %v1731
    %v1742 = vmul.f32 1.0, %v1741
    %v1743 = vrcp.pop %v1732
    %v1744 = vmul.f32 1.0, %v1743
    %v1745 = vtanh.pop %v1707
    %v1746 = vtanh.pop %v1708
    %v1747 = vmul.f32 %v1738, 0.0
    %v1748 = vmul.f32 %v1740, 0.0
    %v1749 = vmul.f32 %v1734, %v1745
    %v1750 = vmul.f32 %v1736, %v1746
    %v1751 = vadd.f32 %v1747, %v1749
    %v1752 = vadd.f32 %v1748, %v1750
    %v1753 = vtanh.pop %v1751
    %v1754 = vtanh.pop %v1752
    %v1755 = vmul.f32 %v1742, %v1753
    %v1756 = vmul.f32 %v1744, %v1754
    %v1757 = vpack.c.bf16 %v1755, %v1755
    %v1758 = vpack.c.bf16 %v1756, %v1756
    %1759 = vmatprep.subr.bf16.mxu0 %v1282
    %1760 = vmatpush1.bf16.msra.mxu0 %v1281
    %1761 = vmatprep.subr.bf16.mxu0 %v1290
    %1762 = vmatpush1.bf16.msra.mxu0 %v1289
    %1763 = vmatprep.subr.bf16.mxu0 %v1298
    %1764 = vmatpush1.bf16.msra.mxu0 %v1297
    %1765 = vmatprep.subr.bf16.mxu0 %v1306
    %1766 = vmatpush1.bf16.msra.mxu0 %v1305
    %1767 = vmatprep.subr.bf16.mxu0 %v1314
    %1768 = vmatpush1.bf16.msra.mxu0 %v1313
    %1769 = vmatprep.subr.bf16.mxu0 %v1322
    %1770 = vmatpush1.bf16.msra.mxu0 %v1321
    %1771 = vmatprep.subr.bf16.mxu0 %v1330
    %1772 = vmatpush1.bf16.msra.mxu0 %v1329
    %1773 = vmatprep.subr.bf16.mxu0 %v1338
    %1774 = vmatpush1.bf16.msra.mxu0 %v1337
    %1775 = vmatprep.subr.bf16.mxu0 %v1346
    %1776 = vmatpush1.bf16.msra.mxu0 %v1345
    %1777 = vmatprep.subr.bf16.mxu0 %v1354
    %1778 = vmatpush1.bf16.msra.mxu0 %v1353
    %1779 = vmatprep.subr.bf16.mxu0 %v1362
    %1780 = vmatpush1.bf16.msra.mxu0 %v1361
    %1781 = vmatprep.subr.bf16.mxu0 %v1370
    %1782 = vmatpush1.bf16.msra.mxu0 %v1369
    %1783 = vmatprep.subr.bf16.mxu0 %v1378
    %1784 = vmatpush1.bf16.msra.mxu0 %v1377
    %1785 = vmatprep.subr.bf16.mxu0 %v1386
    %1786 = vmatpush1.bf16.msra.mxu0 %v1385
    %1787 = vmatprep.subr.bf16.mxu0 %v1394
    %1788 = vmatpush1.bf16.msra.mxu0 %v1393
    %1789 = vmatprep.subr.bf16.mxu0 %v1402
    %1790 = vmatpush1.bf16.msra.mxu0 %v1401
    %1791 = vmatprep.mubr.bf16.mxu0 %v1758
    %1792 = vmatmul.mubr.bf16.gmra.mrb[0].mxu0 %v1757
    %v1793 = vpop.f32.mrb[0].mxu0
    %v1794 = vadd.f32 0.0, %v1793
    %v1795 = vpop.f32.mrb[0].mxu0
    %v1796 = vadd.f32 0.0, %v1795
    %v1797 = vpop.f32.mrb[0].mxu0
    %v1798 = vpop.f32.mrb[0].mxu0
    %1799 = vdwg.mxu0
    %1800 = vmatprep.subr.bf16.mxu0 %v1284
    %1801 = vmatpush1.bf16.msra.mxu0 %v1283
    %1802 = vmatprep.subr.bf16.mxu0 %v1292
    %1803 = vmatpush1.bf16.msra.mxu0 %v1291
    %1804 = vmatprep.subr.bf16.mxu0 %v1300
    %1805 = vmatpush1.bf16.msra.mxu0 %v1299
    %1806 = vmatprep.subr.bf16.mxu0 %v1308
    %1807 = vmatpush1.bf16.msra.mxu0 %v1307
    %1808 = vmatprep.subr.bf16.mxu0 %v1316
    %1809 = vmatpush1.bf16.msra.mxu0 %v1315
    %1810 = vmatprep.subr.bf16.mxu0 %v1324
    %1811 = vmatpush1.bf16.msra.mxu0 %v1323
    %1812 = vmatprep.subr.bf16.mxu0 %v1332
    %1813 = vmatpush1.bf16.msra.mxu0 %v1331
    %1814 = vmatprep.subr.bf16.mxu0 %v1340
    %1815 = vmatpush1.bf16.msra.mxu0 %v1339
    %1816 = vmatprep.subr.bf16.mxu0 %v1348
    %1817 = vmatpush1.bf16.msra.mxu0 %v1347
    %1818 = vmatprep.subr.bf16.mxu0 %v1356
    %1819 = vmatpush1.bf16.msra.mxu0 %v1355
    %1820 = vmatprep.subr.bf16.mxu0 %v1364
    %1821 = vmatpush1.bf16.msra.mxu0 %v1363
    %1822 = vmatprep.subr.bf16.mxu0 %v1372
    %1823 = vmatpush1.bf16.msra.mxu0 %v1371
    %1824 = vmatprep.subr.bf16.mxu0 %v1380
    %1825 = vmatpush1.bf16.msra.mxu0 %v1379
    %1826 = vmatprep.subr.bf16.mxu0 %v1388
    %1827 = vmatpush1.bf16.msra.mxu0 %v1387
    %1828 = vmatprep.subr.bf16.mxu0 %v1396
    %1829 = vmatpush1.bf16.msra.mxu0 %v1395
    %1830 = vmatprep.subr.bf16.mxu0 %v1404
    %1831 = vmatpush1.bf16.msra.mxu0 %v1403
    %1832 = vmatprep.mubr.bf16.mxu0 %v1758
    %1833 = vmatmul.mubr.bf16.gmra.mrb[0].mxu0 %v1757
    %v1834 = vpop.f32.mrb[0].mxu0
    %v1835 = vadd.f32 0.0, %v1834
    %v1836 = vpop.f32.mrb[0].mxu0
    %v1837 = vadd.f32 0.0, %v1836
    %v1838 = vpop.f32.mrb[0].mxu0
    %v1839 = vpop.f32.mrb[0].mxu0
    %1840 = vdwg.mxu0
    %1841 = vmatprep.subr.bf16.mxu0 %v1286
    %1842 = vmatpush1.bf16.msra.mxu0 %v1285
    %1843 = vmatprep.subr.bf16.mxu0 %v1294
    %1844 = vmatpush1.bf16.msra.mxu0 %v1293
    %1845 = vmatprep.subr.bf16.mxu0 %v1302
    %1846 = vmatpush1.bf16.msra.mxu0 %v1301
    %1847 = vmatprep.subr.bf16.mxu0 %v1310
    %1848 = vmatpush1.bf16.msra.mxu0 %v1309
    %1849 = vmatprep.subr.bf16.mxu0 %v1318
    %1850 = vmatpush1.bf16.msra.mxu0 %v1317
    %1851 = vmatprep.subr.bf16.mxu0 %v1326
    %1852 = vmatpush1.bf16.msra.mxu0 %v1325
    %1853 = vmatprep.subr.bf16.mxu0 %v1334
    %1854 = vmatpush1.bf16.msra.mxu0 %v1333
    %1855 = vmatprep.subr.bf16.mxu0 %v1342
    %1856 = vmatpush1.bf16.msra.mxu0 %v1341
    %1857 = vmatprep.subr.bf16.mxu0 %v1350
    %1858 = vmatpush1.bf16.msra.mxu0 %v1349
    %1859 = vmatprep.subr.bf16.mxu0 %v1358
    %1860 = vmatpush1.bf16.msra.mxu0 %v1357
    %1861 = vmatprep.subr.bf16.mxu0 %v1366
    %1862 = vmatpush1.bf16.msra.mxu0 %v1365
    %1863 = vmatprep.subr.bf16.mxu0 %v1374
    %1864 = vmatpush1.bf16.msra.mxu0 %v1373
    %1865 = vmatprep.subr.bf16.mxu0 %v1382
    %1866 = vmatpush1.bf16.msra.mxu0 %v1381
    %1867 = vmatprep.subr.bf16.mxu0 %v1390
    %1868 = vmatpush1.bf16.msra.mxu0 %v1389
    %1869 = vmatprep.subr.bf16.mxu0 %v1398
    %1870 = vmatpush1.bf16.msra.mxu0 %v1397
    %1871 = vmatprep.subr.bf16.mxu0 %v1406
    %1872 = vmatpush1.bf16.msra.mxu0 %v1405
    %1873 = vmatprep.mubr.bf16.mxu0 %v1758
    %1874 = vmatmul.mubr.bf16.gmra.mrb[0].mxu0 %v1757
    %v1875 = vpop.f32.mrb[0].mxu0
    %v1876 = vadd.f32 0.0, %v1875
    %v1877 = vpop.f32.mrb[0].mxu0
    %v1878 = vadd.f32 0.0, %v1877
    %v1879 = vpop.f32.mrb[0].mxu0
    %v1880 = vpop.f32.mrb[0].mxu0
    %1881 = vdwg.mxu0
    %1882 = vmatprep.subr.bf16.mxu0 %v1288
    %1883 = vmatpush1.bf16.msra.mxu0 %v1287
    %1884 = vmatprep.subr.bf16.mxu0 %v1296
    %1885 = vmatpush1.bf16.msra.mxu0 %v1295
    %1886 = vmatprep.subr.bf16.mxu0 %v1304
    %1887 = vmatpush1.bf16.msra.mxu0 %v1303
    %1888 = vmatprep.subr.bf16.mxu0 %v1312
    %1889 = vmatpush1.bf16.msra.mxu0 %v1311
    %1890 = vmatprep.subr.bf16.mxu0 %v1320
    %1891 = vmatpush1.bf16.msra.mxu0 %v1319
    %1892 = vmatprep.subr.bf16.mxu0 %v1328
    %1893 = vmatpush1.bf16.msra.mxu0 %v1327
    %1894 = vmatprep.subr.bf16.mxu0 %v1336
    %1895 = vmatpush1.bf16.msra.mxu0 %v1335
    %1896 = vmatprep.subr.bf16.mxu0 %v1344
    %1897 = vmatpush1.bf16.msra.mxu0 %v1343
    %1898 = vmatprep.subr.bf16.mxu0 %v1352
    %1899 = vmatpush1.bf16.msra.mxu0 %v1351
    %1900 = vmatprep.subr.bf16.mxu0 %v1360
    %1901 = vmatpush1.bf16.msra.mxu0 %v1359
    %1902 = vmatprep.subr.bf16.mxu0 %v1368
    %1903 = vmatpush1.bf16.msra.mxu0 %v1367
    %1904 = vmatprep.subr.bf16.mxu0 %v1376
    %1905 = vmatpush1.bf16.msra.mxu0 %v1375
    %1906 = vmatprep.subr.bf16.mxu0 %v1384
    %1907 = vmatpush1.bf16.msra.mxu0 %v1383
    %1908 = vmatprep.subr.bf16.mxu0 %v1392
    %1909 = vmatpush1.bf16.msra.mxu0 %v1391
    %1910 = vmatprep.subr.bf16.mxu0 %v1400
    %1911 = vmatpush1.bf16.msra.mxu0 %v1399
    %1912 = vmatprep.subr.bf16.mxu0 %v1408
    %1913 = vmatpush1.bf16.msra.mxu0 %v1407
    %1914 = vmatprep.mubr.bf16.mxu0 %v1758
    %1915 = vmatmul.mubr.bf16.gmra.mrb[0].mxu0 %v1757
    %v1916 = vpop.f32.mrb[0].mxu0
    %v1917 = vadd.f32 0.0, %v1916
    %v1918 = vpop.f32.mrb[0].mxu0
    %v1919 = vadd.f32 0.0, %v1918
    %v1920 = vpop.f32.mrb[0].mxu0
    %v1921 = vpop.f32.mrb[0].mxu0
    %1922 = vdwg.mxu0
    %v1931 = vrot.slane %v1794, 6
    %v1932 = vrot.slane %v1796, 6
    %v1933 = vrot.slane %v1835, 6
    %v1934 = vrot.slane %v1837, 6
    %v1935 = vrot.slane %v1876, 6
    %v1936 = vrot.slane %v1878, 6
    %v1937 = vrot.slane %v1917, 6
    %v1938 = vrot.slane %v1919, 6
    %v1947 = vadd.f32 %v760, %v1931
    %v1948 = vadd.f32 %v762, %v1932
    %v1949 = vadd.f32 %v803, %v1933
    %v1950 = vadd.f32 %v805, %v1934
    %v1951 = vadd.f32 %v846, %v1935
    %v1952 = vadd.f32 %v848, %v1936
    %v1953 = vadd.f32 %v889, %v1937
    %v1954 = vadd.f32 %v891, %v1938
    %v1955 = vxor.u32 %v1947, 2147483648
    %v1956 = vxor.u32 %v1948, 2147483648
    %v1957 = vxor.u32 %v1949, 2147483648
    %v1958 = vxor.u32 %v1950, 2147483648
    %v1959 = vxor.u32 %v1951, 2147483648
    %v1960 = vxor.u32 %v1952, 2147483648
    %v1961 = vmul.f32 %v1955, 1.442695
    %v1962 = vpow.pop %v1961
    %v1963 = vmul.f32 %v1956, 1.442695
    %v1964 = vpow.pop %v1963
    %v1965 = vmul.f32 %v1957, 1.442695
    %v1966 = vpow.pop %v1965
    %v1967 = vmul.f32 %v1958, 1.442695
    %v1968 = vpow.pop %v1967
    %v1969 = vmul.f32 %v1959, 1.442695
    %v1970 = vpow.pop %v1969
    %v1971 = vmul.f32 %v1960, 1.442695
    %v1972 = vpow.pop %v1971
    %v1973 = vadd.f32 %v1962, 1.0
    %v1974 = vadd.f32 %v1964, 1.0
    %v1975 = vadd.f32 %v1966, 1.0
    %v1976 = vadd.f32 %v1968, 1.0
    %v1977 = vadd.f32 %v1970, 1.0
    %v1978 = vadd.f32 %v1972, 1.0
    %v1979 = vrcp.pop %v1973
    %v1980 = vmul.f32 1.0, %v1979
    %v1981 = vrcp.pop %v1974
    %v1982 = vmul.f32 1.0, %v1981
    %v1983 = vrcp.pop %v1975
    %v1984 = vmul.f32 1.0, %v1983
    %v1985 = vrcp.pop %v1976
    %v1986 = vmul.f32 1.0, %v1985
    %v1987 = vrcp.pop %v1977
    %v1988 = vmul.f32 1.0, %v1987
    %v1989 = vrcp.pop %v1978
    %v1990 = vmul.f32 1.0, %v1989
    %v1991 = vtanh.pop %v1953
    %v1992 = vtanh.pop %v1954
    %v1995 = vrot.slane %v1751, 6
    %v1996 = vrot.slane %v1752, 6
    %v1999 = vmul.f32 %v1984, %v1995
    %v2000 = vmul.f32 %v1986, %v1996
    %v2001 = vmul.f32 %v1980, %v1991
    %v2002 = vmul.f32 %v1982, %v1992
    %v2003 = vadd.f32 %v1999, %v2001
    %v2004 = vadd.f32 %v2000, %v2002
    %v2005 = vtanh.pop %v2003
    %v2006 = vtanh.pop %v2004
    %v2007 = vmul.f32 %v1988, %v2005
    %v2008 = vmul.f32 %v1990, %v2006
    %v2009 = vpack.c.bf16 %v2007, %v2007
    %v2010 = vpack.c.bf16 %v2008, %v2008
    %v2012 = vlaneseq
    %v2013 = vshrl.u32 %v2012, 7
    %v2014 = vsub.s32 0, %v2013
    %v2015 = vrot.slane %v483, %v2014
    %v2016 = vlaneseq
    %v2017 = vshrl.u32 %v2016, 7
    %v2018 = vsub.s32 1, %v2017
    %v2019 = vrot.slane %v483, %v2018
    %v2020 = vlaneseq
    %v2021 = vshrl.u32 %v2020, 7
    %v2022 = vsub.s32 2, %v2021
    %v2023 = vrot.slane %v483, %v2022
    %v2024 = vlaneseq
    %v2025 = vshrl.u32 %v2024, 7
    %v2026 = vsub.s32 3, %v2025
    %v2027 = vrot.slane %v483, %v2026
    %v2028 = vlaneseq
    %v2029 = vshrl.u32 %v2028, 7
    %v2030 = vsub.s32 4, %v2029
    %v2031 = vrot.slane %v483, %v2030
    %v2032 = vlaneseq
    %v2033 = vshrl.u32 %v2032, 7
    %v2034 = vsub.s32 5, %v2033
    %v2035 = vrot.slane %v483, %v2034
    %v2036 = vlaneseq
    %v2037 = vshrl.u32 %v2036, 7
    %v2038 = vsub.s32 6, %v2037
    %v2039 = vrot.slane %v483, %v2038
    %v2040 = vlaneseq
    %v2041 = vshrl.u32 %v2040, 7
    %v2042 = vsub.s32 7, %v2041
    %v2043 = vrot.slane %v483, %v2042
    %v2308 = vunpack.c.l.b16 %v227
    %v2309 = vunpack.c.h.b16 %v227
    %v2310 = vunpack.c.l.b16 %v228
    %v2311 = vunpack.c.h.b16 %v228
    %v2312 = vunpack.c.l.b16 %v229
    %v2313 = vunpack.c.h.b16 %v229
    %v2314 = vunpack.c.l.b16 %v230
    %v2315 = vunpack.c.h.b16 %v230
    %v2316 = vunpack.c.l.b16 %v231
    %v2317 = vunpack.c.h.b16 %v231
    %v2318 = vunpack.c.l.b16 %v232
    %v2319 = vunpack.c.h.b16 %v232
    %v2320 = vunpack.c.l.b16 %v233
    %v2321 = vunpack.c.h.b16 %v233
    %v2322 = vunpack.c.l.b16 %v234
    %v2323 = vunpack.c.h.b16 %v234
    %v2324 = vunpack.c.l.b16 %v235
    %v2325 = vunpack.c.h.b16 %v235
    %v2326 = vunpack.c.l.b16 %v236
    %v2327 = vunpack.c.h.b16 %v236
    %v2328 = vunpack.c.l.b16 %v237
    %v2329 = vunpack.c.h.b16 %v237
    %v2330 = vunpack.c.l.b16 %v238
    %v2331 = vunpack.c.h.b16 %v238
    %v2332 = vunpack.c.l.b16 %v239
    %v2333 = vunpack.c.h.b16 %v239
    %v2334 = vunpack.c.l.b16 %v240
    %v2335 = vunpack.c.h.b16 %v240
    %v2336 = vunpack.c.l.b16 %v241
    %v2337 = vunpack.c.h.b16 %v241
    %v2338 = vunpack.c.l.b16 %v242
    %v2339 = vunpack.c.h.b16 %v242
    %v2340 = vunpack.c.l.b16 %v243
    %v2341 = vunpack.c.h.b16 %v243
    %v2342 = vunpack.c.l.b16 %v244
    %v2343 = vunpack.c.h.b16 %v244
    %v2344 = vunpack.c.l.b16 %v245
    %v2345 = vunpack.c.h.b16 %v245
    %v2346 = vunpack.c.l.b16 %v246
    %v2347 = vunpack.c.h.b16 %v246
    %v2348 = vunpack.c.l.b16 %v247
    %v2349 = vunpack.c.h.b16 %v247
    %v2350 = vunpack.c.l.b16 %v248
    %v2351 = vunpack.c.h.b16 %v248
    %v2352 = vunpack.c.l.b16 %v249
    %v2353 = vunpack.c.h.b16 %v249
    %v2354 = vunpack.c.l.b16 %v250
    %v2355 = vunpack.c.h.b16 %v250
    %v2356 = vunpack.c.l.b16 %v251
    %v2357 = vunpack.c.h.b16 %v251
    %v2358 = vunpack.c.l.b16 %v252
    %v2359 = vunpack.c.h.b16 %v252
    %v2360 = vunpack.c.l.b16 %v253
    %v2361 = vunpack.c.h.b16 %v253
    %v2362 = vunpack.c.l.b16 %v254
    %v2363 = vunpack.c.h.b16 %v254
    %v2364 = vunpack.c.l.b16 %v255
    %v2365 = vunpack.c.h.b16 %v255
    %v2366 = vunpack.c.l.b16 %v256
    %v2367 = vunpack.c.h.b16 %v256
    %v2368 = vunpack.c.l.b16 %v257
    %v2369 = vunpack.c.h.b16 %v257
    %v2370 = vunpack.c.l.b16 %v258
    %v2371 = vunpack.c.h.b16 %v258
    %v2372 = vunpack.c.l.b16 %v259
    %v2373 = vunpack.c.h.b16 %v259
    %v2374 = vunpack.c.l.b16 %v260
    %v2375 = vunpack.c.h.b16 %v260
    %v2376 = vunpack.c.l.b16 %v261
    %v2377 = vunpack.c.h.b16 %v261
    %v2378 = vunpack.c.l.b16 %v262
    %v2379 = vunpack.c.h.b16 %v262
    %v2380 = vunpack.c.l.b16 %v263
    %v2381 = vunpack.c.h.b16 %v263
    %v2382 = vunpack.c.l.b16 %v264
    %v2383 = vunpack.c.h.b16 %v264
    %v2384 = vunpack.c.l.b16 %v265
    %v2385 = vunpack.c.h.b16 %v265
    %v2386 = vunpack.c.l.b16 %v266
    %v2387 = vunpack.c.h.b16 %v266
    %v2388 = vunpack.c.l.b16 %v267
    %v2389 = vunpack.c.h.b16 %v267
    %v2390 = vunpack.c.l.b16 %v268
    %v2391 = vunpack.c.h.b16 %v268
    %v2392 = vunpack.c.l.b16 %v269
    %v2393 = vunpack.c.h.b16 %v269
    %v2394 = vunpack.c.l.b16 %v270
    %v2395 = vunpack.c.h.b16 %v270
    %v2396 = vunpack.c.l.b16 %v271
    %v2397 = vunpack.c.h.b16 %v271
    %v2398 = vunpack.c.l.b16 %v272
    %v2399 = vunpack.c.h.b16 %v272
    %v2400 = vunpack.c.l.b16 %v273
    %v2401 = vunpack.c.h.b16 %v273
    %v2402 = vunpack.c.l.b16 %v274
    %v2403 = vunpack.c.h.b16 %v274
    %v2404 = vunpack.c.l.b16 %v275
    %v2405 = vunpack.c.h.b16 %v275
    %v2406 = vunpack.c.l.b16 %v276
    %v2407 = vunpack.c.h.b16 %v276
    %v2408 = vunpack.c.l.b16 %v277
    %v2409 = vunpack.c.h.b16 %v277
    %v2410 = vunpack.c.l.b16 %v278
    %v2411 = vunpack.c.h.b16 %v278
    %v2412 = vunpack.c.l.b16 %v279
    %v2413 = vunpack.c.h.b16 %v279
    %v2414 = vunpack.c.l.b16 %v280
    %v2415 = vunpack.c.h.b16 %v280
    %v2416 = vunpack.c.l.b16 %v281
    %v2417 = vunpack.c.h.b16 %v281
    %v2418 = vunpack.c.l.b16 %v282
    %v2419 = vunpack.c.h.b16 %v282
    %v2420 = vunpack.c.l.b16 %v283
    %v2421 = vunpack.c.h.b16 %v283
    %v2422 = vunpack.c.l.b16 %v284
    %v2423 = vunpack.c.h.b16 %v284
    %v2424 = vunpack.c.l.b16 %v285
    %v2425 = vunpack.c.h.b16 %v285
    %v2426 = vunpack.c.l.b16 %v286
    %v2427 = vunpack.c.h.b16 %v286
    %v2428 = vunpack.c.l.b16 %v287
    %v2429 = vunpack.c.h.b16 %v287
    %v2430 = vunpack.c.l.b16 %v288
    %v2431 = vunpack.c.h.b16 %v288
    %v2432 = vunpack.c.l.b16 %v289
    %v2433 = vunpack.c.h.b16 %v289
    %v2434 = vunpack.c.l.b16 %v290
    %v2435 = vunpack.c.h.b16 %v290
    %v2436 = vunpack.c.l.b16 %v291
    %v2437 = vunpack.c.h.b16 %v291
    %v2438 = vunpack.c.l.b16 %v292
    %v2439 = vunpack.c.h.b16 %v292
    %v2440 = vunpack.c.l.b16 %v293
    %v2441 = vunpack.c.h.b16 %v293
    %v2442 = vunpack.c.l.b16 %v294
    %v2443 = vunpack.c.h.b16 %v294
    %v2444 = vunpack.c.l.b16 %v295
    %v2445 = vunpack.c.h.b16 %v295
    %v2446 = vunpack.c.l.b16 %v296
    %v2447 = vunpack.c.h.b16 %v296
    %v2448 = vunpack.c.l.b16 %v297
    %v2449 = vunpack.c.h.b16 %v297
    %v2450 = vunpack.c.l.b16 %v298
    %v2451 = vunpack.c.h.b16 %v298
    %v2452 = vunpack.c.l.b16 %v299
    %v2453 = vunpack.c.h.b16 %v299
    %v2454 = vunpack.c.l.b16 %v300
    %v2455 = vunpack.c.h.b16 %v300
    %v2456 = vunpack.c.l.b16 %v301
    %v2457 = vunpack.c.h.b16 %v301
    %v2458 = vunpack.c.l.b16 %v302
    %v2459 = vunpack.c.h.b16 %v302
    %v2460 = vunpack.c.l.b16 %v303
    %v2461 = vunpack.c.h.b16 %v303
    %v2462 = vunpack.c.l.b16 %v304
    %v2463 = vunpack.c.h.b16 %v304
    %v2464 = vunpack.c.l.b16 %v305
    %v2465 = vunpack.c.h.b16 %v305
    %v2466 = vunpack.c.l.b16 %v306
    %v2467 = vunpack.c.h.b16 %v306
    %v2468 = vunpack.c.l.b16 %v307
    %v2469 = vunpack.c.h.b16 %v307
    %v2470 = vunpack.c.l.b16 %v308
    %v2471 = vunpack.c.h.b16 %v308
    %v2472 = vunpack.c.l.b16 %v309
    %v2473 = vunpack.c.h.b16 %v309
    %v2474 = vunpack.c.l.b16 %v310
    %v2475 = vunpack.c.h.b16 %v310
    %v2476 = vunpack.c.l.b16 %v311
    %v2477 = vunpack.c.h.b16 %v311
    %v2478 = vunpack.c.l.b16 %v312
    %v2479 = vunpack.c.h.b16 %v312
    %v2480 = vunpack.c.l.b16 %v313
    %v2481 = vunpack.c.h.b16 %v313
    %v2482 = vunpack.c.l.b16 %v314
    %v2483 = vunpack.c.h.b16 %v314
    %v2484 = vunpack.c.l.b16 %v315
    %v2485 = vunpack.c.h.b16 %v315
    %v2486 = vunpack.c.l.b16 %v316
    %v2487 = vunpack.c.h.b16 %v316
    %v2488 = vunpack.c.l.b16 %v317
    %v2489 = vunpack.c.h.b16 %v317
    %v2490 = vunpack.c.l.b16 %v318
    %v2491 = vunpack.c.h.b16 %v318
    %v2492 = vunpack.c.l.b16 %v319
    %v2493 = vunpack.c.h.b16 %v319
    %v2494 = vunpack.c.l.b16 %v320
    %v2495 = vunpack.c.h.b16 %v320
    %v2496 = vunpack.c.l.b16 %v321
    %v2497 = vunpack.c.h.b16 %v321
    %v2498 = vunpack.c.l.b16 %v322
    %v2499 = vunpack.c.h.b16 %v322
    %v2500 = vunpack.c.l.b16 %v323
    %v2501 = vunpack.c.h.b16 %v323
    %v2502 = vunpack.c.l.b16 %v324
    %v2503 = vunpack.c.h.b16 %v324
    %v2504 = vunpack.c.l.b16 %v325
    %v2505 = vunpack.c.h.b16 %v325
    %v2506 = vunpack.c.l.b16 %v326
    %v2507 = vunpack.c.h.b16 %v326
    %v2508 = vunpack.c.l.b16 %v327
    %v2509 = vunpack.c.h.b16 %v327
    %v2510 = vunpack.c.l.b16 %v328
    %v2511 = vunpack.c.h.b16 %v328
    %v2512 = vunpack.c.l.b16 %v329
    %v2513 = vunpack.c.h.b16 %v329
    %v2514 = vunpack.c.l.b16 %v330
    %v2515 = vunpack.c.h.b16 %v330
    %v2516 = vunpack.c.l.b16 %v331
    %v2517 = vunpack.c.h.b16 %v331
    %v2518 = vunpack.c.l.b16 %v332
    %v2519 = vunpack.c.h.b16 %v332
    %v2520 = vunpack.c.l.b16 %v333
    %v2521 = vunpack.c.h.b16 %v333
    %v2522 = vunpack.c.l.b16 %v334
    %v2523 = vunpack.c.h.b16 %v334
    %v2524 = vunpack.c.l.b16 %v335
    %v2525 = vunpack.c.h.b16 %v335
    %v2526 = vunpack.c.l.b16 %v336
    %v2527 = vunpack.c.h.b16 %v336
    %v2528 = vunpack.c.l.b16 %v337
    %v2529 = vunpack.c.h.b16 %v337
    %v2530 = vunpack.c.l.b16 %v338
    %v2531 = vunpack.c.h.b16 %v338
    %v2532 = vunpack.c.l.b16 %v339
    %v2533 = vunpack.c.h.b16 %v339
    %v2534 = vunpack.c.l.b16 %v340
    %v2535 = vunpack.c.h.b16 %v340
    %v2536 = vunpack.c.l.b16 %v341
    %v2537 = vunpack.c.h.b16 %v341
    %v2538 = vunpack.c.l.b16 %v342
    %v2539 = vunpack.c.h.b16 %v342
    %v2540 = vunpack.c.l.b16 %v343
    %v2541 = vunpack.c.h.b16 %v343
    %v2542 = vunpack.c.l.b16 %v344
    %v2543 = vunpack.c.h.b16 %v344
    %v2544 = vunpack.c.l.b16 %v345
    %v2545 = vunpack.c.h.b16 %v345
    %v2546 = vunpack.c.l.b16 %v346
    %v2547 = vunpack.c.h.b16 %v346
    %v2548 = vunpack.c.l.b16 %v347
    %v2549 = vunpack.c.h.b16 %v347
    %v2550 = vunpack.c.l.b16 %v348
    %v2551 = vunpack.c.h.b16 %v348
    %v2552 = vunpack.c.l.b16 %v349
    %v2553 = vunpack.c.h.b16 %v349
    %v2554 = vunpack.c.l.b16 %v350
    %v2555 = vunpack.c.h.b16 %v350
    %v2556 = vunpack.c.l.b16 %v351
    %v2557 = vunpack.c.h.b16 %v351
    %v2558 = vunpack.c.l.b16 %v352
    %v2559 = vunpack.c.h.b16 %v352
    %v2560 = vunpack.c.l.b16 %v353
    %v2561 = vunpack.c.h.b16 %v353
    %v2562 = vunpack.c.l.b16 %v354
    %v2563 = vunpack.c.h.b16 %v354
    %v2564 = vunpack.c.l.b16 %v355
    %v2565 = vunpack.c.h.b16 %v355
    %v2566 = vunpack.c.l.b16 %v356
    %v2567 = vunpack.c.h.b16 %v356
    %v2568 = vunpack.c.l.b16 %v357
    %v2569 = vunpack.c.h.b16 %v357
    %v2570 = vunpack.c.l.b16 %v358
    %v2571 = vunpack.c.h.b16 %v358
    %v2572 = vunpack.c.l.b16 %v359
    %v2573 = vunpack.c.h.b16 %v359
    %v2574 = vunpack.c.l.b16 %v360
    %v2575 = vunpack.c.h.b16 %v360
    %v2576 = vunpack.c.l.b16 %v361
    %v2577 = vunpack.c.h.b16 %v361
    %v2578 = vunpack.c.l.b16 %v362
    %v2579 = vunpack.c.h.b16 %v362
    %v2580 = vunpack.c.l.b16 %v363
    %v2581 = vunpack.c.h.b16 %v363
    %v2582 = vunpack.c.l.b16 %v364
    %v2583 = vunpack.c.h.b16 %v364
    %v2584 = vunpack.c.l.b16 %v365
    %v2585 = vunpack.c.h.b16 %v365
    %v2586 = vunpack.c.l.b16 %v366
    %v2587 = vunpack.c.h.b16 %v366
    %v2588 = vunpack.c.l.b16 %v367
    %v2589 = vunpack.c.h.b16 %v367
    %v2590 = vunpack.c.l.b16 %v368
    %v2591 = vunpack.c.h.b16 %v368
    %v2592 = vunpack.c.l.b16 %v369
    %v2593 = vunpack.c.h.b16 %v369
    %v2594 = vunpack.c.l.b16 %v370
    %v2595 = vunpack.c.h.b16 %v370
    %v2596 = vunpack.c.l.b16 %v371
    %v2597 = vunpack.c.h.b16 %v371
    %v2598 = vunpack.c.l.b16 %v372
    %v2599 = vunpack.c.h.b16 %v372
    %v2600 = vunpack.c.l.b16 %v373
    %v2601 = vunpack.c.h.b16 %v373
    %v2602 = vunpack.c.l.b16 %v374
    %v2603 = vunpack.c.h.b16 %v374
    %v2604 = vunpack.c.l.b16 %v375
    %v2605 = vunpack.c.h.b16 %v375
    %v2606 = vunpack.c.l.b16 %v376
    %v2607 = vunpack.c.h.b16 %v376
    %v2608 = vunpack.c.l.b16 %v377
    %v2609 = vunpack.c.h.b16 %v377
    %v2610 = vunpack.c.l.b16 %v378
    %v2611 = vunpack.c.h.b16 %v378
    %v2612 = vunpack.c.l.b16 %v379
    %v2613 = vunpack.c.h.b16 %v379
    %v2614 = vunpack.c.l.b16 %v380
    %v2615 = vunpack.c.h.b16 %v380
    %v2616 = vunpack.c.l.b16 %v381
    %v2617 = vunpack.c.h.b16 %v381
    %v2618 = vunpack.c.l.b16 %v382
    %v2619 = vunpack.c.h.b16 %v382
    %v2620 = vunpack.c.l.b16 %v383
    %v2621 = vunpack.c.h.b16 %v383
    %v2622 = vunpack.c.l.b16 %v384
    %v2623 = vunpack.c.h.b16 %v384
    %v2624 = vunpack.c.l.b16 %v385
    %v2625 = vunpack.c.h.b16 %v385
    %v2626 = vunpack.c.l.b16 %v386
    %v2627 = vunpack.c.h.b16 %v386
    %v2628 = vunpack.c.l.b16 %v387
    %v2629 = vunpack.c.h.b16 %v387
    %v2630 = vunpack.c.l.b16 %v388
    %v2631 = vunpack.c.h.b16 %v388
    %v2632 = vunpack.c.l.b16 %v389
    %v2633 = vunpack.c.h.b16 %v389
    %v2634 = vunpack.c.l.b16 %v390
    %v2635 = vunpack.c.h.b16 %v390
    %v2636 = vunpack.c.l.b16 %v391
    %v2637 = vunpack.c.h.b16 %v391
    %v2638 = vunpack.c.l.b16 %v392
    %v2639 = vunpack.c.h.b16 %v392
    %v2640 = vunpack.c.l.b16 %v393
    %v2641 = vunpack.c.h.b16 %v393
    %v2642 = vunpack.c.l.b16 %v394
    %v2643 = vunpack.c.h.b16 %v394
    %v2644 = vunpack.c.l.b16 %v395
    %v2645 = vunpack.c.h.b16 %v395
    %v2646 = vunpack.c.l.b16 %v396
    %v2647 = vunpack.c.h.b16 %v396
    %v2648 = vunpack.c.l.b16 %v397
    %v2649 = vunpack.c.h.b16 %v397
    %v2650 = vunpack.c.l.b16 %v398
    %v2651 = vunpack.c.h.b16 %v398
    %v2652 = vunpack.c.l.b16 %v399
    %v2653 = vunpack.c.h.b16 %v399
    %v2654 = vunpack.c.l.b16 %v400
    %v2655 = vunpack.c.h.b16 %v400
    %v2656 = vunpack.c.l.b16 %v401
    %v2657 = vunpack.c.h.b16 %v401
    %v2658 = vunpack.c.l.b16 %v402
    %v2659 = vunpack.c.h.b16 %v402
    %v2660 = vunpack.c.l.b16 %v403
    %v2661 = vunpack.c.h.b16 %v403
    %v2662 = vunpack.c.l.b16 %v404
    %v2663 = vunpack.c.h.b16 %v404
    %v2664 = vunpack.c.l.b16 %v405
    %v2665 = vunpack.c.h.b16 %v405
    %v2666 = vunpack.c.l.b16 %v406
    %v2667 = vunpack.c.h.b16 %v406
    %v2668 = vunpack.c.l.b16 %v407
    %v2669 = vunpack.c.h.b16 %v407
    %v2670 = vunpack.c.l.b16 %v408
    %v2671 = vunpack.c.h.b16 %v408
    %v2672 = vunpack.c.l.b16 %v409
    %v2673 = vunpack.c.h.b16 %v409
    %v2674 = vunpack.c.l.b16 %v410
    %v2675 = vunpack.c.h.b16 %v410
    %v2676 = vunpack.c.l.b16 %v411
    %v2677 = vunpack.c.h.b16 %v411
    %v2678 = vunpack.c.l.b16 %v412
    %v2679 = vunpack.c.h.b16 %v412
    %v2680 = vunpack.c.l.b16 %v413
    %v2681 = vunpack.c.h.b16 %v413
    %v2682 = vunpack.c.l.b16 %v414
    %v2683 = vunpack.c.h.b16 %v414
    %v2684 = vunpack.c.l.b16 %v415
    %v2685 = vunpack.c.h.b16 %v415
    %v2686 = vunpack.c.l.b16 %v416
    %v2687 = vunpack.c.h.b16 %v416
    %v2688 = vunpack.c.l.b16 %v417
    %v2689 = vunpack.c.h.b16 %v417
    %v2690 = vunpack.c.l.b16 %v418
    %v2691 = vunpack.c.h.b16 %v418
    %v2692 = vunpack.c.l.b16 %v419
    %v2693 = vunpack.c.h.b16 %v419
    %v2694 = vunpack.c.l.b16 %v420
    %v2695 = vunpack.c.h.b16 %v420
    %v2696 = vunpack.c.l.b16 %v421
    %v2697 = vunpack.c.h.b16 %v421
    %v2698 = vunpack.c.l.b16 %v422
    %v2699 = vunpack.c.h.b16 %v422
    %v2700 = vunpack.c.l.b16 %v423
    %v2701 = vunpack.c.h.b16 %v423
    %v2702 = vunpack.c.l.b16 %v424
    %v2703 = vunpack.c.h.b16 %v424
    %v2704 = vunpack.c.l.b16 %v425
    %v2705 = vunpack.c.h.b16 %v425
    %v2706 = vunpack.c.l.b16 %v426
    %v2707 = vunpack.c.h.b16 %v426
    %v2708 = vunpack.c.l.b16 %v427
    %v2709 = vunpack.c.h.b16 %v427
    %v2710 = vunpack.c.l.b16 %v428
    %v2711 = vunpack.c.h.b16 %v428
    %v2712 = vunpack.c.l.b16 %v429
    %v2713 = vunpack.c.h.b16 %v429
    %v2714 = vunpack.c.l.b16 %v430
    %v2715 = vunpack.c.h.b16 %v430
    %v2716 = vunpack.c.l.b16 %v431
    %v2717 = vunpack.c.h.b16 %v431
    %v2718 = vunpack.c.l.b16 %v432
    %v2719 = vunpack.c.h.b16 %v432
    %v2720 = vunpack.c.l.b16 %v433
    %v2721 = vunpack.c.h.b16 %v433
    %v2722 = vunpack.c.l.b16 %v434
    %v2723 = vunpack.c.h.b16 %v434
    %v2724 = vunpack.c.l.b16 %v435
    %v2725 = vunpack.c.h.b16 %v435
    %v2726 = vunpack.c.l.b16 %v436
    %v2727 = vunpack.c.h.b16 %v436
    %v2728 = vunpack.c.l.b16 %v437
    %v2729 = vunpack.c.h.b16 %v437
    %v2730 = vunpack.c.l.b16 %v438
    %v2731 = vunpack.c.h.b16 %v438
    %v2732 = vunpack.c.l.b16 %v439
    %v2733 = vunpack.c.h.b16 %v439
    %v2734 = vunpack.c.l.b16 %v440
    %v2735 = vunpack.c.h.b16 %v440
    %v2736 = vunpack.c.l.b16 %v441
    %v2737 = vunpack.c.h.b16 %v441
    %v2738 = vunpack.c.l.b16 %v442
    %v2739 = vunpack.c.h.b16 %v442
    %v2740 = vunpack.c.l.b16 %v443
    %v2741 = vunpack.c.h.b16 %v443
    %v2742 = vunpack.c.l.b16 %v444
    %v2743 = vunpack.c.h.b16 %v444
    %v2744 = vunpack.c.l.b16 %v445
    %v2745 = vunpack.c.h.b16 %v445
    %v2746 = vunpack.c.l.b16 %v446
    %v2747 = vunpack.c.h.b16 %v446
    %v2748 = vunpack.c.l.b16 %v447
    %v2749 = vunpack.c.h.b16 %v447
    %v2750 = vunpack.c.l.b16 %v448
    %v2751 = vunpack.c.h.b16 %v448
    %v2752 = vunpack.c.l.b16 %v449
    %v2753 = vunpack.c.h.b16 %v449
    %v2754 = vunpack.c.l.b16 %v450
    %v2755 = vunpack.c.h.b16 %v450
    %v2756 = vunpack.c.l.b16 %v451
    %v2757 = vunpack.c.h.b16 %v451
    %v2758 = vunpack.c.l.b16 %v452
    %v2759 = vunpack.c.h.b16 %v452
    %v2760 = vunpack.c.l.b16 %v453
    %v2761 = vunpack.c.h.b16 %v453
    %v2762 = vunpack.c.l.b16 %v454
    %v2763 = vunpack.c.h.b16 %v454
    %v2764 = vunpack.c.l.b16 %v455
    %v2765 = vunpack.c.h.b16 %v455
    %v2766 = vunpack.c.l.b16 %v456
    %v2767 = vunpack.c.h.b16 %v456
    %v2768 = vunpack.c.l.b16 %v457
    %v2769 = vunpack.c.h.b16 %v457
    %v2770 = vunpack.c.l.b16 %v458
    %v2771 = vunpack.c.h.b16 %v458
    %v2772 = vunpack.c.l.b16 %v459
    %v2773 = vunpack.c.h.b16 %v459
    %v2774 = vunpack.c.l.b16 %v460
    %v2775 = vunpack.c.h.b16 %v460
    %v2776 = vunpack.c.l.b16 %v461
    %v2777 = vunpack.c.h.b16 %v461
    %v2778 = vunpack.c.l.b16 %v462
    %v2779 = vunpack.c.h.b16 %v462
    %v2780 = vunpack.c.l.b16 %v463
    %v2781 = vunpack.c.h.b16 %v463
    %v2782 = vunpack.c.l.b16 %v464
    %v2783 = vunpack.c.h.b16 %v464
    %v2784 = vunpack.c.l.b16 %v465
    %v2785 = vunpack.c.h.b16 %v465
    %v2786 = vunpack.c.l.b16 %v466
    %v2787 = vunpack.c.h.b16 %v466
    %v2788 = vunpack.c.l.b16 %v467
    %v2789 = vunpack.c.h.b16 %v467
    %v2790 = vunpack.c.l.b16 %v468
    %v2791 = vunpack.c.h.b16 %v468
    %v2792 = vunpack.c.l.b16 %v469
    %v2793 = vunpack.c.h.b16 %v469
    %v2794 = vunpack.c.l.b16 %v470
    %v2795 = vunpack.c.h.b16 %v470
    %v2796 = vunpack.c.l.b16 %v471
    %v2797 = vunpack.c.h.b16 %v471
    %v2798 = vunpack.c.l.b16 %v472
    %v2799 = vunpack.c.h.b16 %v472
    %v2800 = vunpack.c.l.b16 %v473
    %v2801 = vunpack.c.h.b16 %v473
    %v2802 = vunpack.c.l.b16 %v474
    %v2803 = vunpack.c.h.b16 %v474
    %v2804 = vunpack.c.l.b16 %v475
    %v2805 = vunpack.c.h.b16 %v475
    %v2806 = vunpack.c.l.b16 %v476
    %v2807 = vunpack.c.h.b16 %v476
    %v2808 = vunpack.c.l.b16 %v477
    %v2809 = vunpack.c.h.b16 %v477
    %v2810 = vunpack.c.l.b16 %v478
    %v2811 = vunpack.c.h.b16 %v478
    %v2812 = vunpack.c.l.b16 %v479
    %v2813 = vunpack.c.h.b16 %v479
    %v2814 = vunpack.c.l.b16 %v480
    %v2815 = vunpack.c.h.b16 %v480
    %v2816 = vunpack.c.l.b16 %v481
    %v2817 = vunpack.c.h.b16 %v481
    %v2818 = vunpack.c.l.b16 %v482
    %v2819 = vunpack.c.h.b16 %v482
    %v2820 = vpack.c.b16 %v2316, %v2308
    %v2821 = vpack.c.b16 %v2317, %v2309
    %v2822 = vpack.c.b16 %v2318, %v2310
    %v2823 = vpack.c.b16 %v2319, %v2311
    %v2824 = vpack.c.b16 %v2320, %v2312
    %v2825 = vpack.c.b16 %v2321, %v2313
    %v2826 = vpack.c.b16 %v2322, %v2314
    %v2827 = vpack.c.b16 %v2323, %v2315
    %v2828 = vpack.c.b16 %v2332, %v2324
    %v2829 = vpack.c.b16 %v2333, %v2325
    %v2830 = vpack.c.b16 %v2334, %v2326
    %v2831 = vpack.c.b16 %v2335, %v2327
    %v2832 = vpack.c.b16 %v2336, %v2328
    %v2833 = vpack.c.b16 %v2337, %v2329
    %v2834 = vpack.c.b16 %v2338, %v2330
    %v2835 = vpack.c.b16 %v2339, %v2331
    %v2836 = vpack.c.b16 %v2348, %v2340
    %v2837 = vpack.c.b16 %v2349, %v2341
    %v2838 = vpack.c.b16 %v2350, %v2342
    %v2839 = vpack.c.b16 %v2351, %v2343
    %v2840 = vpack.c.b16 %v2352, %v2344
    %v2841 = vpack.c.b16 %v2353, %v2345
    %v2842 = vpack.c.b16 %v2354, %v2346
    %v2843 = vpack.c.b16 %v2355, %v2347
    %v2844 = vpack.c.b16 %v2364, %v2356
    %v2845 = vpack.c.b16 %v2365, %v2357
    %v2846 = vpack.c.b16 %v2366, %v2358
    %v2847 = vpack.c.b16 %v2367, %v2359
    %v2848 = vpack.c.b16 %v2368, %v2360
    %v2849 = vpack.c.b16 %v2369, %v2361
    %v2850 = vpack.c.b16 %v2370, %v2362
    %v2851 = vpack.c.b16 %v2371, %v2363
    %v2852 = vpack.c.b16 %v2380, %v2372
    %v2853 = vpack.c.b16 %v2381, %v2373
    %v2854 = vpack.c.b16 %v2382, %v2374
    %v2855 = vpack.c.b16 %v2383, %v2375
    %v2856 = vpack.c.b16 %v2384, %v2376
    %v2857 = vpack.c.b16 %v2385, %v2377
    %v2858 = vpack.c.b16 %v2386, %v2378
    %v2859 = vpack.c.b16 %v2387, %v2379
    %v2860 = vpack.c.b16 %v2396, %v2388
    %v2861 = vpack.c.b16 %v2397, %v2389
    %v2862 = vpack.c.b16 %v2398, %v2390
    %v2863 = vpack.c.b16 %v2399, %v2391
    %v2864 = vpack.c.b16 %v2400, %v2392
    %v2865 = vpack.c.b16 %v2401, %v2393
    %v2866 = vpack.c.b16 %v2402, %v2394
    %v2867 = vpack.c.b16 %v2403, %v2395
    %v2868 = vpack.c.b16 %v2412, %v2404
    %v2869 = vpack.c.b16 %v2413, %v2405
    %v2870 = vpack.c.b16 %v2414, %v2406
    %v2871 = vpack.c.b16 %v2415, %v2407
    %v2872 = vpack.c.b16 %v2416, %v2408
    %v2873 = vpack.c.b16 %v2417, %v2409
    %v2874 = vpack.c.b16 %v2418, %v2410
    %v2875 = vpack.c.b16 %v2419, %v2411
    %v2876 = vpack.c.b16 %v2428, %v2420
    %v2877 = vpack.c.b16 %v2429, %v2421
    %v2878 = vpack.c.b16 %v2430, %v2422
    %v2879 = vpack.c.b16 %v2431, %v2423
    %v2880 = vpack.c.b16 %v2432, %v2424
    %v2881 = vpack.c.b16 %v2433, %v2425
    %v2882 = vpack.c.b16 %v2434, %v2426
    %v2883 = vpack.c.b16 %v2435, %v2427
    %v2884 = vpack.c.b16 %v2444, %v2436
    %v2885 = vpack.c.b16 %v2445, %v2437
    %v2886 = vpack.c.b16 %v2446, %v2438
    %v2887 = vpack.c.b16 %v2447, %v2439
    %v2888 = vpack.c.b16 %v2448, %v2440
    %v2889 = vpack.c.b16 %v2449, %v2441
    %v2890 = vpack.c.b16 %v2450, %v2442
    %v2891 = vpack.c.b16 %v2451, %v2443
    %v2892 = vpack.c.b16 %v2460, %v2452
    %v2893 = vpack.c.b16 %v2461, %v2453
    %v2894 = vpack.c.b16 %v2462, %v2454
    %v2895 = vpack.c.b16 %v2463, %v2455
    %v2896 = vpack.c.b16 %v2464, %v2456
    %v2897 = vpack.c.b16 %v2465, %v2457
    %v2898 = vpack.c.b16 %v2466, %v2458
    %v2899 = vpack.c.b16 %v2467, %v2459
    %v2900 = vpack.c.b16 %v2476, %v2468
    %v2901 = vpack.c.b16 %v2477, %v2469
    %v2902 = vpack.c.b16 %v2478, %v2470
    %v2903 = vpack.c.b16 %v2479, %v2471
    %v2904 = vpack.c.b16 %v2480, %v2472
    %v2905 = vpack.c.b16 %v2481, %v2473
    %v2906 = vpack.c.b16 %v2482, %v2474
    %v2907 = vpack.c.b16 %v2483, %v2475
    %v2908 = vpack.c.b16 %v2492, %v2484
    %v2909 = vpack.c.b16 %v2493, %v2485
    %v2910 = vpack.c.b16 %v2494, %v2486
    %v2911 = vpack.c.b16 %v2495, %v2487
    %v2912 = vpack.c.b16 %v2496, %v2488
    %v2913 = vpack.c.b16 %v2497, %v2489
    %v2914 = vpack.c.b16 %v2498, %v2490
    %v2915 = vpack.c.b16 %v2499, %v2491
    %v2916 = vpack.c.b16 %v2508, %v2500
    %v2917 = vpack.c.b16 %v2509, %v2501
    %v2918 = vpack.c.b16 %v2510, %v2502
    %v2919 = vpack.c.b16 %v2511, %v2503
    %v2920 = vpack.c.b16 %v2512, %v2504
    %v2921 = vpack.c.b16 %v2513, %v2505
    %v2922 = vpack.c.b16 %v2514, %v2506
    %v2923 = vpack.c.b16 %v2515, %v2507
    %v2924 = vpack.c.b16 %v2524, %v2516
    %v2925 = vpack.c.b16 %v2525, %v2517
    %v2926 = vpack.c.b16 %v2526, %v2518
    %v2927 = vpack.c.b16 %v2527, %v2519
    %v2928 = vpack.c.b16 %v2528, %v2520
    %v2929 = vpack.c.b16 %v2529, %v2521
    %v2930 = vpack.c.b16 %v2530, %v2522
    %v2931 = vpack.c.b16 %v2531, %v2523
    %v2932 = vpack.c.b16 %v2540, %v2532
    %v2933 = vpack.c.b16 %v2541, %v2533
    %v2934 = vpack.c.b16 %v2542, %v2534
    %v2935 = vpack.c.b16 %v2543, %v2535
    %v2936 = vpack.c.b16 %v2544, %v2536
    %v2937 = vpack.c.b16 %v2545, %v2537
    %v2938 = vpack.c.b16 %v2546, %v2538
    %v2939 = vpack.c.b16 %v2547, %v2539
    %v2940 = vpack.c.b16 %v2556, %v2548
    %v2941 = vpack.c.b16 %v2557, %v2549
    %v2942 = vpack.c.b16 %v2558, %v2550
    %v2943 = vpack.c.b16 %v2559, %v2551
    %v2944 = vpack.c.b16 %v2560, %v2552
    %v2945 = vpack.c.b16 %v2561, %v2553
    %v2946 = vpack.c.b16 %v2562, %v2554
    %v2947 = vpack.c.b16 %v2563, %v2555
    %v2948 = vpack.c.b16 %v2572, %v2564
    %v2949 = vpack.c.b16 %v2573, %v2565
    %v2950 = vpack.c.b16 %v2574, %v2566
    %v2951 = vpack.c.b16 %v2575, %v2567
    %v2952 = vpack.c.b16 %v2576, %v2568
    %v2953 = vpack.c.b16 %v2577, %v2569
    %v2954 = vpack.c.b16 %v2578, %v2570
    %v2955 = vpack.c.b16 %v2579, %v2571
    %v2956 = vpack.c.b16 %v2588, %v2580
    %v2957 = vpack.c.b16 %v2589, %v2581
    %v2958 = vpack.c.b16 %v2590, %v2582
    %v2959 = vpack.c.b16 %v2591, %v2583
    %v2960 = vpack.c.b16 %v2592, %v2584
    %v2961 = vpack.c.b16 %v2593, %v2585
    %v2962 = vpack.c.b16 %v2594, %v2586
    %v2963 = vpack.c.b16 %v2595, %v2587
    %v2964 = vpack.c.b16 %v2604, %v2596
    %v2965 = vpack.c.b16 %v2605, %v2597
    %v2966 = vpack.c.b16 %v2606, %v2598
    %v2967 = vpack.c.b16 %v2607, %v2599
    %v2968 = vpack.c.b16 %v2608, %v2600
    %v2969 = vpack.c.b16 %v2609, %v2601
    %v2970 = vpack.c.b16 %v2610, %v2602
    %v2971 = vpack.c.b16 %v2611, %v2603
    %v2972 = vpack.c.b16 %v2620, %v2612
    %v2973 = vpack.c.b16 %v2621, %v2613
    %v2974 = vpack.c.b16 %v2622, %v2614
    %v2975 = vpack.c.b16 %v2623, %v2615
    %v2976 = vpack.c.b16 %v2624, %v2616
    %v2977 = vpack.c.b16 %v2625, %v2617
    %v2978 = vpack.c.b16 %v2626, %v2618
    %v2979 = vpack.c.b16 %v2627, %v2619
    %v2980 = vpack.c.b16 %v2636, %v2628
    %v2981 = vpack.c.b16 %v2637, %v2629
    %v2982 = vpack.c.b16 %v2638, %v2630
    %v2983 = vpack.c.b16 %v2639, %v2631
    %v2984 = vpack.c.b16 %v2640, %v2632
    %v2985 = vpack.c.b16 %v2641, %v2633
    %v2986 = vpack.c.b16 %v2642, %v2634
    %v2987 = vpack.c.b16 %v2643, %v2635
    %v2988 = vpack.c.b16 %v2652, %v2644
    %v2989 = vpack.c.b16 %v2653, %v2645
    %v2990 = vpack.c.b16 %v2654, %v2646
    %v2991 = vpack.c.b16 %v2655, %v2647
    %v2992 = vpack.c.b16 %v2656, %v2648
    %v2993 = vpack.c.b16 %v2657, %v2649
    %v2994 = vpack.c.b16 %v2658, %v2650
    %v2995 = vpack.c.b16 %v2659, %v2651
    %v2996 = vpack.c.b16 %v2668, %v2660
    %v2997 = vpack.c.b16 %v2669, %v2661
    %v2998 = vpack.c.b16 %v2670, %v2662
    %v2999 = vpack.c.b16 %v2671, %v2663
    %v3000 = vpack.c.b16 %v2672, %v2664
    %v3001 = vpack.c.b16 %v2673, %v2665
    %v3002 = vpack.c.b16 %v2674, %v2666
    %v3003 = vpack.c.b16 %v2675, %v2667
    %v3004 = vpack.c.b16 %v2684, %v2676
    %v3005 = vpack.c.b16 %v2685, %v2677
    %v3006 = vpack.c.b16 %v2686, %v2678
    %v3007 = vpack.c.b16 %v2687, %v2679
    %v3008 = vpack.c.b16 %v2688, %v2680
    %v3009 = vpack.c.b16 %v2689, %v2681
    %v3010 = vpack.c.b16 %v2690, %v2682
    %v3011 = vpack.c.b16 %v2691, %v2683
    %v3012 = vpack.c.b16 %v2700, %v2692
    %v3013 = vpack.c.b16 %v2701, %v2693
    %v3014 = vpack.c.b16 %v2702, %v2694
    %v3015 = vpack.c.b16 %v2703, %v2695
    %v3016 = vpack.c.b16 %v2704, %v2696
    %v3017 = vpack.c.b16 %v2705, %v2697
    %v3018 = vpack.c.b16 %v2706, %v2698
    %v3019 = vpack.c.b16 %v2707, %v2699
    %v3020 = vpack.c.b16 %v2716, %v2708
    %v3021 = vpack.c.b16 %v2717, %v2709
    %v3022 = vpack.c.b16 %v2718, %v2710
    %v3023 = vpack.c.b16 %v2719, %v2711
    %v3024 = vpack.c.b16 %v2720, %v2712
    %v3025 = vpack.c.b16 %v2721, %v2713
    %v3026 = vpack.c.b16 %v2722, %v2714
    %v3027 = vpack.c.b16 %v2723, %v2715
    %v3028 = vpack.c.b16 %v2732, %v2724
    %v3029 = vpack.c.b16 %v2733, %v2725
    %v3030 = vpack.c.b16 %v2734, %v2726
    %v3031 = vpack.c.b16 %v2735, %v2727
    %v3032 = vpack.c.b16 %v2736, %v2728
    %v3033 = vpack.c.b16 %v2737, %v2729
    %v3034 = vpack.c.b16 %v2738, %v2730
    %v3035 = vpack.c.b16 %v2739, %v2731
    %v3036 = vpack.c.b16 %v2748, %v2740
    %v3037 = vpack.c.b16 %v2749, %v2741
    %v3038 = vpack.c.b16 %v2750, %v2742
    %v3039 = vpack.c.b16 %v2751, %v2743
    %v3040 = vpack.c.b16 %v2752, %v2744
    %v3041 = vpack.c.b16 %v2753, %v2745
    %v3042 = vpack.c.b16 %v2754, %v2746
    %v3043 = vpack.c.b16 %v2755, %v2747
    %v3044 = vpack.c.b16 %v2764, %v2756
    %v3045 = vpack.c.b16 %v2765, %v2757
    %v3046 = vpack.c.b16 %v2766, %v2758
    %v3047 = vpack.c.b16 %v2767, %v2759
    %v3048 = vpack.c.b16 %v2768, %v2760
    %v3049 = vpack.c.b16 %v2769, %v2761
    %v3050 = vpack.c.b16 %v2770, %v2762
    %v3051 = vpack.c.b16 %v2771, %v2763
    %v3052 = vpack.c.b16 %v2780, %v2772
    %v3053 = vpack.c.b16 %v2781, %v2773
    %v3054 = vpack.c.b16 %v2782, %v2774
    %v3055 = vpack.c.b16 %v2783, %v2775
    %v3056 = vpack.c.b16 %v2784, %v2776
    %v3057 = vpack.c.b16 %v2785, %v2777
    %v3058 = vpack.c.b16 %v2786, %v2778
    %v3059 = vpack.c.b16 %v2787, %v2779
    %v3060 = vpack.c.b16 %v2796, %v2788
    %v3061 = vpack.c.b16 %v2797, %v2789
    %v3062 = vpack.c.b16 %v2798, %v2790
    %v3063 = vpack.c.b16 %v2799, %v2791
    %v3064 = vpack.c.b16 %v2800, %v2792
    %v3065 = vpack.c.b16 %v2801, %v2793
    %v3066 = vpack.c.b16 %v2802, %v2794
    %v3067 = vpack.c.b16 %v2803, %v2795
    %v3068 = vpack.c.b16 %v2812, %v2804
    %v3069 = vpack.c.b16 %v2813, %v2805
    %v3070 = vpack.c.b16 %v2814, %v2806
    %v3071 = vpack.c.b16 %v2815, %v2807
    %v3072 = vpack.c.b16 %v2816, %v2808
    %v3073 = vpack.c.b16 %v2817, %v2809
    %v3074 = vpack.c.b16 %v2818, %v2810
    %v3075 = vpack.c.b16 %v2819, %v2811
    %3332 = vmatprep.subr.bf16.mxu0 %v2821
    %3333 = vmatpush1.bf16.msra.mxu0 %v2820
    %3334 = vmatprep.subr.bf16.mxu0 %v2829
    %3335 = vmatpush1.bf16.msra.mxu0 %v2828
    %3336 = vmatprep.subr.bf16.mxu0 %v2837
    %3337 = vmatpush1.bf16.msra.mxu0 %v2836
    %3338 = vmatprep.subr.bf16.mxu0 %v2845
    %3339 = vmatpush1.bf16.msra.mxu0 %v2844
    %3340 = vmatprep.subr.bf16.mxu0 %v2853
    %3341 = vmatpush1.bf16.msra.mxu0 %v2852
    %3342 = vmatprep.subr.bf16.mxu0 %v2861
    %3343 = vmatpush1.bf16.msra.mxu0 %v2860
    %3344 = vmatprep.subr.bf16.mxu0 %v2869
    %3345 = vmatpush1.bf16.msra.mxu0 %v2868
    %3346 = vmatprep.subr.bf16.mxu0 %v2877
    %3347 = vmatpush1.bf16.msra.mxu0 %v2876
    %3348 = vmatprep.subr.bf16.mxu0 %v2885
    %3349 = vmatpush1.bf16.msra.mxu0 %v2884
    %3350 = vmatprep.subr.bf16.mxu0 %v2893
    %3351 = vmatpush1.bf16.msra.mxu0 %v2892
    %3352 = vmatprep.subr.bf16.mxu0 %v2901
    %3353 = vmatpush1.bf16.msra.mxu0 %v2900
    %3354 = vmatprep.subr.bf16.mxu0 %v2909
    %3355 = vmatpush1.bf16.msra.mxu0 %v2908
    %3356 = vmatprep.subr.bf16.mxu0 %v2917
    %3357 = vmatpush1.bf16.msra.mxu0 %v2916
    %3358 = vmatprep.subr.bf16.mxu0 %v2925
    %3359 = vmatpush1.bf16.msra.mxu0 %v2924
    %3360 = vmatprep.subr.bf16.mxu0 %v2933
    %3361 = vmatpush1.bf16.msra.mxu0 %v2932
    %3362 = vmatprep.subr.bf16.mxu0 %v2941
    %3363 = vmatpush1.bf16.msra.mxu0 %v2940
    %3364 = vmatprep.mubr.bf16.mxu0 %v1758
    %3365 = vmatmul.mubr.bf16.gmra.mrb[0].mxu0 %v1757
    %v3366 = vpop.f32.mrb[0].mxu0
    %v3367 = vadd.f32 %v2015, %v3366
    %v3368 = vpop.f32.mrb[0].mxu0
    %v3369 = vadd.f32 %v2019, %v3368
    %v3370 = vpop.f32.mrb[0].mxu0
    %v3371 = vpop.f32.mrb[0].mxu0
    %3372 = vdwg.mxu0
    %3373 = vmatprep.subr.bf16.mxu0 %v2949
    %3374 = vmatpush1.bf16.msra.mxu0 %v2948
    %3375 = vmatprep.subr.bf16.mxu0 %v2957
    %3376 = vmatpush1.bf16.msra.mxu0 %v2956
    %3377 = vmatprep.subr.bf16.mxu0 %v2965
    %3378 = vmatpush1.bf16.msra.mxu0 %v2964
    %3379 = vmatprep.subr.bf16.mxu0 %v2973
    %3380 = vmatpush1.bf16.msra.mxu0 %v2972
    %3381 = vmatprep.subr.bf16.mxu0 %v2981
    %3382 = vmatpush1.bf16.msra.mxu0 %v2980
    %3383 = vmatprep.subr.bf16.mxu0 %v2989
    %3384 = vmatpush1.bf16.msra.mxu0 %v2988
    %3385 = vmatprep.subr.bf16.mxu0 %v2997
    %3386 = vmatpush1.bf16.msra.mxu0 %v2996
    %3387 = vmatprep.subr.bf16.mxu0 %v3005
    %3388 = vmatpush1.bf16.msra.mxu0 %v3004
    %3389 = vmatprep.subr.bf16.mxu0 %v3013
    %3390 = vmatpush1.bf16.msra.mxu0 %v3012
    %3391 = vmatprep.subr.bf16.mxu0 %v3021
    %3392 = vmatpush1.bf16.msra.mxu0 %v3020
    %3393 = vmatprep.subr.bf16.mxu0 %v3029
    %3394 = vmatpush1.bf16.msra.mxu0 %v3028
    %3395 = vmatprep.subr.bf16.mxu0 %v3037
    %3396 = vmatpush1.bf16.msra.mxu0 %v3036
    %3397 = vmatprep.subr.bf16.mxu0 %v3045
    %3398 = vmatpush1.bf16.msra.mxu0 %v3044
    %3399 = vmatprep.subr.bf16.mxu0 %v3053
    %3400 = vmatpush1.bf16.msra.mxu0 %v3052
    %3401 = vmatprep.subr.bf16.mxu0 %v3061
    %3402 = vmatpush1.bf16.msra.mxu0 %v3060
    %3403 = vmatprep.subr.bf16.mxu0 %v3069
    %3404 = vmatpush1.bf16.msra.mxu0 %v3068
    %3405 = vmatprep.mubr.bf16.mxu0 0
    %3406 = vmatmul.mubr.bf16.gmra.mrb[0].mxu0 0
    %v3407 = vpop.f32.mrb[0].mxu0
    %v3408 = vadd.f32 %v3367, %v3407
    %v3409 = vpop.f32.mrb[0].mxu0
    %v3410 = vadd.f32 %v3369, %v3409
    %v3411 = vpop.f32.mrb[0].mxu0
    %v3412 = vpop.f32.mrb[0].mxu0
    %3413 = vdwg.mxu0
    %3414 = vmatprep.subr.bf16.mxu0 %v2823
    %3415 = vmatpush1.bf16.msra.mxu0 %v2822
    %3416 = vmatprep.subr.bf16.mxu0 %v2831
    %3417 = vmatpush1.bf16.msra.mxu0 %v2830
    %3418 = vmatprep.subr.bf16.mxu0 %v2839
    %3419 = vmatpush1.bf16.msra.mxu0 %v2838
    %3420 = vmatprep.subr.bf16.mxu0 %v2847
    %3421 = vmatpush1.bf16.msra.mxu0 %v2846
    %3422 = vmatprep.subr.bf16.mxu0 %v2855
    %3423 = vmatpush1.bf16.msra.mxu0 %v2854
    %3424 = vmatprep.subr.bf16.mxu0 %v2863
    %3425 = vmatpush1.bf16.msra.mxu0 %v2862
    %3426 = vmatprep.subr.bf16.mxu0 %v2871
    %3427 = vmatpush1.bf16.msra.mxu0 %v2870
    %3428 = vmatprep.subr.bf16.mxu0 %v2879
    %3429 = vmatpush1.bf16.msra.mxu0 %v2878
    %3430 = vmatprep.subr.bf16.mxu0 %v2887
    %3431 = vmatpush1.bf16.msra.mxu0 %v2886
    %3432 = vmatprep.subr.bf16.mxu0 %v2895
    %3433 = vmatpush1.bf16.msra.mxu0 %v2894
    %3434 = vmatprep.subr.bf16.mxu0 %v2903
    %3435 = vmatpush1.bf16.msra.mxu0 %v2902
    %3436 = vmatprep.subr.bf16.mxu0 %v2911
    %3437 = vmatpush1.bf16.msra.mxu0 %v2910
    %3438 = vmatprep.subr.bf16.mxu0 %v2919
    %3439 = vmatpush1.bf16.msra.mxu0 %v2918
    %3440 = vmatprep.subr.bf16.mxu0 %v2927
    %3441 = vmatpush1.bf16.msra.mxu0 %v2926
    %3442 = vmatprep.subr.bf16.mxu0 %v2935
    %3443 = vmatpush1.bf16.msra.mxu0 %v2934
    %3444 = vmatprep.subr.bf16.mxu0 %v2943
    %3445 = vmatpush1.bf16.msra.mxu0 %v2942
    %3446 = vmatprep.mubr.bf16.mxu0 %v1758
    %3447 = vmatmul.mubr.bf16.gmra.mrb[0].mxu0 %v1757
    %v3448 = vpop.f32.mrb[0].mxu0
    %v3449 = vadd.f32 %v2023, %v3448
    %v3450 = vpop.f32.mrb[0].mxu0
    %v3451 = vadd.f32 %v2027, %v3450
    %v3452 = vpop.f32.mrb[0].mxu0
    %v3453 = vpop.f32.mrb[0].mxu0
    %3454 = vdwg.mxu0
    %3455 = vmatprep.subr.bf16.mxu0 %v2951
    %3456 = vmatpush1.bf16.msra.mxu0 %v2950
    %3457 = vmatprep.subr.bf16.mxu0 %v2959
    %3458 = vmatpush1.bf16.msra.mxu0 %v2958
    %3459 = vmatprep.subr.bf16.mxu0 %v2967
    %3460 = vmatpush1.bf16.msra.mxu0 %v2966
    %3461 = vmatprep.subr.bf16.mxu0 %v2975
    %3462 = vmatpush1.bf16.msra.mxu0 %v2974
    %3463 = vmatprep.subr.bf16.mxu0 %v2983
    %3464 = vmatpush1.bf16.msra.mxu0 %v2982
    %3465 = vmatprep.subr.bf16.mxu0 %v2991
    %3466 = vmatpush1.bf16.msra.mxu0 %v2990
    %3467 = vmatprep.subr.bf16.mxu0 %v2999
    %3468 = vmatpush1.bf16.msra.mxu0 %v2998
    %3469 = vmatprep.subr.bf16.mxu0 %v3007
    %3470 = vmatpush1.bf16.msra.mxu0 %v3006
    %3471 = vmatprep.subr.bf16.mxu0 %v3015
    %3472 = vmatpush1.bf16.msra.mxu0 %v3014
    %3473 = vmatprep.subr.bf16.mxu0 %v3023
    %3474 = vmatpush1.bf16.msra.mxu0 %v3022
    %3475 = vmatprep.subr.bf16.mxu0 %v3031
    %3476 = vmatpush1.bf16.msra.mxu0 %v3030
    %3477 = vmatprep.subr.bf16.mxu0 %v3039
    %3478 = vmatpush1.bf16.msra.mxu0 %v3038
    %3479 = vmatprep.subr.bf16.mxu0 %v3047
    %3480 = vmatpush1.bf16.msra.mxu0 %v3046
    %3481 = vmatprep.subr.bf16.mxu0 %v3055
    %3482 = vmatpush1.bf16.msra.mxu0 %v3054
    %3483 = vmatprep.subr.bf16.mxu0 %v3063
    %3484 = vmatpush1.bf16.msra.mxu0 %v3062
    %3485 = vmatprep.subr.bf16.mxu0 %v3071
    %3486 = vmatpush1.bf16.msra.mxu0 %v3070
    %3487 = vmatprep.mubr.bf16.mxu0 0
    %3488 = vmatmul.mubr.bf16.gmra.mrb[0].mxu0 0
    %v3489 = vpop.f32.mrb[0].mxu0
    %v3490 = vadd.f32 %v3449, %v3489
    %v3491 = vpop.f32.mrb[0].mxu0
    %v3492 = vadd.f32 %v3451, %v3491
    %v3493 = vpop.f32.mrb[0].mxu0
    %v3494 = vpop.f32.mrb[0].mxu0
    %3495 = vdwg.mxu0
    %3496 = vmatprep.subr.bf16.mxu0 %v2825
    %3497 = vmatpush1.bf16.msra.mxu0 %v2824
    %3498 = vmatprep.subr.bf16.mxu0 %v2833
    %3499 = vmatpush1.bf16.msra.mxu0 %v2832
    %3500 = vmatprep.subr.bf16.mxu0 %v2841
    %3501 = vmatpush1.bf16.msra.mxu0 %v2840
    %3502 = vmatprep.subr.bf16.mxu0 %v2849
    %3503 = vmatpush1.bf16.msra.mxu0 %v2848
    %3504 = vmatprep.subr.bf16.mxu0 %v2857
    %3505 = vmatpush1.bf16.msra.mxu0 %v2856
    %3506 = vmatprep.subr.bf16.mxu0 %v2865
    %3507 = vmatpush1.bf16.msra.mxu0 %v2864
    %3508 = vmatprep.subr.bf16.mxu0 %v2873
    %3509 = vmatpush1.bf16.msra.mxu0 %v2872
    %3510 = vmatprep.subr.bf16.mxu0 %v2881
    %3511 = vmatpush1.bf16.msra.mxu0 %v2880
    %3512 = vmatprep.subr.bf16.mxu0 %v2889
    %3513 = vmatpush1.bf16.msra.mxu0 %v2888
    %3514 = vmatprep.subr.bf16.mxu0 %v2897
    %3515 = vmatpush1.bf16.msra.mxu0 %v2896
    %3516 = vmatprep.subr.bf16.mxu0 %v2905
    %3517 = vmatpush1.bf16.msra.mxu0 %v2904
    %3518 = vmatprep.subr.bf16.mxu0 %v2913
    %3519 = vmatpush1.bf16.msra.mxu0 %v2912
    %3520 = vmatprep.subr.bf16.mxu0 %v2921
    %3521 = vmatpush1.bf16.msra.mxu0 %v2920
    %3522 = vmatprep.subr.bf16.mxu0 %v2929
    %3523 = vmatpush1.bf16.msra.mxu0 %v2928
    %3524 = vmatprep.subr.bf16.mxu0 %v2937
    %3525 = vmatpush1.bf16.msra.mxu0 %v2936
    %3526 = vmatprep.subr.bf16.mxu0 %v2945
    %3527 = vmatpush1.bf16.msra.mxu0 %v2944
    %3528 = vmatprep.mubr.bf16.mxu0 %v1758
    %3529 = vmatmul.mubr.bf16.gmra.mrb[0].mxu0 %v1757
    %v3530 = vpop.f32.mrb[0].mxu0
    %v3531 = vadd.f32 %v2031, %v3530
    %v3532 = vpop.f32.mrb[0].mxu0
    %v3533 = vadd.f32 %v2035, %v3532
    %v3534 = vpop.f32.mrb[0].mxu0
    %v3535 = vpop.f32.mrb[0].mxu0
    %3536 = vdwg.mxu0
    %3537 = vmatprep.subr.bf16.mxu0 %v2953
    %3538 = vmatpush1.bf16.msra.mxu0 %v2952
    %3539 = vmatprep.subr.bf16.mxu0 %v2961
    %3540 = vmatpush1.bf16.msra.mxu0 %v2960
    %3541 = vmatprep.subr.bf16.mxu0 %v2969
    %3542 = vmatpush1.bf16.msra.mxu0 %v2968
    %3543 = vmatprep.subr.bf16.mxu0 %v2977
    %3544 = vmatpush1.bf16.msra.mxu0 %v2976
    %3545 = vmatprep.subr.bf16.mxu0 %v2985
    %3546 = vmatpush1.bf16.msra.mxu0 %v2984
    %3547 = vmatprep.subr.bf16.mxu0 %v2993
    %3548 = vmatpush1.bf16.msra.mxu0 %v2992
    %3549 = vmatprep.subr.bf16.mxu0 %v3001
    %3550 = vmatpush1.bf16.msra.mxu0 %v3000
    %3551 = vmatprep.subr.bf16.mxu0 %v3009
    %3552 = vmatpush1.bf16.msra.mxu0 %v3008
    %3553 = vmatprep.subr.bf16.mxu0 %v3017
    %3554 = vmatpush1.bf16.msra.mxu0 %v3016
    %3555 = vmatprep.subr.bf16.mxu0 %v3025
    %3556 = vmatpush1.bf16.msra.mxu0 %v3024
    %3557 = vmatprep.subr.bf16.mxu0 %v3033
    %3558 = vmatpush1.bf16.msra.mxu0 %v3032
    %3559 = vmatprep.subr.bf16.mxu0 %v3041
    %3560 = vmatpush1.bf16.msra.mxu0 %v3040
    %3561 = vmatprep.subr.bf16.mxu0 %v3049
    %3562 = vmatpush1.bf16.msra.mxu0 %v3048
    %3563 = vmatprep.subr.bf16.mxu0 %v3057
    %3564 = vmatpush1.bf16.msra.mxu0 %v3056
    %3565 = vmatprep.subr.bf16.mxu0 %v3065
    %3566 = vmatpush1.bf16.msra.mxu0 %v3064
    %3567 = vmatprep.subr.bf16.mxu0 %v3073
    %3568 = vmatpush1.bf16.msra.mxu0 %v3072
    %3569 = vmatprep.mubr.bf16.mxu0 0
    %3570 = vmatmul.mubr.bf16.gmra.mrb[0].mxu0 0
    %v3571 = vpop.f32.mrb[0].mxu0
    %v3572 = vadd.f32 %v3531, %v3571
    %v3573 = vpop.f32.mrb[0].mxu0
    %v3574 = vadd.f32 %v3533, %v3573
    %v3575 = vpop.f32.mrb[0].mxu0
    %v3576 = vpop.f32.mrb[0].mxu0
    %3577 = vdwg.mxu0
    %3578 = vmatprep.subr.bf16.mxu0 %v2827
    %3579 = vmatpush1.bf16.msra.mxu0 %v2826
    %3580 = vmatprep.subr.bf16.mxu0 %v2835
    %3581 = vmatpush1.bf16.msra.mxu0 %v2834
    %3582 = vmatprep.subr.bf16.mxu0 %v2843
    %3583 = vmatpush1.bf16.msra.mxu0 %v2842
    %3584 = vmatprep.subr.bf16.mxu0 %v2851
    %3585 = vmatpush1.bf16.msra.mxu0 %v2850
    %3586 = vmatprep.subr.bf16.mxu0 %v2859
    %3587 = vmatpush1.bf16.msra.mxu0 %v2858
    %3588 = vmatprep.subr.bf16.mxu0 %v2867
    %3589 = vmatpush1.bf16.msra.mxu0 %v2866
    %3590 = vmatprep.subr.bf16.mxu0 %v2875
    %3591 = vmatpush1.bf16.msra.mxu0 %v2874
    %3592 = vmatprep.subr.bf16.mxu0 %v2883
    %3593 = vmatpush1.bf16.msra.mxu0 %v2882
    %3594 = vmatprep.subr.bf16.mxu0 %v2891
    %3595 = vmatpush1.bf16.msra.mxu0 %v2890
    %3596 = vmatprep.subr.bf16.mxu0 %v2899
    %3597 = vmatpush1.bf16.msra.mxu0 %v2898
    %3598 = vmatprep.subr.bf16.mxu0 %v2907
    %3599 = vmatpush1.bf16.msra.mxu0 %v2906
    %3600 = vmatprep.subr.bf16.mxu0 %v2915
    %3601 = vmatpush1.bf16.msra.mxu0 %v2914
    %3602 = vmatprep.subr.bf16.mxu0 %v2923
    %3603 = vmatpush1.bf16.msra.mxu0 %v2922
    %3604 = vmatprep.subr.bf16.mxu0 %v2931
    %3605 = vmatpush1.bf16.msra.mxu0 %v2930
    %3606 = vmatprep.subr.bf16.mxu0 %v2939
    %3607 = vmatpush1.bf16.msra.mxu0 %v2938
    %3608 = vmatprep.subr.bf16.mxu0 %v2947
    %3609 = vmatpush1.bf16.msra.mxu0 %v2946
    %3610 = vmatprep.mubr.bf16.mxu0 %v1758
    %3611 = vmatmul.mubr.bf16.gmra.mrb[0].mxu0 %v1757
    %v3612 = vpop.f32.mrb[0].mxu0
    %v3613 = vadd.f32 %v2039, %v3612
    %v3614 = vpop.f32.mrb[0].mxu0
    %v3615 = vadd.f32 %v2043, %v3614
    %v3616 = vpop.f32.mrb[0].mxu0
    %v3617 = vpop.f32.mrb[0].mxu0
    %3618 = vdwg.mxu0
    %3619 = vmatprep.subr.bf16.mxu0 %v2955
    %3620 = vmatpush1.bf16.msra.mxu0 %v2954
    %3621 = vmatprep.subr.bf16.mxu0 %v2963
    %3622 = vmatpush1.bf16.msra.mxu0 %v2962
    %3623 = vmatprep.subr.bf16.mxu0 %v2971
    %3624 = vmatpush1.bf16.msra.mxu0 %v2970
    %3625 = vmatprep.subr.bf16.mxu0 %v2979
    %3626 = vmatpush1.bf16.msra.mxu0 %v2978
    %3627 = vmatprep.subr.bf16.mxu0 %v2987
    %3628 = vmatpush1.bf16.msra.mxu0 %v2986
    %3629 = vmatprep.subr.bf16.mxu0 %v2995
    %3630 = vmatpush1.bf16.msra.mxu0 %v2994
    %3631 = vmatprep.subr.bf16.mxu0 %v3003
    %3632 = vmatpush1.bf16.msra.mxu0 %v3002
    %3633 = vmatprep.subr.bf16.mxu0 %v3011
    %3634 = vmatpush1.bf16.msra.mxu0 %v3010
    %3635 = vmatprep.subr.bf16.mxu0 %v3019
    %3636 = vmatpush1.bf16.msra.mxu0 %v3018
    %3637 = vmatprep.subr.bf16.mxu0 %v3027
    %3638 = vmatpush1.bf16.msra.mxu0 %v3026
    %3639 = vmatprep.subr.bf16.mxu0 %v3035
    %3640 = vmatpush1.bf16.msra.mxu0 %v3034
    %3641 = vmatprep.subr.bf16.mxu0 %v3043
    %3642 = vmatpush1.bf16.msra.mxu0 %v3042
    %3643 = vmatprep.subr.bf16.mxu0 %v3051
    %3644 = vmatpush1.bf16.msra.mxu0 %v3050
    %3645 = vmatprep.subr.bf16.mxu0 %v3059
    %3646 = vmatpush1.bf16.msra.mxu0 %v3058
    %3647 = vmatprep.subr.bf16.mxu0 %v3067
    %3648 = vmatpush1.bf16.msra.mxu0 %v3066
    %3649 = vmatprep.subr.bf16.mxu0 %v3075
    %3650 = vmatpush1.bf16.msra.mxu0 %v3074
    %3651 = vmatprep.mubr.bf16.mxu0 0
    %3652 = vmatmul.mubr.bf16.gmra.mrb[0].mxu0 0
    %v3653 = vpop.f32.mrb[0].mxu0
    %v3654 = vadd.f32 %v3613, %v3653
    %v3655 = vpop.f32.mrb[0].mxu0
    %v3656 = vadd.f32 %v3615, %v3655
    %v3657 = vpop.f32.mrb[0].mxu0
    %v3658 = vpop.f32.mrb[0].mxu0
    %3659 = vdwg.mxu0
    %v3660 = vxor.u32 %v3408, 2147483648
    %v3661 = vxor.u32 %v3410, 2147483648
    %v3662 = vxor.u32 %v3490, 2147483648
    %v3663 = vxor.u32 %v3492, 2147483648
    %v3664 = vxor.u32 %v3572, 2147483648
    %v3665 = vxor.u32 %v3574, 2147483648
    %v3666 = vmul.f32 %v3660, 1.442695
    %v3667 = vpow.pop %v3666
    %v3668 = vmul.f32 %v3661, 1.442695
    %v3669 = vpow.pop %v3668
    %v3670 = vmul.f32 %v3662, 1.442695
    %v3671 = vpow.pop %v3670
    %v3672 = vmul.f32 %v3663, 1.442695
    %v3673 = vpow.pop %v3672
    %v3674 = vmul.f32 %v3664, 1.442695
    %v3675 = vpow.pop %v3674
    %v3676 = vmul.f32 %v3665, 1.442695
    %v3677 = vpow.pop %v3676
    %v3678 = vadd.f32 %v3667, 1.0
    %v3679 = vadd.f32 %v3669, 1.0
    %v3680 = vadd.f32 %v3671, 1.0
    %v3681 = vadd.f32 %v3673, 1.0
    %v3682 = vadd.f32 %v3675, 1.0
    %v3683 = vadd.f32 %v3677, 1.0
    %v3684 = vrcp.pop %v3678
    %v3685 = vmul.f32 1.0, %v3684
    %v3686 = vrcp.pop %v3679
    %v3687 = vmul.f32 1.0, %v3686
    %v3688 = vrcp.pop %v3680
    %v3689 = vmul.f32 1.0, %v3688
    %v3690 = vrcp.pop %v3681
    %v3691 = vmul.f32 1.0, %v3690
    %v3692 = vrcp.pop %v3682
    %v3693 = vmul.f32 1.0, %v3692
    %v3694 = vrcp.pop %v3683
    %v3695 = vmul.f32 1.0, %v3694
    %v3696 = vtanh.pop %v3654
    %v3697 = vtanh.pop %v3656
    %v3698 = vmul.f32 %v3689, 0.0
    %v3699 = vmul.f32 %v3691, 0.0
    %v3700 = vmul.f32 %v3685, %v3696
    %v3701 = vmul.f32 %v3687, %v3697
    %v3702 = vadd.f32 %v3698, %v3700
    %v3703 = vadd.f32 %v3699, %v3701
    %v3704 = vtanh.pop %v3702
    %v3705 = vtanh.pop %v3703
    %v3706 = vmul.f32 %v3693, %v3704
    %v3707 = vmul.f32 %v3695, %v3705
    %v3708 = vpack.c.bf16 %v3706, %v3706
    %v3709 = vpack.c.bf16 %v3707, %v3707
    %v3712 = vrot.slane %v2009, 1
    %v3713 = vrot.slane %v2010, 1
    %3716 = vmatprep.subr.bf16.mxu0 %v1282
    %3717 = vmatpush1.bf16.msra.mxu0 %v1281
    %3718 = vmatprep.subr.bf16.mxu0 %v1290
    %3719 = vmatpush1.bf16.msra.mxu0 %v1289
    %3720 = vmatprep.subr.bf16.mxu0 %v1298
    %3721 = vmatpush1.bf16.msra.mxu0 %v1297
    %3722 = vmatprep.subr.bf16.mxu0 %v1306
    %3723 = vmatpush1.bf16.msra.mxu0 %v1305
    %3724 = vmatprep.subr.bf16.mxu0 %v1314
    %3725 = vmatpush1.bf16.msra.mxu0 %v1313
    %3726 = vmatprep.subr.bf16.mxu0 %v1322
    %3727 = vmatpush1.bf16.msra.mxu0 %v1321
    %3728 = vmatprep.subr.bf16.mxu0 %v1330
    %3729 = vmatpush1.bf16.msra.mxu0 %v1329
    %3730 = vmatprep.subr.bf16.mxu0 %v1338
    %3731 = vmatpush1.bf16.msra.mxu0 %v1337
    %3732 = vmatprep.subr.bf16.mxu0 %v1346
    %3733 = vmatpush1.bf16.msra.mxu0 %v1345
    %3734 = vmatprep.subr.bf16.mxu0 %v1354
    %3735 = vmatpush1.bf16.msra.mxu0 %v1353
    %3736 = vmatprep.subr.bf16.mxu0 %v1362
    %3737 = vmatpush1.bf16.msra.mxu0 %v1361
    %3738 = vmatprep.subr.bf16.mxu0 %v1370
    %3739 = vmatpush1.bf16.msra.mxu0 %v1369
    %3740 = vmatprep.subr.bf16.mxu0 %v1378
    %3741 = vmatpush1.bf16.msra.mxu0 %v1377
    %3742 = vmatprep.subr.bf16.mxu0 %v1386
    %3743 = vmatpush1.bf16.msra.mxu0 %v1385
    %3744 = vmatprep.subr.bf16.mxu0 %v1394
    %3745 = vmatpush1.bf16.msra.mxu0 %v1393
    %3746 = vmatprep.subr.bf16.mxu0 %v1402
    %3747 = vmatpush1.bf16.msra.mxu0 %v1401
    %3748 = vmatprep.mubr.bf16.mxu0 %v3713
    %3749 = vmatmul.mubr.bf16.gmra.mrb[0].mxu0 %v3712
    %v3750 = vpop.f32.mrb[0].mxu0
    %v3751 = vadd.f32 0.0, %v3750
    %v3752 = vpop.f32.mrb[0].mxu0
    %v3753 = vadd.f32 0.0, %v3752
    %v3754 = vpop.f32.mrb[0].mxu0
    %v3755 = vpop.f32.mrb[0].mxu0
    %3756 = vdwg.mxu0
    %3757 = vmatprep.subr.bf16.mxu0 %v1284
    %3758 = vmatpush1.bf16.msra.mxu0 %v1283
    %3759 = vmatprep.subr.bf16.mxu0 %v1292
    %3760 = vmatpush1.bf16.msra.mxu0 %v1291
    %3761 = vmatprep.subr.bf16.mxu0 %v1300
    %3762 = vmatpush1.bf16.msra.mxu0 %v1299
    %3763 = vmatprep.subr.bf16.mxu0 %v1308
    %3764 = vmatpush1.bf16.msra.mxu0 %v1307
    %3765 = vmatprep.subr.bf16.mxu0 %v1316
    %3766 = vmatpush1.bf16.msra.mxu0 %v1315
    %3767 = vmatprep.subr.bf16.mxu0 %v1324
    %3768 = vmatpush1.bf16.msra.mxu0 %v1323
    %3769 = vmatprep.subr.bf16.mxu0 %v1332
    %3770 = vmatpush1.bf16.msra.mxu0 %v1331
    %3771 = vmatprep.subr.bf16.mxu0 %v1340
    %3772 = vmatpush1.bf16.msra.mxu0 %v1339
    %3773 = vmatprep.subr.bf16.mxu0 %v1348
    %3774 = vmatpush1.bf16.msra.mxu0 %v1347
    %3775 = vmatprep.subr.bf16.mxu0 %v1356
    %3776 = vmatpush1.bf16.msra.mxu0 %v1355
    %3777 = vmatprep.subr.bf16.mxu0 %v1364
    %3778 = vmatpush1.bf16.msra.mxu0 %v1363
    %3779 = vmatprep.subr.bf16.mxu0 %v1372
    %3780 = vmatpush1.bf16.msra.mxu0 %v1371
    %3781 = vmatprep.subr.bf16.mxu0 %v1380
    %3782 = vmatpush1.bf16.msra.mxu0 %v1379
    %3783 = vmatprep.subr.bf16.mxu0 %v1388
    %3784 = vmatpush1.bf16.msra.mxu0 %v1387
    %3785 = vmatprep.subr.bf16.mxu0 %v1396
    %3786 = vmatpush1.bf16.msra.mxu0 %v1395
    %3787 = vmatprep.subr.bf16.mxu0 %v1404
    %3788 = vmatpush1.bf16.msra.mxu0 %v1403
    %3789 = vmatprep.mubr.bf16.mxu0 %v3713
    %3790 = vmatmul.mubr.bf16.gmra.mrb[0].mxu0 %v3712
    %v3791 = vpop.f32.mrb[0].mxu0
    %v3792 = vadd.f32 0.0, %v3791
    %v3793 = vpop.f32.mrb[0].mxu0
    %v3794 = vadd.f32 0.0, %v3793
    %v3795 = vpop.f32.mrb[0].mxu0
    %v3796 = vpop.f32.mrb[0].mxu0
    %3797 = vdwg.mxu0
    %3798 = vmatprep.subr.bf16.mxu0 %v1286
    %3799 = vmatpush1.bf16.msra.mxu0 %v1285
    %3800 = vmatprep.subr.bf16.mxu0 %v1294
    %3801 = vmatpush1.bf16.msra.mxu0 %v1293
    %3802 = vmatprep.subr.bf16.mxu0 %v1302
    %3803 = vmatpush1.bf16.msra.mxu0 %v1301
    %3804 = vmatprep.subr.bf16.mxu0 %v1310
    %3805 = vmatpush1.bf16.msra.mxu0 %v1309
    %3806 = vmatprep.subr.bf16.mxu0 %v1318
    %3807 = vmatpush1.bf16.msra.mxu0 %v1317
    %3808 = vmatprep.subr.bf16.mxu0 %v1326
    %3809 = vmatpush1.bf16.msra.mxu0 %v1325
    %3810 = vmatprep.subr.bf16.mxu0 %v1334
    %3811 = vmatpush1.bf16.msra.mxu0 %v1333
    %3812 = vmatprep.subr.bf16.mxu0 %v1342
    %3813 = vmatpush1.bf16.msra.mxu0 %v1341
    %3814 = vmatprep.subr.bf16.mxu0 %v1350
    %3815 = vmatpush1.bf16.msra.mxu0 %v1349
    %3816 = vmatprep.subr.bf16.mxu0 %v1358
    %3817 = vmatpush1.bf16.msra.mxu0 %v1357
    %3818 = vmatprep.subr.bf16.mxu0 %v1366
    %3819 = vmatpush1.bf16.msra.mxu0 %v1365
    %3820 = vmatprep.subr.bf16.mxu0 %v1374
    %3821 = vmatpush1.bf16.msra.mxu0 %v1373
    %3822 = vmatprep.subr.bf16.mxu0 %v1382
    %3823 = vmatpush1.bf16.msra.mxu0 %v1381
    %3824 = vmatprep.subr.bf16.mxu0 %v1390
    %3825 = vmatpush1.bf16.msra.mxu0 %v1389
    %3826 = vmatprep.subr.bf16.mxu0 %v1398
    %3827 = vmatpush1.bf16.msra.mxu0 %v1397
    %3828 = vmatprep.subr.bf16.mxu0 %v1406
    %3829 = vmatpush1.bf16.msra.mxu0 %v1405
    %3830 = vmatprep.mubr.bf16.mxu0 %v3713
    %3831 = vmatmul.mubr.bf16.gmra.mrb[0].mxu0 %v3712
    %v3832 = vpop.f32.mrb[0].mxu0
    %v3833 = vadd.f32 0.0, %v3832
    %v3834 = vpop.f32.mrb[0].mxu0
    %v3835 = vadd.f32 0.0, %v3834
    %v3836 = vpop.f32.mrb[0].mxu0
    %v3837 = vpop.f32.mrb[0].mxu0
    %3838 = vdwg.mxu0
    %3839 = vmatprep.subr.bf16.mxu0 %v1288
    %3840 = vmatpush1.bf16.msra.mxu0 %v1287
    %3841 = vmatprep.subr.bf16.mxu0 %v1296
    %3842 = vmatpush1.bf16.msra.mxu0 %v1295
    %3843 = vmatprep.subr.bf16.mxu0 %v1304
    %3844 = vmatpush1.bf16.msra.mxu0 %v1303
    %3845 = vmatprep.subr.bf16.mxu0 %v1312
    %3846 = vmatpush1.bf16.msra.mxu0 %v1311
    %3847 = vmatprep.subr.bf16.mxu0 %v1320
    %3848 = vmatpush1.bf16.msra.mxu0 %v1319
    %3849 = vmatprep.subr.bf16.mxu0 %v1328
    %3850 = vmatpush1.bf16.msra.mxu0 %v1327
    %3851 = vmatprep.subr.bf16.mxu0 %v1336
    %3852 = vmatpush1.bf16.msra.mxu0 %v1335
    %3853 = vmatprep.subr.bf16.mxu0 %v1344
    %3854 = vmatpush1.bf16.msra.mxu0 %v1343
    %3855 = vmatprep.subr.bf16.mxu0 %v1352
    %3856 = vmatpush1.bf16.msra.mxu0 %v1351
    %3857 = vmatprep.subr.bf16.mxu0 %v1360
    %3858 = vmatpush1.bf16.msra.mxu0 %v1359
    %3859 = vmatprep.subr.bf16.mxu0 %v1368
    %3860 = vmatpush1.bf16.msra.mxu0 %v1367
    %3861 = vmatprep.subr.bf16.mxu0 %v1376
    %3862 = vmatpush1.bf16.msra.mxu0 %v1375
    %3863 = vmatprep.subr.bf16.mxu0 %v1384
    %3864 = vmatpush1.bf16.msra.mxu0 %v1383
    %3865 = vmatprep.subr.bf16.mxu0 %v1392
    %3866 = vmatpush1.bf16.msra.mxu0 %v1391
    %3867 = vmatprep.subr.bf16.mxu0 %v1400
    %3868 = vmatpush1.bf16.msra.mxu0 %v1399
    %3869 = vmatprep.subr.bf16.mxu0 %v1408
    %3870 = vmatpush1.bf16.msra.mxu0 %v1407
    %3871 = vmatprep.mubr.bf16.mxu0 %v3713
    %3872 = vmatmul.mubr.bf16.gmra.mrb[0].mxu0 %v3712
    %v3873 = vpop.f32.mrb[0].mxu0
    %v3874 = vadd.f32 0.0, %v3873
    %v3875 = vpop.f32.mrb[0].mxu0
    %v3876 = vadd.f32 0.0, %v3875
    %v3877 = vpop.f32.mrb[0].mxu0
    %v3878 = vpop.f32.mrb[0].mxu0
    %3879 = vdwg.mxu0
    %v3888 = vrot.slane %v3751, 4
    %v3889 = vrot.slane %v3753, 4
    %v3890 = vrot.slane %v3792, 4
    %v3891 = vrot.slane %v3794, 4
    %v3892 = vrot.slane %v3833, 4
    %v3893 = vrot.slane %v3835, 4
    %v3894 = vrot.slane %v3874, 4
    %v3895 = vrot.slane %v3876, 4
    %v3904 = vadd.f32 %v760, %v3888
    %v3905 = vadd.f32 %v762, %v3889
    %v3906 = vadd.f32 %v803, %v3890
    %v3907 = vadd.f32 %v805, %v3891
    %v3908 = vadd.f32 %v846, %v3892
    %v3909 = vadd.f32 %v848, %v3893
    %v3910 = vadd.f32 %v889, %v3894
    %v3911 = vadd.f32 %v891, %v3895
    %v3912 = vxor.u32 %v3904, 2147483648
    %v3913 = vxor.u32 %v3905, 2147483648
    %v3914 = vxor.u32 %v3906, 2147483648
    %v3915 = vxor.u32 %v3907, 2147483648
    %v3916 = vxor.u32 %v3908, 2147483648
    %v3917 = vxor.u32 %v3909, 2147483648
    %v3918 = vmul.f32 %v3912, 1.442695
    %v3919 = vpow.pop %v3918
    %v3920 = vmul.f32 %v3913, 1.442695
    %v3921 = vpow.pop %v3920
    %v3922 = vmul.f32 %v3914, 1.442695
    %v3923 = vpow.pop %v3922
    %v3924 = vmul.f32 %v3915, 1.442695
    %v3925 = vpow.pop %v3924
    %v3926 = vmul.f32 %v3916, 1.442695
    %v3927 = vpow.pop %v3926
    %v3928 = vmul.f32 %v3917, 1.442695
    %v3929 = vpow.pop %v3928
    %v3930 = vadd.f32 %v3919, 1.0
    %v3931 = vadd.f32 %v3921, 1.0
    %v3932 = vadd.f32 %v3923, 1.0
    %v3933 = vadd.f32 %v3925, 1.0
    %v3934 = vadd.f32 %v3927, 1.0
    %v3935 = vadd.f32 %v3929, 1.0
    %v3936 = vrcp.pop %v3930
    %v3937 = vmul.f32 1.0, %v3936
    %v3938 = vrcp.pop %v3931
    %v3939 = vmul.f32 1.0, %v3938
    %v3940 = vrcp.pop %v3932
    %v3941 = vmul.f32 1.0, %v3940
    %v3942 = vrcp.pop %v3933
    %v3943 = vmul.f32 1.0, %v3942
    %v3944 = vrcp.pop %v3934
    %v3945 = vmul.f32 1.0, %v3944
    %v3946 = vrcp.pop %v3935
    %v3947 = vmul.f32 1.0, %v3946
    %v3948 = vtanh.pop %v3910
    %v3949 = vtanh.pop %v3911
    %v3952 = vrot.slane %v2003, 6
    %v3953 = vrot.slane %v2004, 6
    %v3956 = vmul.f32 %v3941, %v3952
    %v3957 = vmul.f32 %v3943, %v3953
    %v3958 = vmul.f32 %v3937, %v3948
    %v3959 = vmul.f32 %v3939, %v3949
    %v3960 = vadd.f32 %v3956, %v3958
    %v3961 = vadd.f32 %v3957, %v3959
    %v3962 = vtanh.pop %v3960
    %v3963 = vtanh.pop %v3961
    %v3964 = vmul.f32 %v3945, %v3962
    %v3965 = vmul.f32 %v3947, %v3963
    %v3966 = vpack.c.bf16 %v3964, %v3964
    %v3967 = vpack.c.bf16 %v3965, %v3965
    %v3970 = vrot.slane %v3708, 7
    %v3971 = vrot.slane %v3709, 7
    %v3972 = vrot.slane %v3970, 1
    %v3973 = vrot.slane %v3971, 1
    %3976 = vmatprep.subr.bf16.mxu0 %v2821
    %3977 = vmatpush1.bf16.msra.mxu0 %v2820
    %3978 = vmatprep.subr.bf16.mxu0 %v2829
    %3979 = vmatpush1.bf16.msra.mxu0 %v2828
    %3980 = vmatprep.subr.bf16.mxu0 %v2837
    %3981 = vmatpush1.bf16.msra.mxu0 %v2836
    %3982 = vmatprep.subr.bf16.mxu0 %v2845
    %3983 = vmatpush1.bf16.msra.mxu0 %v2844
    %3984 = vmatprep.subr.bf16.mxu0 %v2853
    %3985 = vmatpush1.bf16.msra.mxu0 %v2852
    %3986 = vmatprep.subr.bf16.mxu0 %v2861
    %3987 = vmatpush1.bf16.msra.mxu0 %v2860
    %3988 = vmatprep.subr.bf16.mxu0 %v2869
    %3989 = vmatpush1.bf16.msra.mxu0 %v2868
    %3990 = vmatprep.subr.bf16.mxu0 %v2877
    %3991 = vmatpush1.bf16.msra.mxu0 %v2876
    %3992 = vmatprep.subr.bf16.mxu0 %v2885
    %3993 = vmatpush1.bf16.msra.mxu0 %v2884
    %3994 = vmatprep.subr.bf16.mxu0 %v2893
    %3995 = vmatpush1.bf16.msra.mxu0 %v2892
    %3996 = vmatprep.subr.bf16.mxu0 %v2901
    %3997 = vmatpush1.bf16.msra.mxu0 %v2900
    %3998 = vmatprep.subr.bf16.mxu0 %v2909
    %3999 = vmatpush1.bf16.msra.mxu0 %v2908
    %4000 = vmatprep.subr.bf16.mxu0 %v2917
    %4001 = vmatpush1.bf16.msra.mxu0 %v2916
    %4002 = vmatprep.subr.bf16.mxu0 %v2925
    %4003 = vmatpush1.bf16.msra.mxu0 %v2924
    %4004 = vmatprep.subr.bf16.mxu0 %v2933
    %4005 = vmatpush1.bf16.msra.mxu0 %v2932
    %4006 = vmatprep.subr.bf16.mxu0 %v2941
    %4007 = vmatpush1.bf16.msra.mxu0 %v2940
    %4008 = vmatprep.mubr.bf16.mxu0 %v3713
    %4009 = vmatmul.mubr.bf16.gmra.mrb[0].mxu0 %v3712
    %v4010 = vpop.f32.mrb[0].mxu0
    %v4011 = vadd.f32 %v2015, %v4010
    %v4012 = vpop.f32.mrb[0].mxu0
    %v4013 = vadd.f32 %v2019, %v4012
    %v4014 = vpop.f32.mrb[0].mxu0
    %v4015 = vpop.f32.mrb[0].mxu0
    %4016 = vdwg.mxu0
    %4017 = vmatprep.subr.bf16.mxu0 %v2949
    %4018 = vmatpush1.bf16.msra.mxu0 %v2948
    %4019 = vmatprep.subr.bf16.mxu0 %v2957
    %4020 = vmatpush1.bf16.msra.mxu0 %v2956
    %4021 = vmatprep.subr.bf16.mxu0 %v2965
    %4022 = vmatpush1.bf16.msra.mxu0 %v2964
    %4023 = vmatprep.subr.bf16.mxu0 %v2973
    %4024 = vmatpush1.bf16.msra.mxu0 %v2972
    %4025 = vmatprep.subr.bf16.mxu0 %v2981
    %4026 = vmatpush1.bf16.msra.mxu0 %v2980
    %4027 = vmatprep.subr.bf16.mxu0 %v2989
    %4028 = vmatpush1.bf16.msra.mxu0 %v2988
    %4029 = vmatprep.subr.bf16.mxu0 %v2997
    %4030 = vmatpush1.bf16.msra.mxu0 %v2996
    %4031 = vmatprep.subr.bf16.mxu0 %v3005
    %4032 = vmatpush1.bf16.msra.mxu0 %v3004
    %4033 = vmatprep.subr.bf16.mxu0 %v3013
    %4034 = vmatpush1.bf16.msra.mxu0 %v3012
    %4035 = vmatprep.subr.bf16.mxu0 %v3021
    %4036 = vmatpush1.bf16.msra.mxu0 %v3020
    %4037 = vmatprep.subr.bf16.mxu0 %v3029
    %4038 = vmatpush1.bf16.msra.mxu0 %v3028
    %4039 = vmatprep.subr.bf16.mxu0 %v3037
    %4040 = vmatpush1.bf16.msra.mxu0 %v3036
    %4041 = vmatprep.subr.bf16.mxu0 %v3045
    %4042 = vmatpush1.bf16.msra.mxu0 %v3044
    %4043 = vmatprep.subr.bf16.mxu0 %v3053
    %4044 = vmatpush1.bf16.msra.mxu0 %v3052
    %4045 = vmatprep.subr.bf16.mxu0 %v3061
    %4046 = vmatpush1.bf16.msra.mxu0 %v3060
    %4047 = vmatprep.subr.bf16.mxu0 %v3069
    %4048 = vmatpush1.bf16.msra.mxu0 %v3068
    %4049 = vmatprep.mubr.bf16.mxu0 %v3973
    %4050 = vmatmul.mubr.bf16.gmra.mrb[0].mxu0 %v3972
    %v4051 = vpop.f32.mrb[0].mxu0
    %v4052 = vadd.f32 %v4011, %v4051
    %v4053 = vpop.f32.mrb[0].mxu0
    %v4054 = vadd.f32 %v4013, %v4053
    %v4055 = vpop.f32.mrb[0].mxu0
    %v4056 = vpop.f32.mrb[0].mxu0
    %4057 = vdwg.mxu0
    %4058 = vmatprep.subr.bf16.mxu0 %v2823
    %4059 = vmatpush1.bf16.msra.mxu0 %v2822
    %4060 = vmatprep.subr.bf16.mxu0 %v2831
    %4061 = vmatpush1.bf16.msra.mxu0 %v2830
    %4062 = vmatprep.subr.bf16.mxu0 %v2839
    %4063 = vmatpush1.bf16.msra.mxu0 %v2838
    %4064 = vmatprep.subr.bf16.mxu0 %v2847
    %4065 = vmatpush1.bf16.msra.mxu0 %v2846
    %4066 = vmatprep.subr.bf16.mxu0 %v2855
    %4067 = vmatpush1.bf16.msra.mxu0 %v2854
    %4068 = vmatprep.subr.bf16.mxu0 %v2863
    %4069 = vmatpush1.bf16.msra.mxu0 %v2862
    %4070 = vmatprep.subr.bf16.mxu0 %v2871
    %4071 = vmatpush1.bf16.msra.mxu0 %v2870
    %4072 = vmatprep.subr.bf16.mxu0 %v2879
    %4073 = vmatpush1.bf16.msra.mxu0 %v2878
    %4074 = vmatprep.subr.bf16.mxu0 %v2887
    %4075 = vmatpush1.bf16.msra.mxu0 %v2886
    %4076 = vmatprep.subr.bf16.mxu0 %v2895
    %4077 = vmatpush1.bf16.msra.mxu0 %v2894
    %4078 = vmatprep.subr.bf16.mxu0 %v2903
    %4079 = vmatpush1.bf16.msra.mxu0 %v2902
    %4080 = vmatprep.subr.bf16.mxu0 %v2911
    %4081 = vmatpush1.bf16.msra.mxu0 %v2910
    %4082 = vmatprep.subr.bf16.mxu0 %v2919
    %4083 = vmatpush1.bf16.msra.mxu0 %v2918
    %4084 = vmatprep.subr.bf16.mxu0 %v2927
    %4085 = vmatpush1.bf16.msra.mxu0 %v2926
    %4086 = vmatprep.subr.bf16.mxu0 %v2935
    %4087 = vmatpush1.bf16.msra.mxu0 %v2934
    %4088 = vmatprep.subr.bf16.mxu0 %v2943
    %4089 = vmatpush1.bf16.msra.mxu0 %v2942
    %4090 = vmatprep.mubr.bf16.mxu0 %v3713
    %4091 = vmatmul.mubr.bf16.gmra.mrb[0].mxu0 %v3712
    %v4092 = vpop.f32.mrb[0].mxu0
    %v4093 = vadd.f32 %v2023, %v4092
    %v4094 = vpop.f32.mrb[0].mxu0
    %v4095 = vadd.f32 %v2027, %v4094
    %v4096 = vpop.f32.mrb[0].mxu0
    %v4097 = vpop.f32.mrb[0].mxu0
    %4098 = vdwg.mxu0
    %4099 = vmatprep.subr.bf16.mxu0 %v2951
    %4100 = vmatpush1.bf16.msra.mxu0 %v2950
    %4101 = vmatprep.subr.bf16.mxu0 %v2959
    %4102 = vmatpush1.bf16.msra.mxu0 %v2958
    %4103 = vmatprep.subr.bf16.mxu0 %v2967
    %4104 = vmatpush1.bf16.msra.mxu0 %v2966
    %4105 = vmatprep.subr.bf16.mxu0 %v2975
    %4106 = vmatpush1.bf16.msra.mxu0 %v2974
    %4107 = vmatprep.subr.bf16.mxu0 %v2983
    %4108 = vmatpush1.bf16.msra.mxu0 %v2982
    %4109 = vmatprep.subr.bf16.mxu0 %v2991
    %4110 = vmatpush1.bf16.msra.mxu0 %v2990
    %4111 = vmatprep.subr.bf16.mxu0 %v2999
    %4112 = vmatpush1.bf16.msra.mxu0 %v2998
    %4113 = vmatprep.subr.bf16.mxu0 %v3007
    %4114 = vmatpush1.bf16.msra.mxu0 %v3006
    %4115 = vmatprep.subr.bf16.mxu0 %v3015
    %4116 = vmatpush1.bf16.msra.mxu0 %v3014
    %4117 = vmatprep.subr.bf16.mxu0 %v3023
    %4118 = vmatpush1.bf16.msra.mxu0 %v3022
    %4119 = vmatprep.subr.bf16.mxu0 %v3031
    %4120 = vmatpush1.bf16.msra.mxu0 %v3030
    %4121 = vmatprep.subr.bf16.mxu0 %v3039
    %4122 = vmatpush1.bf16.msra.mxu0 %v3038
    %4123 = vmatprep.subr.bf16.mxu0 %v3047
    %4124 = vmatpush1.bf16.msra.mxu0 %v3046
    %4125 = vmatprep.subr.bf16.mxu0 %v3055
    %4126 = vmatpush1.bf16.msra.mxu0 %v3054
    %4127 = vmatprep.subr.bf16.mxu0 %v3063
    %4128 = vmatpush1.bf16.msra.mxu0 %v3062
    %4129 = vmatprep.subr.bf16.mxu0 %v3071
    %4130 = vmatpush1.bf16.msra.mxu0 %v3070
    %4131 = vmatprep.mubr.bf16.mxu0 %v3973
    %4132 = vmatmul.mubr.bf16.gmra.mrb[0].mxu0 %v3972
    %v4133 = vpop.f32.mrb[0].mxu0
    %v4134 = vadd.f32 %v4093, %v4133
    %v4135 = vpop.f32.mrb[0].mxu0
    %v4136 = vadd.f32 %v4095, %v4135
    %v4137 = vpop.f32.mrb[0].mxu0
    %v4138 = vpop.f32.mrb[0].mxu0
    %4139 = vdwg.mxu0
    %4140 = vmatprep.subr.bf16.mxu0 %v2825
    %4141 = vmatpush1.bf16.msra.mxu0 %v2824
    %4142 = vmatprep.subr.bf16.mxu0 %v2833
    %4143 = vmatpush1.bf16.msra.mxu0 %v2832
    %4144 = vmatprep.subr.bf16.mxu0 %v2841
    %4145 = vmatpush1.bf16.msra.mxu0 %v2840
    %4146 = vmatprep.subr.bf16.mxu0 %v2849
    %4147 = vmatpush1.bf16.msra.mxu0 %v2848
    %4148 = vmatprep.subr.bf16.mxu0 %v2857
    %4149 = vmatpush1.bf16.msra.mxu0 %v2856
    %4150 = vmatprep.subr.bf16.mxu0 %v2865
    %4151 = vmatpush1.bf16.msra.mxu0 %v2864
    %4152 = vmatprep.subr.bf16.mxu0 %v2873
    %4153 = vmatpush1.bf16.msra.mxu0 %v2872
    %4154 = vmatprep.subr.bf16.mxu0 %v2881
    %4155 = vmatpush1.bf16.msra.mxu0 %v2880
    %4156 = vmatprep.subr.bf16.mxu0 %v2889
    %4157 = vmatpush1.bf16.msra.mxu0 %v2888
    %4158 = vmatprep.subr.bf16.mxu0 %v2897
    %4159 = vmatpush1.bf16.msra.mxu0 %v2896
    %4160 = vmatprep.subr.bf16.mxu0 %v2905
    %4161 = vmatpush1.bf16.msra.mxu0 %v2904
    %4162 = vmatprep.subr.bf16.mxu0 %v2913
    %4163 = vmatpush1.bf16.msra.mxu0 %v2912
    %4164 = vmatprep.subr.bf16.mxu0 %v2921
    %4165 = vmatpush1.bf16.msra.mxu0 %v2920
    %4166 = vmatprep.subr.bf16.mxu0 %v2929
    %4167 = vmatpush1.bf16.msra.mxu0 %v2928
    %4168 = vmatprep.subr.bf16.mxu0 %v2937
    %4169 = vmatpush1.bf16.msra.mxu0 %v2936
    %4170 = vmatprep.subr.bf16.mxu0 %v2945
    %4171 = vmatpush1.bf16.msra.mxu0 %v2944
    %4172 = vmatprep.mubr.bf16.mxu0 %v3713
    %4173 = vmatmul.mubr.bf16.gmra.mrb[0].mxu0 %v3712
    %v4174 = vpop.f32.mrb[0].mxu0
    %v4175 = vadd.f32 %v2031, %v4174
    %v4176 = vpop.f32.mrb[0].mxu0
    %v4177 = vadd.f32 %v2035, %v4176
    %v4178 = vpop.f32.mrb[0].mxu0
    %v4179 = vpop.f32.mrb[0].mxu0
    %4180 = vdwg.mxu0
    %4181 = vmatprep.subr.bf16.mxu0 %v2953
    %4182 = vmatpush1.bf16.msra.mxu0 %v2952
    %4183 = vmatprep.subr.bf16.mxu0 %v2961
    %4184 = vmatpush1.bf16.msra.mxu0 %v2960
    %4185 = vmatprep.subr.bf16.mxu0 %v2969
    %4186 = vmatpush1.bf16.msra.mxu0 %v2968
    %4187 = vmatprep.subr.bf16.mxu0 %v2977
    %4188 = vmatpush1.bf16.msra.mxu0 %v2976
    %4189 = vmatprep.subr.bf16.mxu0 %v2985
    %4190 = vmatpush1.bf16.msra.mxu0 %v2984
    %4191 = vmatprep.subr.bf16.mxu0 %v2993
    %4192 = vmatpush1.bf16.msra.mxu0 %v2992
    %4193 = vmatprep.subr.bf16.mxu0 %v3001
    %4194 = vmatpush1.bf16.msra.mxu0 %v3000
    %4195 = vmatprep.subr.bf16.mxu0 %v3009
    %4196 = vmatpush1.bf16.msra.mxu0 %v3008
    %4197 = vmatprep.subr.bf16.mxu0 %v3017
    %4198 = vmatpush1.bf16.msra.mxu0 %v3016
    %4199 = vmatprep.subr.bf16.mxu0 %v3025
    %4200 = vmatpush1.bf16.msra.mxu0 %v3024
    %4201 = vmatprep.subr.bf16.mxu0 %v3033
    %4202 = vmatpush1.bf16.msra.mxu0 %v3032
    %4203 = vmatprep.subr.bf16.mxu0 %v3041
    %4204 = vmatpush1.bf16.msra.mxu0 %v3040
    %4205 = vmatprep.subr.bf16.mxu0 %v3049
    %4206 = vmatpush1.bf16.msra.mxu0 %v3048
    %4207 = vmatprep.subr.bf16.mxu0 %v3057
    %4208 = vmatpush1.bf16.msra.mxu0 %v3056
    %4209 = vmatprep.subr.bf16.mxu0 %v3065
    %4210 = vmatpush1.bf16.msra.mxu0 %v3064
    %4211 = vmatprep.subr.bf16.mxu0 %v3073
    %4212 = vmatpush1.bf16.msra.mxu0 %v3072
    %4213 = vmatprep.mubr.bf16.mxu0 %v3973
    %4214 = vmatmul.mubr.bf16.gmra.mrb[0].mxu0 %v3972
    %v4215 = vpop.f32.mrb[0].mxu0
    %v4216 = vadd.f32 %v4175, %v4215
    %v4217 = vpop.f32.mrb[0].mxu0
    %v4218 = vadd.f32 %v4177, %v4217
    %v4219 = vpop.f32.mrb[0].mxu0
    %v4220 = vpop.f32.mrb[0].mxu0
    %4221 = vdwg.mxu0
    %4222 = vmatprep.subr.bf16.mxu0 %v2827
    %4223 = vmatpush1.bf16.msra.mxu0 %v2826
    %4224 = vmatprep.subr.bf16.mxu0 %v2835
    %4225 = vmatpush1.bf16.msra.mxu0 %v2834
    %4226 = vmatprep.subr.bf16.mxu0 %v2843
    %4227 = vmatpush1.bf16.msra.mxu0 %v2842
    %4228 = vmatprep.subr.bf16.mxu0 %v2851
    %4229 = vmatpush1.bf16.msra.mxu0 %v2850
    %4230 = vmatprep.subr.bf16.mxu0 %v2859
    %4231 = vmatpush1.bf16.msra.mxu0 %v2858
    %4232 = vmatprep.subr.bf16.mxu0 %v2867
    %4233 = vmatpush1.bf16.msra.mxu0 %v2866
    %4234 = vmatprep.subr.bf16.mxu0 %v2875
    %4235 = vmatpush1.bf16.msra.mxu0 %v2874
    %4236 = vmatprep.subr.bf16.mxu0 %v2883
    %4237 = vmatpush1.bf16.msra.mxu0 %v2882
    %4238 = vmatprep.subr.bf16.mxu0 %v2891
    %4239 = vmatpush1.bf16.msra.mxu0 %v2890
    %4240 = vmatprep.subr.bf16.mxu0 %v2899
    %4241 = vmatpush1.bf16.msra.mxu0 %v2898
    %4242 = vmatprep.subr.bf16.mxu0 %v2907
    %4243 = vmatpush1.bf16.msra.mxu0 %v2906
    %4244 = vmatprep.subr.bf16.mxu0 %v2915
    %4245 = vmatpush1.bf16.msra.mxu0 %v2914
    %4246 = vmatprep.subr.bf16.mxu0 %v2923
    %4247 = vmatpush1.bf16.msra.mxu0 %v2922
    %4248 = vmatprep.subr.bf16.mxu0 %v2931
    %4249 = vmatpush1.bf16.msra.mxu0 %v2930
    %4250 = vmatprep.subr.bf16.mxu0 %v2939
    %4251 = vmatpush1.bf16.msra.mxu0 %v2938
    %4252 = vmatprep.subr.bf16.mxu0 %v2947
    %4253 = vmatpush1.bf16.msra.mxu0 %v2946
    %4254 = vmatprep.mubr.bf16.mxu0 %v3713
    %4255 = vmatmul.mubr.bf16.gmra.mrb[0].mxu0 %v3712
    %v4256 = vpop.f32.mrb[0].mxu0
    %v4257 = vadd.f32 %v2039, %v4256
    %v4258 = vpop.f32.mrb[0].mxu0
    %v4259 = vadd.f32 %v2043, %v4258
    %v4260 = vpop.f32.mrb[0].mxu0
    %v4261 = vpop.f32.mrb[0].mxu0
    %4262 = vdwg.mxu0
    %4263 = vmatprep.subr.bf16.mxu0 %v2955
    %4264 = vmatpush1.bf16.msra.mxu0 %v2954
    %4265 = vmatprep.subr.bf16.mxu0 %v2963
    %4266 = vmatpush1.bf16.msra.mxu0 %v2962
    %4267 = vmatprep.subr.bf16.mxu0 %v2971
    %4268 = vmatpush1.bf16.msra.mxu0 %v2970
    %4269 = vmatprep.subr.bf16.mxu0 %v2979
    %4270 = vmatpush1.bf16.msra.mxu0 %v2978
    %4271 = vmatprep.subr.bf16.mxu0 %v2987
    %4272 = vmatpush1.bf16.msra.mxu0 %v2986
    %4273 = vmatprep.subr.bf16.mxu0 %v2995
    %4274 = vmatpush1.bf16.msra.mxu0 %v2994
    %4275 = vmatprep.subr.bf16.mxu0 %v3003
    %4276 = vmatpush1.bf16.msra.mxu0 %v3002
    %4277 = vmatprep.subr.bf16.mxu0 %v3011
    %4278 = vmatpush1.bf16.msra.mxu0 %v3010
    %4279 = vmatprep.subr.bf16.mxu0 %v3019
    %4280 = vmatpush1.bf16.msra.mxu0 %v3018
    %4281 = vmatprep.subr.bf16.mxu0 %v3027
    %4282 = vmatpush1.bf16.msra.mxu0 %v3026
    %4283 = vmatprep.subr.bf16.mxu0 %v3035
    %4284 = vmatpush1.bf16.msra.mxu0 %v3034
    %4285 = vmatprep.subr.bf16.mxu0 %v3043
    %4286 = vmatpush1.bf16.msra.mxu0 %v3042
    %4287 = vmatprep.subr.bf16.mxu0 %v3051
    %4288 = vmatpush1.bf16.msra.mxu0 %v3050
    %4289 = vmatprep.subr.bf16.mxu0 %v3059
    %4290 = vmatpush1.bf16.msra.mxu0 %v3058
    %4291 = vmatprep.subr.bf16.mxu0 %v3067
    %4292 = vmatpush1.bf16.msra.mxu0 %v3066
    %4293 = vmatprep.subr.bf16.mxu0 %v3075
    %4294 = vmatpush1.bf16.msra.mxu0 %v3074
    %4295 = vmatprep.mubr.bf16.mxu0 %v3973
    %4296 = vmatmul.mubr.bf16.gmra.mrb[0].mxu0 %v3972
    %v4297 = vpop.f32.mrb[0].mxu0
    %v4298 = vadd.f32 %v4257, %v4297
    %v4299 = vpop.f32.mrb[0].mxu0
    %v4300 = vadd.f32 %v4259, %v4299
    %v4301 = vpop.f32.mrb[0].mxu0
    %v4302 = vpop.f32.mrb[0].mxu0
    %4303 = vdwg.mxu0
    %v4304 = vxor.u32 %v4052, 2147483648
    %v4305 = vxor.u32 %v4054, 2147483648
    %v4306 = vxor.u32 %v4134, 2147483648
    %v4307 = vxor.u32 %v4136, 2147483648
    %v4308 = vxor.u32 %v4216, 2147483648
    %v4309 = vxor.u32 %v4218, 2147483648
    %v4310 = vmul.f32 %v4304, 1.442695
    %v4311 = vpow.pop %v4310
    %v4312 = vmul.f32 %v4305, 1.442695
    %v4313 = vpow.pop %v4312
    %v4314 = vmul.f32 %v4306, 1.442695
    %v4315 = vpow.pop %v4314
    %v4316 = vmul.f32 %v4307, 1.442695
    %v4317 = vpow.pop %v4316
    %v4318 = vmul.f32 %v4308, 1.442695
    %v4319 = vpow.pop %v4318
    %v4320 = vmul.f32 %v4309, 1.442695
    %v4321 = vpow.pop %v4320
    %v4322 = vadd.f32 %v4311, 1.0
    %v4323 = vadd.f32 %v4313, 1.0
    %v4324 = vadd.f32 %v4315, 1.0
    %v4325 = vadd.f32 %v4317, 1.0
    %v4326 = vadd.f32 %v4319, 1.0
    %v4327 = vadd.f32 %v4321, 1.0
    %v4328 = vrcp.pop %v4322
    %v4329 = vmul.f32 1.0, %v4328
    %v4330 = vrcp.pop %v4323
    %v4331 = vmul.f32 1.0, %v4330
    %v4332 = vrcp.pop %v4324
    %v4333 = vmul.f32 1.0, %v4332
    %v4334 = vrcp.pop %v4325
    %v4335 = vmul.f32 1.0, %v4334
    %v4336 = vrcp.pop %v4326
    %v4337 = vmul.f32 1.0, %v4336
    %v4338 = vrcp.pop %v4327
    %v4339 = vmul.f32 1.0, %v4338
    %v4340 = vtanh.pop %v4298
    %v4341 = vtanh.pop %v4300
    %v4342 = vmul.f32 %v4333, %v3702
    %v4343 = vmul.f32 %v4335, %v3703
    %v4344 = vmul.f32 %v4329, %v4340
    %v4345 = vmul.f32 %v4331, %v4341
    %v4346 = vadd.f32 %v4342, %v4344
    %v4347 = vadd.f32 %v4343, %v4345
    %v4348 = vtanh.pop %v4346
    %v4349 = vtanh.pop %v4347
    %v4350 = vmul.f32 %v4337, %v4348
    %v4351 = vmul.f32 %v4339, %v4349
    %v4352 = vpack.c.bf16 %v4350, %v4350
    %v4353 = vpack.c.bf16 %v4351, %v4351
    %v4356 = vrot.slane %v3966, 2
    %v4357 = vrot.slane %v3967, 2
    %4360 = vmatprep.subr.bf16.mxu0 %v1282
    %4361 = vmatpush1.bf16.msra.mxu0 %v1281
    %4362 = vmatprep.subr.bf16.mxu0 %v1290
    %4363 = vmatpush1.bf16.msra.mxu0 %v1289
    %4364 = vmatprep.subr.bf16.mxu0 %v1298
    %4365 = vmatpush1.bf16.msra.mxu0 %v1297
    %4366 = vmatprep.subr.bf16.mxu0 %v1306
    %4367 = vmatpush1.bf16.msra.mxu0 %v1305
    %4368 = vmatprep.subr.bf16.mxu0 %v1314
    %4369 = vmatpush1.bf16.msra.mxu0 %v1313
    %4370 = vmatprep.subr.bf16.mxu0 %v1322
    %4371 = vmatpush1.bf16.msra.mxu0 %v1321
    %4372 = vmatprep.subr.bf16.mxu0 %v1330
    %4373 = vmatpush1.bf16.msra.mxu0 %v1329
    %4374 = vmatprep.subr.bf16.mxu0 %v1338
    %4375 = vmatpush1.bf16.msra.mxu0 %v1337
    %4376 = vmatprep.subr.bf16.mxu0 %v1346
    %4377 = vmatpush1.bf16.msra.mxu0 %v1345
    %4378 = vmatprep.subr.bf16.mxu0 %v1354
    %4379 = vmatpush1.bf16.msra.mxu0 %v1353
    %4380 = vmatprep.subr.bf16.mxu0 %v1362
    %4381 = vmatpush1.bf16.msra.mxu0 %v1361
    %4382 = vmatprep.subr.bf16.mxu0 %v1370
    %4383 = vmatpush1.bf16.msra.mxu0 %v1369
    %4384 = vmatprep.subr.bf16.mxu0 %v1378
    %4385 = vmatpush1.bf16.msra.mxu0 %v1377
    %4386 = vmatprep.subr.bf16.mxu0 %v1386
    %4387 = vmatpush1.bf16.msra.mxu0 %v1385
    %4388 = vmatprep.subr.bf16.mxu0 %v1394
    %4389 = vmatpush1.bf16.msra.mxu0 %v1393
    %4390 = vmatprep.subr.bf16.mxu0 %v1402
    %4391 = vmatpush1.bf16.msra.mxu0 %v1401
    %4392 = vmatprep.mubr.bf16.mxu0 %v4357
    %4393 = vmatmul.mubr.bf16.gmra.mrb[0].mxu0 %v4356
    %v4394 = vpop.f32.mrb[0].mxu0
    %v4395 = vadd.f32 0.0, %v4394
    %v4396 = vpop.f32.mrb[0].mxu0
    %v4397 = vadd.f32 0.0, %v4396
    %v4398 = vpop.f32.mrb[0].mxu0
    %v4399 = vpop.f32.mrb[0].mxu0
    %4400 = vdwg.mxu0
    %4401 = vmatprep.subr.bf16.mxu0 %v1284
    %4402 = vmatpush1.bf16.msra.mxu0 %v1283
    %4403 = vmatprep.subr.bf16.mxu0 %v1292
    %4404 = vmatpush1.bf16.msra.mxu0 %v1291
    %4405 = vmatprep.subr.bf16.mxu0 %v1300
    %4406 = vmatpush1.bf16.msra.mxu0 %v1299
    %4407 = vmatprep.subr.bf16.mxu0 %v1308
    %4408 = vmatpush1.bf16.msra.mxu0 %v1307
    %4409 = vmatprep.subr.bf16.mxu0 %v1316
    %4410 = vmatpush1.bf16.msra.mxu0 %v1315
    %4411 = vmatprep.subr.bf16.mxu0 %v1324
    %4412 = vmatpush1.bf16.msra.mxu0 %v1323
    %4413 = vmatprep.subr.bf16.mxu0 %v1332
    %4414 = vmatpush1.bf16.msra.mxu0 %v1331
    %4415 = vmatprep.subr.bf16.mxu0 %v1340
    %4416 = vmatpush1.bf16.msra.mxu0 %v1339
    %4417 = vmatprep.subr.bf16.mxu0 %v1348
    %4418 = vmatpush1.bf16.msra.mxu0 %v1347
    %4419 = vmatprep.subr.bf16.mxu0 %v1356
    %4420 = vmatpush1.bf16.msra.mxu0 %v1355
    %4421 = vmatprep.subr.bf16.mxu0 %v1364
    %4422 = vmatpush1.bf16.msra.mxu0 %v1363
    %4423 = vmatprep.subr.bf16.mxu0 %v1372
    %4424 = vmatpush1.bf16.msra.mxu0 %v1371
    %4425 = vmatprep.subr.bf16.mxu0 %v1380
    %4426 = vmatpush1.bf16.msra.mxu0 %v1379
    %4427 = vmatprep.subr.bf16.mxu0 %v1388
    %4428 = vmatpush1.bf16.msra.mxu0 %v1387
    %4429 = vmatprep.subr.bf16.mxu0 %v1396
    %4430 = vmatpush1.bf16.msra.mxu0 %v1395
    %4431 = vmatprep.subr.bf16.mxu0 %v1404
    %4432 = vmatpush1.bf16.msra.mxu0 %v1403
    %4433 = vmatprep.mubr.bf16.mxu0 %v4357
    %4434 = vmatmul.mubr.bf16.gmra.mrb[0].mxu0 %v4356
    %v4435 = vpop.f32.mrb[0].mxu0
    %v4436 = vadd.f32 0.0, %v4435
    %v4437 = vpop.f32.mrb[0].mxu0
    %v4438 = vadd.f32 0.0, %v4437
    %v4439 = vpop.f32.mrb[0].mxu0
    %v4440 = vpop.f32.mrb[0].mxu0
    %4441 = vdwg.mxu0
    %4442 = vmatprep.subr.bf16.mxu0 %v1286
    %4443 = vmatpush1.bf16.msra.mxu0 %v1285
    %4444 = vmatprep.subr.bf16.mxu0 %v1294
    %4445 = vmatpush1.bf16.msra.mxu0 %v1293
    %4446 = vmatprep.subr.bf16.mxu0 %v1302
    %4447 = vmatpush1.bf16.msra.mxu0 %v1301
    %4448 = vmatprep.subr.bf16.mxu0 %v1310
    %4449 = vmatpush1.bf16.msra.mxu0 %v1309
    %4450 = vmatprep.subr.bf16.mxu0 %v1318
    %4451 = vmatpush1.bf16.msra.mxu0 %v1317
    %4452 = vmatprep.subr.bf16.mxu0 %v1326
    %4453 = vmatpush1.bf16.msra.mxu0 %v1325
    %4454 = vmatprep.subr.bf16.mxu0 %v1334
    %4455 = vmatpush1.bf16.msra.mxu0 %v1333
    %4456 = vmatprep.subr.bf16.mxu0 %v1342
    %4457 = vmatpush1.bf16.msra.mxu0 %v1341
    %4458 = vmatprep.subr.bf16.mxu0 %v1350
    %4459 = vmatpush1.bf16.msra.mxu0 %v1349
    %4460 = vmatprep.subr.bf16.mxu0 %v1358
    %4461 = vmatpush1.bf16.msra.mxu0 %v1357
    %4462 = vmatprep.subr.bf16.mxu0 %v1366
    %4463 = vmatpush1.bf16.msra.mxu0 %v1365
    %4464 = vmatprep.subr.bf16.mxu0 %v1374
    %4465 = vmatpush1.bf16.msra.mxu0 %v1373
    %4466 = vmatprep.subr.bf16.mxu0 %v1382
    %4467 = vmatpush1.bf16.msra.mxu0 %v1381
    %4468 = vmatprep.subr.bf16.mxu0 %v1390
    %4469 = vmatpush1.bf16.msra.mxu0 %v1389
    %4470 = vmatprep.subr.bf16.mxu0 %v1398
    %4471 = vmatpush1.bf16.msra.mxu0 %v1397
    %4472 = vmatprep.subr.bf16.mxu0 %v1406
    %4473 = vmatpush1.bf16.msra.mxu0 %v1405
    %4474 = vmatprep.mubr.bf16.mxu0 %v4357
    %4475 = vmatmul.mubr.bf16.gmra.mrb[0].mxu0 %v4356
    %v4476 = vpop.f32.mrb[0].mxu0
    %v4477 = vadd.f32 0.0, %v4476
    %v4478 = vpop.f32.mrb[0].mxu0
    %v4479 = vadd.f32 0.0, %v4478
    %v4480 = vpop.f32.mrb[0].mxu0
    %v4481 = vpop.f32.mrb[0].mxu0
    %4482 = vdwg.mxu0
    %4483 = vmatprep.subr.bf16.mxu0 %v1288
    %4484 = vmatpush1.bf16.msra.mxu0 %v1287
    %4485 = vmatprep.subr.bf16.mxu0 %v1296
    %4486 = vmatpush1.bf16.msra.mxu0 %v1295
    %4487 = vmatprep.subr.bf16.mxu0 %v1304
    %4488 = vmatpush1.bf16.msra.mxu0 %v1303
    %4489 = vmatprep.subr.bf16.mxu0 %v1312
    %4490 = vmatpush1.bf16.msra.mxu0 %v1311
    %4491 = vmatprep.subr.bf16.mxu0 %v1320
    %4492 = vmatpush1.bf16.msra.mxu0 %v1319
    %4493 = vmatprep.subr.bf16.mxu0 %v1328
    %4494 = vmatpush1.bf16.msra.mxu0 %v1327
    %4495 = vmatprep.subr.bf16.mxu0 %v1336
    %4496 = vmatpush1.bf16.msra.mxu0 %v1335
    %4497 = vmatprep.subr.bf16.mxu0 %v1344
    %4498 = vmatpush1.bf16.msra.mxu0 %v1343
    %4499 = vmatprep.subr.bf16.mxu0 %v1352
    %4500 = vmatpush1.bf16.msra.mxu0 %v1351
    %4501 = vmatprep.subr.bf16.mxu0 %v1360
    %4502 = vmatpush1.bf16.msra.mxu0 %v1359
    %4503 = vmatprep.subr.bf16.mxu0 %v1368
    %4504 = vmatpush1.bf16.msra.mxu0 %v1367
    %4505 = vmatprep.subr.bf16.mxu0 %v1376
    %4506 = vmatpush1.bf16.msra.mxu0 %v1375
    %4507 = vmatprep.subr.bf16.mxu0 %v1384
    %4508 = vmatpush1.bf16.msra.mxu0 %v1383
    %4509 = vmatprep.subr.bf16.mxu0 %v1392
    %4510 = vmatpush1.bf16.msra.mxu0 %v1391
    %4511 = vmatprep.subr.bf16.mxu0 %v1400
    %4512 = vmatpush1.bf16.msra.mxu0 %v1399
    %4513 = vmatprep.subr.bf16.mxu0 %v1408
    %4514 = vmatpush1.bf16.msra.mxu0 %v1407
    %4515 = vmatprep.mubr.bf16.mxu0 %v4357
    %4516 = vmatmul.mubr.bf16.gmra.mrb[0].mxu0 %v4356
    %v4517 = vpop.f32.mrb[0].mxu0
    %v4518 = vadd.f32 0.0, %v4517
    %v4519 = vpop.f32.mrb[0].mxu0
    %v4520 = vadd.f32 0.0, %v4519
    %v4521 = vpop.f32.mrb[0].mxu0
    %v4522 = vpop.f32.mrb[0].mxu0
    %4523 = vdwg.mxu0
    %v4532 = vrot.slane %v4395, 2
    %v4533 = vrot.slane %v4397, 2
    %v4534 = vrot.slane %v4436, 2
    %v4535 = vrot.slane %v4438, 2
    %v4536 = vrot.slane %v4477, 2
    %v4537 = vrot.slane %v4479, 2
    %v4538 = vrot.slane %v4518, 2
    %v4539 = vrot.slane %v4520, 2
    %v4548 = vadd.f32 %v760, %v4532
    %v4549 = vadd.f32 %v762, %v4533
    %v4550 = vadd.f32 %v803, %v4534
    %v4551 = vadd.f32 %v805, %v4535
    %v4552 = vadd.f32 %v846, %v4536
    %v4553 = vadd.f32 %v848, %v4537
    %v4554 = vadd.f32 %v889, %v4538
    %v4555 = vadd.f32 %v891, %v4539
    %v4556 = vxor.u32 %v4548, 2147483648
    %v4557 = vxor.u32 %v4549, 2147483648
    %v4558 = vxor.u32 %v4550, 2147483648
    %v4559 = vxor.u32 %v4551, 2147483648
    %v4560 = vxor.u32 %v4552, 2147483648
    %v4561 = vxor.u32 %v4553, 2147483648
    %v4562 = vmul.f32 %v4556, 1.442695
    %v4563 = vpow.pop %v4562
    %v4564 = vmul.f32 %v4557, 1.442695
    %v4565 = vpow.pop %v4564
    %v4566 = vmul.f32 %v4558, 1.442695
    %v4567 = vpow.pop %v4566
    %v4568 = vmul.f32 %v4559, 1.442695
    %v4569 = vpow.pop %v4568
    %v4570 = vmul.f32 %v4560, 1.442695
    %v4571 = vpow.pop %v4570
    %v4572 = vmul.f32 %v4561, 1.442695
    %v4573 = vpow.pop %v4572
    %v4574 = vadd.f32 %v4563, 1.0
    %v4575 = vadd.f32 %v4565, 1.0
    %v4576 = vadd.f32 %v4567, 1.0
    %v4577 = vadd.f32 %v4569, 1.0
    %v4578 = vadd.f32 %v4571, 1.0
    %v4579 = vadd.f32 %v4573, 1.0
    %v4580 = vrcp.pop %v4574
    %v4581 = vmul.f32 1.0, %v4580
    %v4582 = vrcp.pop %v4575
    %v4583 = vmul.f32 1.0, %v4582
    %v4584 = vrcp.pop %v4576
    %v4585 = vmul.f32 1.0, %v4584
    %v4586 = vrcp.pop %v4577
    %v4587 = vmul.f32 1.0, %v4586
    %v4588 = vrcp.pop %v4578
    %v4589 = vmul.f32 1.0, %v4588
    %v4590 = vrcp.pop %v4579
    %v4591 = vmul.f32 1.0, %v4590
    %v4592 = vtanh.pop %v4554
    %v4593 = vtanh.pop %v4555
    %v4596 = vrot.slane %v3960, 6
    %v4597 = vrot.slane %v3961, 6
    %v4600 = vmul.f32 %v4585, %v4596
    %v4601 = vmul.f32 %v4587, %v4597
    %v4602 = vmul.f32 %v4581, %v4592
    %v4603 = vmul.f32 %v4583, %v4593
    %v4604 = vadd.f32 %v4600, %v4602
    %v4605 = vadd.f32 %v4601, %v4603
    %v4606 = vtanh.pop %v4604
    %v4607 = vtanh.pop %v4605
    %v4608 = vmul.f32 %v4589, %v4606
    %v4609 = vmul.f32 %v4591, %v4607
    %v4610 = vpack.c.bf16 %v4608, %v4608
    %v4611 = vpack.c.bf16 %v4609, %v4609
    %v4614 = vrot.slane %v4352, 6
    %v4615 = vrot.slane %v4353, 6
    %v4616 = vrot.slane %v4614, 2
    %v4617 = vrot.slane %v4615, 2
    %4620 = vmatprep.subr.bf16.mxu0 %v2821
    %4621 = vmatpush1.bf16.msra.mxu0 %v2820
    %4622 = vmatprep.subr.bf16.mxu0 %v2829
    %4623 = vmatpush1.bf16.msra.mxu0 %v2828
    %4624 = vmatprep.subr.bf16.mxu0 %v2837
    %4625 = vmatpush1.bf16.msra.mxu0 %v2836
    %4626 = vmatprep.subr.bf16.mxu0 %v2845
    %4627 = vmatpush1.bf16.msra.mxu0 %v2844
    %4628 = vmatprep.subr.bf16.mxu0 %v2853
    %4629 = vmatpush1.bf16.msra.mxu0 %v2852
    %4630 = vmatprep.subr.bf16.mxu0 %v2861
    %4631 = vmatpush1.bf16.msra.mxu0 %v2860
    %4632 = vmatprep.subr.bf16.mxu0 %v2869
    %4633 = vmatpush1.bf16.msra.mxu0 %v2868
    %4634 = vmatprep.subr.bf16.mxu0 %v2877
    %4635 = vmatpush1.bf16.msra.mxu0 %v2876
    %4636 = vmatprep.subr.bf16.mxu0 %v2885
    %4637 = vmatpush1.bf16.msra.mxu0 %v2884
    %4638 = vmatprep.subr.bf16.mxu0 %v2893
    %4639 = vmatpush1.bf16.msra.mxu0 %v2892
    %4640 = vmatprep.subr.bf16.mxu0 %v2901
    %4641 = vmatpush1.bf16.msra.mxu0 %v2900
    %4642 = vmatprep.subr.bf16.mxu0 %v2909
    %4643 = vmatpush1.bf16.msra.mxu0 %v2908
    %4644 = vmatprep.subr.bf16.mxu0 %v2917
    %4645 = vmatpush1.bf16.msra.mxu0 %v2916
    %4646 = vmatprep.subr.bf16.mxu0 %v2925
    %4647 = vmatpush1.bf16.msra.mxu0 %v2924
    %4648 = vmatprep.subr.bf16.mxu0 %v2933
    %4649 = vmatpush1.bf16.msra.mxu0 %v2932
    %4650 = vmatprep.subr.bf16.mxu0 %v2941
    %4651 = vmatpush1.bf16.msra.mxu0 %v2940
    %4652 = vmatprep.mubr.bf16.mxu0 %v4357
    %4653 = vmatmul.mubr.bf16.gmra.mrb[0].mxu0 %v4356
    %v4654 = vpop.f32.mrb[0].mxu0
    %v4655 = vadd.f32 %v2015, %v4654
    %v4656 = vpop.f32.mrb[0].mxu0
    %v4657 = vadd.f32 %v2019, %v4656
    %v4658 = vpop.f32.mrb[0].mxu0
    %v4659 = vpop.f32.mrb[0].mxu0
    %4660 = vdwg.mxu0
    %4661 = vmatprep.subr.bf16.mxu0 %v2949
    %4662 = vmatpush1.bf16.msra.mxu0 %v2948
    %4663 = vmatprep.subr.bf16.mxu0 %v2957
    %4664 = vmatpush1.bf16.msra.mxu0 %v2956
    %4665 = vmatprep.subr.bf16.mxu0 %v2965
    %4666 = vmatpush1.bf16.msra.mxu0 %v2964
    %4667 = vmatprep.subr.bf16.mxu0 %v2973
    %4668 = vmatpush1.bf16.msra.mxu0 %v2972
    %4669 = vmatprep.subr.bf16.mxu0 %v2981
    %4670 = vmatpush1.bf16.msra.mxu0 %v2980
    %4671 = vmatprep.subr.bf16.mxu0 %v2989
    %4672 = vmatpush1.bf16.msra.mxu0 %v2988
    %4673 = vmatprep.subr.bf16.mxu0 %v2997
    %4674 = vmatpush1.bf16.msra.mxu0 %v2996
    %4675 = vmatprep.subr.bf16.mxu0 %v3005
    %4676 = vmatpush1.bf16.msra.mxu0 %v3004
    %4677 = vmatprep.subr.bf16.mxu0 %v3013
    %4678 = vmatpush1.bf16.msra.mxu0 %v3012
    %4679 = vmatprep.subr.bf16.mxu0 %v3021
    %4680 = vmatpush1.bf16.msra.mxu0 %v3020
    %4681 = vmatprep.subr.bf16.mxu0 %v3029
    %4682 = vmatpush1.bf16.msra.mxu0 %v3028
    %4683 = vmatprep.subr.bf16.mxu0 %v3037
    %4684 = vmatpush1.bf16.msra.mxu0 %v3036
    %4685 = vmatprep.subr.bf16.mxu0 %v3045
    %4686 = vmatpush1.bf16.msra.mxu0 %v3044
    %4687 = vmatprep.subr.bf16.mxu0 %v3053
    %4688 = vmatpush1.bf16.msra.mxu0 %v3052
    %4689 = vmatprep.subr.bf16.mxu0 %v3061
    %4690 = vmatpush1.bf16.msra.mxu0 %v3060
    %4691 = vmatprep.subr.bf16.mxu0 %v3069
    %4692 = vmatpush1.bf16.msra.mxu0 %v3068
    %4693 = vmatprep.mubr.bf16.mxu0 %v4617
    %4694 = vmatmul.mubr.bf16.gmra.mrb[0].mxu0 %v4616
    %v4695 = vpop.f32.mrb[0].mxu0
    %v4696 = vadd.f32 %v4655, %v4695
    %v4697 = vpop.f32.mrb[0].mxu0
    %v4698 = vadd.f32 %v4657, %v4697
    %v4699 = vpop.f32.mrb[0].mxu0
    %v4700 = vpop.f32.mrb[0].mxu0
    %4701 = vdwg.mxu0
    %4702 = vmatprep.subr.bf16.mxu0 %v2823
    %4703 = vmatpush1.bf16.msra.mxu0 %v2822
    %4704 = vmatprep.subr.bf16.mxu0 %v2831
    %4705 = vmatpush1.bf16.msra.mxu0 %v2830
    %4706 = vmatprep.subr.bf16.mxu0 %v2839
    %4707 = vmatpush1.bf16.msra.mxu0 %v2838
    %4708 = vmatprep.subr.bf16.mxu0 %v2847
    %4709 = vmatpush1.bf16.msra.mxu0 %v2846
    %4710 = vmatprep.subr.bf16.mxu0 %v2855
    %4711 = vmatpush1.bf16.msra.mxu0 %v2854
    %4712 = vmatprep.subr.bf16.mxu0 %v2863
    %4713 = vmatpush1.bf16.msra.mxu0 %v2862
    %4714 = vmatprep.subr.bf16.mxu0 %v2871
    %4715 = vmatpush1.bf16.msra.mxu0 %v2870
    %4716 = vmatprep.subr.bf16.mxu0 %v2879
    %4717 = vmatpush1.bf16.msra.mxu0 %v2878
    %4718 = vmatprep.subr.bf16.mxu0 %v2887
    %4719 = vmatpush1.bf16.msra.mxu0 %v2886
    %4720 = vmatprep.subr.bf16.mxu0 %v2895
    %4721 = vmatpush1.bf16.msra.mxu0 %v2894
    %4722 = vmatprep.subr.bf16.mxu0 %v2903
    %4723 = vmatpush1.bf16.msra.mxu0 %v2902
    %4724 = vmatprep.subr.bf16.mxu0 %v2911
    %4725 = vmatpush1.bf16.msra.mxu0 %v2910
    %4726 = vmatprep.subr.bf16.mxu0 %v2919
    %4727 = vmatpush1.bf16.msra.mxu0 %v2918
    %4728 = vmatprep.subr.bf16.mxu0 %v2927
    %4729 = vmatpush1.bf16.msra.mxu0 %v2926
    %4730 = vmatprep.subr.bf16.mxu0 %v2935
    %4731 = vmatpush1.bf16.msra.mxu0 %v2934
    %4732 = vmatprep.subr.bf16.mxu0 %v2943
    %4733 = vmatpush1.bf16.msra.mxu0 %v2942
    %4734 = vmatprep.mubr.bf16.mxu0 %v4357
    %4735 = vmatmul.mubr.bf16.gmra.mrb[0].mxu0 %v4356
    %v4736 = vpop.f32.mrb[0].mxu0
    %v4737 = vadd.f32 %v2023, %v4736
    %v4738 = vpop.f32.mrb[0].mxu0
    %v4739 = vadd.f32 %v2027, %v4738
    %v4740 = vpop.f32.mrb[0].mxu0
    %v4741 = vpop.f32.mrb[0].mxu0
    %4742 = vdwg.mxu0
    %4743 = vmatprep.subr.bf16.mxu0 %v2951
    %4744 = vmatpush1.bf16.msra.mxu0 %v2950
    %4745 = vmatprep.subr.bf16.mxu0 %v2959
    %4746 = vmatpush1.bf16.msra.mxu0 %v2958
    %4747 = vmatprep.subr.bf16.mxu0 %v2967
    %4748 = vmatpush1.bf16.msra.mxu0 %v2966
    %4749 = vmatprep.subr.bf16.mxu0 %v2975
    %4750 = vmatpush1.bf16.msra.mxu0 %v2974
    %4751 = vmatprep.subr.bf16.mxu0 %v2983
    %4752 = vmatpush1.bf16.msra.mxu0 %v2982
    %4753 = vmatprep.subr.bf16.mxu0 %v2991
    %4754 = vmatpush1.bf16.msra.mxu0 %v2990
    %4755 = vmatprep.subr.bf16.mxu0 %v2999
    %4756 = vmatpush1.bf16.msra.mxu0 %v2998
    %4757 = vmatprep.subr.bf16.mxu0 %v3007
    %4758 = vmatpush1.bf16.msra.mxu0 %v3006
    %4759 = vmatprep.subr.bf16.mxu0 %v3015
    %4760 = vmatpush1.bf16.msra.mxu0 %v3014
    %4761 = vmatprep.subr.bf16.mxu0 %v3023
    %4762 = vmatpush1.bf16.msra.mxu0 %v3022
    %4763 = vmatprep.subr.bf16.mxu0 %v3031
    %4764 = vmatpush1.bf16.msra.mxu0 %v3030
    %4765 = vmatprep.subr.bf16.mxu0 %v3039
    %4766 = vmatpush1.bf16.msra.mxu0 %v3038
    %4767 = vmatprep.subr.bf16.mxu0 %v3047
    %4768 = vmatpush1.bf16.msra.mxu0 %v3046
    %4769 = vmatprep.subr.bf16.mxu0 %v3055
    %4770 = vmatpush1.bf16.msra.mxu0 %v3054
    %4771 = vmatprep.subr.bf16.mxu0 %v3063
    %4772 = vmatpush1.bf16.msra.mxu0 %v3062
    %4773 = vmatprep.subr.bf16.mxu0 %v3071
    %4774 = vmatpush1.bf16.msra.mxu0 %v3070
    %4775 = vmatprep.mubr.bf16.mxu0 %v4617
    %4776 = vmatmul.mubr.bf16.gmra.mrb[0].mxu0 %v4616
    %v4777 = vpop.f32.mrb[0].mxu0
    %v4778 = vadd.f32 %v4737, %v4777
    %v4779 = vpop.f32.mrb[0].mxu0
    %v4780 = vadd.f32 %v4739, %v4779
    %v4781 = vpop.f32.mrb[0].mxu0
    %v4782 = vpop.f32.mrb[0].mxu0
    %4783 = vdwg.mxu0
    %4784 = vmatprep.subr.bf16.mxu0 %v2825
    %4785 = vmatpush1.bf16.msra.mxu0 %v2824
    %4786 = vmatprep.subr.bf16.mxu0 %v2833
    %4787 = vmatpush1.bf16.msra.mxu0 %v2832
    %4788 = vmatprep.subr.bf16.mxu0 %v2841
    %4789 = vmatpush1.bf16.msra.mxu0 %v2840
    %4790 = vmatprep.subr.bf16.mxu0 %v2849
    %4791 = vmatpush1.bf16.msra.mxu0 %v2848
    %4792 = vmatprep.subr.bf16.mxu0 %v2857
    %4793 = vmatpush1.bf16.msra.mxu0 %v2856
    %4794 = vmatprep.subr.bf16.mxu0 %v2865
    %4795 = vmatpush1.bf16.msra.mxu0 %v2864
    %4796 = vmatprep.subr.bf16.mxu0 %v2873
    %4797 = vmatpush1.bf16.msra.mxu0 %v2872
    %4798 = vmatprep.subr.bf16.mxu0 %v2881
    %4799 = vmatpush1.bf16.msra.mxu0 %v2880
    %4800 = vmatprep.subr.bf16.mxu0 %v2889
    %4801 = vmatpush1.bf16.msra.mxu0 %v2888
    %4802 = vmatprep.subr.bf16.mxu0 %v2897
    %4803 = vmatpush1.bf16.msra.mxu0 %v2896
    %4804 = vmatprep.subr.bf16.mxu0 %v2905
    %4805 = vmatpush1.bf16.msra.mxu0 %v2904
    %4806 = vmatprep.subr.bf16.mxu0 %v2913
    %4807 = vmatpush1.bf16.msra.mxu0 %v2912
    %4808 = vmatprep.subr.bf16.mxu0 %v2921
    %4809 = vmatpush1.bf16.msra.mxu0 %v2920
    %4810 = vmatprep.subr.bf16.mxu0 %v2929
    %4811 = vmatpush1.bf16.msra.mxu0 %v2928
    %4812 = vmatprep.subr.bf16.mxu0 %v2937
    %4813 = vmatpush1.bf16.msra.mxu0 %v2936
    %4814 = vmatprep.subr.bf16.mxu0 %v2945
    %4815 = vmatpush1.bf16.msra.mxu0 %v2944
    %4816 = vmatprep.mubr.bf16.mxu0 %v4357
    %4817 = vmatmul.mubr.bf16.gmra.mrb[0].mxu0 %v4356
    %v4818 = vpop.f32.mrb[0].mxu0
    %v4819 = vadd.f32 %v2031, %v4818
    %v4820 = vpop.f32.mrb[0].mxu0
    %v4821 = vadd.f32 %v2035, %v4820
    %v4822 = vpop.f32.mrb[0].mxu0
    %v4823 = vpop.f32.mrb[0].mxu0
    %4824 = vdwg.mxu0
    %4825 = vmatprep.subr.bf16.mxu0 %v2953
    %4826 = vmatpush1.bf16.msra.mxu0 %v2952
    %4827 = vmatprep.subr.bf16.mxu0 %v2961
    %4828 = vmatpush1.bf16.msra.mxu0 %v2960
    %4829 = vmatprep.subr.bf16.mxu0 %v2969
    %4830 = vmatpush1.bf16.msra.mxu0 %v2968
    %4831 = vmatprep.subr.bf16.mxu0 %v2977
    %4832 = vmatpush1.bf16.msra.mxu0 %v2976
    %4833 = vmatprep.subr.bf16.mxu0 %v2985
    %4834 = vmatpush1.bf16.msra.mxu0 %v2984
    %4835 = vmatprep.subr.bf16.mxu0 %v2993
    %4836 = vmatpush1.bf16.msra.mxu0 %v2992
    %4837 = vmatprep.subr.bf16.mxu0 %v3001
    %4838 = vmatpush1.bf16.msra.mxu0 %v3000
    %4839 = vmatprep.subr.bf16.mxu0 %v3009
    %4840 = vmatpush1.bf16.msra.mxu0 %v3008
    %4841 = vmatprep.subr.bf16.mxu0 %v3017
    %4842 = vmatpush1.bf16.msra.mxu0 %v3016
    %4843 = vmatprep.subr.bf16.mxu0 %v3025
    %4844 = vmatpush1.bf16.msra.mxu0 %v3024
    %4845 = vmatprep.subr.bf16.mxu0 %v3033
    %4846 = vmatpush1.bf16.msra.mxu0 %v3032
    %4847 = vmatprep.subr.bf16.mxu0 %v3041
    %4848 = vmatpush1.bf16.msra.mxu0 %v3040
    %4849 = vmatprep.subr.bf16.mxu0 %v3049
    %4850 = vmatpush1.bf16.msra.mxu0 %v3048
    %4851 = vmatprep.subr.bf16.mxu0 %v3057
    %4852 = vmatpush1.bf16.msra.mxu0 %v3056
    %4853 = vmatprep.subr.bf16.mxu0 %v3065
    %4854 = vmatpush1.bf16.msra.mxu0 %v3064
    %4855 = vmatprep.subr.bf16.mxu0 %v3073
    %4856 = vmatpush1.bf16.msra.mxu0 %v3072
    %4857 = vmatprep.mubr.bf16.mxu0 %v4617
    %4858 = vmatmul.mubr.bf16.gmra.mrb[0].mxu0 %v4616
    %v4859 = vpop.f32.mrb[0].mxu0
    %v4860 = vadd.f32 %v4819, %v4859
    %v4861 = vpop.f32.mrb[0].mxu0
    %v4862 = vadd.f32 %v4821, %v4861
    %v4863 = vpop.f32.mrb[0].mxu0
    %v4864 = vpop.f32.mrb[0].mxu0
    %4865 = vdwg.mxu0
    %4866 = vmatprep.subr.bf16.mxu0 %v2827
    %4867 = vmatpush1.bf16.msra.mxu0 %v2826
    %4868 = vmatprep.subr.bf16.mxu0 %v2835
    %4869 = vmatpush1.bf16.msra.mxu0 %v2834
    %4870 = vmatprep.subr.bf16.mxu0 %v2843
    %4871 = vmatpush1.bf16.msra.mxu0 %v2842
    %4872 = vmatprep.subr.bf16.mxu0 %v2851
    %4873 = vmatpush1.bf16.msra.mxu0 %v2850
    %4874 = vmatprep.subr.bf16.mxu0 %v2859
    %4875 = vmatpush1.bf16.msra.mxu0 %v2858
    %4876 = vmatprep.subr.bf16.mxu0 %v2867
    %4877 = vmatpush1.bf16.msra.mxu0 %v2866
    %4878 = vmatprep.subr.bf16.mxu0 %v2875
    %4879 = vmatpush1.bf16.msra.mxu0 %v2874
    %4880 = vmatprep.subr.bf16.mxu0 %v2883
    %4881 = vmatpush1.bf16.msra.mxu0 %v2882
    %4882 = vmatprep.subr.bf16.mxu0 %v2891
    %4883 = vmatpush1.bf16.msra.mxu0 %v2890
    %4884 = vmatprep.subr.bf16.mxu0 %v2899
    %4885 = vmatpush1.bf16.msra.mxu0 %v2898
    %4886 = vmatprep.subr.bf16.mxu0 %v2907
    %4887 = vmatpush1.bf16.msra.mxu0 %v2906
    %4888 = vmatprep.subr.bf16.mxu0 %v2915
    %4889 = vmatpush1.bf16.msra.mxu0 %v2914
    %4890 = vmatprep.subr.bf16.mxu0 %v2923
    %4891 = vmatpush1.bf16.msra.mxu0 %v2922
    %4892 = vmatprep.subr.bf16.mxu0 %v2931
    %4893 = vmatpush1.bf16.msra.mxu0 %v2930
    %4894 = vmatprep.subr.bf16.mxu0 %v2939
    %4895 = vmatpush1.bf16.msra.mxu0 %v2938
    %4896 = vmatprep.subr.bf16.mxu0 %v2947
    %4897 = vmatpush1.bf16.msra.mxu0 %v2946
    %4898 = vmatprep.mubr.bf16.mxu0 %v4357
    %4899 = vmatmul.mubr.bf16.gmra.mrb[0].mxu0 %v4356
    %v4900 = vpop.f32.mrb[0].mxu0
    %v4901 = vadd.f32 %v2039, %v4900
    %v4902 = vpop.f32.mrb[0].mxu0
    %v4903 = vadd.f32 %v2043, %v4902
    %v4904 = vpop.f32.mrb[0].mxu0
    %v4905 = vpop.f32.mrb[0].mxu0
    %4906 = vdwg.mxu0
    %4907 = vmatprep.subr.bf16.mxu0 %v2955
    %4908 = vmatpush1.bf16.msra.mxu0 %v2954
    %4909 = vmatprep.subr.bf16.mxu0 %v2963
    %4910 = vmatpush1.bf16.msra.mxu0 %v2962
    %4911 = vmatprep.subr.bf16.mxu0 %v2971
    %4912 = vmatpush1.bf16.msra.mxu0 %v2970
    %4913 = vmatprep.subr.bf16.mxu0 %v2979
    %4914 = vmatpush1.bf16.msra.mxu0 %v2978
    %4915 = vmatprep.subr.bf16.mxu0 %v2987
    %4916 = vmatpush1.bf16.msra.mxu0 %v2986
    %4917 = vmatprep.subr.bf16.mxu0 %v2995
    %4918 = vmatpush1.bf16.msra.mxu0 %v2994
    %4919 = vmatprep.subr.bf16.mxu0 %v3003
    %4920 = vmatpush1.bf16.msra.mxu0 %v3002
    %4921 = vmatprep.subr.bf16.mxu0 %v3011
    %4922 = vmatpush1.bf16.msra.mxu0 %v3010
    %4923 = vmatprep.subr.bf16.mxu0 %v3019
    %4924 = vmatpush1.bf16.msra.mxu0 %v3018
    %4925 = vmatprep.subr.bf16.mxu0 %v3027
    %4926 = vmatpush1.bf16.msra.mxu0 %v3026
    %4927 = vmatprep.subr.bf16.mxu0 %v3035
    %4928 = vmatpush1.bf16.msra.mxu0 %v3034
    %4929 = vmatprep.subr.bf16.mxu0 %v3043
    %4930 = vmatpush1.bf16.msra.mxu0 %v3042
    %4931 = vmatprep.subr.bf16.mxu0 %v3051
    %4932 = vmatpush1.bf16.msra.mxu0 %v3050
    %4933 = vmatprep.subr.bf16.mxu0 %v3059
    %4934 = vmatpush1.bf16.msra.mxu0 %v3058
    %4935 = vmatprep.subr.bf16.mxu0 %v3067
    %4936 = vmatpush1.bf16.msra.mxu0 %v3066
    %4937 = vmatprep.subr.bf16.mxu0 %v3075
    %4938 = vmatpush1.bf16.msra.mxu0 %v3074
    %4939 = vmatprep.mubr.bf16.mxu0 %v4617
    %4940 = vmatmul.mubr.bf16.gmra.mrb[0].mxu0 %v4616
    %v4941 = vpop.f32.mrb[0].mxu0
    %v4942 = vadd.f32 %v4901, %v4941
    %v4943 = vpop.f32.mrb[0].mxu0
    %v4944 = vadd.f32 %v4903, %v4943
    %v4945 = vpop.f32.mrb[0].mxu0
    %v4946 = vpop.f32.mrb[0].mxu0
    %4947 = vdwg.mxu0
    %v4948 = vxor.u32 %v4696, 2147483648
    %v4949 = vxor.u32 %v4698, 2147483648
    %v4950 = vxor.u32 %v4778, 2147483648
    %v4951 = vxor.u32 %v4780, 2147483648
    %v4952 = vxor.u32 %v4860, 2147483648
    %v4953 = vxor.u32 %v4862, 2147483648
    %v4954 = vmul.f32 %v4948, 1.442695
    %v4955 = vpow.pop %v4954
    %v4956 = vmul.f32 %v4949, 1.442695
    %v4957 = vpow.pop %v4956
    %v4958 = vmul.f32 %v4950, 1.442695
    %v4959 = vpow.pop %v4958
    %v4960 = vmul.f32 %v4951, 1.442695
    %v4961 = vpow.pop %v4960
    %v4962 = vmul.f32 %v4952, 1.442695
    %v4963 = vpow.pop %v4962
    %v4964 = vmul.f32 %v4953, 1.442695
    %v4965 = vpow.pop %v4964
    %v4966 = vadd.f32 %v4955, 1.0
    %v4967 = vadd.f32 %v4957, 1.0
    %v4968 = vadd.f32 %v4959, 1.0
    %v4969 = vadd.f32 %v4961, 1.0
    %v4970 = vadd.f32 %v4963, 1.0
    %v4971 = vadd.f32 %v4965, 1.0
    %v4972 = vrcp.pop %v4966
    %v4973 = vmul.f32 1.0, %v4972
    %v4974 = vrcp.pop %v4967
    %v4975 = vmul.f32 1.0, %v4974
    %v4976 = vrcp.pop %v4968
    %v4977 = vmul.f32 1.0, %v4976
    %v4978 = vrcp.pop %v4969
    %v4979 = vmul.f32 1.0, %v4978
    %v4980 = vrcp.pop %v4970
    %v4981 = vmul.f32 1.0, %v4980
    %v4982 = vrcp.pop %v4971
    %v4983 = vmul.f32 1.0, %v4982
    %v4984 = vtanh.pop %v4942
    %v4985 = vtanh.pop %v4944
    %v4986 = vmul.f32 %v4977, %v4346
    %v4987 = vmul.f32 %v4979, %v4347
    %v4988 = vmul.f32 %v4973, %v4984
    %v4989 = vmul.f32 %v4975, %v4985
    %v4990 = vadd.f32 %v4986, %v4988
    %v4991 = vadd.f32 %v4987, %v4989
    %v4992 = vtanh.pop %v4990
    %v4993 = vtanh.pop %v4991
    %v4994 = vmul.f32 %v4981, %v4992
    %v4995 = vmul.f32 %v4983, %v4993
    %v4996 = vpack.c.bf16 %v4994, %v4994
    %v4997 = vpack.c.bf16 %v4995, %v4995
    %v5000 = vrot.slane %v4610, 3
    %v5001 = vrot.slane %v4611, 3
    %5004 = vmatprep.subr.bf16.mxu0 %v1282
    %5005 = vmatpush1.bf16.msra.mxu0 %v1281
    %5006 = vmatprep.subr.bf16.mxu0 %v1290
    %5007 = vmatpush1.bf16.msra.mxu0 %v1289
    %5008 = vmatprep.subr.bf16.mxu0 %v1298
    %5009 = vmatpush1.bf16.msra.mxu0 %v1297
    %5010 = vmatprep.subr.bf16.mxu0 %v1306
    %5011 = vmatpush1.bf16.msra.mxu0 %v1305
    %5012 = vmatprep.subr.bf16.mxu0 %v1314
    %5013 = vmatpush1.bf16.msra.mxu0 %v1313
    %5014 = vmatprep.subr.bf16.mxu0 %v1322
    %5015 = vmatpush1.bf16.msra.mxu0 %v1321
    %5016 = vmatprep.subr.bf16.mxu0 %v1330
    %5017 = vmatpush1.bf16.msra.mxu0 %v1329
    %5018 = vmatprep.subr.bf16.mxu0 %v1338
    %5019 = vmatpush1.bf16.msra.mxu0 %v1337
    %5020 = vmatprep.subr.bf16.mxu0 %v1346
    %5021 = vmatpush1.bf16.msra.mxu0 %v1345
    %5022 = vmatprep.subr.bf16.mxu0 %v1354
    %5023 = vmatpush1.bf16.msra.mxu0 %v1353
    %5024 = vmatprep.subr.bf16.mxu0 %v1362
    %5025 = vmatpush1.bf16.msra.mxu0 %v1361
    %5026 = vmatprep.subr.bf16.mxu0 %v1370
    %5027 = vmatpush1.bf16.msra.mxu0 %v1369
    %5028 = vmatprep.subr.bf16.mxu0 %v1378
    %5029 = vmatpush1.bf16.msra.mxu0 %v1377
    %5030 = vmatprep.subr.bf16.mxu0 %v1386
    %5031 = vmatpush1.bf16.msra.mxu0 %v1385
    %5032 = vmatprep.subr.bf16.mxu0 %v1394
    %5033 = vmatpush1.bf16.msra.mxu0 %v1393
    %5034 = vmatprep.subr.bf16.mxu0 %v1402
    %5035 = vmatpush1.bf16.msra.mxu0 %v1401
    %5036 = vmatprep.mubr.bf16.mxu0 %v5001
    %5037 = vmatmul.mubr.bf16.gmra.mrb[0].mxu0 %v5000
    %v5038 = vpop.f32.mrb[0].mxu0
    %v5039 = vadd.f32 0.0, %v5038
    %v5040 = vpop.f32.mrb[0].mxu0
    %v5041 = vadd.f32 0.0, %v5040
    %v5042 = vpop.f32.mrb[0].mxu0
    %v5043 = vpop.f32.mrb[0].mxu0
    %5044 = vdwg.mxu0
    %5045 = vmatprep.subr.bf16.mxu0 %v1284
    %5046 = vmatpush1.bf16.msra.mxu0 %v1283
    %5047 = vmatprep.subr.bf16.mxu0 %v1292
    %5048 = vmatpush1.bf16.msra.mxu0 %v1291
    %5049 = vmatprep.subr.bf16.mxu0 %v1300
    %5050 = vmatpush1.bf16.msra.mxu0 %v1299
    %5051 = vmatprep.subr.bf16.mxu0 %v1308
    %5052 = vmatpush1.bf16.msra.mxu0 %v1307
    %5053 = vmatprep.subr.bf16.mxu0 %v1316
    %5054 = vmatpush1.bf16.msra.mxu0 %v1315
    %5055 = vmatprep.subr.bf16.mxu0 %v1324
    %5056 = vmatpush1.bf16.msra.mxu0 %v1323
    %5057 = vmatprep.subr.bf16.mxu0 %v1332
    %5058 = vmatpush1.bf16.msra.mxu0 %v1331
    %5059 = vmatprep.subr.bf16.mxu0 %v1340
    %5060 = vmatpush1.bf16.msra.mxu0 %v1339
    %5061 = vmatprep.subr.bf16.mxu0 %v1348
    %5062 = vmatpush1.bf16.msra.mxu0 %v1347
    %5063 = vmatprep.subr.bf16.mxu0 %v1356
    %5064 = vmatpush1.bf16.msra.mxu0 %v1355
    %5065 = vmatprep.subr.bf16.mxu0 %v1364
    %5066 = vmatpush1.bf16.msra.mxu0 %v1363
    %5067 = vmatprep.subr.bf16.mxu0 %v1372
    %5068 = vmatpush1.bf16.msra.mxu0 %v1371
    %5069 = vmatprep.subr.bf16.mxu0 %v1380
    %5070 = vmatpush1.bf16.msra.mxu0 %v1379
    %5071 = vmatprep.subr.bf16.mxu0 %v1388
    %5072 = vmatpush1.bf16.msra.mxu0 %v1387
    %5073 = vmatprep.subr.bf16.mxu0 %v1396
    %5074 = vmatpush1.bf16.msra.mxu0 %v1395
    %5075 = vmatprep.subr.bf16.mxu0 %v1404
    %5076 = vmatpush1.bf16.msra.mxu0 %v1403
    %5077 = vmatprep.mubr.bf16.mxu0 %v5001
    %5078 = vmatmul.mubr.bf16.gmra.mrb[0].mxu0 %v5000
    %v5079 = vpop.f32.mrb[0].mxu0
    %v5080 = vadd.f32 0.0, %v5079
    %v5081 = vpop.f32.mrb[0].mxu0
    %v5082 = vadd.f32 0.0, %v5081
    %v5083 = vpop.f32.mrb[0].mxu0
    %v5084 = vpop.f32.mrb[0].mxu0
    %5085 = vdwg.mxu0
    %5086 = vmatprep.subr.bf16.mxu0 %v1286
    %5087 = vmatpush1.bf16.msra.mxu0 %v1285
    %5088 = vmatprep.subr.bf16.mxu0 %v1294
    %5089 = vmatpush1.bf16.msra.mxu0 %v1293
    %5090 = vmatprep.subr.bf16.mxu0 %v1302
    %5091 = vmatpush1.bf16.msra.mxu0 %v1301
    %5092 = vmatprep.subr.bf16.mxu0 %v1310
    %5093 = vmatpush1.bf16.msra.mxu0 %v1309
    %5094 = vmatprep.subr.bf16.mxu0 %v1318
    %5095 = vmatpush1.bf16.msra.mxu0 %v1317
    %5096 = vmatprep.subr.bf16.mxu0 %v1326
    %5097 = vmatpush1.bf16.msra.mxu0 %v1325
    %5098 = vmatprep.subr.bf16.mxu0 %v1334
    %5099 = vmatpush1.bf16.msra.mxu0 %v1333
    %5100 = vmatprep.subr.bf16.mxu0 %v1342
    %5101 = vmatpush1.bf16.msra.mxu0 %v1341
    %5102 = vmatprep.subr.bf16.mxu0 %v1350
    %5103 = vmatpush1.bf16.msra.mxu0 %v1349
    %5104 = vmatprep.subr.bf16.mxu0 %v1358
    %5105 = vmatpush1.bf16.msra.mxu0 %v1357
    %5106 = vmatprep.subr.bf16.mxu0 %v1366
    %5107 = vmatpush1.bf16.msra.mxu0 %v1365
    %5108 = vmatprep.subr.bf16.mxu0 %v1374
    %5109 = vmatpush1.bf16.msra.mxu0 %v1373
    %5110 = vmatprep.subr.bf16.mxu0 %v1382
    %5111 = vmatpush1.bf16.msra.mxu0 %v1381
    %5112 = vmatprep.subr.bf16.mxu0 %v1390
    %5113 = vmatpush1.bf16.msra.mxu0 %v1389
    %5114 = vmatprep.subr.bf16.mxu0 %v1398
    %5115 = vmatpush1.bf16.msra.mxu0 %v1397
    %5116 = vmatprep.subr.bf16.mxu0 %v1406
    %5117 = vmatpush1.bf16.msra.mxu0 %v1405
    %5118 = vmatprep.mubr.bf16.mxu0 %v5001
    %5119 = vmatmul.mubr.bf16.gmra.mrb[0].mxu0 %v5000
    %v5120 = vpop.f32.mrb[0].mxu0
    %v5121 = vadd.f32 0.0, %v5120
    %v5122 = vpop.f32.mrb[0].mxu0
    %v5123 = vadd.f32 0.0, %v5122
    %v5124 = vpop.f32.mrb[0].mxu0
    %v5125 = vpop.f32.mrb[0].mxu0
    %5126 = vdwg.mxu0
    %5127 = vmatprep.subr.bf16.mxu0 %v1288
    %5128 = vmatpush1.bf16.msra.mxu0 %v1287
    %5129 = vmatprep.subr.bf16.mxu0 %v1296
    %5130 = vmatpush1.bf16.msra.mxu0 %v1295
    %5131 = vmatprep.subr.bf16.mxu0 %v1304
    %5132 = vmatpush1.bf16.msra.mxu0 %v1303
    %5133 = vmatprep.subr.bf16.mxu0 %v1312
    %5134 = vmatpush1.bf16.msra.mxu0 %v1311
    %5135 = vmatprep.subr.bf16.mxu0 %v1320
    %5136 = vmatpush1.bf16.msra.mxu0 %v1319
    %5137 = vmatprep.subr.bf16.mxu0 %v1328
    %5138 = vmatpush1.bf16.msra.mxu0 %v1327
    %5139 = vmatprep.subr.bf16.mxu0 %v1336
    %5140 = vmatpush1.bf16.msra.mxu0 %v1335
    %5141 = vmatprep.subr.bf16.mxu0 %v1344
    %5142 = vmatpush1.bf16.msra.mxu0 %v1343
    %5143 = vmatprep.subr.bf16.mxu0 %v1352
    %5144 = vmatpush1.bf16.msra.mxu0 %v1351
    %5145 = vmatprep.subr.bf16.mxu0 %v1360
    %5146 = vmatpush1.bf16.msra.mxu0 %v1359
    %5147 = vmatprep.subr.bf16.mxu0 %v1368
    %5148 = vmatpush1.bf16.msra.mxu0 %v1367
    %5149 = vmatprep.subr.bf16.mxu0 %v1376
    %5150 = vmatpush1.bf16.msra.mxu0 %v1375
    %5151 = vmatprep.subr.bf16.mxu0 %v1384
    %5152 = vmatpush1.bf16.msra.mxu0 %v1383
    %5153 = vmatprep.subr.bf16.mxu0 %v1392
    %5154 = vmatpush1.bf16.msra.mxu0 %v1391
    %5155 = vmatprep.subr.bf16.mxu0 %v1400
    %5156 = vmatpush1.bf16.msra.mxu0 %v1399
    %5157 = vmatprep.subr.bf16.mxu0 %v1408
    %5158 = vmatpush1.bf16.msra.mxu0 %v1407
    %5159 = vmatprep.mubr.bf16.mxu0 %v5001
    %5160 = vmatmul.mubr.bf16.gmra.mrb[0].mxu0 %v5000
    %v5161 = vpop.f32.mrb[0].mxu0
    %v5162 = vadd.f32 0.0, %v5161
    %v5163 = vpop.f32.mrb[0].mxu0
    %v5164 = vadd.f32 0.0, %v5163
    %v5165 = vpop.f32.mrb[0].mxu0
    %v5166 = vpop.f32.mrb[0].mxu0
    %5167 = vdwg.mxu0
    %v5168 = vadd.f32 %v764, %v5039
    %v5169 = vadd.f32 %v766, %v5041
    %v5170 = vadd.f32 %v807, %v5080
    %v5171 = vadd.f32 %v809, %v5082
    %v5172 = vadd.f32 %v850, %v5121
    %v5173 = vadd.f32 %v852, %v5123
    %v5174 = vadd.f32 %v893, %v5162
    %v5175 = vadd.f32 %v895, %v5164
    %v5176 = vxor.u32 %v5168, 2147483648
    %v5177 = vxor.u32 %v5169, 2147483648
    %v5178 = vxor.u32 %v5170, 2147483648
    %v5179 = vxor.u32 %v5171, 2147483648
    %v5180 = vxor.u32 %v5172, 2147483648
    %v5181 = vxor.u32 %v5173, 2147483648
    %v5182 = vmul.f32 %v5176, 1.442695
    %v5183 = vpow.pop %v5182
    %v5184 = vmul.f32 %v5177, 1.442695
    %v5185 = vpow.pop %v5184
    %v5186 = vmul.f32 %v5178, 1.442695
    %v5187 = vpow.pop %v5186
    %v5188 = vmul.f32 %v5179, 1.442695
    %v5189 = vpow.pop %v5188
    %v5190 = vmul.f32 %v5180, 1.442695
    %v5191 = vpow.pop %v5190
    %v5192 = vmul.f32 %v5181, 1.442695
    %v5193 = vpow.pop %v5192
    %v5194 = vadd.f32 %v5183, 1.0
    %v5195 = vadd.f32 %v5185, 1.0
    %v5196 = vadd.f32 %v5187, 1.0
    %v5197 = vadd.f32 %v5189, 1.0
    %v5198 = vadd.f32 %v5191, 1.0
    %v5199 = vadd.f32 %v5193, 1.0
    %v5200 = vrcp.pop %v5194
    %v5201 = vmul.f32 1.0, %v5200
    %v5202 = vrcp.pop %v5195
    %v5203 = vmul.f32 1.0, %v5202
    %v5204 = vrcp.pop %v5196
    %v5205 = vmul.f32 1.0, %v5204
    %v5206 = vrcp.pop %v5197
    %v5207 = vmul.f32 1.0, %v5206
    %v5208 = vrcp.pop %v5198
    %v5209 = vmul.f32 1.0, %v5208
    %v5210 = vrcp.pop %v5199
    %v5211 = vmul.f32 1.0, %v5210
    %v5212 = vtanh.pop %v5174
    %v5213 = vtanh.pop %v5175
    %v5216 = vrot.slane %v4604, 6
    %v5217 = vrot.slane %v4605, 6
    %v5220 = vmul.f32 %v5205, %v5216
    %v5221 = vmul.f32 %v5207, %v5217
    %v5222 = vmul.f32 %v5201, %v5212
    %v5223 = vmul.f32 %v5203, %v5213
    %v5224 = vadd.f32 %v5220, %v5222
    %v5225 = vadd.f32 %v5221, %v5223
    %v5226 = vtanh.pop %v5224
    %v5227 = vtanh.pop %v5225
    %v5228 = vmul.f32 %v5209, %v5226
    %v5229 = vmul.f32 %v5211, %v5227
    %v5230 = vpack.c.bf16 %v5228, %v5228
    %v5231 = vpack.c.bf16 %v5229, %v5229
    %v5234 = vrot.slane %v4996, 5
    %v5235 = vrot.slane %v4997, 5
    %v5236 = vrot.slane %v5234, 3
    %v5237 = vrot.slane %v5235, 3
    %5240 = vmatprep.subr.bf16.mxu0 %v2821
    %5241 = vmatpush1.bf16.msra.mxu0 %v2820
    %5242 = vmatprep.subr.bf16.mxu0 %v2829
    %5243 = vmatpush1.bf16.msra.mxu0 %v2828
    %5244 = vmatprep.subr.bf16.mxu0 %v2837
    %5245 = vmatpush1.bf16.msra.mxu0 %v2836
    %5246 = vmatprep.subr.bf16.mxu0 %v2845
    %5247 = vmatpush1.bf16.msra.mxu0 %v2844
    %5248 = vmatprep.subr.bf16.mxu0 %v2853
    %5249 = vmatpush1.bf16.msra.mxu0 %v2852
    %5250 = vmatprep.subr.bf16.mxu0 %v2861
    %5251 = vmatpush1.bf16.msra.mxu0 %v2860
    %5252 = vmatprep.subr.bf16.mxu0 %v2869
    %5253 = vmatpush1.bf16.msra.mxu0 %v2868
    %5254 = vmatprep.subr.bf16.mxu0 %v2877
    %5255 = vmatpush1.bf16.msra.mxu0 %v2876
    %5256 = vmatprep.subr.bf16.mxu0 %v2885
    %5257 = vmatpush1.bf16.msra.mxu0 %v2884
    %5258 = vmatprep.subr.bf16.mxu0 %v2893
    %5259 = vmatpush1.bf16.msra.mxu0 %v2892
    %5260 = vmatprep.subr.bf16.mxu0 %v2901
    %5261 = vmatpush1.bf16.msra.mxu0 %v2900
    %5262 = vmatprep.subr.bf16.mxu0 %v2909
    %5263 = vmatpush1.bf16.msra.mxu0 %v2908
    %5264 = vmatprep.subr.bf16.mxu0 %v2917
    %5265 = vmatpush1.bf16.msra.mxu0 %v2916
    %5266 = vmatprep.subr.bf16.mxu0 %v2925
    %5267 = vmatpush1.bf16.msra.mxu0 %v2924
    %5268 = vmatprep.subr.bf16.mxu0 %v2933
    %5269 = vmatpush1.bf16.msra.mxu0 %v2932
    %5270 = vmatprep.subr.bf16.mxu0 %v2941
    %5271 = vmatpush1.bf16.msra.mxu0 %v2940
    %5272 = vmatprep.mubr.bf16.mxu0 %v5001
    %5273 = vmatmul.mubr.bf16.gmra.mrb[0].mxu0 %v5000
    %v5274 = vpop.f32.mrb[0].mxu0
    %v5275 = vadd.f32 %v2015, %v5274
    %v5276 = vpop.f32.mrb[0].mxu0
    %v5277 = vadd.f32 %v2019, %v5276
    %v5278 = vpop.f32.mrb[0].mxu0
    %v5279 = vpop.f32.mrb[0].mxu0
    %5280 = vdwg.mxu0
    %5281 = vmatprep.subr.bf16.mxu0 %v2949
    %5282 = vmatpush1.bf16.msra.mxu0 %v2948
    %5283 = vmatprep.subr.bf16.mxu0 %v2957
    %5284 = vmatpush1.bf16.msra.mxu0 %v2956
    %5285 = vmatprep.subr.bf16.mxu0 %v2965
    %5286 = vmatpush1.bf16.msra.mxu0 %v2964
    %5287 = vmatprep.subr.bf16.mxu0 %v2973
    %5288 = vmatpush1.bf16.msra.mxu0 %v2972
    %5289 = vmatprep.subr.bf16.mxu0 %v2981
    %5290 = vmatpush1.bf16.msra.mxu0 %v2980
    %5291 = vmatprep.subr.bf16.mxu0 %v2989
    %5292 = vmatpush1.bf16.msra.mxu0 %v2988
    %5293 = vmatprep.subr.bf16.mxu0 %v2997
    %5294 = vmatpush1.bf16.msra.mxu0 %v2996
    %5295 = vmatprep.subr.bf16.mxu0 %v3005
    %5296 = vmatpush1.bf16.msra.mxu0 %v3004
    %5297 = vmatprep.subr.bf16.mxu0 %v3013
    %5298 = vmatpush1.bf16.msra.mxu0 %v3012
    %5299 = vmatprep.subr.bf16.mxu0 %v3021
    %5300 = vmatpush1.bf16.msra.mxu0 %v3020
    %5301 = vmatprep.subr.bf16.mxu0 %v3029
    %5302 = vmatpush1.bf16.msra.mxu0 %v3028
    %5303 = vmatprep.subr.bf16.mxu0 %v3037
    %5304 = vmatpush1.bf16.msra.mxu0 %v3036
    %5305 = vmatprep.subr.bf16.mxu0 %v3045
    %5306 = vmatpush1.bf16.msra.mxu0 %v3044
    %5307 = vmatprep.subr.bf16.mxu0 %v3053
    %5308 = vmatpush1.bf16.msra.mxu0 %v3052
    %5309 = vmatprep.subr.bf16.mxu0 %v3061
    %5310 = vmatpush1.bf16.msra.mxu0 %v3060
    %5311 = vmatprep.subr.bf16.mxu0 %v3069
    %5312 = vmatpush1.bf16.msra.mxu0 %v3068
    %5313 = vmatprep.mubr.bf16.mxu0 %v5237
    %5314 = vmatmul.mubr.bf16.gmra.mrb[0].mxu0 %v5236
    %v5315 = vpop.f32.mrb[0].mxu0
    %v5316 = vadd.f32 %v5275, %v5315
    %v5317 = vpop.f32.mrb[0].mxu0
    %v5318 = vadd.f32 %v5277, %v5317
    %v5319 = vpop.f32.mrb[0].mxu0
    %v5320 = vpop.f32.mrb[0].mxu0
    %5321 = vdwg.mxu0
    %5322 = vmatprep.subr.bf16.mxu0 %v2823
    %5323 = vmatpush1.bf16.msra.mxu0 %v2822
    %5324 = vmatprep.subr.bf16.mxu0 %v2831
    %5325 = vmatpush1.bf16.msra.mxu0 %v2830
    %5326 = vmatprep.subr.bf16.mxu0 %v2839
    %5327 = vmatpush1.bf16.msra.mxu0 %v2838
    %5328 = vmatprep.subr.bf16.mxu0 %v2847
    %5329 = vmatpush1.bf16.msra.mxu0 %v2846
    %5330 = vmatprep.subr.bf16.mxu0 %v2855
    %5331 = vmatpush1.bf16.msra.mxu0 %v2854
    %5332 = vmatprep.subr.bf16.mxu0 %v2863
    %5333 = vmatpush1.bf16.msra.mxu0 %v2862
    %5334 = vmatprep.subr.bf16.mxu0 %v2871
    %5335 = vmatpush1.bf16.msra.mxu0 %v2870
    %5336 = vmatprep.subr.bf16.mxu0 %v2879
    %5337 = vmatpush1.bf16.msra.mxu0 %v2878
    %5338 = vmatprep.subr.bf16.mxu0 %v2887
    %5339 = vmatpush1.bf16.msra.mxu0 %v2886
    %5340 = vmatprep.subr.bf16.mxu0 %v2895
    %5341 = vmatpush1.bf16.msra.mxu0 %v2894
    %5342 = vmatprep.subr.bf16.mxu0 %v2903
    %5343 = vmatpush1.bf16.msra.mxu0 %v2902
    %5344 = vmatprep.subr.bf16.mxu0 %v2911
    %5345 = vmatpush1.bf16.msra.mxu0 %v2910
    %5346 = vmatprep.subr.bf16.mxu0 %v2919
    %5347 = vmatpush1.bf16.msra.mxu0 %v2918
    %5348 = vmatprep.subr.bf16.mxu0 %v2927
    %5349 = vmatpush1.bf16.msra.mxu0 %v2926
    %5350 = vmatprep.subr.bf16.mxu0 %v2935
    %5351 = vmatpush1.bf16.msra.mxu0 %v2934
    %5352 = vmatprep.subr.bf16.mxu0 %v2943
    %5353 = vmatpush1.bf16.msra.mxu0 %v2942
    %5354 = vmatprep.mubr.bf16.mxu0 %v5001
    %5355 = vmatmul.mubr.bf16.gmra.mrb[0].mxu0 %v5000
    %v5356 = vpop.f32.mrb[0].mxu0
    %v5357 = vadd.f32 %v2023, %v5356
    %v5358 = vpop.f32.mrb[0].mxu0
    %v5359 = vadd.f32 %v2027, %v5358
    %v5360 = vpop.f32.mrb[0].mxu0
    %v5361 = vpop.f32.mrb[0].mxu0
    %5362 = vdwg.mxu0
    %5363 = vmatprep.subr.bf16.mxu0 %v2951
    %5364 = vmatpush1.bf16.msra.mxu0 %v2950
    %5365 = vmatprep.subr.bf16.mxu0 %v2959
    %5366 = vmatpush1.bf16.msra.mxu0 %v2958
    %5367 = vmatprep.subr.bf16.mxu0 %v2967
    %5368 = vmatpush1.bf16.msra.mxu0 %v2966
    %5369 = vmatprep.subr.bf16.mxu0 %v2975
    %5370 = vmatpush1.bf16.msra.mxu0 %v2974
    %5371 = vmatprep.subr.bf16.mxu0 %v2983
    %5372 = vmatpush1.bf16.msra.mxu0 %v2982
    %5373 = vmatprep.subr.bf16.mxu0 %v2991
    %5374 = vmatpush1.bf16.msra.mxu0 %v2990
    %5375 = vmatprep.subr.bf16.mxu0 %v2999
    %5376 = vmatpush1.bf16.msra.mxu0 %v2998
    %5377 = vmatprep.subr.bf16.mxu0 %v3007
    %5378 = vmatpush1.bf16.msra.mxu0 %v3006
    %5379 = vmatprep.subr.bf16.mxu0 %v3015
    %5380 = vmatpush1.bf16.msra.mxu0 %v3014
    %5381 = vmatprep.subr.bf16.mxu0 %v3023
    %5382 = vmatpush1.bf16.msra.mxu0 %v3022
    %5383 = vmatprep.subr.bf16.mxu0 %v3031
    %5384 = vmatpush1.bf16.msra.mxu0 %v3030
    %5385 = vmatprep.subr.bf16.mxu0 %v3039
    %5386 = vmatpush1.bf16.msra.mxu0 %v3038
    %5387 = vmatprep.subr.bf16.mxu0 %v3047
    %5388 = vmatpush1.bf16.msra.mxu0 %v3046
    %5389 = vmatprep.subr.bf16.mxu0 %v3055
    %5390 = vmatpush1.bf16.msra.mxu0 %v3054
    %5391 = vmatprep.subr.bf16.mxu0 %v3063
    %5392 = vmatpush1.bf16.msra.mxu0 %v3062
    %5393 = vmatprep.subr.bf16.mxu0 %v3071
    %5394 = vmatpush1.bf16.msra.mxu0 %v3070
    %5395 = vmatprep.mubr.bf16.mxu0 %v5237
    %5396 = vmatmul.mubr.bf16.gmra.mrb[0].mxu0 %v5236
    %v5397 = vpop.f32.mrb[0].mxu0
    %v5398 = vadd.f32 %v5357, %v5397
    %v5399 = vpop.f32.mrb[0].mxu0
    %v5400 = vadd.f32 %v5359, %v5399
    %v5401 = vpop.f32.mrb[0].mxu0
    %v5402 = vpop.f32.mrb[0].mxu0
    %5403 = vdwg.mxu0
    %5404 = vmatprep.subr.bf16.mxu0 %v2825
    %5405 = vmatpush1.bf16.msra.mxu0 %v2824
    %5406 = vmatprep.subr.bf16.mxu0 %v2833
    %5407 = vmatpush1.bf16.msra.mxu0 %v2832
    %5408 = vmatprep.subr.bf16.mxu0 %v2841
    %5409 = vmatpush1.bf16.msra.mxu0 %v2840
    %5410 = vmatprep.subr.bf16.mxu0 %v2849
    %5411 = vmatpush1.bf16.msra.mxu0 %v2848
    %5412 = vmatprep.subr.bf16.mxu0 %v2857
    %5413 = vmatpush1.bf16.msra.mxu0 %v2856
    %5414 = vmatprep.subr.bf16.mxu0 %v2865
    %5415 = vmatpush1.bf16.msra.mxu0 %v2864
    %5416 = vmatprep.subr.bf16.mxu0 %v2873
    %5417 = vmatpush1.bf16.msra.mxu0 %v2872
    %5418 = vmatprep.subr.bf16.mxu0 %v2881
    %5419 = vmatpush1.bf16.msra.mxu0 %v2880
    %5420 = vmatprep.subr.bf16.mxu0 %v2889
    %5421 = vmatpush1.bf16.msra.mxu0 %v2888
    %5422 = vmatprep.subr.bf16.mxu0 %v2897
    %5423 = vmatpush1.bf16.msra.mxu0 %v2896
    %5424 = vmatprep.subr.bf16.mxu0 %v2905
    %5425 = vmatpush1.bf16.msra.mxu0 %v2904
    %5426 = vmatprep.subr.bf16.mxu0 %v2913
    %5427 = vmatpush1.bf16.msra.mxu0 %v2912
    %5428 = vmatprep.subr.bf16.mxu0 %v2921
    %5429 = vmatpush1.bf16.msra.mxu0 %v2920
    %5430 = vmatprep.subr.bf16.mxu0 %v2929
    %5431 = vmatpush1.bf16.msra.mxu0 %v2928
    %5432 = vmatprep.subr.bf16.mxu0 %v2937
    %5433 = vmatpush1.bf16.msra.mxu0 %v2936
    %5434 = vmatprep.subr.bf16.mxu0 %v2945
    %5435 = vmatpush1.bf16.msra.mxu0 %v2944
    %5436 = vmatprep.mubr.bf16.mxu0 %v5001
    %5437 = vmatmul.mubr.bf16.gmra.mrb[0].mxu0 %v5000
    %v5438 = vpop.f32.mrb[0].mxu0
    %v5439 = vadd.f32 %v2031, %v5438
    %v5440 = vpop.f32.mrb[0].mxu0
    %v5441 = vadd.f32 %v2035, %v5440
    %v5442 = vpop.f32.mrb[0].mxu0
    %v5443 = vpop.f32.mrb[0].mxu0
    %5444 = vdwg.mxu0
    %5445 = vmatprep.subr.bf16.mxu0 %v2953
    %5446 = vmatpush1.bf16.msra.mxu0 %v2952
    %5447 = vmatprep.subr.bf16.mxu0 %v2961
    %5448 = vmatpush1.bf16.msra.mxu0 %v2960
    %5449 = vmatprep.subr.bf16.mxu0 %v2969
    %5450 = vmatpush1.bf16.msra.mxu0 %v2968
    %5451 = vmatprep.subr.bf16.mxu0 %v2977
    %5452 = vmatpush1.bf16.msra.mxu0 %v2976
    %5453 = vmatprep.subr.bf16.mxu0 %v2985
    %5454 = vmatpush1.bf16.msra.mxu0 %v2984
    %5455 = vmatprep.subr.bf16.mxu0 %v2993
    %5456 = vmatpush1.bf16.msra.mxu0 %v2992
    %5457 = vmatprep.subr.bf16.mxu0 %v3001
    %5458 = vmatpush1.bf16.msra.mxu0 %v3000
    %5459 = vmatprep.subr.bf16.mxu0 %v3009
    %5460 = vmatpush1.bf16.msra.mxu0 %v3008
    %5461 = vmatprep.subr.bf16.mxu0 %v3017
    %5462 = vmatpush1.bf16.msra.mxu0 %v3016
    %5463 = vmatprep.subr.bf16.mxu0 %v3025
    %5464 = vmatpush1.bf16.msra.mxu0 %v3024
    %5465 = vmatprep.subr.bf16.mxu0 %v3033
    %5466 = vmatpush1.bf16.msra.mxu0 %v3032
    %5467 = vmatprep.subr.bf16.mxu0 %v3041
    %5468 = vmatpush1.bf16.msra.mxu0 %v3040
    %5469 = vmatprep.subr.bf16.mxu0 %v3049
    %5470 = vmatpush1.bf16.msra.mxu0 %v3048
    %5471 = vmatprep.subr.bf16.mxu0 %v3057
    %5472 = vmatpush1.bf16.msra.mxu0 %v3056
    %5473 = vmatprep.subr.bf16.mxu0 %v3065
    %5474 = vmatpush1.bf16.msra.mxu0 %v3064
    %5475 = vmatprep.subr.bf16.mxu0 %v3073
    %5476 = vmatpush1.bf16.msra.mxu0 %v3072
    %5477 = vmatprep.mubr.bf16.mxu0 %v5237
    %5478 = vmatmul.mubr.bf16.gmra.mrb[0].mxu0 %v5236
    %v5479 = vpop.f32.mrb[0].mxu0
    %v5480 = vadd.f32 %v5439, %v5479
    %v5481 = vpop.f32.mrb[0].mxu0
    %v5482 = vadd.f32 %v5441, %v5481
    %v5483 = vpop.f32.mrb[0].mxu0
    %v5484 = vpop.f32.mrb[0].mxu0
    %5485 = vdwg.mxu0
    %5486 = vmatprep.subr.bf16.mxu0 %v2827
    %5487 = vmatpush1.bf16.msra.mxu0 %v2826
    %5488 = vmatprep.subr.bf16.mxu0 %v2835
    %5489 = vmatpush1.bf16.msra.mxu0 %v2834
    %5490 = vmatprep.subr.bf16.mxu0 %v2843
    %5491 = vmatpush1.bf16.msra.mxu0 %v2842
    %5492 = vmatprep.subr.bf16.mxu0 %v2851
    %5493 = vmatpush1.bf16.msra.mxu0 %v2850
    %5494 = vmatprep.subr.bf16.mxu0 %v2859
    %5495 = vmatpush1.bf16.msra.mxu0 %v2858
    %5496 = vmatprep.subr.bf16.mxu0 %v2867
    %5497 = vmatpush1.bf16.msra.mxu0 %v2866
    %5498 = vmatprep.subr.bf16.mxu0 %v2875
    %5499 = vmatpush1.bf16.msra.mxu0 %v2874
    %5500 = vmatprep.subr.bf16.mxu0 %v2883
    %5501 = vmatpush1.bf16.msra.mxu0 %v2882
    %5502 = vmatprep.subr.bf16.mxu0 %v2891
    %5503 = vmatpush1.bf16.msra.mxu0 %v2890
    %5504 = vmatprep.subr.bf16.mxu0 %v2899
    %5505 = vmatpush1.bf16.msra.mxu0 %v2898
    %5506 = vmatprep.subr.bf16.mxu0 %v2907
    %5507 = vmatpush1.bf16.msra.mxu0 %v2906
    %5508 = vmatprep.subr.bf16.mxu0 %v2915
    %5509 = vmatpush1.bf16.msra.mxu0 %v2914
    %5510 = vmatprep.subr.bf16.mxu0 %v2923
    %5511 = vmatpush1.bf16.msra.mxu0 %v2922
    %5512 = vmatprep.subr.bf16.mxu0 %v2931
    %5513 = vmatpush1.bf16.msra.mxu0 %v2930
    %5514 = vmatprep.subr.bf16.mxu0 %v2939
    %5515 = vmatpush1.bf16.msra.mxu0 %v2938
    %5516 = vmatprep.subr.bf16.mxu0 %v2947
    %5517 = vmatpush1.bf16.msra.mxu0 %v2946
    %5518 = vmatprep.mubr.bf16.mxu0 %v5001
    %5519 = vmatmul.mubr.bf16.gmra.mrb[0].mxu0 %v5000
    %v5520 = vpop.f32.mrb[0].mxu0
    %v5521 = vadd.f32 %v2039, %v5520
    %v5522 = vpop.f32.mrb[0].mxu0
    %v5523 = vadd.f32 %v2043, %v5522
    %v5524 = vpop.f32.mrb[0].mxu0
    %v5525 = vpop.f32.mrb[0].mxu0
    %5526 = vdwg.mxu0
    %5527 = vmatprep.subr.bf16.mxu0 %v2955
    %5528 = vmatpush1.bf16.msra.mxu0 %v2954
    %5529 = vmatprep.subr.bf16.mxu0 %v2963
    %5530 = vmatpush1.bf16.msra.mxu0 %v2962
    %5531 = vmatprep.subr.bf16.mxu0 %v2971
    %5532 = vmatpush1.bf16.msra.mxu0 %v2970
    %5533 = vmatprep.subr.bf16.mxu0 %v2979
    %5534 = vmatpush1.bf16.msra.mxu0 %v2978
    %5535 = vmatprep.subr.bf16.mxu0 %v2987
    %5536 = vmatpush1.bf16.msra.mxu0 %v2986
    %5537 = vmatprep.subr.bf16.mxu0 %v2995
    %5538 = vmatpush1.bf16.msra.mxu0 %v2994
    %5539 = vmatprep.subr.bf16.mxu0 %v3003
    %5540 = vmatpush1.bf16.msra.mxu0 %v3002
    %5541 = vmatprep.subr.bf16.mxu0 %v3011
    %5542 = vmatpush1.bf16.msra.mxu0 %v3010
    %5543 = vmatprep.subr.bf16.mxu0 %v3019
    %5544 = vmatpush1.bf16.msra.mxu0 %v3018
    %5545 = vmatprep.subr.bf16.mxu0 %v3027
    %5546 = vmatpush1.bf16.msra.mxu0 %v3026
    %5547 = vmatprep.subr.bf16.mxu0 %v3035
    %5548 = vmatpush1.bf16.msra.mxu0 %v3034
    %5549 = vmatprep.subr.bf16.mxu0 %v3043
    %5550 = vmatpush1.bf16.msra.mxu0 %v3042
    %5551 = vmatprep.subr.bf16.mxu0 %v3051
    %5552 = vmatpush1.bf16.msra.mxu0 %v3050
    %5553 = vmatprep.subr.bf16.mxu0 %v3059
    %5554 = vmatpush1.bf16.msra.mxu0 %v3058
    %5555 = vmatprep.subr.bf16.mxu0 %v3067
    %5556 = vmatpush1.bf16.msra.mxu0 %v3066
    %5557 = vmatprep.subr.bf16.mxu0 %v3075
    %5558 = vmatpush1.bf16.msra.mxu0 %v3074
    %5559 = vmatprep.mubr.bf16.mxu0 %v5237
    %5560 = vmatmul.mubr.bf16.gmra.mrb[0].mxu0 %v5236
    %v5561 = vpop.f32.mrb[0].mxu0
    %v5562 = vadd.f32 %v5521, %v5561
    %v5563 = vpop.f32.mrb[0].mxu0
    %v5564 = vadd.f32 %v5523, %v5563
    %v5565 = vpop.f32.mrb[0].mxu0
    %v5566 = vpop.f32.mrb[0].mxu0
    %5567 = vdwg.mxu0
    %v5568 = vxor.u32 %v5316, 2147483648
    %v5569 = vxor.u32 %v5318, 2147483648
    %v5570 = vxor.u32 %v5398, 2147483648
    %v5571 = vxor.u32 %v5400, 2147483648
    %v5572 = vxor.u32 %v5480, 2147483648
    %v5573 = vxor.u32 %v5482, 2147483648
    %v5574 = vmul.f32 %v5568, 1.442695
    %v5575 = vpow.pop %v5574
    %v5576 = vmul.f32 %v5569, 1.442695
    %v5577 = vpow.pop %v5576
    %v5578 = vmul.f32 %v5570, 1.442695
    %v5579 = vpow.pop %v5578
    %v5580 = vmul.f32 %v5571, 1.442695
    %v5581 = vpow.pop %v5580
    %v5582 = vmul.f32 %v5572, 1.442695
    %v5583 = vpow.pop %v5582
    %v5584 = vmul.f32 %v5573, 1.442695
    %v5585 = vpow.pop %v5584
    %v5586 = vadd.f32 %v5575, 1.0
    %v5587 = vadd.f32 %v5577, 1.0
    %v5588 = vadd.f32 %v5579, 1.0
    %v5589 = vadd.f32 %v5581, 1.0
    %v5590 = vadd.f32 %v5583, 1.0
    %v5591 = vadd.f32 %v5585, 1.0
    %v5592 = vrcp.pop %v5586
    %v5593 = vmul.f32 1.0, %v5592
    %v5594 = vrcp.pop %v5587
    %v5595 = vmul.f32 1.0, %v5594
    %v5596 = vrcp.pop %v5588
    %v5597 = vmul.f32 1.0, %v5596
    %v5598 = vrcp.pop %v5589
    %v5599 = vmul.f32 1.0, %v5598
    %v5600 = vrcp.pop %v5590
    %v5601 = vmul.f32 1.0, %v5600
    %v5602 = vrcp.pop %v5591
    %v5603 = vmul.f32 1.0, %v5602
    %v5604 = vtanh.pop %v5562
    %v5605 = vtanh.pop %v5564
    %v5606 = vmul.f32 %v5597, %v4990
    %v5607 = vmul.f32 %v5599, %v4991
    %v5608 = vmul.f32 %v5593, %v5604
    %v5609 = vmul.f32 %v5595, %v5605
    %v5610 = vadd.f32 %v5606, %v5608
    %v5611 = vadd.f32 %v5607, %v5609
    %v5612 = vtanh.pop %v5610
    %v5613 = vtanh.pop %v5611
    %v5614 = vmul.f32 %v5601, %v5612
    %v5615 = vmul.f32 %v5603, %v5613
    %v5616 = vpack.c.bf16 %v5614, %v5614
    %v5617 = vpack.c.bf16 %v5615, %v5615
    %5618 = vmatprep.subr.bf16.mxu0 %v1282
    %5619 = vmatpush1.bf16.msra.mxu0 %v1281
    %5620 = vmatprep.subr.bf16.mxu0 %v1290
    %5621 = vmatpush1.bf16.msra.mxu0 %v1289
    %5622 = vmatprep.subr.bf16.mxu0 %v1298
    %5623 = vmatpush1.bf16.msra.mxu0 %v1297
    %5624 = vmatprep.subr.bf16.mxu0 %v1306
    %5625 = vmatpush1.bf16.msra.mxu0 %v1305
    %5626 = vmatprep.subr.bf16.mxu0 %v1314
    %5627 = vmatpush1.bf16.msra.mxu0 %v1313
    %5628 = vmatprep.subr.bf16.mxu0 %v1322
    %5629 = vmatpush1.bf16.msra.mxu0 %v1321
    %5630 = vmatprep.subr.bf16.mxu0 %v1330
    %5631 = vmatpush1.bf16.msra.mxu0 %v1329
    %5632 = vmatprep.subr.bf16.mxu0 %v1338
    %5633 = vmatpush1.bf16.msra.mxu0 %v1337
    %5634 = vmatprep.subr.bf16.mxu0 %v1346
    %5635 = vmatpush1.bf16.msra.mxu0 %v1345
    %5636 = vmatprep.subr.bf16.mxu0 %v1354
    %5637 = vmatpush1.bf16.msra.mxu0 %v1353
    %5638 = vmatprep.subr.bf16.mxu0 %v1362
    %5639 = vmatpush1.bf16.msra.mxu0 %v1361
    %5640 = vmatprep.subr.bf16.mxu0 %v1370
    %5641 = vmatpush1.bf16.msra.mxu0 %v1369
    %5642 = vmatprep.subr.bf16.mxu0 %v1378
    %5643 = vmatpush1.bf16.msra.mxu0 %v1377
    %5644 = vmatprep.subr.bf16.mxu0 %v1386
    %5645 = vmatpush1.bf16.msra.mxu0 %v1385
    %5646 = vmatprep.subr.bf16.mxu0 %v1394
    %5647 = vmatpush1.bf16.msra.mxu0 %v1393
    %5648 = vmatprep.subr.bf16.mxu0 %v1402
    %5649 = vmatpush1.bf16.msra.mxu0 %v1401
    %5650 = vmatprep.mubr.bf16.mxu0 %v5231
    %5651 = vmatmul.mubr.bf16.gmra.mrb[0].mxu0 %v5230
    %v5652 = vpop.f32.mrb[0].mxu0
    %v5653 = vadd.f32 0.0, %v5652
    %v5654 = vpop.f32.mrb[0].mxu0
    %v5655 = vadd.f32 0.0, %v5654
    %v5656 = vpop.f32.mrb[0].mxu0
    %v5657 = vpop.f32.mrb[0].mxu0
    %5658 = vdwg.mxu0
    %5659 = vmatprep.subr.bf16.mxu0 %v1284
    %5660 = vmatpush1.bf16.msra.mxu0 %v1283
    %5661 = vmatprep.subr.bf16.mxu0 %v1292
    %5662 = vmatpush1.bf16.msra.mxu0 %v1291
    %5663 = vmatprep.subr.bf16.mxu0 %v1300
    %5664 = vmatpush1.bf16.msra.mxu0 %v1299
    %5665 = vmatprep.subr.bf16.mxu0 %v1308
    %5666 = vmatpush1.bf16.msra.mxu0 %v1307
    %5667 = vmatprep.subr.bf16.mxu0 %v1316
    %5668 = vmatpush1.bf16.msra.mxu0 %v1315
    %5669 = vmatprep.subr.bf16.mxu0 %v1324
    %5670 = vmatpush1.bf16.msra.mxu0 %v1323
    %5671 = vmatprep.subr.bf16.mxu0 %v1332
    %5672 = vmatpush1.bf16.msra.mxu0 %v1331
    %5673 = vmatprep.subr.bf16.mxu0 %v1340
    %5674 = vmatpush1.bf16.msra.mxu0 %v1339
    %5675 = vmatprep.subr.bf16.mxu0 %v1348
    %5676 = vmatpush1.bf16.msra.mxu0 %v1347
    %5677 = vmatprep.subr.bf16.mxu0 %v1356
    %5678 = vmatpush1.bf16.msra.mxu0 %v1355
    %5679 = vmatprep.subr.bf16.mxu0 %v1364
    %5680 = vmatpush1.bf16.msra.mxu0 %v1363
    %5681 = vmatprep.subr.bf16.mxu0 %v1372
    %5682 = vmatpush1.bf16.msra.mxu0 %v1371
    %5683 = vmatprep.subr.bf16.mxu0 %v1380
    %5684 = vmatpush1.bf16.msra.mxu0 %v1379
    %5685 = vmatprep.subr.bf16.mxu0 %v1388
    %5686 = vmatpush1.bf16.msra.mxu0 %v1387
    %5687 = vmatprep.subr.bf16.mxu0 %v1396
    %5688 = vmatpush1.bf16.msra.mxu0 %v1395
    %5689 = vmatprep.subr.bf16.mxu0 %v1404
    %5690 = vmatpush1.bf16.msra.mxu0 %v1403
    %5691 = vmatprep.mubr.bf16.mxu0 %v5231
    %5692 = vmatmul.mubr.bf16.gmra.mrb[0].mxu0 %v5230
    %v5693 = vpop.f32.mrb[0].mxu0
    %v5694 = vadd.f32 0.0, %v5693
    %v5695 = vpop.f32.mrb[0].mxu0
    %v5696 = vadd.f32 0.0, %v5695
    %v5697 = vpop.f32.mrb[0].mxu0
    %v5698 = vpop.f32.mrb[0].mxu0
    %5699 = vdwg.mxu0
    %5700 = vmatprep.subr.bf16.mxu0 %v1286
    %5701 = vmatpush1.bf16.msra.mxu0 %v1285
    %5702 = vmatprep.subr.bf16.mxu0 %v1294
    %5703 = vmatpush1.bf16.msra.mxu0 %v1293
    %5704 = vmatprep.subr.bf16.mxu0 %v1302
    %5705 = vmatpush1.bf16.msra.mxu0 %v1301
    %5706 = vmatprep.subr.bf16.mxu0 %v1310
    %5707 = vmatpush1.bf16.msra.mxu0 %v1309
    %5708 = vmatprep.subr.bf16.mxu0 %v1318
    %5709 = vmatpush1.bf16.msra.mxu0 %v1317
    %5710 = vmatprep.subr.bf16.mxu0 %v1326
    %5711 = vmatpush1.bf16.msra.mxu0 %v1325
    %5712 = vmatprep.subr.bf16.mxu0 %v1334
    %5713 = vmatpush1.bf16.msra.mxu0 %v1333
    %5714 = vmatprep.subr.bf16.mxu0 %v1342
    %5715 = vmatpush1.bf16.msra.mxu0 %v1341
    %5716 = vmatprep.subr.bf16.mxu0 %v1350
    %5717 = vmatpush1.bf16.msra.mxu0 %v1349
    %5718 = vmatprep.subr.bf16.mxu0 %v1358
    %5719 = vmatpush1.bf16.msra.mxu0 %v1357
    %5720 = vmatprep.subr.bf16.mxu0 %v1366
    %5721 = vmatpush1.bf16.msra.mxu0 %v1365
    %5722 = vmatprep.subr.bf16.mxu0 %v1374
    %5723 = vmatpush1.bf16.msra.mxu0 %v1373
    %5724 = vmatprep.subr.bf16.mxu0 %v1382
    %5725 = vmatpush1.bf16.msra.mxu0 %v1381
    %5726 = vmatprep.subr.bf16.mxu0 %v1390
    %5727 = vmatpush1.bf16.msra.mxu0 %v1389
    %5728 = vmatprep.subr.bf16.mxu0 %v1398
    %5729 = vmatpush1.bf16.msra.mxu0 %v1397
    %5730 = vmatprep.subr.bf16.mxu0 %v1406
    %5731 = vmatpush1.bf16.msra.mxu0 %v1405
    %5732 = vmatprep.mubr.bf16.mxu0 %v5231
    %5733 = vmatmul.mubr.bf16.gmra.mrb[0].mxu0 %v5230
    %v5734 = vpop.f32.mrb[0].mxu0
    %v5735 = vadd.f32 0.0, %v5734
    %v5736 = vpop.f32.mrb[0].mxu0
    %v5737 = vadd.f32 0.0, %v5736
    %v5738 = vpop.f32.mrb[0].mxu0
    %v5739 = vpop.f32.mrb[0].mxu0
    %5740 = vdwg.mxu0
    %5741 = vmatprep.subr.bf16.mxu0 %v1288
    %5742 = vmatpush1.bf16.msra.mxu0 %v1287
    %5743 = vmatprep.subr.bf16.mxu0 %v1296
    %5744 = vmatpush1.bf16.msra.mxu0 %v1295
    %5745 = vmatprep.subr.bf16.mxu0 %v1304
    %5746 = vmatpush1.bf16.msra.mxu0 %v1303
    %5747 = vmatprep.subr.bf16.mxu0 %v1312
    %5748 = vmatpush1.bf16.msra.mxu0 %v1311
    %5749 = vmatprep.subr.bf16.mxu0 %v1320
    %5750 = vmatpush1.bf16.msra.mxu0 %v1319
    %5751 = vmatprep.subr.bf16.mxu0 %v1328
    %5752 = vmatpush1.bf16.msra.mxu0 %v1327
    %5753 = vmatprep.subr.bf16.mxu0 %v1336
    %5754 = vmatpush1.bf16.msra.mxu0 %v1335
    %5755 = vmatprep.subr.bf16.mxu0 %v1344
    %5756 = vmatpush1.bf16.msra.mxu0 %v1343
    %5757 = vmatprep.subr.bf16.mxu0 %v1352
    %5758 = vmatpush1.bf16.msra.mxu0 %v1351
    %5759 = vmatprep.subr.bf16.mxu0 %v1360
    %5760 = vmatpush1.bf16.msra.mxu0 %v1359
    %5761 = vmatprep.subr.bf16.mxu0 %v1368
    %5762 = vmatpush1.bf16.msra.mxu0 %v1367
    %5763 = vmatprep.subr.bf16.mxu0 %v1376
    %5764 = vmatpush1.bf16.msra.mxu0 %v1375
    %5765 = vmatprep.subr.bf16.mxu0 %v1384
    %5766 = vmatpush1.bf16.msra.mxu0 %v1383
    %5767 = vmatprep.subr.bf16.mxu0 %v1392
    %5768 = vmatpush1.bf16.msra.mxu0 %v1391
    %5769 = vmatprep.subr.bf16.mxu0 %v1400
    %5770 = vmatpush1.bf16.msra.mxu0 %v1399
    %5771 = vmatprep.subr.bf16.mxu0 %v1408
    %5772 = vmatpush1.bf16.msra.mxu0 %v1407
    %5773 = vmatprep.mubr.bf16.mxu0 %v5231
    %5774 = vmatmul.mubr.bf16.gmra.mrb[0].mxu0 %v5230
    %v5775 = vpop.f32.mrb[0].mxu0
    %v5776 = vadd.f32 0.0, %v5775
    %v5777 = vpop.f32.mrb[0].mxu0
    %v5778 = vadd.f32 0.0, %v5777
    %v5779 = vpop.f32.mrb[0].mxu0
    %v5780 = vpop.f32.mrb[0].mxu0
    %5781 = vdwg.mxu0
    %v5790 = vrot.slane %v5653, 6
    %v5791 = vrot.slane %v5655, 6
    %v5792 = vrot.slane %v5694, 6
    %v5793 = vrot.slane %v5696, 6
    %v5794 = vrot.slane %v5735, 6
    %v5795 = vrot.slane %v5737, 6
    %v5796 = vrot.slane %v5776, 6
    %v5797 = vrot.slane %v5778, 6
    %v5806 = vadd.f32 %v764, %v5790
    %v5807 = vadd.f32 %v766, %v5791
    %v5808 = vadd.f32 %v807, %v5792
    %v5809 = vadd.f32 %v809, %v5793
    %v5810 = vadd.f32 %v850, %v5794
    %v5811 = vadd.f32 %v852, %v5795
    %v5812 = vadd.f32 %v893, %v5796
    %v5813 = vadd.f32 %v895, %v5797
    %v5814 = vxor.u32 %v5806, 2147483648
    %v5815 = vxor.u32 %v5807, 2147483648
    %v5816 = vxor.u32 %v5808, 2147483648
    %v5817 = vxor.u32 %v5809, 2147483648
    %v5818 = vxor.u32 %v5810, 2147483648
    %v5819 = vxor.u32 %v5811, 2147483648
    %v5820 = vmul.f32 %v5814, 1.442695
    %v5821 = vpow.pop %v5820
    %v5822 = vmul.f32 %v5815, 1.442695
    %v5823 = vpow.pop %v5822
    %v5824 = vmul.f32 %v5816, 1.442695
    %v5825 = vpow.pop %v5824
    %v5826 = vmul.f32 %v5817, 1.442695
    %v5827 = vpow.pop %v5826
    %v5828 = vmul.f32 %v5818, 1.442695
    %v5829 = vpow.pop %v5828
    %v5830 = vmul.f32 %v5819, 1.442695
    %v5831 = vpow.pop %v5830
    %v5832 = vadd.f32 %v5821, 1.0
    %v5833 = vadd.f32 %v5823, 1.0
    %v5834 = vadd.f32 %v5825, 1.0
    %v5835 = vadd.f32 %v5827, 1.0
    %v5836 = vadd.f32 %v5829, 1.0
    %v5837 = vadd.f32 %v5831, 1.0
    %v5838 = vrcp.pop %v5832
    %v5839 = vmul.f32 1.0, %v5838
    %v5840 = vrcp.pop %v5833
    %v5841 = vmul.f32 1.0, %v5840
    %v5842 = vrcp.pop %v5834
    %v5843 = vmul.f32 1.0, %v5842
    %v5844 = vrcp.pop %v5835
    %v5845 = vmul.f32 1.0, %v5844
    %v5846 = vrcp.pop %v5836
    %v5847 = vmul.f32 1.0, %v5846
    %v5848 = vrcp.pop %v5837
    %v5849 = vmul.f32 1.0, %v5848
    %v5850 = vtanh.pop %v5812
    %v5851 = vtanh.pop %v5813
    %v5854 = vrot.slane %v5224, 6
    %v5855 = vrot.slane %v5225, 6
    %v5858 = vmul.f32 %v5843, %v5854
    %v5859 = vmul.f32 %v5845, %v5855
    %v5860 = vmul.f32 %v5839, %v5850
    %v5861 = vmul.f32 %v5841, %v5851
    %v5862 = vadd.f32 %v5858, %v5860
    %v5863 = vadd.f32 %v5859, %v5861
    %v5864 = vtanh.pop %v5862
    %v5865 = vtanh.pop %v5863
    %v5866 = vmul.f32 %v5847, %v5864
    %v5867 = vmul.f32 %v5849, %v5865
    %v5868 = vpack.c.bf16 %v5866, %v5866
    %v5869 = vpack.c.bf16 %v5867, %v5867
    %5870 = vmatprep.subr.bf16.mxu0 %v2821
    %5871 = vmatpush1.bf16.msra.mxu0 %v2820
    %5872 = vmatprep.subr.bf16.mxu0 %v2829
    %5873 = vmatpush1.bf16.msra.mxu0 %v2828
    %5874 = vmatprep.subr.bf16.mxu0 %v2837
    %5875 = vmatpush1.bf16.msra.mxu0 %v2836
    %5876 = vmatprep.subr.bf16.mxu0 %v2845
    %5877 = vmatpush1.bf16.msra.mxu0 %v2844
    %5878 = vmatprep.subr.bf16.mxu0 %v2853
    %5879 = vmatpush1.bf16.msra.mxu0 %v2852
    %5880 = vmatprep.subr.bf16.mxu0 %v2861
    %5881 = vmatpush1.bf16.msra.mxu0 %v2860
    %5882 = vmatprep.subr.bf16.mxu0 %v2869
    %5883 = vmatpush1.bf16.msra.mxu0 %v2868
    %5884 = vmatprep.subr.bf16.mxu0 %v2877
    %5885 = vmatpush1.bf16.msra.mxu0 %v2876
    %5886 = vmatprep.subr.bf16.mxu0 %v2885
    %5887 = vmatpush1.bf16.msra.mxu0 %v2884
    %5888 = vmatprep.subr.bf16.mxu0 %v2893
    %5889 = vmatpush1.bf16.msra.mxu0 %v2892
    %5890 = vmatprep.subr.bf16.mxu0 %v2901
    %5891 = vmatpush1.bf16.msra.mxu0 %v2900
    %5892 = vmatprep.subr.bf16.mxu0 %v2909
    %5893 = vmatpush1.bf16.msra.mxu0 %v2908
    %5894 = vmatprep.subr.bf16.mxu0 %v2917
    %5895 = vmatpush1.bf16.msra.mxu0 %v2916
    %5896 = vmatprep.subr.bf16.mxu0 %v2925
    %5897 = vmatpush1.bf16.msra.mxu0 %v2924
    %5898 = vmatprep.subr.bf16.mxu0 %v2933
    %5899 = vmatpush1.bf16.msra.mxu0 %v2932
    %5900 = vmatprep.subr.bf16.mxu0 %v2941
    %5901 = vmatpush1.bf16.msra.mxu0 %v2940
    %5902 = vmatprep.mubr.bf16.mxu0 %v5231
    %5903 = vmatmul.mubr.bf16.gmra.mrb[0].mxu0 %v5230
    %v5904 = vpop.f32.mrb[0].mxu0
    %v5905 = vadd.f32 %v2015, %v5904
    %v5906 = vpop.f32.mrb[0].mxu0
    %v5907 = vadd.f32 %v2019, %v5906
    %v5908 = vpop.f32.mrb[0].mxu0
    %v5909 = vpop.f32.mrb[0].mxu0
    %5910 = vdwg.mxu0
    %5911 = vmatprep.subr.bf16.mxu0 %v2949
    %5912 = vmatpush1.bf16.msra.mxu0 %v2948
    %5913 = vmatprep.subr.bf16.mxu0 %v2957
    %5914 = vmatpush1.bf16.msra.mxu0 %v2956
    %5915 = vmatprep.subr.bf16.mxu0 %v2965
    %5916 = vmatpush1.bf16.msra.mxu0 %v2964
    %5917 = vmatprep.subr.bf16.mxu0 %v2973
    %5918 = vmatpush1.bf16.msra.mxu0 %v2972
    %5919 = vmatprep.subr.bf16.mxu0 %v2981
    %5920 = vmatpush1.bf16.msra.mxu0 %v2980
    %5921 = vmatprep.subr.bf16.mxu0 %v2989
    %5922 = vmatpush1.bf16.msra.mxu0 %v2988
    %5923 = vmatprep.subr.bf16.mxu0 %v2997
    %5924 = vmatpush1.bf16.msra.mxu0 %v2996
    %5925 = vmatprep.subr.bf16.mxu0 %v3005
    %5926 = vmatpush1.bf16.msra.mxu0 %v3004
    %5927 = vmatprep.subr.bf16.mxu0 %v3013
    %5928 = vmatpush1.bf16.msra.mxu0 %v3012
    %5929 = vmatprep.subr.bf16.mxu0 %v3021
    %5930 = vmatpush1.bf16.msra.mxu0 %v3020
    %5931 = vmatprep.subr.bf16.mxu0 %v3029
    %5932 = vmatpush1.bf16.msra.mxu0 %v3028
    %5933 = vmatprep.subr.bf16.mxu0 %v3037
    %5934 = vmatpush1.bf16.msra.mxu0 %v3036
    %5935 = vmatprep.subr.bf16.mxu0 %v3045
    %5936 = vmatpush1.bf16.msra.mxu0 %v3044
    %5937 = vmatprep.subr.bf16.mxu0 %v3053
    %5938 = vmatpush1.bf16.msra.mxu0 %v3052
    %5939 = vmatprep.subr.bf16.mxu0 %v3061
    %5940 = vmatpush1.bf16.msra.mxu0 %v3060
    %5941 = vmatprep.subr.bf16.mxu0 %v3069
    %5942 = vmatpush1.bf16.msra.mxu0 %v3068
    %5943 = vmatprep.mubr.bf16.mxu0 %v5617
    %5944 = vmatmul.mubr.bf16.gmra.mrb[0].mxu0 %v5616
    %v5945 = vpop.f32.mrb[0].mxu0
    %v5946 = vadd.f32 %v5905, %v5945
    %v5947 = vpop.f32.mrb[0].mxu0
    %v5948 = vadd.f32 %v5907, %v5947
    %v5949 = vpop.f32.mrb[0].mxu0
    %v5950 = vpop.f32.mrb[0].mxu0
    %5951 = vdwg.mxu0
    %5952 = vmatprep.subr.bf16.mxu0 %v2823
    %5953 = vmatpush1.bf16.msra.mxu0 %v2822
    %5954 = vmatprep.subr.bf16.mxu0 %v2831
    %5955 = vmatpush1.bf16.msra.mxu0 %v2830
    %5956 = vmatprep.subr.bf16.mxu0 %v2839
    %5957 = vmatpush1.bf16.msra.mxu0 %v2838
    %5958 = vmatprep.subr.bf16.mxu0 %v2847
    %5959 = vmatpush1.bf16.msra.mxu0 %v2846
    %5960 = vmatprep.subr.bf16.mxu0 %v2855
    %5961 = vmatpush1.bf16.msra.mxu0 %v2854
    %5962 = vmatprep.subr.bf16.mxu0 %v2863
    %5963 = vmatpush1.bf16.msra.mxu0 %v2862
    %5964 = vmatprep.subr.bf16.mxu0 %v2871
    %5965 = vmatpush1.bf16.msra.mxu0 %v2870
    %5966 = vmatprep.subr.bf16.mxu0 %v2879
    %5967 = vmatpush1.bf16.msra.mxu0 %v2878
    %5968 = vmatprep.subr.bf16.mxu0 %v2887
    %5969 = vmatpush1.bf16.msra.mxu0 %v2886
    %5970 = vmatprep.subr.bf16.mxu0 %v2895
    %5971 = vmatpush1.bf16.msra.mxu0 %v2894
    %5972 = vmatprep.subr.bf16.mxu0 %v2903
    %5973 = vmatpush1.bf16.msra.mxu0 %v2902
    %5974 = vmatprep.subr.bf16.mxu0 %v2911
    %5975 = vmatpush1.bf16.msra.mxu0 %v2910
    %5976 = vmatprep.subr.bf16.mxu0 %v2919
    %5977 = vmatpush1.bf16.msra.mxu0 %v2918
    %5978 = vmatprep.subr.bf16.mxu0 %v2927
    %5979 = vmatpush1.bf16.msra.mxu0 %v2926
    %5980 = vmatprep.subr.bf16.mxu0 %v2935
    %5981 = vmatpush1.bf16.msra.mxu0 %v2934
    %5982 = vmatprep.subr.bf16.mxu0 %v2943
    %5983 = vmatpush1.bf16.msra.mxu0 %v2942
    %5984 = vmatprep.mubr.bf16.mxu0 %v5231
    %5985 = vmatmul.mubr.bf16.gmra.mrb[0].mxu0 %v5230
    %v5986 = vpop.f32.mrb[0].mxu0
    %v5987 = vadd.f32 %v2023, %v5986
    %v5988 = vpop.f32.mrb[0].mxu0
    %v5989 = vadd.f32 %v2027, %v5988
    %v5990 = vpop.f32.mrb[0].mxu0
    %v5991 = vpop.f32.mrb[0].mxu0
    %5992 = vdwg.mxu0
    %5993 = vmatprep.subr.bf16.mxu0 %v2951
    %5994 = vmatpush1.bf16.msra.mxu0 %v2950
    %5995 = vmatprep.subr.bf16.mxu0 %v2959
    %5996 = vmatpush1.bf16.msra.mxu0 %v2958
    %5997 = vmatprep.subr.bf16.mxu0 %v2967
    %5998 = vmatpush1.bf16.msra.mxu0 %v2966
    %5999 = vmatprep.subr.bf16.mxu0 %v2975
    %6000 = vmatpush1.bf16.msra.mxu0 %v2974
    %6001 = vmatprep.subr.bf16.mxu0 %v2983
    %6002 = vmatpush1.bf16.msra.mxu0 %v2982
    %6003 = vmatprep.subr.bf16.mxu0 %v2991
    %6004 = vmatpush1.bf16.msra.mxu0 %v2990
    %6005 = vmatprep.subr.bf16.mxu0 %v2999
    %6006 = vmatpush1.bf16.msra.mxu0 %v2998
    %6007 = vmatprep.subr.bf16.mxu0 %v3007
    %6008 = vmatpush1.bf16.msra.mxu0 %v3006
    %6009 = vmatprep.subr.bf16.mxu0 %v3015
    %6010 = vmatpush1.bf16.msra.mxu0 %v3014
    %6011 = vmatprep.subr.bf16.mxu0 %v3023
    %6012 = vmatpush1.bf16.msra.mxu0 %v3022
    %6013 = vmatprep.subr.bf16.mxu0 %v3031
    %6014 = vmatpush1.bf16.msra.mxu0 %v3030
    %6015 = vmatprep.subr.bf16.mxu0 %v3039
    %6016 = vmatpush1.bf16.msra.mxu0 %v3038
    %6017 = vmatprep.subr.bf16.mxu0 %v3047
    %6018 = vmatpush1.bf16.msra.mxu0 %v3046
    %6019 = vmatprep.subr.bf16.mxu0 %v3055
    %6020 = vmatpush1.bf16.msra.mxu0 %v3054
    %6021 = vmatprep.subr.bf16.mxu0 %v3063
    %6022 = vmatpush1.bf16.msra.mxu0 %v3062
    %6023 = vmatprep.subr.bf16.mxu0 %v3071
    %6024 = vmatpush1.bf16.msra.mxu0 %v3070
    %6025 = vmatprep.mubr.bf16.mxu0 %v5617
    %6026 = vmatmul.mubr.bf16.gmra.mrb[0].mxu0 %v5616
    %v6027 = vpop.f32.mrb[0].mxu0
    %v6028 = vadd.f32 %v5987, %v6027
    %v6029 = vpop.f32.mrb[0].mxu0
    %v6030 = vadd.f32 %v5989, %v6029
    %v6031 = vpop.f32.mrb[0].mxu0
    %v6032 = vpop.f32.mrb[0].mxu0
    %6033 = vdwg.mxu0
    %6034 = vmatprep.subr.bf16.mxu0 %v2825
    %6035 = vmatpush1.bf16.msra.mxu0 %v2824
    %6036 = vmatprep.subr.bf16.mxu0 %v2833
    %6037 = vmatpush1.bf16.msra.mxu0 %v2832
    %6038 = vmatprep.subr.bf16.mxu0 %v2841
    %6039 = vmatpush1.bf16.msra.mxu0 %v2840
    %6040 = vmatprep.subr.bf16.mxu0 %v2849
    %6041 = vmatpush1.bf16.msra.mxu0 %v2848
    %6042 = vmatprep.subr.bf16.mxu0 %v2857
    %6043 = vmatpush1.bf16.msra.mxu0 %v2856
    %6044 = vmatprep.subr.bf16.mxu0 %v2865
    %6045 = vmatpush1.bf16.msra.mxu0 %v2864
    %6046 = vmatprep.subr.bf16.mxu0 %v2873
    %6047 = vmatpush1.bf16.msra.mxu0 %v2872
    %6048 = vmatprep.subr.bf16.mxu0 %v2881
    %6049 = vmatpush1.bf16.msra.mxu0 %v2880
    %6050 = vmatprep.subr.bf16.mxu0 %v2889
    %6051 = vmatpush1.bf16.msra.mxu0 %v2888
    %6052 = vmatprep.subr.bf16.mxu0 %v2897
    %6053 = vmatpush1.bf16.msra.mxu0 %v2896
    %6054 = vmatprep.subr.bf16.mxu0 %v2905
    %6055 = vmatpush1.bf16.msra.mxu0 %v2904
    %6056 = vmatprep.subr.bf16.mxu0 %v2913
    %6057 = vmatpush1.bf16.msra.mxu0 %v2912
    %6058 = vmatprep.subr.bf16.mxu0 %v2921
    %6059 = vmatpush1.bf16.msra.mxu0 %v2920
    %6060 = vmatprep.subr.bf16.mxu0 %v2929
    %6061 = vmatpush1.bf16.msra.mxu0 %v2928
    %6062 = vmatprep.subr.bf16.mxu0 %v2937
    %6063 = vmatpush1.bf16.msra.mxu0 %v2936
    %6064 = vmatprep.subr.bf16.mxu0 %v2945
    %6065 = vmatpush1.bf16.msra.mxu0 %v2944
    %6066 = vmatprep.mubr.bf16.mxu0 %v5231
    %6067 = vmatmul.mubr.bf16.gmra.mrb[0].mxu0 %v5230
    %v6068 = vpop.f32.mrb[0].mxu0
    %v6069 = vadd.f32 %v2031, %v6068
    %v6070 = vpop.f32.mrb[0].mxu0
    %v6071 = vadd.f32 %v2035, %v6070
    %v6072 = vpop.f32.mrb[0].mxu0
    %v6073 = vpop.f32.mrb[0].mxu0
    %6074 = vdwg.mxu0
    %6075 = vmatprep.subr.bf16.mxu0 %v2953
    %6076 = vmatpush1.bf16.msra.mxu0 %v2952
    %6077 = vmatprep.subr.bf16.mxu0 %v2961
    %6078 = vmatpush1.bf16.msra.mxu0 %v2960
    %6079 = vmatprep.subr.bf16.mxu0 %v2969
    %6080 = vmatpush1.bf16.msra.mxu0 %v2968
    %6081 = vmatprep.subr.bf16.mxu0 %v2977
    %6082 = vmatpush1.bf16.msra.mxu0 %v2976
    %6083 = vmatprep.subr.bf16.mxu0 %v2985
    %6084 = vmatpush1.bf16.msra.mxu0 %v2984
    %6085 = vmatprep.subr.bf16.mxu0 %v2993
    %6086 = vmatpush1.bf16.msra.mxu0 %v2992
    %6087 = vmatprep.subr.bf16.mxu0 %v3001
    %6088 = vmatpush1.bf16.msra.mxu0 %v3000
    %6089 = vmatprep.subr.bf16.mxu0 %v3009
    %6090 = vmatpush1.bf16.msra.mxu0 %v3008
    %6091 = vmatprep.subr.bf16.mxu0 %v3017
    %6092 = vmatpush1.bf16.msra.mxu0 %v3016
    %6093 = vmatprep.subr.bf16.mxu0 %v3025
    %6094 = vmatpush1.bf16.msra.mxu0 %v3024
    %6095 = vmatprep.subr.bf16.mxu0 %v3033
    %6096 = vmatpush1.bf16.msra.mxu0 %v3032
    %6097 = vmatprep.subr.bf16.mxu0 %v3041
    %6098 = vmatpush1.bf16.msra.mxu0 %v3040
    %6099 = vmatprep.subr.bf16.mxu0 %v3049
    %6100 = vmatpush1.bf16.msra.mxu0 %v3048
    %6101 = vmatprep.subr.bf16.mxu0 %v3057
    %6102 = vmatpush1.bf16.msra.mxu0 %v3056
    %6103 = vmatprep.subr.bf16.mxu0 %v3065
    %6104 = vmatpush1.bf16.msra.mxu0 %v3064
    %6105 = vmatprep.subr.bf16.mxu0 %v3073
    %6106 = vmatpush1.bf16.msra.mxu0 %v3072
    %6107 = vmatprep.mubr.bf16.mxu0 %v5617
    %6108 = vmatmul.mubr.bf16.gmra.mrb[0].mxu0 %v5616
    %v6109 = vpop.f32.mrb[0].mxu0
    %v6110 = vadd.f32 %v6069, %v6109
    %v6111 = vpop.f32.mrb[0].mxu0
    %v6112 = vadd.f32 %v6071, %v6111
    %v6113 = vpop.f32.mrb[0].mxu0
    %v6114 = vpop.f32.mrb[0].mxu0
    %6115 = vdwg.mxu0
    %6116 = vmatprep.subr.bf16.mxu0 %v2827
    %6117 = vmatpush1.bf16.msra.mxu0 %v2826
    %6118 = vmatprep.subr.bf16.mxu0 %v2835
    %6119 = vmatpush1.bf16.msra.mxu0 %v2834
    %6120 = vmatprep.subr.bf16.mxu0 %v2843
    %6121 = vmatpush1.bf16.msra.mxu0 %v2842
    %6122 = vmatprep.subr.bf16.mxu0 %v2851
    %6123 = vmatpush1.bf16.msra.mxu0 %v2850
    %6124 = vmatprep.subr.bf16.mxu0 %v2859
    %6125 = vmatpush1.bf16.msra.mxu0 %v2858
    %6126 = vmatprep.subr.bf16.mxu0 %v2867
    %6127 = vmatpush1.bf16.msra.mxu0 %v2866
    %6128 = vmatprep.subr.bf16.mxu0 %v2875
    %6129 = vmatpush1.bf16.msra.mxu0 %v2874
    %6130 = vmatprep.subr.bf16.mxu0 %v2883
    %6131 = vmatpush1.bf16.msra.mxu0 %v2882
    %6132 = vmatprep.subr.bf16.mxu0 %v2891
    %6133 = vmatpush1.bf16.msra.mxu0 %v2890
    %6134 = vmatprep.subr.bf16.mxu0 %v2899
    %6135 = vmatpush1.bf16.msra.mxu0 %v2898
    %6136 = vmatprep.subr.bf16.mxu0 %v2907
    %6137 = vmatpush1.bf16.msra.mxu0 %v2906
    %6138 = vmatprep.subr.bf16.mxu0 %v2915
    %6139 = vmatpush1.bf16.msra.mxu0 %v2914
    %6140 = vmatprep.subr.bf16.mxu0 %v2923
    %6141 = vmatpush1.bf16.msra.mxu0 %v2922
    %6142 = vmatprep.subr.bf16.mxu0 %v2931
    %6143 = vmatpush1.bf16.msra.mxu0 %v2930
    %6144 = vmatprep.subr.bf16.mxu0 %v2939
    %6145 = vmatpush1.bf16.msra.mxu0 %v2938
    %6146 = vmatprep.subr.bf16.mxu0 %v2947
    %6147 = vmatpush1.bf16.msra.mxu0 %v2946
    %6148 = vmatprep.mubr.bf16.mxu0 %v5231
    %6149 = vmatmul.mubr.bf16.gmra.mrb[0].mxu0 %v5230
    %v6150 = vpop.f32.mrb[0].mxu0
    %v6151 = vadd.f32 %v2039, %v6150
    %v6152 = vpop.f32.mrb[0].mxu0
    %v6153 = vadd.f32 %v2043, %v6152
    %v6154 = vpop.f32.mrb[0].mxu0
    %v6155 = vpop.f32.mrb[0].mxu0
    %6156 = vdwg.mxu0
    %6157 = vmatprep.subr.bf16.mxu0 %v2955
    %6158 = vmatpush1.bf16.msra.mxu0 %v2954
    %6159 = vmatprep.subr.bf16.mxu0 %v2963
    %6160 = vmatpush1.bf16.msra.mxu0 %v2962
    %6161 = vmatprep.subr.bf16.mxu0 %v2971
    %6162 = vmatpush1.bf16.msra.mxu0 %v2970
    %6163 = vmatprep.subr.bf16.mxu0 %v2979
    %6164 = vmatpush1.bf16.msra.mxu0 %v2978
    %6165 = vmatprep.subr.bf16.mxu0 %v2987
    %6166 = vmatpush1.bf16.msra.mxu0 %v2986
    %6167 = vmatprep.subr.bf16.mxu0 %v2995
    %6168 = vmatpush1.bf16.msra.mxu0 %v2994
    %6169 = vmatprep.subr.bf16.mxu0 %v3003
    %6170 = vmatpush1.bf16.msra.mxu0 %v3002
    %6171 = vmatprep.subr.bf16.mxu0 %v3011
    %6172 = vmatpush1.bf16.msra.mxu0 %v3010
    %6173 = vmatprep.subr.bf16.mxu0 %v3019
    %6174 = vmatpush1.bf16.msra.mxu0 %v3018
    %6175 = vmatprep.subr.bf16.mxu0 %v3027
    %6176 = vmatpush1.bf16.msra.mxu0 %v3026
    %6177 = vmatprep.subr.bf16.mxu0 %v3035
    %6178 = vmatpush1.bf16.msra.mxu0 %v3034
    %6179 = vmatprep.subr.bf16.mxu0 %v3043
    %6180 = vmatpush1.bf16.msra.mxu0 %v3042
    %6181 = vmatprep.subr.bf16.mxu0 %v3051
    %6182 = vmatpush1.bf16.msra.mxu0 %v3050
    %6183 = vmatprep.subr.bf16.mxu0 %v3059
    %6184 = vmatpush1.bf16.msra.mxu0 %v3058
    %6185 = vmatprep.subr.bf16.mxu0 %v3067
    %6186 = vmatpush1.bf16.msra.mxu0 %v3066
    %6187 = vmatprep.subr.bf16.mxu0 %v3075
    %6188 = vmatpush1.bf16.msra.mxu0 %v3074
    %6189 = vmatprep.mubr.bf16.mxu0 %v5617
    %6190 = vmatmul.mubr.bf16.gmra.mrb[0].mxu0 %v5616
    %v6191 = vpop.f32.mrb[0].mxu0
    %v6192 = vadd.f32 %v6151, %v6191
    %v6193 = vpop.f32.mrb[0].mxu0
    %v6194 = vadd.f32 %v6153, %v6193
    %v6195 = vpop.f32.mrb[0].mxu0
    %v6196 = vpop.f32.mrb[0].mxu0
    %6197 = vdwg.mxu0
    %v6198 = vxor.u32 %v5946, 2147483648
    %v6199 = vxor.u32 %v5948, 2147483648
    %v6200 = vxor.u32 %v6028, 2147483648
    %v6201 = vxor.u32 %v6030, 2147483648
    %v6202 = vxor.u32 %v6110, 2147483648
    %v6203 = vxor.u32 %v6112, 2147483648
    %v6204 = vmul.f32 %v6198, 1.442695
    %v6205 = vpow.pop %v6204
    %v6206 = vmul.f32 %v6199, 1.442695
    %v6207 = vpow.pop %v6206
    %v6208 = vmul.f32 %v6200, 1.442695
    %v6209 = vpow.pop %v6208
    %v6210 = vmul.f32 %v6201, 1.442695
    %v6211 = vpow.pop %v6210
    %v6212 = vmul.f32 %v6202, 1.442695
    %v6213 = vpow.pop %v6212
    %v6214 = vmul.f32 %v6203, 1.442695
    %v6215 = vpow.pop %v6214
    %v6216 = vadd.f32 %v6205, 1.0
    %v6217 = vadd.f32 %v6207, 1.0
    %v6218 = vadd.f32 %v6209, 1.0
    %v6219 = vadd.f32 %v6211, 1.0
    %v6220 = vadd.f32 %v6213, 1.0
    %v6221 = vadd.f32 %v6215, 1.0
    %v6222 = vrcp.pop %v6216
    %v6223 = vmul.f32 1.0, %v6222
    %v6224 = vrcp.pop %v6217
    %v6225 = vmul.f32 1.0, %v6224
    %v6226 = vrcp.pop %v6218
    %v6227 = vmul.f32 1.0, %v6226
    %v6228 = vrcp.pop %v6219
    %v6229 = vmul.f32 1.0, %v6228
    %v6230 = vrcp.pop %v6220
    %v6231 = vmul.f32 1.0, %v6230
    %v6232 = vrcp.pop %v6221
    %v6233 = vmul.f32 1.0, %v6232
    %v6234 = vtanh.pop %v6192
    %v6235 = vtanh.pop %v6194
    %v6236 = vmul.f32 %v6227, %v5610
    %v6237 = vmul.f32 %v6229, %v5611
    %v6238 = vmul.f32 %v6223, %v6234
    %v6239 = vmul.f32 %v6225, %v6235
    %v6240 = vadd.f32 %v6236, %v6238
    %v6241 = vadd.f32 %v6237, %v6239
    %v6242 = vtanh.pop %v6240
    %v6243 = vtanh.pop %v6241
    %v6244 = vmul.f32 %v6231, %v6242
    %v6245 = vmul.f32 %v6233, %v6243
    %v6246 = vpack.c.bf16 %v6244, %v6244
    %v6247 = vpack.c.bf16 %v6245, %v6245
    %v6250 = vrot.slane %v5868, 1
    %v6251 = vrot.slane %v5869, 1
    %6254 = vmatprep.subr.bf16.mxu0 %v1282
    %6255 = vmatpush1.bf16.msra.mxu0 %v1281
    %6256 = vmatprep.subr.bf16.mxu0 %v1290
    %6257 = vmatpush1.bf16.msra.mxu0 %v1289
    %6258 = vmatprep.subr.bf16.mxu0 %v1298
    %6259 = vmatpush1.bf16.msra.mxu0 %v1297
    %6260 = vmatprep.subr.bf16.mxu0 %v1306
    %6261 = vmatpush1.bf16.msra.mxu0 %v1305
    %6262 = vmatprep.subr.bf16.mxu0 %v1314
    %6263 = vmatpush1.bf16.msra.mxu0 %v1313
    %6264 = vmatprep.subr.bf16.mxu0 %v1322
    %6265 = vmatpush1.bf16.msra.mxu0 %v1321
    %6266 = vmatprep.subr.bf16.mxu0 %v1330
    %6267 = vmatpush1.bf16.msra.mxu0 %v1329
    %6268 = vmatprep.subr.bf16.mxu0 %v1338
    %6269 = vmatpush1.bf16.msra.mxu0 %v1337
    %6270 = vmatprep.subr.bf16.mxu0 %v1346
    %6271 = vmatpush1.bf16.msra.mxu0 %v1345
    %6272 = vmatprep.subr.bf16.mxu0 %v1354
    %6273 = vmatpush1.bf16.msra.mxu0 %v1353
    %6274 = vmatprep.subr.bf16.mxu0 %v1362
    %6275 = vmatpush1.bf16.msra.mxu0 %v1361
    %6276 = vmatprep.subr.bf16.mxu0 %v1370
    %6277 = vmatpush1.bf16.msra.mxu0 %v1369
    %6278 = vmatprep.subr.bf16.mxu0 %v1378
    %6279 = vmatpush1.bf16.msra.mxu0 %v1377
    %6280 = vmatprep.subr.bf16.mxu0 %v1386
    %6281 = vmatpush1.bf16.msra.mxu0 %v1385
    %6282 = vmatprep.subr.bf16.mxu0 %v1394
    %6283 = vmatpush1.bf16.msra.mxu0 %v1393
    %6284 = vmatprep.subr.bf16.mxu0 %v1402
    %6285 = vmatpush1.bf16.msra.mxu0 %v1401
    %6286 = vmatprep.mubr.bf16.mxu0 %v6251
    %6287 = vmatmul.mubr.bf16.gmra.mrb[0].mxu0 %v6250
    %v6288 = vpop.f32.mrb[0].mxu0
    %v6289 = vadd.f32 0.0, %v6288
    %v6290 = vpop.f32.mrb[0].mxu0
    %v6291 = vadd.f32 0.0, %v6290
    %v6292 = vpop.f32.mrb[0].mxu0
    %v6293 = vpop.f32.mrb[0].mxu0
    %6294 = vdwg.mxu0
    %6295 = vmatprep.subr.bf16.mxu0 %v1284
    %6296 = vmatpush1.bf16.msra.mxu0 %v1283
    %6297 = vmatprep.subr.bf16.mxu0 %v1292
    %6298 = vmatpush1.bf16.msra.mxu0 %v1291
    %6299 = vmatprep.subr.bf16.mxu0 %v1300
    %6300 = vmatpush1.bf16.msra.mxu0 %v1299
    %6301 = vmatprep.subr.bf16.mxu0 %v1308
    %6302 = vmatpush1.bf16.msra.mxu0 %v1307
    %6303 = vmatprep.subr.bf16.mxu0 %v1316
    %6304 = vmatpush1.bf16.msra.mxu0 %v1315
    %6305 = vmatprep.subr.bf16.mxu0 %v1324
    %6306 = vmatpush1.bf16.msra.mxu0 %v1323
    %6307 = vmatprep.subr.bf16.mxu0 %v1332
    %6308 = vmatpush1.bf16.msra.mxu0 %v1331
    %6309 = vmatprep.subr.bf16.mxu0 %v1340
    %6310 = vmatpush1.bf16.msra.mxu0 %v1339
    %6311 = vmatprep.subr.bf16.mxu0 %v1348
    %6312 = vmatpush1.bf16.msra.mxu0 %v1347
    %6313 = vmatprep.subr.bf16.mxu0 %v1356
    %6314 = vmatpush1.bf16.msra.mxu0 %v1355
    %6315 = vmatprep.subr.bf16.mxu0 %v1364
    %6316 = vmatpush1.bf16.msra.mxu0 %v1363
    %6317 = vmatprep.subr.bf16.mxu0 %v1372
    %6318 = vmatpush1.bf16.msra.mxu0 %v1371
    %6319 = vmatprep.subr.bf16.mxu0 %v1380
    %6320 = vmatpush1.bf16.msra.mxu0 %v1379
    %6321 = vmatprep.subr.bf16.mxu0 %v1388
    %6322 = vmatpush1.bf16.msra.mxu0 %v1387
    %6323 = vmatprep.subr.bf16.mxu0 %v1396
    %6324 = vmatpush1.bf16.msra.mxu0 %v1395
    %6325 = vmatprep.subr.bf16.mxu0 %v1404
    %6326 = vmatpush1.bf16.msra.mxu0 %v1403
    %6327 = vmatprep.mubr.bf16.mxu0 %v6251
    %6328 = vmatmul.mubr.bf16.gmra.mrb[0].mxu0 %v6250
    %v6329 = vpop.f32.mrb[0].mxu0
    %v6330 = vadd.f32 0.0, %v6329
    %v6331 = vpop.f32.mrb[0].mxu0
    %v6332 = vadd.f32 0.0, %v6331
    %v6333 = vpop.f32.mrb[0].mxu0
    %v6334 = vpop.f32.mrb[0].mxu0
    %6335 = vdwg.mxu0
    %6336 = vmatprep.subr.bf16.mxu0 %v1286
    %6337 = vmatpush1.bf16.msra.mxu0 %v1285
    %6338 = vmatprep.subr.bf16.mxu0 %v1294
    %6339 = vmatpush1.bf16.msra.mxu0 %v1293
    %6340 = vmatprep.subr.bf16.mxu0 %v1302
    %6341 = vmatpush1.bf16.msra.mxu0 %v1301
    %6342 = vmatprep.subr.bf16.mxu0 %v1310
    %6343 = vmatpush1.bf16.msra.mxu0 %v1309
    %6344 = vmatprep.subr.bf16.mxu0 %v1318
    %6345 = vmatpush1.bf16.msra.mxu0 %v1317
    %6346 = vmatprep.subr.bf16.mxu0 %v1326
    %6347 = vmatpush1.bf16.msra.mxu0 %v1325
    %6348 = vmatprep.subr.bf16.mxu0 %v1334
    %6349 = vmatpush1.bf16.msra.mxu0 %v1333
    %6350 = vmatprep.subr.bf16.mxu0 %v1342
    %6351 = vmatpush1.bf16.msra.mxu0 %v1341
    %6352 = vmatprep.subr.bf16.mxu0 %v1350
    %6353 = vmatpush1.bf16.msra.mxu0 %v1349
    %6354 = vmatprep.subr.bf16.mxu0 %v1358
    %6355 = vmatpush1.bf16.msra.mxu0 %v1357
    %6356 = vmatprep.subr.bf16.mxu0 %v1366
    %6357 = vmatpush1.bf16.msra.mxu0 %v1365
    %6358 = vmatprep.subr.bf16.mxu0 %v1374
    %6359 = vmatpush1.bf16.msra.mxu0 %v1373
    %6360 = vmatprep.subr.bf16.mxu0 %v1382
    %6361 = vmatpush1.bf16.msra.mxu0 %v1381
    %6362 = vmatprep.subr.bf16.mxu0 %v1390
    %6363 = vmatpush1.bf16.msra.mxu0 %v1389
    %6364 = vmatprep.subr.bf16.mxu0 %v1398
    %6365 = vmatpush1.bf16.msra.mxu0 %v1397
    %6366 = vmatprep.subr.bf16.mxu0 %v1406
    %6367 = vmatpush1.bf16.msra.mxu0 %v1405
    %6368 = vmatprep.mubr.bf16.mxu0 %v6251
    %6369 = vmatmul.mubr.bf16.gmra.mrb[0].mxu0 %v6250
    %v6370 = vpop.f32.mrb[0].mxu0
    %v6371 = vadd.f32 0.0, %v6370
    %v6372 = vpop.f32.mrb[0].mxu0
    %v6373 = vadd.f32 0.0, %v6372
    %v6374 = vpop.f32.mrb[0].mxu0
    %v6375 = vpop.f32.mrb[0].mxu0
    %6376 = vdwg.mxu0
    %6377 = vmatprep.subr.bf16.mxu0 %v1288
    %6378 = vmatpush1.bf16.msra.mxu0 %v1287
    %6379 = vmatprep.subr.bf16.mxu0 %v1296
    %6380 = vmatpush1.bf16.msra.mxu0 %v1295
    %6381 = vmatprep.subr.bf16.mxu0 %v1304
    %6382 = vmatpush1.bf16.msra.mxu0 %v1303
    %6383 = vmatprep.subr.bf16.mxu0 %v1312
    %6384 = vmatpush1.bf16.msra.mxu0 %v1311
    %6385 = vmatprep.subr.bf16.mxu0 %v1320
    %6386 = vmatpush1.bf16.msra.mxu0 %v1319
    %6387 = vmatprep.subr.bf16.mxu0 %v1328
    %6388 = vmatpush1.bf16.msra.mxu0 %v1327
    %6389 = vmatprep.subr.bf16.mxu0 %v1336
    %6390 = vmatpush1.bf16.msra.mxu0 %v1335
    %6391 = vmatprep.subr.bf16.mxu0 %v1344
    %6392 = vmatpush1.bf16.msra.mxu0 %v1343
    %6393 = vmatprep.subr.bf16.mxu0 %v1352
    %6394 = vmatpush1.bf16.msra.mxu0 %v1351
    %6395 = vmatprep.subr.bf16.mxu0 %v1360
    %6396 = vmatpush1.bf16.msra.mxu0 %v1359
    %6397 = vmatprep.subr.bf16.mxu0 %v1368
    %6398 = vmatpush1.bf16.msra.mxu0 %v1367
    %6399 = vmatprep.subr.bf16.mxu0 %v1376
    %6400 = vmatpush1.bf16.msra.mxu0 %v1375
    %6401 = vmatprep.subr.bf16.mxu0 %v1384
    %6402 = vmatpush1.bf16.msra.mxu0 %v1383
    %6403 = vmatprep.subr.bf16.mxu0 %v1392
    %6404 = vmatpush1.bf16.msra.mxu0 %v1391
    %6405 = vmatprep.subr.bf16.mxu0 %v1400
    %6406 = vmatpush1.bf16.msra.mxu0 %v1399
    %6407 = vmatprep.subr.bf16.mxu0 %v1408
    %6408 = vmatpush1.bf16.msra.mxu0 %v1407
    %6409 = vmatprep.mubr.bf16.mxu0 %v6251
    %6410 = vmatmul.mubr.bf16.gmra.mrb[0].mxu0 %v6250
    %v6411 = vpop.f32.mrb[0].mxu0
    %v6412 = vadd.f32 0.0, %v6411
    %v6413 = vpop.f32.mrb[0].mxu0
    %v6414 = vadd.f32 0.0, %v6413
    %v6415 = vpop.f32.mrb[0].mxu0
    %v6416 = vpop.f32.mrb[0].mxu0
    %6417 = vdwg.mxu0
    %v6426 = vrot.slane %v6289, 4
    %v6427 = vrot.slane %v6291, 4
    %v6428 = vrot.slane %v6330, 4
    %v6429 = vrot.slane %v6332, 4
    %v6430 = vrot.slane %v6371, 4
    %v6431 = vrot.slane %v6373, 4
    %v6432 = vrot.slane %v6412, 4
    %v6433 = vrot.slane %v6414, 4
    %v6442 = vadd.f32 %v764, %v6426
    %v6443 = vadd.f32 %v766, %v6427
    %v6444 = vadd.f32 %v807, %v6428
    %v6445 = vadd.f32 %v809, %v6429
    %v6446 = vadd.f32 %v850, %v6430
    %v6447 = vadd.f32 %v852, %v6431
    %v6448 = vadd.f32 %v893, %v6432
    %v6449 = vadd.f32 %v895, %v6433
    %v6450 = vxor.u32 %v6442, 2147483648
    %v6451 = vxor.u32 %v6443, 2147483648
    %v6452 = vxor.u32 %v6444, 2147483648
    %v6453 = vxor.u32 %v6445, 2147483648
    %v6454 = vxor.u32 %v6446, 2147483648
    %v6455 = vxor.u32 %v6447, 2147483648
    %v6456 = vmul.f32 %v6450, 1.442695
    %v6457 = vpow.pop %v6456
    %v6458 = vmul.f32 %v6451, 1.442695
    %v6459 = vpow.pop %v6458
    %v6460 = vmul.f32 %v6452, 1.442695
    %v6461 = vpow.pop %v6460
    %v6462 = vmul.f32 %v6453, 1.442695
    %v6463 = vpow.pop %v6462
    %v6464 = vmul.f32 %v6454, 1.442695
    %v6465 = vpow.pop %v6464
    %v6466 = vmul.f32 %v6455, 1.442695
    %v6467 = vpow.pop %v6466
    %v6468 = vadd.f32 %v6457, 1.0
    %v6469 = vadd.f32 %v6459, 1.0
    %v6470 = vadd.f32 %v6461, 1.0
    %v6471 = vadd.f32 %v6463, 1.0
    %v6472 = vadd.f32 %v6465, 1.0
    %v6473 = vadd.f32 %v6467, 1.0
    %v6474 = vrcp.pop %v6468
    %v6475 = vmul.f32 1.0, %v6474
    %v6476 = vrcp.pop %v6469
    %v6477 = vmul.f32 1.0, %v6476
    %v6478 = vrcp.pop %v6470
    %v6479 = vmul.f32 1.0, %v6478
    %v6480 = vrcp.pop %v6471
    %v6481 = vmul.f32 1.0, %v6480
    %v6482 = vrcp.pop %v6472
    %v6483 = vmul.f32 1.0, %v6482
    %v6484 = vrcp.pop %v6473
    %v6485 = vmul.f32 1.0, %v6484
    %v6486 = vtanh.pop %v6448
    %v6487 = vtanh.pop %v6449
    %v6490 = vrot.slane %v5862, 6
    %v6491 = vrot.slane %v5863, 6
    %v6494 = vmul.f32 %v6479, %v6490
    %v6495 = vmul.f32 %v6481, %v6491
    %v6496 = vmul.f32 %v6475, %v6486
    %v6497 = vmul.f32 %v6477, %v6487
    %v6498 = vadd.f32 %v6494, %v6496
    %v6499 = vadd.f32 %v6495, %v6497
    %v6500 = vtanh.pop %v6498
    %v6501 = vtanh.pop %v6499
    %v6502 = vmul.f32 %v6483, %v6500
    %v6503 = vmul.f32 %v6485, %v6501
    %v6504 = vpack.c.bf16 %v6502, %v6502
    %v6505 = vpack.c.bf16 %v6503, %v6503
    %v6508 = vrot.slane %v6246, 7
    %v6509 = vrot.slane %v6247, 7
    %v6510 = vrot.slane %v6508, 1
    %v6511 = vrot.slane %v6509, 1
    %6514 = vmatprep.subr.bf16.mxu0 %v2821
    %6515 = vmatpush1.bf16.msra.mxu0 %v2820
    %6516 = vmatprep.subr.bf16.mxu0 %v2829
    %6517 = vmatpush1.bf16.msra.mxu0 %v2828
    %6518 = vmatprep.subr.bf16.mxu0 %v2837
    %6519 = vmatpush1.bf16.msra.mxu0 %v2836
    %6520 = vmatprep.subr.bf16.mxu0 %v2845
    %6521 = vmatpush1.bf16.msra.mxu0 %v2844
    %6522 = vmatprep.subr.bf16.mxu0 %v2853
    %6523 = vmatpush1.bf16.msra.mxu0 %v2852
    %6524 = vmatprep.subr.bf16.mxu0 %v2861
    %6525 = vmatpush1.bf16.msra.mxu0 %v2860
    %6526 = vmatprep.subr.bf16.mxu0 %v2869
    %6527 = vmatpush1.bf16.msra.mxu0 %v2868
    %6528 = vmatprep.subr.bf16.mxu0 %v2877
    %6529 = vmatpush1.bf16.msra.mxu0 %v2876
    %6530 = vmatprep.subr.bf16.mxu0 %v2885
    %6531 = vmatpush1.bf16.msra.mxu0 %v2884
    %6532 = vmatprep.subr.bf16.mxu0 %v2893
    %6533 = vmatpush1.bf16.msra.mxu0 %v2892
    %6534 = vmatprep.subr.bf16.mxu0 %v2901
    %6535 = vmatpush1.bf16.msra.mxu0 %v2900
    %6536 = vmatprep.subr.bf16.mxu0 %v2909
    %6537 = vmatpush1.bf16.msra.mxu0 %v2908
    %6538 = vmatprep.subr.bf16.mxu0 %v2917
    %6539 = vmatpush1.bf16.msra.mxu0 %v2916
    %6540 = vmatprep.subr.bf16.mxu0 %v2925
    %6541 = vmatpush1.bf16.msra.mxu0 %v2924
    %6542 = vmatprep.subr.bf16.mxu0 %v2933
    %6543 = vmatpush1.bf16.msra.mxu0 %v2932
    %6544 = vmatprep.subr.bf16.mxu0 %v2941
    %6545 = vmatpush1.bf16.msra.mxu0 %v2940
    %6546 = vmatprep.mubr.bf16.mxu0 %v6251
    %6547 = vmatmul.mubr.bf16.gmra.mrb[0].mxu0 %v6250
    %v6548 = vpop.f32.mrb[0].mxu0
    %v6549 = vadd.f32 %v2015, %v6548
    %v6550 = vpop.f32.mrb[0].mxu0
    %v6551 = vadd.f32 %v2019, %v6550
    %v6552 = vpop.f32.mrb[0].mxu0
    %v6553 = vpop.f32.mrb[0].mxu0
    %6554 = vdwg.mxu0
    %6555 = vmatprep.subr.bf16.mxu0 %v2949
    %6556 = vmatpush1.bf16.msra.mxu0 %v2948
    %6557 = vmatprep.subr.bf16.mxu0 %v2957
    %6558 = vmatpush1.bf16.msra.mxu0 %v2956
    %6559 = vmatprep.subr.bf16.mxu0 %v2965
    %6560 = vmatpush1.bf16.msra.mxu0 %v2964
    %6561 = vmatprep.subr.bf16.mxu0 %v2973
    %6562 = vmatpush1.bf16.msra.mxu0 %v2972
    %6563 = vmatprep.subr.bf16.mxu0 %v2981
    %6564 = vmatpush1.bf16.msra.mxu0 %v2980
    %6565 = vmatprep.subr.bf16.mxu0 %v2989
    %6566 = vmatpush1.bf16.msra.mxu0 %v2988
    %6567 = vmatprep.subr.bf16.mxu0 %v2997
    %6568 = vmatpush1.bf16.msra.mxu0 %v2996
    %6569 = vmatprep.subr.bf16.mxu0 %v3005
    %6570 = vmatpush1.bf16.msra.mxu0 %v3004
    %6571 = vmatprep.subr.bf16.mxu0 %v3013
    %6572 = vmatpush1.bf16.msra.mxu0 %v3012
    %6573 = vmatprep.subr.bf16.mxu0 %v3021
    %6574 = vmatpush1.bf16.msra.mxu0 %v3020
    %6575 = vmatprep.subr.bf16.mxu0 %v3029
    %6576 = vmatpush1.bf16.msra.mxu0 %v3028
    %6577 = vmatprep.subr.bf16.mxu0 %v3037
    %6578 = vmatpush1.bf16.msra.mxu0 %v3036
    %6579 = vmatprep.subr.bf16.mxu0 %v3045
    %6580 = vmatpush1.bf16.msra.mxu0 %v3044
    %6581 = vmatprep.subr.bf16.mxu0 %v3053
    %6582 = vmatpush1.bf16.msra.mxu0 %v3052
    %6583 = vmatprep.subr.bf16.mxu0 %v3061
    %6584 = vmatpush1.bf16.msra.mxu0 %v3060
    %6585 = vmatprep.subr.bf16.mxu0 %v3069
    %6586 = vmatpush1.bf16.msra.mxu0 %v3068
    %6587 = vmatprep.mubr.bf16.mxu0 %v6511
    %6588 = vmatmul.mubr.bf16.gmra.mrb[0].mxu0 %v6510
    %v6589 = vpop.f32.mrb[0].mxu0
    %v6590 = vadd.f32 %v6549, %v6589
    %v6591 = vpop.f32.mrb[0].mxu0
    %v6592 = vadd.f32 %v6551, %v6591
    %v6593 = vpop.f32.mrb[0].mxu0
    %v6594 = vpop.f32.mrb[0].mxu0
    %6595 = vdwg.mxu0
    %6596 = vmatprep.subr.bf16.mxu0 %v2823
    %6597 = vmatpush1.bf16.msra.mxu0 %v2822
    %6598 = vmatprep.subr.bf16.mxu0 %v2831
    %6599 = vmatpush1.bf16.msra.mxu0 %v2830
    %6600 = vmatprep.subr.bf16.mxu0 %v2839
    %6601 = vmatpush1.bf16.msra.mxu0 %v2838
    %6602 = vmatprep.subr.bf16.mxu0 %v2847
    %6603 = vmatpush1.bf16.msra.mxu0 %v2846
    %6604 = vmatprep.subr.bf16.mxu0 %v2855
    %6605 = vmatpush1.bf16.msra.mxu0 %v2854
    %6606 = vmatprep.subr.bf16.mxu0 %v2863
    %6607 = vmatpush1.bf16.msra.mxu0 %v2862
    %6608 = vmatprep.subr.bf16.mxu0 %v2871
    %6609 = vmatpush1.bf16.msra.mxu0 %v2870
    %6610 = vmatprep.subr.bf16.mxu0 %v2879
    %6611 = vmatpush1.bf16.msra.mxu0 %v2878
    %6612 = vmatprep.subr.bf16.mxu0 %v2887
    %6613 = vmatpush1.bf16.msra.mxu0 %v2886
    %6614 = vmatprep.subr.bf16.mxu0 %v2895
    %6615 = vmatpush1.bf16.msra.mxu0 %v2894
    %6616 = vmatprep.subr.bf16.mxu0 %v2903
    %6617 = vmatpush1.bf16.msra.mxu0 %v2902
    %6618 = vmatprep.subr.bf16.mxu0 %v2911
    %6619 = vmatpush1.bf16.msra.mxu0 %v2910
    %6620 = vmatprep.subr.bf16.mxu0 %v2919
    %6621 = vmatpush1.bf16.msra.mxu0 %v2918
    %6622 = vmatprep.subr.bf16.mxu0 %v2927
    %6623 = vmatpush1.bf16.msra.mxu0 %v2926
    %6624 = vmatprep.subr.bf16.mxu0 %v2935
    %6625 = vmatpush1.bf16.msra.mxu0 %v2934
    %6626 = vmatprep.subr.bf16.mxu0 %v2943
    %6627 = vmatpush1.bf16.msra.mxu0 %v2942
    %6628 = vmatprep.mubr.bf16.mxu0 %v6251
    %6629 = vmatmul.mubr.bf16.gmra.mrb[0].mxu0 %v6250
    %v6630 = vpop.f32.mrb[0].mxu0
    %v6631 = vadd.f32 %v2023, %v6630
    %v6632 = vpop.f32.mrb[0].mxu0
    %v6633 = vadd.f32 %v2027, %v6632
    %v6634 = vpop.f32.mrb[0].mxu0
    %v6635 = vpop.f32.mrb[0].mxu0
    %6636 = vdwg.mxu0
    %6637 = vmatprep.subr.bf16.mxu0 %v2951
    %6638 = vmatpush1.bf16.msra.mxu0 %v2950
    %6639 = vmatprep.subr.bf16.mxu0 %v2959
    %6640 = vmatpush1.bf16.msra.mxu0 %v2958
    %6641 = vmatprep.subr.bf16.mxu0 %v2967
    %6642 = vmatpush1.bf16.msra.mxu0 %v2966
    %6643 = vmatprep.subr.bf16.mxu0 %v2975
    %6644 = vmatpush1.bf16.msra.mxu0 %v2974
    %6645 = vmatprep.subr.bf16.mxu0 %v2983
    %6646 = vmatpush1.bf16.msra.mxu0 %v2982
    %6647 = vmatprep.subr.bf16.mxu0 %v2991
    %6648 = vmatpush1.bf16.msra.mxu0 %v2990
    %6649 = vmatprep.subr.bf16.mxu0 %v2999
    %6650 = vmatpush1.bf16.msra.mxu0 %v2998
    %6651 = vmatprep.subr.bf16.mxu0 %v3007
    %6652 = vmatpush1.bf16.msra.mxu0 %v3006
    %6653 = vmatprep.subr.bf16.mxu0 %v3015
    %6654 = vmatpush1.bf16.msra.mxu0 %v3014
    %6655 = vmatprep.subr.bf16.mxu0 %v3023
    %6656 = vmatpush1.bf16.msra.mxu0 %v3022
    %6657 = vmatprep.subr.bf16.mxu0 %v3031
    %6658 = vmatpush1.bf16.msra.mxu0 %v3030
    %6659 = vmatprep.subr.bf16.mxu0 %v3039
    %6660 = vmatpush1.bf16.msra.mxu0 %v3038
    %6661 = vmatprep.subr.bf16.mxu0 %v3047
    %6662 = vmatpush1.bf16.msra.mxu0 %v3046
    %6663 = vmatprep.subr.bf16.mxu0 %v3055
    %6664 = vmatpush1.bf16.msra.mxu0 %v3054
    %6665 = vmatprep.subr.bf16.mxu0 %v3063
    %6666 = vmatpush1.bf16.msra.mxu0 %v3062
    %6667 = vmatprep.subr.bf16.mxu0 %v3071
    %6668 = vmatpush1.bf16.msra.mxu0 %v3070
    %6669 = vmatprep.mubr.bf16.mxu0 %v6511
    %6670 = vmatmul.mubr.bf16.gmra.mrb[0].mxu0 %v6510
    %v6671 = vpop.f32.mrb[0].mxu0
    %v6672 = vadd.f32 %v6631, %v6671
    %v6673 = vpop.f32.mrb[0].mxu0
    %v6674 = vadd.f32 %v6633, %v6673
    %v6675 = vpop.f32.mrb[0].mxu0
    %v6676 = vpop.f32.mrb[0].mxu0
    %6677 = vdwg.mxu0
    %6678 = vmatprep.subr.bf16.mxu0 %v2825
    %6679 = vmatpush1.bf16.msra.mxu0 %v2824
    %6680 = vmatprep.subr.bf16.mxu0 %v2833
    %6681 = vmatpush1.bf16.msra.mxu0 %v2832
    %6682 = vmatprep.subr.bf16.mxu0 %v2841
    %6683 = vmatpush1.bf16.msra.mxu0 %v2840
    %6684 = vmatprep.subr.bf16.mxu0 %v2849
    %6685 = vmatpush1.bf16.msra.mxu0 %v2848
    %6686 = vmatprep.subr.bf16.mxu0 %v2857
    %6687 = vmatpush1.bf16.msra.mxu0 %v2856
    %6688 = vmatprep.subr.bf16.mxu0 %v2865
    %6689 = vmatpush1.bf16.msra.mxu0 %v2864
    %6690 = vmatprep.subr.bf16.mxu0 %v2873
    %6691 = vmatpush1.bf16.msra.mxu0 %v2872
    %6692 = vmatprep.subr.bf16.mxu0 %v2881
    %6693 = vmatpush1.bf16.msra.mxu0 %v2880
    %6694 = vmatprep.subr.bf16.mxu0 %v2889
    %6695 = vmatpush1.bf16.msra.mxu0 %v2888
    %6696 = vmatprep.subr.bf16.mxu0 %v2897
    %6697 = vmatpush1.bf16.msra.mxu0 %v2896
    %6698 = vmatprep.subr.bf16.mxu0 %v2905
    %6699 = vmatpush1.bf16.msra.mxu0 %v2904
    %6700 = vmatprep.subr.bf16.mxu0 %v2913
    %6701 = vmatpush1.bf16.msra.mxu0 %v2912
    %6702 = vmatprep.subr.bf16.mxu0 %v2921
    %6703 = vmatpush1.bf16.msra.mxu0 %v2920
    %6704 = vmatprep.subr.bf16.mxu0 %v2929
    %6705 = vmatpush1.bf16.msra.mxu0 %v2928
    %6706 = vmatprep.subr.bf16.mxu0 %v2937
    %6707 = vmatpush1.bf16.msra.mxu0 %v2936
    %6708 = vmatprep.subr.bf16.mxu0 %v2945
    %6709 = vmatpush1.bf16.msra.mxu0 %v2944
    %6710 = vmatprep.mubr.bf16.mxu0 %v6251
    %6711 = vmatmul.mubr.bf16.gmra.mrb[0].mxu0 %v6250
    %v6712 = vpop.f32.mrb[0].mxu0
    %v6713 = vadd.f32 %v2031, %v6712
    %v6714 = vpop.f32.mrb[0].mxu0
    %v6715 = vadd.f32 %v2035, %v6714
    %v6716 = vpop.f32.mrb[0].mxu0
    %v6717 = vpop.f32.mrb[0].mxu0
    %6718 = vdwg.mxu0
    %6719 = vmatprep.subr.bf16.mxu0 %v2953
    %6720 = vmatpush1.bf16.msra.mxu0 %v2952
    %6721 = vmatprep.subr.bf16.mxu0 %v2961
    %6722 = vmatpush1.bf16.msra.mxu0 %v2960
    %6723 = vmatprep.subr.bf16.mxu0 %v2969
    %6724 = vmatpush1.bf16.msra.mxu0 %v2968
    %6725 = vmatprep.subr.bf16.mxu0 %v2977
    %6726 = vmatpush1.bf16.msra.mxu0 %v2976
    %6727 = vmatprep.subr.bf16.mxu0 %v2985
    %6728 = vmatpush1.bf16.msra.mxu0 %v2984
    %6729 = vmatprep.subr.bf16.mxu0 %v2993
    %6730 = vmatpush1.bf16.msra.mxu0 %v2992
    %6731 = vmatprep.subr.bf16.mxu0 %v3001
    %6732 = vmatpush1.bf16.msra.mxu0 %v3000
    %6733 = vmatprep.subr.bf16.mxu0 %v3009
    %6734 = vmatpush1.bf16.msra.mxu0 %v3008
    %6735 = vmatprep.subr.bf16.mxu0 %v3017
    %6736 = vmatpush1.bf16.msra.mxu0 %v3016
    %6737 = vmatprep.subr.bf16.mxu0 %v3025
    %6738 = vmatpush1.bf16.msra.mxu0 %v3024
    %6739 = vmatprep.subr.bf16.mxu0 %v3033
    %6740 = vmatpush1.bf16.msra.mxu0 %v3032
    %6741 = vmatprep.subr.bf16.mxu0 %v3041
    %6742 = vmatpush1.bf16.msra.mxu0 %v3040
    %6743 = vmatprep.subr.bf16.mxu0 %v3049
    %6744 = vmatpush1.bf16.msra.mxu0 %v3048
    %6745 = vmatprep.subr.bf16.mxu0 %v3057
    %6746 = vmatpush1.bf16.msra.mxu0 %v3056
    %6747 = vmatprep.subr.bf16.mxu0 %v3065
    %6748 = vmatpush1.bf16.msra.mxu0 %v3064
    %6749 = vmatprep.subr.bf16.mxu0 %v3073
    %6750 = vmatpush1.bf16.msra.mxu0 %v3072
    %6751 = vmatprep.mubr.bf16.mxu0 %v6511
    %6752 = vmatmul.mubr.bf16.gmra.mrb[0].mxu0 %v6510
    %v6753 = vpop.f32.mrb[0].mxu0
    %v6754 = vadd.f32 %v6713, %v6753
    %v6755 = vpop.f32.mrb[0].mxu0
    %v6756 = vadd.f32 %v6715, %v6755
    %v6757 = vpop.f32.mrb[0].mxu0
    %v6758 = vpop.f32.mrb[0].mxu0
    %6759 = vdwg.mxu0
    %6760 = vmatprep.subr.bf16.mxu0 %v2827
    %6761 = vmatpush1.bf16.msra.mxu0 %v2826
    %6762 = vmatprep.subr.bf16.mxu0 %v2835
    %6763 = vmatpush1.bf16.msra.mxu0 %v2834
    %6764 = vmatprep.subr.bf16.mxu0 %v2843
    %6765 = vmatpush1.bf16.msra.mxu0 %v2842
    %6766 = vmatprep.subr.bf16.mxu0 %v2851
    %6767 = vmatpush1.bf16.msra.mxu0 %v2850
    %6768 = vmatprep.subr.bf16.mxu0 %v2859
    %6769 = vmatpush1.bf16.msra.mxu0 %v2858
    %6770 = vmatprep.subr.bf16.mxu0 %v2867
    %6771 = vmatpush1.bf16.msra.mxu0 %v2866
    %6772 = vmatprep.subr.bf16.mxu0 %v2875
    %6773 = vmatpush1.bf16.msra.mxu0 %v2874
    %6774 = vmatprep.subr.bf16.mxu0 %v2883
    %6775 = vmatpush1.bf16.msra.mxu0 %v2882
    %6776 = vmatprep.subr.bf16.mxu0 %v2891
    %6777 = vmatpush1.bf16.msra.mxu0 %v2890
    %6778 = vmatprep.subr.bf16.mxu0 %v2899
    %6779 = vmatpush1.bf16.msra.mxu0 %v2898
    %6780 = vmatprep.subr.bf16.mxu0 %v2907
    %6781 = vmatpush1.bf16.msra.mxu0 %v2906
    %6782 = vmatprep.subr.bf16.mxu0 %v2915
    %6783 = vmatpush1.bf16.msra.mxu0 %v2914
    %6784 = vmatprep.subr.bf16.mxu0 %v2923
    %6785 = vmatpush1.bf16.msra.mxu0 %v2922
    %6786 = vmatprep.subr.bf16.mxu0 %v2931
    %6787 = vmatpush1.bf16.msra.mxu0 %v2930
    %6788 = vmatprep.subr.bf16.mxu0 %v2939
    %6789 = vmatpush1.bf16.msra.mxu0 %v2938
    %6790 = vmatprep.subr.bf16.mxu0 %v2947
    %6791 = vmatpush1.bf16.msra.mxu0 %v2946
    %6792 = vmatprep.mubr.bf16.mxu0 %v6251
    %6793 = vmatmul.mubr.bf16.gmra.mrb[0].mxu0 %v6250
    %v6794 = vpop.f32.mrb[0].mxu0
    %v6795 = vadd.f32 %v2039, %v6794
    %v6796 = vpop.f32.mrb[0].mxu0
    %v6797 = vadd.f32 %v2043, %v6796
    %v6798 = vpop.f32.mrb[0].mxu0
    %v6799 = vpop.f32.mrb[0].mxu0
    %6800 = vdwg.mxu0
    %6801 = vmatprep.subr.bf16.mxu0 %v2955
    %6802 = vmatpush1.bf16.msra.mxu0 %v2954
    %6803 = vmatprep.subr.bf16.mxu0 %v2963
    %6804 = vmatpush1.bf16.msra.mxu0 %v2962
    %6805 = vmatprep.subr.bf16.mxu0 %v2971
    %6806 = vmatpush1.bf16.msra.mxu0 %v2970
    %6807 = vmatprep.subr.bf16.mxu0 %v2979
    %6808 = vmatpush1.bf16.msra.mxu0 %v2978
    %6809 = vmatprep.subr.bf16.mxu0 %v2987
    %6810 = vmatpush1.bf16.msra.mxu0 %v2986
    %6811 = vmatprep.subr.bf16.mxu0 %v2995
    %6812 = vmatpush1.bf16.msra.mxu0 %v2994
    %6813 = vmatprep.subr.bf16.mxu0 %v3003
    %6814 = vmatpush1.bf16.msra.mxu0 %v3002
    %6815 = vmatprep.subr.bf16.mxu0 %v3011
    %6816 = vmatpush1.bf16.msra.mxu0 %v3010
    %6817 = vmatprep.subr.bf16.mxu0 %v3019
    %6818 = vmatpush1.bf16.msra.mxu0 %v3018
    %6819 = vmatprep.subr.bf16.mxu0 %v3027
    %6820 = vmatpush1.bf16.msra.mxu0 %v3026
    %6821 = vmatprep.subr.bf16.mxu0 %v3035
    %6822 = vmatpush1.bf16.msra.mxu0 %v3034
    %6823 = vmatprep.subr.bf16.mxu0 %v3043
    %6824 = vmatpush1.bf16.msra.mxu0 %v3042
    %6825 = vmatprep.subr.bf16.mxu0 %v3051
    %6826 = vmatpush1.bf16.msra.mxu0 %v3050
    %6827 = vmatprep.subr.bf16.mxu0 %v3059
    %6828 = vmatpush1.bf16.msra.mxu0 %v3058
    %6829 = vmatprep.subr.bf16.mxu0 %v3067
    %6830 = vmatpush1.bf16.msra.mxu0 %v3066
    %6831 = vmatprep.subr.bf16.mxu0 %v3075
    %6832 = vmatpush1.bf16.msra.mxu0 %v3074
    %6833 = vmatprep.mubr.bf16.mxu0 %v6511
    %6834 = vmatmul.mubr.bf16.gmra.mrb[0].mxu0 %v6510
    %v6835 = vpop.f32.mrb[0].mxu0
    %v6836 = vadd.f32 %v6795, %v6835
    %v6837 = vpop.f32.mrb[0].mxu0
    %v6838 = vadd.f32 %v6797, %v6837
    %v6839 = vpop.f32.mrb[0].mxu0
    %v6840 = vpop.f32.mrb[0].mxu0
    %6841 = vdwg.mxu0
    %v6842 = vxor.u32 %v6590, 2147483648
    %v6843 = vxor.u32 %v6592, 2147483648
    %v6844 = vxor.u32 %v6672, 2147483648
    %v6845 = vxor.u32 %v6674, 2147483648
    %v6846 = vxor.u32 %v6754, 2147483648
    %v6847 = vxor.u32 %v6756, 2147483648
    %v6848 = vmul.f32 %v6842, 1.442695
    %v6849 = vpow.pop %v6848
    %v6850 = vmul.f32 %v6843, 1.442695
    %v6851 = vpow.pop %v6850
    %v6852 = vmul.f32 %v6844, 1.442695
    %v6853 = vpow.pop %v6852
    %v6854 = vmul.f32 %v6845, 1.442695
    %v6855 = vpow.pop %v6854
    %v6856 = vmul.f32 %v6846, 1.442695
    %v6857 = vpow.pop %v6856
    %v6858 = vmul.f32 %v6847, 1.442695
    %v6859 = vpow.pop %v6858
    %v6860 = vadd.f32 %v6849, 1.0
    %v6861 = vadd.f32 %v6851, 1.0
    %v6862 = vadd.f32 %v6853, 1.0
    %v6863 = vadd.f32 %v6855, 1.0
    %v6864 = vadd.f32 %v6857, 1.0
    %v6865 = vadd.f32 %v6859, 1.0
    %v6866 = vrcp.pop %v6860
    %v6867 = vmul.f32 1.0, %v6866
    %v6868 = vrcp.pop %v6861
    %v6869 = vmul.f32 1.0, %v6868
    %v6870 = vrcp.pop %v6862
    %v6871 = vmul.f32 1.0, %v6870
    %v6872 = vrcp.pop %v6863
    %v6873 = vmul.f32 1.0, %v6872
    %v6874 = vrcp.pop %v6864
    %v6875 = vmul.f32 1.0, %v6874
    %v6876 = vrcp.pop %v6865
    %v6877 = vmul.f32 1.0, %v6876
    %v6878 = vtanh.pop %v6836
    %v6879 = vtanh.pop %v6838
    %v6880 = vmul.f32 %v6871, %v6240
    %v6881 = vmul.f32 %v6873, %v6241
    %v6882 = vmul.f32 %v6867, %v6878
    %v6883 = vmul.f32 %v6869, %v6879
    %v6884 = vadd.f32 %v6880, %v6882
    %v6885 = vadd.f32 %v6881, %v6883
    %v6886 = vtanh.pop %v6884
    %v6887 = vtanh.pop %v6885
    %v6888 = vmul.f32 %v6875, %v6886
    %v6889 = vmul.f32 %v6877, %v6887
    %v6890 = vpack.c.bf16 %v6888, %v6888
    %v6891 = vpack.c.bf16 %v6889, %v6889
    %v6894 = vrot.slane %v6504, 2
    %v6895 = vrot.slane %v6505, 2
    %6898 = vmatprep.subr.bf16.mxu0 %v1282
    %6899 = vmatpush1.bf16.msra.mxu0 %v1281
    %6900 = vmatprep.subr.bf16.mxu0 %v1290
    %6901 = vmatpush1.bf16.msra.mxu0 %v1289
    %6902 = vmatprep.subr.bf16.mxu0 %v1298
    %6903 = vmatpush1.bf16.msra.mxu0 %v1297
    %6904 = vmatprep.subr.bf16.mxu0 %v1306
    %6905 = vmatpush1.bf16.msra.mxu0 %v1305
    %6906 = vmatprep.subr.bf16.mxu0 %v1314
    %6907 = vmatpush1.bf16.msra.mxu0 %v1313
    %6908 = vmatprep.subr.bf16.mxu0 %v1322
    %6909 = vmatpush1.bf16.msra.mxu0 %v1321
    %6910 = vmatprep.subr.bf16.mxu0 %v1330
    %6911 = vmatpush1.bf16.msra.mxu0 %v1329
    %6912 = vmatprep.subr.bf16.mxu0 %v1338
    %6913 = vmatpush1.bf16.msra.mxu0 %v1337
    %6914 = vmatprep.subr.bf16.mxu0 %v1346
    %6915 = vmatpush1.bf16.msra.mxu0 %v1345
    %6916 = vmatprep.subr.bf16.mxu0 %v1354
    %6917 = vmatpush1.bf16.msra.mxu0 %v1353
    %6918 = vmatprep.subr.bf16.mxu0 %v1362
    %6919 = vmatpush1.bf16.msra.mxu0 %v1361
    %6920 = vmatprep.subr.bf16.mxu0 %v1370
    %6921 = vmatpush1.bf16.msra.mxu0 %v1369
    %6922 = vmatprep.subr.bf16.mxu0 %v1378
    %6923 = vmatpush1.bf16.msra.mxu0 %v1377
    %6924 = vmatprep.subr.bf16.mxu0 %v1386
    %6925 = vmatpush1.bf16.msra.mxu0 %v1385
    %6926 = vmatprep.subr.bf16.mxu0 %v1394
    %6927 = vmatpush1.bf16.msra.mxu0 %v1393
    %6928 = vmatprep.subr.bf16.mxu0 %v1402
    %6929 = vmatpush1.bf16.msra.mxu0 %v1401
    %6930 = vmatprep.mubr.bf16.mxu0 %v6895
    %6931 = vmatmul.mubr.bf16.gmra.mrb[0].mxu0 %v6894
    %v6932 = vpop.f32.mrb[0].mxu0
    %v6933 = vadd.f32 0.0, %v6932
    %v6934 = vpop.f32.mrb[0].mxu0
    %v6935 = vadd.f32 0.0, %v6934
    %v6936 = vpop.f32.mrb[0].mxu0
    %v6937 = vpop.f32.mrb[0].mxu0
    %6938 = vdwg.mxu0
    %6939 = vmatprep.subr.bf16.mxu0 %v1284
    %6940 = vmatpush1.bf16.msra.mxu0 %v1283
    %6941 = vmatprep.subr.bf16.mxu0 %v1292
    %6942 = vmatpush1.bf16.msra.mxu0 %v1291
    %6943 = vmatprep.subr.bf16.mxu0 %v1300
    %6944 = vmatpush1.bf16.msra.mxu0 %v1299
    %6945 = vmatprep.subr.bf16.mxu0 %v1308
    %6946 = vmatpush1.bf16.msra.mxu0 %v1307
    %6947 = vmatprep.subr.bf16.mxu0 %v1316
    %6948 = vmatpush1.bf16.msra.mxu0 %v1315
    %6949 = vmatprep.subr.bf16.mxu0 %v1324
    %6950 = vmatpush1.bf16.msra.mxu0 %v1323
    %6951 = vmatprep.subr.bf16.mxu0 %v1332
    %6952 = vmatpush1.bf16.msra.mxu0 %v1331
    %6953 = vmatprep.subr.bf16.mxu0 %v1340
    %6954 = vmatpush1.bf16.msra.mxu0 %v1339
    %6955 = vmatprep.subr.bf16.mxu0 %v1348
    %6956 = vmatpush1.bf16.msra.mxu0 %v1347
    %6957 = vmatprep.subr.bf16.mxu0 %v1356
    %6958 = vmatpush1.bf16.msra.mxu0 %v1355
    %6959 = vmatprep.subr.bf16.mxu0 %v1364
    %6960 = vmatpush1.bf16.msra.mxu0 %v1363
    %6961 = vmatprep.subr.bf16.mxu0 %v1372
    %6962 = vmatpush1.bf16.msra.mxu0 %v1371
    %6963 = vmatprep.subr.bf16.mxu0 %v1380
    %6964 = vmatpush1.bf16.msra.mxu0 %v1379
    %6965 = vmatprep.subr.bf16.mxu0 %v1388
    %6966 = vmatpush1.bf16.msra.mxu0 %v1387
    %6967 = vmatprep.subr.bf16.mxu0 %v1396
    %6968 = vmatpush1.bf16.msra.mxu0 %v1395
    %6969 = vmatprep.subr.bf16.mxu0 %v1404
    %6970 = vmatpush1.bf16.msra.mxu0 %v1403
    %6971 = vmatprep.mubr.bf16.mxu0 %v6895
    %6972 = vmatmul.mubr.bf16.gmra.mrb[0].mxu0 %v6894
    %v6973 = vpop.f32.mrb[0].mxu0
    %v6974 = vadd.f32 0.0, %v6973
    %v6975 = vpop.f32.mrb[0].mxu0
    %v6976 = vadd.f32 0.0, %v6975
    %v6977 = vpop.f32.mrb[0].mxu0
    %v6978 = vpop.f32.mrb[0].mxu0
    %6979 = vdwg.mxu0
    %6980 = vmatprep.subr.bf16.mxu0 %v1286
    %6981 = vmatpush1.bf16.msra.mxu0 %v1285
    %6982 = vmatprep.subr.bf16.mxu0 %v1294
    %6983 = vmatpush1.bf16.msra.mxu0 %v1293
    %6984 = vmatprep.subr.bf16.mxu0 %v1302
    %6985 = vmatpush1.bf16.msra.mxu0 %v1301
    %6986 = vmatprep.subr.bf16.mxu0 %v1310
    %6987 = vmatpush1.bf16.msra.mxu0 %v1309
    %6988 = vmatprep.subr.bf16.mxu0 %v1318
    %6989 = vmatpush1.bf16.msra.mxu0 %v1317
    %6990 = vmatprep.subr.bf16.mxu0 %v1326
    %6991 = vmatpush1.bf16.msra.mxu0 %v1325
    %6992 = vmatprep.subr.bf16.mxu0 %v1334
    %6993 = vmatpush1.bf16.msra.mxu0 %v1333
    %6994 = vmatprep.subr.bf16.mxu0 %v1342
    %6995 = vmatpush1.bf16.msra.mxu0 %v1341
    %6996 = vmatprep.subr.bf16.mxu0 %v1350
    %6997 = vmatpush1.bf16.msra.mxu0 %v1349
    %6998 = vmatprep.subr.bf16.mxu0 %v1358
    %6999 = vmatpush1.bf16.msra.mxu0 %v1357
    %7000 = vmatprep.subr.bf16.mxu0 %v1366
    %7001 = vmatpush1.bf16.msra.mxu0 %v1365
    %7002 = vmatprep.subr.bf16.mxu0 %v1374
    %7003 = vmatpush1.bf16.msra.mxu0 %v1373
    %7004 = vmatprep.subr.bf16.mxu0 %v1382
    %7005 = vmatpush1.bf16.msra.mxu0 %v1381
    %7006 = vmatprep.subr.bf16.mxu0 %v1390
    %7007 = vmatpush1.bf16.msra.mxu0 %v1389
    %7008 = vmatprep.subr.bf16.mxu0 %v1398
    %7009 = vmatpush1.bf16.msra.mxu0 %v1397
    %7010 = vmatprep.subr.bf16.mxu0 %v1406
    %7011 = vmatpush1.bf16.msra.mxu0 %v1405
    %7012 = vmatprep.mubr.bf16.mxu0 %v6895
    %7013 = vmatmul.mubr.bf16.gmra.mrb[0].mxu0 %v6894
    %v7014 = vpop.f32.mrb[0].mxu0
    %v7015 = vadd.f32 0.0, %v7014
    %v7016 = vpop.f32.mrb[0].mxu0
    %v7017 = vadd.f32 0.0, %v7016
    %v7018 = vpop.f32.mrb[0].mxu0
    %v7019 = vpop.f32.mrb[0].mxu0
    %7020 = vdwg.mxu0
    %7021 = vmatprep.subr.bf16.mxu0 %v1288
    %7022 = vmatpush1.bf16.msra.mxu0 %v1287
    %7023 = vmatprep.subr.bf16.mxu0 %v1296
    %7024 = vmatpush1.bf16.msra.mxu0 %v1295
    %7025 = vmatprep.subr.bf16.mxu0 %v1304
    %7026 = vmatpush1.bf16.msra.mxu0 %v1303
    %7027 = vmatprep.subr.bf16.mxu0 %v1312
    %7028 = vmatpush1.bf16.msra.mxu0 %v1311
    %7029 = vmatprep.subr.bf16.mxu0 %v1320
    %7030 = vmatpush1.bf16.msra.mxu0 %v1319
    %7031 = vmatprep.subr.bf16.mxu0 %v1328
    %7032 = vmatpush1.bf16.msra.mxu0 %v1327
    %7033 = vmatprep.subr.bf16.mxu0 %v1336
    %7034 = vmatpush1.bf16.msra.mxu0 %v1335
    %7035 = vmatprep.subr.bf16.mxu0 %v1344
    %7036 = vmatpush1.bf16.msra.mxu0 %v1343
    %7037 = vmatprep.subr.bf16.mxu0 %v1352
    %7038 = vmatpush1.bf16.msra.mxu0 %v1351
    %7039 = vmatprep.subr.bf16.mxu0 %v1360
    %7040 = vmatpush1.bf16.msra.mxu0 %v1359
    %7041 = vmatprep.subr.bf16.mxu0 %v1368
    %7042 = vmatpush1.bf16.msra.mxu0 %v1367
    %7043 = vmatprep.subr.bf16.mxu0 %v1376
    %7044 = vmatpush1.bf16.msra.mxu0 %v1375
    %7045 = vmatprep.subr.bf16.mxu0 %v1384
    %7046 = vmatpush1.bf16.msra.mxu0 %v1383
    %7047 = vmatprep.subr.bf16.mxu0 %v1392
    %7048 = vmatpush1.bf16.msra.mxu0 %v1391
    %7049 = vmatprep.subr.bf16.mxu0 %v1400
    %7050 = vmatpush1.bf16.msra.mxu0 %v1399
    %7051 = vmatprep.subr.bf16.mxu0 %v1408
    %7052 = vmatpush1.bf16.msra.mxu0 %v1407
    %7053 = vmatprep.mubr.bf16.mxu0 %v6895
    %7054 = vmatmul.mubr.bf16.gmra.mrb[0].mxu0 %v6894
    %v7055 = vpop.f32.mrb[0].mxu0
    %v7056 = vadd.f32 0.0, %v7055
    %v7057 = vpop.f32.mrb[0].mxu0
    %v7058 = vadd.f32 0.0, %v7057
    %v7059 = vpop.f32.mrb[0].mxu0
    %v7060 = vpop.f32.mrb[0].mxu0
    %7061 = vdwg.mxu0
    %v7070 = vrot.slane %v6933, 2
    %v7071 = vrot.slane %v6935, 2
    %v7072 = vrot.slane %v6974, 2
    %v7073 = vrot.slane %v6976, 2
    %v7074 = vrot.slane %v7015, 2
    %v7075 = vrot.slane %v7017, 2
    %v7076 = vrot.slane %v7056, 2
    %v7077 = vrot.slane %v7058, 2
    %v7086 = vadd.f32 %v764, %v7070
    %v7087 = vadd.f32 %v766, %v7071
    %v7088 = vadd.f32 %v807, %v7072
    %v7089 = vadd.f32 %v809, %v7073
    %v7090 = vadd.f32 %v850, %v7074
    %v7091 = vadd.f32 %v852, %v7075
    %v7092 = vadd.f32 %v893, %v7076
    %v7093 = vadd.f32 %v895, %v7077
    %v7094 = vxor.u32 %v7086, 2147483648
    %v7095 = vxor.u32 %v7087, 2147483648
    %v7096 = vxor.u32 %v7088, 2147483648
    %v7097 = vxor.u32 %v7089, 2147483648
    %v7098 = vxor.u32 %v7090, 2147483648
    %v7099 = vxor.u32 %v7091, 2147483648
    %v7100 = vmul.f32 %v7094, 1.442695
    %v7101 = vpow.pop %v7100
    %v7102 = vmul.f32 %v7095, 1.442695
    %v7103 = vpow.pop %v7102
    %v7104 = vmul.f32 %v7096, 1.442695
    %v7105 = vpow.pop %v7104
    %v7106 = vmul.f32 %v7097, 1.442695
    %v7107 = vpow.pop %v7106
    %v7108 = vmul.f32 %v7098, 1.442695
    %v7109 = vpow.pop %v7108
    %v7110 = vmul.f32 %v7099, 1.442695
    %v7111 = vpow.pop %v7110
    %v7112 = vadd.f32 %v7101, 1.0
    %v7113 = vadd.f32 %v7103, 1.0
    %v7114 = vadd.f32 %v7105, 1.0
    %v7115 = vadd.f32 %v7107, 1.0
    %v7116 = vadd.f32 %v7109, 1.0
    %v7117 = vadd.f32 %v7111, 1.0
    %v7118 = vrcp.pop %v7112
    %v7119 = vmul.f32 1.0, %v7118
    %v7120 = vrcp.pop %v7113
    %v7121 = vmul.f32 1.0, %v7120
    %v7122 = vrcp.pop %v7114
    %v7123 = vmul.f32 1.0, %v7122
    %v7124 = vrcp.pop %v7115
    %v7125 = vmul.f32 1.0, %v7124
    %v7126 = vrcp.pop %v7116
    %v7127 = vmul.f32 1.0, %v7126
    %v7128 = vrcp.pop %v7117
    %v7129 = vmul.f32 1.0, %v7128
    %v7130 = vtanh.pop %v7092
    %v7131 = vtanh.pop %v7093
    %v7134 = vrot.slane %v6498, 6
    %v7135 = vrot.slane %v6499, 6
    %v7138 = vmul.f32 %v7123, %v7134
    %v7139 = vmul.f32 %v7125, %v7135
    %v7140 = vmul.f32 %v7119, %v7130
    %v7141 = vmul.f32 %v7121, %v7131
    %v7142 = vadd.f32 %v7138, %v7140
    %v7143 = vadd.f32 %v7139, %v7141
    %v7144 = vtanh.pop %v7142
    %v7145 = vtanh.pop %v7143
    %v7146 = vmul.f32 %v7127, %v7144
    %v7147 = vmul.f32 %v7129, %v7145
    %v7148 = vpack.c.bf16 %v7146, %v7146
    %v7149 = vpack.c.bf16 %v7147, %v7147
    %v7152 = vrot.slane %v6890, 6
    %v7153 = vrot.slane %v6891, 6
    %v7154 = vrot.slane %v7152, 2
    %v7155 = vrot.slane %v7153, 2
    %7158 = vmatprep.subr.bf16.mxu0 %v2821
    %7159 = vmatpush1.bf16.msra.mxu0 %v2820
    %7160 = vmatprep.subr.bf16.mxu0 %v2829
    %7161 = vmatpush1.bf16.msra.mxu0 %v2828
    %7162 = vmatprep.subr.bf16.mxu0 %v2837
    %7163 = vmatpush1.bf16.msra.mxu0 %v2836
    %7164 = vmatprep.subr.bf16.mxu0 %v2845
    %7165 = vmatpush1.bf16.msra.mxu0 %v2844
    %7166 = vmatprep.subr.bf16.mxu0 %v2853
    %7167 = vmatpush1.bf16.msra.mxu0 %v2852
    %7168 = vmatprep.subr.bf16.mxu0 %v2861
    %7169 = vmatpush1.bf16.msra.mxu0 %v2860
    %7170 = vmatprep.subr.bf16.mxu0 %v2869
    %7171 = vmatpush1.bf16.msra.mxu0 %v2868
    %7172 = vmatprep.subr.bf16.mxu0 %v2877
    %7173 = vmatpush1.bf16.msra.mxu0 %v2876
    %7174 = vmatprep.subr.bf16.mxu0 %v2885
    %7175 = vmatpush1.bf16.msra.mxu0 %v2884
    %7176 = vmatprep.subr.bf16.mxu0 %v2893
    %7177 = vmatpush1.bf16.msra.mxu0 %v2892
    %7178 = vmatprep.subr.bf16.mxu0 %v2901
    %7179 = vmatpush1.bf16.msra.mxu0 %v2900
    %7180 = vmatprep.subr.bf16.mxu0 %v2909
    %7181 = vmatpush1.bf16.msra.mxu0 %v2908
    %7182 = vmatprep.subr.bf16.mxu0 %v2917
    %7183 = vmatpush1.bf16.msra.mxu0 %v2916
    %7184 = vmatprep.subr.bf16.mxu0 %v2925
    %7185 = vmatpush1.bf16.msra.mxu0 %v2924
    %7186 = vmatprep.subr.bf16.mxu0 %v2933
    %7187 = vmatpush1.bf16.msra.mxu0 %v2932
    %7188 = vmatprep.subr.bf16.mxu0 %v2941
    %7189 = vmatpush1.bf16.msra.mxu0 %v2940
    %7190 = vmatprep.mubr.bf16.mxu0 %v6895
    %7191 = vmatmul.mubr.bf16.gmra.mrb[0].mxu0 %v6894
    %v7192 = vpop.f32.mrb[0].mxu0
    %v7193 = vadd.f32 %v2015, %v7192
    %v7194 = vpop.f32.mrb[0].mxu0
    %v7195 = vadd.f32 %v2019, %v7194
    %v7196 = vpop.f32.mrb[0].mxu0
    %v7197 = vpop.f32.mrb[0].mxu0
    %7198 = vdwg.mxu0
    %7199 = vmatprep.subr.bf16.mxu0 %v2949
    %7200 = vmatpush1.bf16.msra.mxu0 %v2948
    %7201 = vmatprep.subr.bf16.mxu0 %v2957
    %7202 = vmatpush1.bf16.msra.mxu0 %v2956
    %7203 = vmatprep.subr.bf16.mxu0 %v2965
    %7204 = vmatpush1.bf16.msra.mxu0 %v2964
    %7205 = vmatprep.subr.bf16.mxu0 %v2973
    %7206 = vmatpush1.bf16.msra.mxu0 %v2972
    %7207 = vmatprep.subr.bf16.mxu0 %v2981
    %7208 = vmatpush1.bf16.msra.mxu0 %v2980
    %7209 = vmatprep.subr.bf16.mxu0 %v2989
    %7210 = vmatpush1.bf16.msra.mxu0 %v2988
    %7211 = vmatprep.subr.bf16.mxu0 %v2997
    %7212 = vmatpush1.bf16.msra.mxu0 %v2996
    %7213 = vmatprep.subr.bf16.mxu0 %v3005
    %7214 = vmatpush1.bf16.msra.mxu0 %v3004
    %7215 = vmatprep.subr.bf16.mxu0 %v3013
    %7216 = vmatpush1.bf16.msra.mxu0 %v3012
    %7217 = vmatprep.subr.bf16.mxu0 %v3021
    %7218 = vmatpush1.bf16.msra.mxu0 %v3020
    %7219 = vmatprep.subr.bf16.mxu0 %v3029
    %7220 = vmatpush1.bf16.msra.mxu0 %v3028
    %7221 = vmatprep.subr.bf16.mxu0 %v3037
    %7222 = vmatpush1.bf16.msra.mxu0 %v3036
    %7223 = vmatprep.subr.bf16.mxu0 %v3045
    %7224 = vmatpush1.bf16.msra.mxu0 %v3044
    %7225 = vmatprep.subr.bf16.mxu0 %v3053
    %7226 = vmatpush1.bf16.msra.mxu0 %v3052
    %7227 = vmatprep.subr.bf16.mxu0 %v3061
    %7228 = vmatpush1.bf16.msra.mxu0 %v3060
    %7229 = vmatprep.subr.bf16.mxu0 %v3069
    %7230 = vmatpush1.bf16.msra.mxu0 %v3068
    %7231 = vmatprep.mubr.bf16.mxu0 %v7155
    %7232 = vmatmul.mubr.bf16.gmra.mrb[0].mxu0 %v7154
    %v7233 = vpop.f32.mrb[0].mxu0
    %v7234 = vadd.f32 %v7193, %v7233
    %v7235 = vpop.f32.mrb[0].mxu0
    %v7236 = vadd.f32 %v7195, %v7235
    %v7237 = vpop.f32.mrb[0].mxu0
    %v7238 = vpop.f32.mrb[0].mxu0
    %7239 = vdwg.mxu0
    %7240 = vmatprep.subr.bf16.mxu0 %v2823
    %7241 = vmatpush1.bf16.msra.mxu0 %v2822
    %7242 = vmatprep.subr.bf16.mxu0 %v2831
    %7243 = vmatpush1.bf16.msra.mxu0 %v2830
    %7244 = vmatprep.subr.bf16.mxu0 %v2839
    %7245 = vmatpush1.bf16.msra.mxu0 %v2838
    %7246 = vmatprep.subr.bf16.mxu0 %v2847
    %7247 = vmatpush1.bf16.msra.mxu0 %v2846
    %7248 = vmatprep.subr.bf16.mxu0 %v2855
    %7249 = vmatpush1.bf16.msra.mxu0 %v2854
    %7250 = vmatprep.subr.bf16.mxu0 %v2863
    %7251 = vmatpush1.bf16.msra.mxu0 %v2862
    %7252 = vmatprep.subr.bf16.mxu0 %v2871
    %7253 = vmatpush1.bf16.msra.mxu0 %v2870
    %7254 = vmatprep.subr.bf16.mxu0 %v2879
    %7255 = vmatpush1.bf16.msra.mxu0 %v2878
    %7256 = vmatprep.subr.bf16.mxu0 %v2887
    %7257 = vmatpush1.bf16.msra.mxu0 %v2886
    %7258 = vmatprep.subr.bf16.mxu0 %v2895
    %7259 = vmatpush1.bf16.msra.mxu0 %v2894
    %7260 = vmatprep.subr.bf16.mxu0 %v2903
    %7261 = vmatpush1.bf16.msra.mxu0 %v2902
    %7262 = vmatprep.subr.bf16.mxu0 %v2911
    %7263 = vmatpush1.bf16.msra.mxu0 %v2910
    %7264 = vmatprep.subr.bf16.mxu0 %v2919
    %7265 = vmatpush1.bf16.msra.mxu0 %v2918
    %7266 = vmatprep.subr.bf16.mxu0 %v2927
    %7267 = vmatpush1.bf16.msra.mxu0 %v2926
    %7268 = vmatprep.subr.bf16.mxu0 %v2935
    %7269 = vmatpush1.bf16.msra.mxu0 %v2934
    %7270 = vmatprep.subr.bf16.mxu0 %v2943
    %7271 = vmatpush1.bf16.msra.mxu0 %v2942
    %7272 = vmatprep.mubr.bf16.mxu0 %v6895
    %7273 = vmatmul.mubr.bf16.gmra.mrb[0].mxu0 %v6894
    %v7274 = vpop.f32.mrb[0].mxu0
    %v7275 = vadd.f32 %v2023, %v7274
    %v7276 = vpop.f32.mrb[0].mxu0
    %v7277 = vadd.f32 %v2027, %v7276
    %v7278 = vpop.f32.mrb[0].mxu0
    %v7279 = vpop.f32.mrb[0].mxu0
    %7280 = vdwg.mxu0
    %7281 = vmatprep.subr.bf16.mxu0 %v2951
    %7282 = vmatpush1.bf16.msra.mxu0 %v2950
    %7283 = vmatprep.subr.bf16.mxu0 %v2959
    %7284 = vmatpush1.bf16.msra.mxu0 %v2958
    %7285 = vmatprep.subr.bf16.mxu0 %v2967
    %7286 = vmatpush1.bf16.msra.mxu0 %v2966
    %7287 = vmatprep.subr.bf16.mxu0 %v2975
    %7288 = vmatpush1.bf16.msra.mxu0 %v2974
    %7289 = vmatprep.subr.bf16.mxu0 %v2983
    %7290 = vmatpush1.bf16.msra.mxu0 %v2982
    %7291 = vmatprep.subr.bf16.mxu0 %v2991
    %7292 = vmatpush1.bf16.msra.mxu0 %v2990
    %7293 = vmatprep.subr.bf16.mxu0 %v2999
    %7294 = vmatpush1.bf16.msra.mxu0 %v2998
    %7295 = vmatprep.subr.bf16.mxu0 %v3007
    %7296 = vmatpush1.bf16.msra.mxu0 %v3006
    %7297 = vmatprep.subr.bf16.mxu0 %v3015
    %7298 = vmatpush1.bf16.msra.mxu0 %v3014
    %7299 = vmatprep.subr.bf16.mxu0 %v3023
    %7300 = vmatpush1.bf16.msra.mxu0 %v3022
    %7301 = vmatprep.subr.bf16.mxu0 %v3031
    %7302 = vmatpush1.bf16.msra.mxu0 %v3030
    %7303 = vmatprep.subr.bf16.mxu0 %v3039
    %7304 = vmatpush1.bf16.msra.mxu0 %v3038
    %7305 = vmatprep.subr.bf16.mxu0 %v3047
    %7306 = vmatpush1.bf16.msra.mxu0 %v3046
    %7307 = vmatprep.subr.bf16.mxu0 %v3055
    %7308 = vmatpush1.bf16.msra.mxu0 %v3054
    %7309 = vmatprep.subr.bf16.mxu0 %v3063
    %7310 = vmatpush1.bf16.msra.mxu0 %v3062
    %7311 = vmatprep.subr.bf16.mxu0 %v3071
    %7312 = vmatpush1.bf16.msra.mxu0 %v3070
    %7313 = vmatprep.mubr.bf16.mxu0 %v7155
    %7314 = vmatmul.mubr.bf16.gmra.mrb[0].mxu0 %v7154
    %v7315 = vpop.f32.mrb[0].mxu0
    %v7316 = vadd.f32 %v7275, %v7315
    %v7317 = vpop.f32.mrb[0].mxu0
    %v7318 = vadd.f32 %v7277, %v7317
    %v7319 = vpop.f32.mrb[0].mxu0
    %v7320 = vpop.f32.mrb[0].mxu0
    %7321 = vdwg.mxu0
    %7322 = vmatprep.subr.bf16.mxu0 %v2825
    %7323 = vmatpush1.bf16.msra.mxu0 %v2824
    %7324 = vmatprep.subr.bf16.mxu0 %v2833
    %7325 = vmatpush1.bf16.msra.mxu0 %v2832
    %7326 = vmatprep.subr.bf16.mxu0 %v2841
    %7327 = vmatpush1.bf16.msra.mxu0 %v2840
    %7328 = vmatprep.subr.bf16.mxu0 %v2849
    %7329 = vmatpush1.bf16.msra.mxu0 %v2848
    %7330 = vmatprep.subr.bf16.mxu0 %v2857
    %7331 = vmatpush1.bf16.msra.mxu0 %v2856
    %7332 = vmatprep.subr.bf16.mxu0 %v2865
    %7333 = vmatpush1.bf16.msra.mxu0 %v2864
    %7334 = vmatprep.subr.bf16.mxu0 %v2873
    %7335 = vmatpush1.bf16.msra.mxu0 %v2872
    %7336 = vmatprep.subr.bf16.mxu0 %v2881
    %7337 = vmatpush1.bf16.msra.mxu0 %v2880
    %7338 = vmatprep.subr.bf16.mxu0 %v2889
    %7339 = vmatpush1.bf16.msra.mxu0 %v2888
    %7340 = vmatprep.subr.bf16.mxu0 %v2897
    %7341 = vmatpush1.bf16.msra.mxu0 %v2896
    %7342 = vmatprep.subr.bf16.mxu0 %v2905
    %7343 = vmatpush1.bf16.msra.mxu0 %v2904
    %7344 = vmatprep.subr.bf16.mxu0 %v2913
    %7345 = vmatpush1.bf16.msra.mxu0 %v2912
    %7346 = vmatprep.subr.bf16.mxu0 %v2921
    %7347 = vmatpush1.bf16.msra.mxu0 %v2920
    %7348 = vmatprep.subr.bf16.mxu0 %v2929
    %7349 = vmatpush1.bf16.msra.mxu0 %v2928
    %7350 = vmatprep.subr.bf16.mxu0 %v2937
    %7351 = vmatpush1.bf16.msra.mxu0 %v2936
    %7352 = vmatprep.subr.bf16.mxu0 %v2945
    %7353 = vmatpush1.bf16.msra.mxu0 %v2944
    %7354 = vmatprep.mubr.bf16.mxu0 %v6895
    %7355 = vmatmul.mubr.bf16.gmra.mrb[0].mxu0 %v6894
    %v7356 = vpop.f32.mrb[0].mxu0
    %v7357 = vadd.f32 %v2031, %v7356
    %v7358 = vpop.f32.mrb[0].mxu0
    %v7359 = vadd.f32 %v2035, %v7358
    %v7360 = vpop.f32.mrb[0].mxu0
    %v7361 = vpop.f32.mrb[0].mxu0
    %7362 = vdwg.mxu0
    %7363 = vmatprep.subr.bf16.mxu0 %v2953
    %7364 = vmatpush1.bf16.msra.mxu0 %v2952
    %7365 = vmatprep.subr.bf16.mxu0 %v2961
    %7366 = vmatpush1.bf16.msra.mxu0 %v2960
    %7367 = vmatprep.subr.bf16.mxu0 %v2969
    %7368 = vmatpush1.bf16.msra.mxu0 %v2968
    %7369 = vmatprep.subr.bf16.mxu0 %v2977
    %7370 = vmatpush1.bf16.msra.mxu0 %v2976
    %7371 = vmatprep.subr.bf16.mxu0 %v2985
    %7372 = vmatpush1.bf16.msra.mxu0 %v2984
    %7373 = vmatprep.subr.bf16.mxu0 %v2993
    %7374 = vmatpush1.bf16.msra.mxu0 %v2992
    %7375 = vmatprep.subr.bf16.mxu0 %v3001
    %7376 = vmatpush1.bf16.msra.mxu0 %v3000
    %7377 = vmatprep.subr.bf16.mxu0 %v3009
    %7378 = vmatpush1.bf16.msra.mxu0 %v3008
    %7379 = vmatprep.subr.bf16.mxu0 %v3017
    %7380 = vmatpush1.bf16.msra.mxu0 %v3016
    %7381 = vmatprep.subr.bf16.mxu0 %v3025
    %7382 = vmatpush1.bf16.msra.mxu0 %v3024
    %7383 = vmatprep.subr.bf16.mxu0 %v3033
    %7384 = vmatpush1.bf16.msra.mxu0 %v3032
    %7385 = vmatprep.subr.bf16.mxu0 %v3041
    %7386 = vmatpush1.bf16.msra.mxu0 %v3040
    %7387 = vmatprep.subr.bf16.mxu0 %v3049
    %7388 = vmatpush1.bf16.msra.mxu0 %v3048
    %7389 = vmatprep.subr.bf16.mxu0 %v3057
    %7390 = vmatpush1.bf16.msra.mxu0 %v3056
    %7391 = vmatprep.subr.bf16.mxu0 %v3065
    %7392 = vmatpush1.bf16.msra.mxu0 %v3064
    %7393 = vmatprep.subr.bf16.mxu0 %v3073
    %7394 = vmatpush1.bf16.msra.mxu0 %v3072
    %7395 = vmatprep.mubr.bf16.mxu0 %v7155
    %7396 = vmatmul.mubr.bf16.gmra.mrb[0].mxu0 %v7154
    %v7397 = vpop.f32.mrb[0].mxu0
    %v7398 = vadd.f32 %v7357, %v7397
    %v7399 = vpop.f32.mrb[0].mxu0
    %v7400 = vadd.f32 %v7359, %v7399
    %v7401 = vpop.f32.mrb[0].mxu0
    %v7402 = vpop.f32.mrb[0].mxu0
    %7403 = vdwg.mxu0
    %7404 = vmatprep.subr.bf16.mxu0 %v2827
    %7405 = vmatpush1.bf16.msra.mxu0 %v2826
    %7406 = vmatprep.subr.bf16.mxu0 %v2835
    %7407 = vmatpush1.bf16.msra.mxu0 %v2834
    %7408 = vmatprep.subr.bf16.mxu0 %v2843
    %7409 = vmatpush1.bf16.msra.mxu0 %v2842
    %7410 = vmatprep.subr.bf16.mxu0 %v2851
    %7411 = vmatpush1.bf16.msra.mxu0 %v2850
    %7412 = vmatprep.subr.bf16.mxu0 %v2859
    %7413 = vmatpush1.bf16.msra.mxu0 %v2858
    %7414 = vmatprep.subr.bf16.mxu0 %v2867
    %7415 = vmatpush1.bf16.msra.mxu0 %v2866
    %7416 = vmatprep.subr.bf16.mxu0 %v2875
    %7417 = vmatpush1.bf16.msra.mxu0 %v2874
    %7418 = vmatprep.subr.bf16.mxu0 %v2883
    %7419 = vmatpush1.bf16.msra.mxu0 %v2882
    %7420 = vmatprep.subr.bf16.mxu0 %v2891
    %7421 = vmatpush1.bf16.msra.mxu0 %v2890
    %7422 = vmatprep.subr.bf16.mxu0 %v2899
    %7423 = vmatpush1.bf16.msra.mxu0 %v2898
    %7424 = vmatprep.subr.bf16.mxu0 %v2907
    %7425 = vmatpush1.bf16.msra.mxu0 %v2906
    %7426 = vmatprep.subr.bf16.mxu0 %v2915
    %7427 = vmatpush1.bf16.msra.mxu0 %v2914
    %7428 = vmatprep.subr.bf16.mxu0 %v2923
    %7429 = vmatpush1.bf16.msra.mxu0 %v2922
    %7430 = vmatprep.subr.bf16.mxu0 %v2931
    %7431 = vmatpush1.bf16.msra.mxu0 %v2930
    %7432 = vmatprep.subr.bf16.mxu0 %v2939
    %7433 = vmatpush1.bf16.msra.mxu0 %v2938
    %7434 = vmatprep.subr.bf16.mxu0 %v2947
    %7435 = vmatpush1.bf16.msra.mxu0 %v2946
    %7436 = vmatprep.mubr.bf16.mxu0 %v6895
    %7437 = vmatmul.mubr.bf16.gmra.mrb[0].mxu0 %v6894
    %v7438 = vpop.f32.mrb[0].mxu0
    %v7439 = vadd.f32 %v2039, %v7438
    %v7440 = vpop.f32.mrb[0].mxu0
    %v7441 = vadd.f32 %v2043, %v7440
    %v7442 = vpop.f32.mrb[0].mxu0
    %v7443 = vpop.f32.mrb[0].mxu0
    %7444 = vdwg.mxu0
    %7445 = vmatprep.subr.bf16.mxu0 %v2955
    %7446 = vmatpush1.bf16.msra.mxu0 %v2954
    %7447 = vmatprep.subr.bf16.mxu0 %v2963
    %7448 = vmatpush1.bf16.msra.mxu0 %v2962
    %7449 = vmatprep.subr.bf16.mxu0 %v2971
    %7450 = vmatpush1.bf16.msra.mxu0 %v2970
    %7451 = vmatprep.subr.bf16.mxu0 %v2979
    %7452 = vmatpush1.bf16.msra.mxu0 %v2978
    %7453 = vmatprep.subr.bf16.mxu0 %v2987
    %7454 = vmatpush1.bf16.msra.mxu0 %v2986
    %7455 = vmatprep.subr.bf16.mxu0 %v2995
    %7456 = vmatpush1.bf16.msra.mxu0 %v2994
    %7457 = vmatprep.subr.bf16.mxu0 %v3003
    %7458 = vmatpush1.bf16.msra.mxu0 %v3002
    %7459 = vmatprep.subr.bf16.mxu0 %v3011
    %7460 = vmatpush1.bf16.msra.mxu0 %v3010
    %7461 = vmatprep.subr.bf16.mxu0 %v3019
    %7462 = vmatpush1.bf16.msra.mxu0 %v3018
    %7463 = vmatprep.subr.bf16.mxu0 %v3027
    %7464 = vmatpush1.bf16.msra.mxu0 %v3026
    %7465 = vmatprep.subr.bf16.mxu0 %v3035
    %7466 = vmatpush1.bf16.msra.mxu0 %v3034
    %7467 = vmatprep.subr.bf16.mxu0 %v3043
    %7468 = vmatpush1.bf16.msra.mxu0 %v3042
    %7469 = vmatprep.subr.bf16.mxu0 %v3051
    %7470 = vmatpush1.bf16.msra.mxu0 %v3050
    %7471 = vmatprep.subr.bf16.mxu0 %v3059
    %7472 = vmatpush1.bf16.msra.mxu0 %v3058
    %7473 = vmatprep.subr.bf16.mxu0 %v3067
    %7474 = vmatpush1.bf16.msra.mxu0 %v3066
    %7475 = vmatprep.subr.bf16.mxu0 %v3075
    %7476 = vmatpush1.bf16.msra.mxu0 %v3074
    %7477 = vmatprep.mubr.bf16.mxu0 %v7155
    %7478 = vmatmul.mubr.bf16.gmra.mrb[0].mxu0 %v7154
    %v7479 = vpop.f32.mrb[0].mxu0
    %v7480 = vadd.f32 %v7439, %v7479
    %v7481 = vpop.f32.mrb[0].mxu0
    %v7482 = vadd.f32 %v7441, %v7481
    %v7483 = vpop.f32.mrb[0].mxu0
    %v7484 = vpop.f32.mrb[0].mxu0
    %7485 = vdwg.mxu0
    %v7486 = vxor.u32 %v7234, 2147483648
    %v7487 = vxor.u32 %v7236, 2147483648
    %v7488 = vxor.u32 %v7316, 2147483648
    %v7489 = vxor.u32 %v7318, 2147483648
    %v7490 = vxor.u32 %v7398, 2147483648
    %v7491 = vxor.u32 %v7400, 2147483648
    %v7492 = vmul.f32 %v7486, 1.442695
    %v7493 = vpow.pop %v7492
    %v7494 = vmul.f32 %v7487, 1.442695
    %v7495 = vpow.pop %v7494
    %v7496 = vmul.f32 %v7488, 1.442695
    %v7497 = vpow.pop %v7496
    %v7498 = vmul.f32 %v7489, 1.442695
    %v7499 = vpow.pop %v7498
    %v7500 = vmul.f32 %v7490, 1.442695
    %v7501 = vpow.pop %v7500
    %v7502 = vmul.f32 %v7491, 1.442695
    %v7503 = vpow.pop %v7502
    %v7504 = vadd.f32 %v7493, 1.0
    %v7505 = vadd.f32 %v7495, 1.0
    %v7506 = vadd.f32 %v7497, 1.0
    %v7507 = vadd.f32 %v7499, 1.0
    %v7508 = vadd.f32 %v7501, 1.0
    %v7509 = vadd.f32 %v7503, 1.0
    %v7510 = vrcp.pop %v7504
    %v7511 = vmul.f32 1.0, %v7510
    %v7512 = vrcp.pop %v7505
    %v7513 = vmul.f32 1.0, %v7512
    %v7514 = vrcp.pop %v7506
    %v7515 = vmul.f32 1.0, %v7514
    %v7516 = vrcp.pop %v7507
    %v7517 = vmul.f32 1.0, %v7516
    %v7518 = vrcp.pop %v7508
    %v7519 = vmul.f32 1.0, %v7518
    %v7520 = vrcp.pop %v7509
    %v7521 = vmul.f32 1.0, %v7520
    %v7522 = vtanh.pop %v7480
    %v7523 = vtanh.pop %v7482
    %v7524 = vmul.f32 %v7515, %v6884
    %v7525 = vmul.f32 %v7517, %v6885
    %v7526 = vmul.f32 %v7511, %v7522
    %v7527 = vmul.f32 %v7513, %v7523
    %v7528 = vadd.f32 %v7524, %v7526
    %v7529 = vadd.f32 %v7525, %v7527
    %v7530 = vtanh.pop %v7528
    %v7531 = vtanh.pop %v7529
    %v7532 = vmul.f32 %v7519, %v7530
    %v7533 = vmul.f32 %v7521, %v7531
    %v7534 = vpack.c.bf16 %v7532, %v7532
    %v7535 = vpack.c.bf16 %v7533, %v7533
    %v7538 = vrot.slane %v7534, 5
    %v7539 = vrot.slane %v7535, 5
    %v7542 = vrot.slane %v7148, 3
    %v7543 = vrot.slane %v7149, 3
    %v7544 = vrot.slane %v7538, 3
    %v7545 = vrot.slane %v7539, 3
    %7550 = vmatprep.subr.bf16.mxu0 %v2821
    %7551 = vmatpush1.bf16.msra.mxu0 %v2820
    %7552 = vmatprep.subr.bf16.mxu0 %v2829
    %7553 = vmatpush1.bf16.msra.mxu0 %v2828
    %7554 = vmatprep.subr.bf16.mxu0 %v2837
    %7555 = vmatpush1.bf16.msra.mxu0 %v2836
    %7556 = vmatprep.subr.bf16.mxu0 %v2845
    %7557 = vmatpush1.bf16.msra.mxu0 %v2844
    %7558 = vmatprep.subr.bf16.mxu0 %v2853
    %7559 = vmatpush1.bf16.msra.mxu0 %v2852
    %7560 = vmatprep.subr.bf16.mxu0 %v2861
    %7561 = vmatpush1.bf16.msra.mxu0 %v2860
    %7562 = vmatprep.subr.bf16.mxu0 %v2869
    %7563 = vmatpush1.bf16.msra.mxu0 %v2868
    %7564 = vmatprep.subr.bf16.mxu0 %v2877
    %7565 = vmatpush1.bf16.msra.mxu0 %v2876
    %7566 = vmatprep.subr.bf16.mxu0 %v2885
    %7567 = vmatpush1.bf16.msra.mxu0 %v2884
    %7568 = vmatprep.subr.bf16.mxu0 %v2893
    %7569 = vmatpush1.bf16.msra.mxu0 %v2892
    %7570 = vmatprep.subr.bf16.mxu0 %v2901
    %7571 = vmatpush1.bf16.msra.mxu0 %v2900
    %7572 = vmatprep.subr.bf16.mxu0 %v2909
    %7573 = vmatpush1.bf16.msra.mxu0 %v2908
    %7574 = vmatprep.subr.bf16.mxu0 %v2917
    %7575 = vmatpush1.bf16.msra.mxu0 %v2916
    %7576 = vmatprep.subr.bf16.mxu0 %v2925
    %7577 = vmatpush1.bf16.msra.mxu0 %v2924
    %7578 = vmatprep.subr.bf16.mxu0 %v2933
    %7579 = vmatpush1.bf16.msra.mxu0 %v2932
    %7580 = vmatprep.subr.bf16.mxu0 %v2941
    %7581 = vmatpush1.bf16.msra.mxu0 %v2940
    %7582 = vmatprep.mubr.bf16.mxu0 %v7543
    %7583 = vmatmul.mubr.bf16.gmra.mrb[0].mxu0 %v7542
    %v7584 = vpop.f32.mrb[0].mxu0
    %v7585 = vadd.f32 %v2015, %v7584
    %v7586 = vpop.f32.mrb[0].mxu0
    %v7587 = vadd.f32 %v2019, %v7586
    %v7588 = vpop.f32.mrb[0].mxu0
    %v7589 = vpop.f32.mrb[0].mxu0
    %7590 = vdwg.mxu0
    %7591 = vmatprep.subr.bf16.mxu0 %v2949
    %7592 = vmatpush1.bf16.msra.mxu0 %v2948
    %7593 = vmatprep.subr.bf16.mxu0 %v2957
    %7594 = vmatpush1.bf16.msra.mxu0 %v2956
    %7595 = vmatprep.subr.bf16.mxu0 %v2965
    %7596 = vmatpush1.bf16.msra.mxu0 %v2964
    %7597 = vmatprep.subr.bf16.mxu0 %v2973
    %7598 = vmatpush1.bf16.msra.mxu0 %v2972
    %7599 = vmatprep.subr.bf16.mxu0 %v2981
    %7600 = vmatpush1.bf16.msra.mxu0 %v2980
    %7601 = vmatprep.subr.bf16.mxu0 %v2989
    %7602 = vmatpush1.bf16.msra.mxu0 %v2988
    %7603 = vmatprep.subr.bf16.mxu0 %v2997
    %7604 = vmatpush1.bf16.msra.mxu0 %v2996
    %7605 = vmatprep.subr.bf16.mxu0 %v3005
    %7606 = vmatpush1.bf16.msra.mxu0 %v3004
    %7607 = vmatprep.subr.bf16.mxu0 %v3013
    %7608 = vmatpush1.bf16.msra.mxu0 %v3012
    %7609 = vmatprep.subr.bf16.mxu0 %v3021
    %7610 = vmatpush1.bf16.msra.mxu0 %v3020
    %7611 = vmatprep.subr.bf16.mxu0 %v3029
    %7612 = vmatpush1.bf16.msra.mxu0 %v3028
    %7613 = vmatprep.subr.bf16.mxu0 %v3037
    %7614 = vmatpush1.bf16.msra.mxu0 %v3036
    %7615 = vmatprep.subr.bf16.mxu0 %v3045
    %7616 = vmatpush1.bf16.msra.mxu0 %v3044
    %7617 = vmatprep.subr.bf16.mxu0 %v3053
    %7618 = vmatpush1.bf16.msra.mxu0 %v3052
    %7619 = vmatprep.subr.bf16.mxu0 %v3061
    %7620 = vmatpush1.bf16.msra.mxu0 %v3060
    %7621 = vmatprep.subr.bf16.mxu0 %v3069
    %7622 = vmatpush1.bf16.msra.mxu0 %v3068
    %7623 = vmatprep.mubr.bf16.mxu0 %v7545
    %7624 = vmatmul.mubr.bf16.gmra.mrb[0].mxu0 %v7544
    %v7625 = vpop.f32.mrb[0].mxu0
    %v7626 = vadd.f32 %v7585, %v7625
    %v7627 = vpop.f32.mrb[0].mxu0
    %v7628 = vadd.f32 %v7587, %v7627
    %v7629 = vpop.f32.mrb[0].mxu0
    %v7630 = vpop.f32.mrb[0].mxu0
    %7631 = vdwg.mxu0
    %7632 = vmatprep.subr.bf16.mxu0 %v2823
    %7633 = vmatpush1.bf16.msra.mxu0 %v2822
    %7634 = vmatprep.subr.bf16.mxu0 %v2831
    %7635 = vmatpush1.bf16.msra.mxu0 %v2830
    %7636 = vmatprep.subr.bf16.mxu0 %v2839
    %7637 = vmatpush1.bf16.msra.mxu0 %v2838
    %7638 = vmatprep.subr.bf16.mxu0 %v2847
    %7639 = vmatpush1.bf16.msra.mxu0 %v2846
    %7640 = vmatprep.subr.bf16.mxu0 %v2855
    %7641 = vmatpush1.bf16.msra.mxu0 %v2854
    %7642 = vmatprep.subr.bf16.mxu0 %v2863
    %7643 = vmatpush1.bf16.msra.mxu0 %v2862
    %7644 = vmatprep.subr.bf16.mxu0 %v2871
    %7645 = vmatpush1.bf16.msra.mxu0 %v2870
    %7646 = vmatprep.subr.bf16.mxu0 %v2879
    %7647 = vmatpush1.bf16.msra.mxu0 %v2878
    %7648 = vmatprep.subr.bf16.mxu0 %v2887
    %7649 = vmatpush1.bf16.msra.mxu0 %v2886
    %7650 = vmatprep.subr.bf16.mxu0 %v2895
    %7651 = vmatpush1.bf16.msra.mxu0 %v2894
    %7652 = vmatprep.subr.bf16.mxu0 %v2903
    %7653 = vmatpush1.bf16.msra.mxu0 %v2902
    %7654 = vmatprep.subr.bf16.mxu0 %v2911
    %7655 = vmatpush1.bf16.msra.mxu0 %v2910
    %7656 = vmatprep.subr.bf16.mxu0 %v2919
    %7657 = vmatpush1.bf16.msra.mxu0 %v2918
    %7658 = vmatprep.subr.bf16.mxu0 %v2927
    %7659 = vmatpush1.bf16.msra.mxu0 %v2926
    %7660 = vmatprep.subr.bf16.mxu0 %v2935
    %7661 = vmatpush1.bf16.msra.mxu0 %v2934
    %7662 = vmatprep.subr.bf16.mxu0 %v2943
    %7663 = vmatpush1.bf16.msra.mxu0 %v2942
    %7664 = vmatprep.mubr.bf16.mxu0 %v7543
    %7665 = vmatmul.mubr.bf16.gmra.mrb[0].mxu0 %v7542
    %v7666 = vpop.f32.mrb[0].mxu0
    %v7667 = vadd.f32 %v2023, %v7666
    %v7668 = vpop.f32.mrb[0].mxu0
    %v7669 = vadd.f32 %v2027, %v7668
    %v7670 = vpop.f32.mrb[0].mxu0
    %v7671 = vpop.f32.mrb[0].mxu0
    %7672 = vdwg.mxu0
    %7673 = vmatprep.subr.bf16.mxu0 %v2951
    %7674 = vmatpush1.bf16.msra.mxu0 %v2950
    %7675 = vmatprep.subr.bf16.mxu0 %v2959
    %7676 = vmatpush1.bf16.msra.mxu0 %v2958
    %7677 = vmatprep.subr.bf16.mxu0 %v2967
    %7678 = vmatpush1.bf16.msra.mxu0 %v2966
    %7679 = vmatprep.subr.bf16.mxu0 %v2975
    %7680 = vmatpush1.bf16.msra.mxu0 %v2974
    %7681 = vmatprep.subr.bf16.mxu0 %v2983
    %7682 = vmatpush1.bf16.msra.mxu0 %v2982
    %7683 = vmatprep.subr.bf16.mxu0 %v2991
    %7684 = vmatpush1.bf16.msra.mxu0 %v2990
    %7685 = vmatprep.subr.bf16.mxu0 %v2999
    %7686 = vmatpush1.bf16.msra.mxu0 %v2998
    %7687 = vmatprep.subr.bf16.mxu0 %v3007
    %7688 = vmatpush1.bf16.msra.mxu0 %v3006
    %7689 = vmatprep.subr.bf16.mxu0 %v3015
    %7690 = vmatpush1.bf16.msra.mxu0 %v3014
    %7691 = vmatprep.subr.bf16.mxu0 %v3023
    %7692 = vmatpush1.bf16.msra.mxu0 %v3022
    %7693 = vmatprep.subr.bf16.mxu0 %v3031
    %7694 = vmatpush1.bf16.msra.mxu0 %v3030
    %7695 = vmatprep.subr.bf16.mxu0 %v3039
    %7696 = vmatpush1.bf16.msra.mxu0 %v3038
    %7697 = vmatprep.subr.bf16.mxu0 %v3047
    %7698 = vmatpush1.bf16.msra.mxu0 %v3046
    %7699 = vmatprep.subr.bf16.mxu0 %v3055
    %7700 = vmatpush1.bf16.msra.mxu0 %v3054
    %7701 = vmatprep.subr.bf16.mxu0 %v3063
    %7702 = vmatpush1.bf16.msra.mxu0 %v3062
    %7703 = vmatprep.subr.bf16.mxu0 %v3071
    %7704 = vmatpush1.bf16.msra.mxu0 %v3070
    %7705 = vmatprep.mubr.bf16.mxu0 %v7545
    %7706 = vmatmul.mubr.bf16.gmra.mrb[0].mxu0 %v7544
    %v7707 = vpop.f32.mrb[0].mxu0
    %v7708 = vadd.f32 %v7667, %v7707
    %v7709 = vpop.f32.mrb[0].mxu0
    %v7710 = vadd.f32 %v7669, %v7709
    %v7711 = vpop.f32.mrb[0].mxu0
    %v7712 = vpop.f32.mrb[0].mxu0
    %7713 = vdwg.mxu0
    %7714 = vmatprep.subr.bf16.mxu0 %v2825
    %7715 = vmatpush1.bf16.msra.mxu0 %v2824
    %7716 = vmatprep.subr.bf16.mxu0 %v2833
    %7717 = vmatpush1.bf16.msra.mxu0 %v2832
    %7718 = vmatprep.subr.bf16.mxu0 %v2841
    %7719 = vmatpush1.bf16.msra.mxu0 %v2840
    %7720 = vmatprep.subr.bf16.mxu0 %v2849
    %7721 = vmatpush1.bf16.msra.mxu0 %v2848
    %7722 = vmatprep.subr.bf16.mxu0 %v2857
    %7723 = vmatpush1.bf16.msra.mxu0 %v2856
    %7724 = vmatprep.subr.bf16.mxu0 %v2865
    %7725 = vmatpush1.bf16.msra.mxu0 %v2864
    %7726 = vmatprep.subr.bf16.mxu0 %v2873
    %7727 = vmatpush1.bf16.msra.mxu0 %v2872
    %7728 = vmatprep.subr.bf16.mxu0 %v2881
    %7729 = vmatpush1.bf16.msra.mxu0 %v2880
    %7730 = vmatprep.subr.bf16.mxu0 %v2889
    %7731 = vmatpush1.bf16.msra.mxu0 %v2888
    %7732 = vmatprep.subr.bf16.mxu0 %v2897
    %7733 = vmatpush1.bf16.msra.mxu0 %v2896
    %7734 = vmatprep.subr.bf16.mxu0 %v2905
    %7735 = vmatpush1.bf16.msra.mxu0 %v2904
    %7736 = vmatprep.subr.bf16.mxu0 %v2913
    %7737 = vmatpush1.bf16.msra.mxu0 %v2912
    %7738 = vmatprep.subr.bf16.mxu0 %v2921
    %7739 = vmatpush1.bf16.msra.mxu0 %v2920
    %7740 = vmatprep.subr.bf16.mxu0 %v2929
    %7741 = vmatpush1.bf16.msra.mxu0 %v2928
    %7742 = vmatprep.subr.bf16.mxu0 %v2937
    %7743 = vmatpush1.bf16.msra.mxu0 %v2936
    %7744 = vmatprep.subr.bf16.mxu0 %v2945
    %7745 = vmatpush1.bf16.msra.mxu0 %v2944
    %7746 = vmatprep.mubr.bf16.mxu0 %v7543
    %7747 = vmatmul.mubr.bf16.gmra.mrb[0].mxu0 %v7542
    %v7748 = vpop.f32.mrb[0].mxu0
    %v7749 = vadd.f32 %v2031, %v7748
    %v7750 = vpop.f32.mrb[0].mxu0
    %v7751 = vadd.f32 %v2035, %v7750
    %v7752 = vpop.f32.mrb[0].mxu0
    %v7753 = vpop.f32.mrb[0].mxu0
    %7754 = vdwg.mxu0
    %7755 = vmatprep.subr.bf16.mxu0 %v2953
    %7756 = vmatpush1.bf16.msra.mxu0 %v2952
    %7757 = vmatprep.subr.bf16.mxu0 %v2961
    %7758 = vmatpush1.bf16.msra.mxu0 %v2960
    %7759 = vmatprep.subr.bf16.mxu0 %v2969
    %7760 = vmatpush1.bf16.msra.mxu0 %v2968
    %7761 = vmatprep.subr.bf16.mxu0 %v2977
    %7762 = vmatpush1.bf16.msra.mxu0 %v2976
    %7763 = vmatprep.subr.bf16.mxu0 %v2985
    %7764 = vmatpush1.bf16.msra.mxu0 %v2984
    %7765 = vmatprep.subr.bf16.mxu0 %v2993
    %7766 = vmatpush1.bf16.msra.mxu0 %v2992
    %7767 = vmatprep.subr.bf16.mxu0 %v3001
    %7768 = vmatpush1.bf16.msra.mxu0 %v3000
    %7769 = vmatprep.subr.bf16.mxu0 %v3009
    %7770 = vmatpush1.bf16.msra.mxu0 %v3008
    %7771 = vmatprep.subr.bf16.mxu0 %v3017
    %7772 = vmatpush1.bf16.msra.mxu0 %v3016
    %7773 = vmatprep.subr.bf16.mxu0 %v3025
    %7774 = vmatpush1.bf16.msra.mxu0 %v3024
    %7775 = vmatprep.subr.bf16.mxu0 %v3033
    %7776 = vmatpush1.bf16.msra.mxu0 %v3032
    %7777 = vmatprep.subr.bf16.mxu0 %v3041
    %7778 = vmatpush1.bf16.msra.mxu0 %v3040
    %7779 = vmatprep.subr.bf16.mxu0 %v3049
    %7780 = vmatpush1.bf16.msra.mxu0 %v3048
    %7781 = vmatprep.subr.bf16.mxu0 %v3057
    %7782 = vmatpush1.bf16.msra.mxu0 %v3056
    %7783 = vmatprep.subr.bf16.mxu0 %v3065
    %7784 = vmatpush1.bf16.msra.mxu0 %v3064
    %7785 = vmatprep.subr.bf16.mxu0 %v3073
    %7786 = vmatpush1.bf16.msra.mxu0 %v3072
    %7787 = vmatprep.mubr.bf16.mxu0 %v7545
    %7788 = vmatmul.mubr.bf16.gmra.mrb[0].mxu0 %v7544
    %v7789 = vpop.f32.mrb[0].mxu0
    %v7790 = vadd.f32 %v7749, %v7789
    %v7791 = vpop.f32.mrb[0].mxu0
    %v7792 = vadd.f32 %v7751, %v7791
    %v7793 = vpop.f32.mrb[0].mxu0
    %v7794 = vpop.f32.mrb[0].mxu0
    %7795 = vdwg.mxu0
    %7796 = vmatprep.subr.bf16.mxu0 %v2827
    %7797 = vmatpush1.bf16.msra.mxu0 %v2826
    %7798 = vmatprep.subr.bf16.mxu0 %v2835
    %7799 = vmatpush1.bf16.msra.mxu0 %v2834
    %7800 = vmatprep.subr.bf16.mxu0 %v2843
    %7801 = vmatpush1.bf16.msra.mxu0 %v2842
    %7802 = vmatprep.subr.bf16.mxu0 %v2851
    %7803 = vmatpush1.bf16.msra.mxu0 %v2850
    %7804 = vmatprep.subr.bf16.mxu0 %v2859
    %7805 = vmatpush1.bf16.msra.mxu0 %v2858
    %7806 = vmatprep.subr.bf16.mxu0 %v2867
    %7807 = vmatpush1.bf16.msra.mxu0 %v2866
    %7808 = vmatprep.subr.bf16.mxu0 %v2875
    %7809 = vmatpush1.bf16.msra.mxu0 %v2874
    %7810 = vmatprep.subr.bf16.mxu0 %v2883
    %7811 = vmatpush1.bf16.msra.mxu0 %v2882
    %7812 = vmatprep.subr.bf16.mxu0 %v2891
    %7813 = vmatpush1.bf16.msra.mxu0 %v2890
    %7814 = vmatprep.subr.bf16.mxu0 %v2899
    %7815 = vmatpush1.bf16.msra.mxu0 %v2898
    %7816 = vmatprep.subr.bf16.mxu0 %v2907
    %7817 = vmatpush1.bf16.msra.mxu0 %v2906
    %7818 = vmatprep.subr.bf16.mxu0 %v2915
    %7819 = vmatpush1.bf16.msra.mxu0 %v2914
    %7820 = vmatprep.subr.bf16.mxu0 %v2923
    %7821 = vmatpush1.bf16.msra.mxu0 %v2922
    %7822 = vmatprep.subr.bf16.mxu0 %v2931
    %7823 = vmatpush1.bf16.msra.mxu0 %v2930
    %7824 = vmatprep.subr.bf16.mxu0 %v2939
    %7825 = vmatpush1.bf16.msra.mxu0 %v2938
    %7826 = vmatprep.subr.bf16.mxu0 %v2947
    %7827 = vmatpush1.bf16.msra.mxu0 %v2946
    %7828 = vmatprep.mubr.bf16.mxu0 %v7543
    %7829 = vmatmul.mubr.bf16.gmra.mrb[0].mxu0 %v7542
    %v7830 = vpop.f32.mrb[0].mxu0
    %v7831 = vadd.f32 %v2039, %v7830
    %v7832 = vpop.f32.mrb[0].mxu0
    %v7833 = vadd.f32 %v2043, %v7832
    %v7834 = vpop.f32.mrb[0].mxu0
    %v7835 = vpop.f32.mrb[0].mxu0
    %7836 = vdwg.mxu0
    %7837 = vmatprep.subr.bf16.mxu0 %v2955
    %7838 = vmatpush1.bf16.msra.mxu0 %v2954
    %7839 = vmatprep.subr.bf16.mxu0 %v2963
    %7840 = vmatpush1.bf16.msra.mxu0 %v2962
    %7841 = vmatprep.subr.bf16.mxu0 %v2971
    %7842 = vmatpush1.bf16.msra.mxu0 %v2970
    %7843 = vmatprep.subr.bf16.mxu0 %v2979
    %7844 = vmatpush1.bf16.msra.mxu0 %v2978
    %7845 = vmatprep.subr.bf16.mxu0 %v2987
    %7846 = vmatpush1.bf16.msra.mxu0 %v2986
    %7847 = vmatprep.subr.bf16.mxu0 %v2995
    %7848 = vmatpush1.bf16.msra.mxu0 %v2994
    %7849 = vmatprep.subr.bf16.mxu0 %v3003
    %7850 = vmatpush1.bf16.msra.mxu0 %v3002
    %7851 = vmatprep.subr.bf16.mxu0 %v3011
    %7852 = vmatpush1.bf16.msra.mxu0 %v3010
    %7853 = vmatprep.subr.bf16.mxu0 %v3019
    %7854 = vmatpush1.bf16.msra.mxu0 %v3018
    %7855 = vmatprep.subr.bf16.mxu0 %v3027
    %7856 = vmatpush1.bf16.msra.mxu0 %v3026
    %7857 = vmatprep.subr.bf16.mxu0 %v3035
    %7858 = vmatpush1.bf16.msra.mxu0 %v3034
    %7859 = vmatprep.subr.bf16.mxu0 %v3043
    %7860 = vmatpush1.bf16.msra.mxu0 %v3042
    %7861 = vmatprep.subr.bf16.mxu0 %v3051
    %7862 = vmatpush1.bf16.msra.mxu0 %v3050
    %7863 = vmatprep.subr.bf16.mxu0 %v3059
    %7864 = vmatpush1.bf16.msra.mxu0 %v3058
    %7865 = vmatprep.subr.bf16.mxu0 %v3067
    %7866 = vmatpush1.bf16.msra.mxu0 %v3066
    %7867 = vmatprep.subr.bf16.mxu0 %v3075
    %7868 = vmatpush1.bf16.msra.mxu0 %v3074
    %7869 = vmatprep.mubr.bf16.mxu0 %v7545
    %7870 = vmatmul.mubr.bf16.gmra.mrb[0].mxu0 %v7544
    %v7871 = vpop.f32.mrb[0].mxu0
    %v7872 = vadd.f32 %v7831, %v7871
    %v7873 = vpop.f32.mrb[0].mxu0
    %v7874 = vadd.f32 %v7833, %v7873
    %v7875 = vpop.f32.mrb[0].mxu0
    %v7876 = vpop.f32.mrb[0].mxu0
    %7877 = vdwg.mxu0
    %v7878 = vxor.u32 %v7626, 2147483648
    %v7879 = vxor.u32 %v7628, 2147483648
    %v7880 = vxor.u32 %v7708, 2147483648
    %v7881 = vxor.u32 %v7710, 2147483648
    %v7882 = vxor.u32 %v7790, 2147483648
    %v7883 = vxor.u32 %v7792, 2147483648
    %v7884 = vmul.f32 %v7878, 1.442695
    %v7885 = vpow.pop %v7884
    %v7886 = vmul.f32 %v7879, 1.442695
    %v7887 = vpow.pop %v7886
    %v7888 = vmul.f32 %v7880, 1.442695
    %v7889 = vpow.pop %v7888
    %v7890 = vmul.f32 %v7881, 1.442695
    %v7891 = vpow.pop %v7890
    %v7892 = vmul.f32 %v7882, 1.442695
    %v7893 = vpow.pop %v7892
    %v7894 = vmul.f32 %v7883, 1.442695
    %v7895 = vpow.pop %v7894
    %v7896 = vadd.f32 %v7885, 1.0
    %v7897 = vadd.f32 %v7887, 1.0
    %v7898 = vadd.f32 %v7889, 1.0
    %v7899 = vadd.f32 %v7891, 1.0
    %v7900 = vadd.f32 %v7893, 1.0
    %v7901 = vadd.f32 %v7895, 1.0
    %v7902 = vrcp.pop %v7896
    %v7903 = vmul.f32 1.0, %v7902
    %v7904 = vrcp.pop %v7897
    %v7905 = vmul.f32 1.0, %v7904
    %v7906 = vrcp.pop %v7898
    %v7907 = vmul.f32 1.0, %v7906
    %v7908 = vrcp.pop %v7899
    %v7909 = vmul.f32 1.0, %v7908
    %v7910 = vrcp.pop %v7900
    %v7911 = vmul.f32 1.0, %v7910
    %v7912 = vrcp.pop %v7901
    %v7913 = vmul.f32 1.0, %v7912
    %v7914 = vtanh.pop %v7872
    %v7915 = vtanh.pop %v7874
    %v7916 = vmul.f32 %v7907, %v7528
    %v7917 = vmul.f32 %v7909, %v7529
    %v7918 = vmul.f32 %v7903, %v7914
    %v7919 = vmul.f32 %v7905, %v7915
    %v7920 = vadd.f32 %v7916, %v7918
    %v7921 = vadd.f32 %v7917, %v7919
    %v7922 = vtanh.pop %v7920
    %v7923 = vtanh.pop %v7921
    %v7924 = vmul.f32 %v7911, %v7922
    %v7925 = vmul.f32 %v7913, %v7923
    %v7926 = vpack.c.bf16 %v7924, %v7924
    %v7927 = vpack.c.bf16 %v7925, %v7925
    %v7928 = vld [vmem:[#allocation10] sm:$0xf]
    %v7929 = vld [vmem:[#allocation10 + $0x4] sm:$0xf]
    %v7930 = vld [vmem:[#allocation10 + $0x8] sm:$0xf]
    %v7931 = vld [vmem:[#allocation10 + $0xc] sm:$0xf]
    %v7932 = vld [vmem:[#allocation10 + $0x10] sm:$0xf]
    %v7933 = vld [vmem:[#allocation10 + $0x14] sm:$0xf]
    %v7934 = vld [vmem:[#allocation10 + $0x18] sm:$0xf]
    %v7935 = vld [vmem:[#allocation10 + $0x1c] sm:$0xf]
    %v7936 = vld [vmem:[#allocation10 + $0x20] sm:$0xf]
    %v7937 = vld [vmem:[#allocation10 + $0x24] sm:$0xf]
    %v7938 = vld [vmem:[#allocation10 + $0x28] sm:$0xf]
    %v7939 = vld [vmem:[#allocation10 + $0x2c] sm:$0xf]
    %v7940 = vld [vmem:[#allocation10 + $0x30] sm:$0xf]
    %v7941 = vld [vmem:[#allocation10 + $0x34] sm:$0xf]
    %v7942 = vld [vmem:[#allocation10 + $0x38] sm:$0xf]
    %v7943 = vld [vmem:[#allocation10 + $0x3c] sm:$0xf]
    %v7944 = vld [vmem:[#allocation10 + $0x40] sm:$0xf]
    %v7945 = vld [vmem:[#allocation10 + $0x44] sm:$0xf]
    %v7946 = vld [vmem:[#allocation10 + $0x48] sm:$0xf]
    %v7947 = vld [vmem:[#allocation10 + $0x4c] sm:$0xf]
    %v7948 = vld [vmem:[#allocation10 + $0x50] sm:$0xf]
    %v7949 = vld [vmem:[#allocation10 + $0x54] sm:$0xf]
    %v7950 = vld [vmem:[#allocation10 + $0x58] sm:$0xf]
    %v7951 = vld [vmem:[#allocation10 + $0x5c] sm:$0xf]
    %v7952 = vld [vmem:[#allocation10 + $0x60] sm:$0xf]
    %v7953 = vld [vmem:[#allocation10 + $0x64] sm:$0xf]
    %v7954 = vld [vmem:[#allocation10 + $0x68] sm:$0xf]
    %v7955 = vld [vmem:[#allocation10 + $0x6c] sm:$0xf]
    %v7956 = vld [vmem:[#allocation10 + $0x70] sm:$0xf]
    %v7957 = vld [vmem:[#allocation10 + $0x74] sm:$0xf]
    %v7958 = vld [vmem:[#allocation10 + $0x78] sm:$0xf]
    %v7959 = vld [vmem:[#allocation10 + $0x7c] sm:$0xf]
    %v7960 = vld [vmem:[%s7] sm:$0x1]
    %v7962 = vlaneseq
    %v7963 = vshrl.u32 %v7962, 7
    %v7964 = vsub.s32 0, %v7963
    %v7965 = vrot.slane %v7960, %v7964
    %v7999 = vunpack.c.l.b16 %v7928
    %v8000 = vunpack.c.l.b16 %v7929
    %v8001 = vunpack.c.l.b16 %v7930
    %v8002 = vunpack.c.l.b16 %v7931
    %v8003 = vunpack.c.l.b16 %v7932
    %v8004 = vunpack.c.l.b16 %v7933
    %v8005 = vunpack.c.l.b16 %v7934
    %v8006 = vunpack.c.l.b16 %v7935
    %v8007 = vunpack.c.l.b16 %v7936
    %v8008 = vunpack.c.l.b16 %v7937
    %v8009 = vunpack.c.l.b16 %v7938
    %v8010 = vunpack.c.l.b16 %v7939
    %v8011 = vunpack.c.l.b16 %v7940
    %v8012 = vunpack.c.l.b16 %v7941
    %v8013 = vunpack.c.l.b16 %v7942
    %v8014 = vunpack.c.l.b16 %v7943
    %v8015 = vunpack.c.l.b16 %v7944
    %v8016 = vunpack.c.l.b16 %v7945
    %v8017 = vunpack.c.l.b16 %v7946
    %v8018 = vunpack.c.l.b16 %v7947
    %v8019 = vunpack.c.l.b16 %v7948
    %v8020 = vunpack.c.l.b16 %v7949
    %v8021 = vunpack.c.l.b16 %v7950
    %v8022 = vunpack.c.l.b16 %v7951
    %v8023 = vunpack.c.l.b16 %v7952
    %v8024 = vunpack.c.l.b16 %v7953
    %v8025 = vunpack.c.l.b16 %v7954
    %v8026 = vunpack.c.l.b16 %v7955
    %v8027 = vunpack.c.l.b16 %v7956
    %v8028 = vunpack.c.l.b16 %v7957
    %v8029 = vunpack.c.l.b16 %v7958
    %v8030 = vunpack.c.l.b16 %v7959
    %v8031 = vpack.c.b16 %v8000, %v7999
    %v8032 = vpack.c.b16 %v8002, %v8001
    %v8033 = vpack.c.b16 %v8004, %v8003
    %v8034 = vpack.c.b16 %v8006, %v8005
    %v8035 = vpack.c.b16 %v8008, %v8007
    %v8036 = vpack.c.b16 %v8010, %v8009
    %v8037 = vpack.c.b16 %v8012, %v8011
    %v8038 = vpack.c.b16 %v8014, %v8013
    %v8039 = vpack.c.b16 %v8016, %v8015
    %v8040 = vpack.c.b16 %v8018, %v8017
    %v8041 = vpack.c.b16 %v8020, %v8019
    %v8042 = vpack.c.b16 %v8022, %v8021
    %v8043 = vpack.c.b16 %v8024, %v8023
    %v8044 = vpack.c.b16 %v8026, %v8025
    %v8045 = vpack.c.b16 %v8028, %v8027
    %v8046 = vpack.c.b16 %v8030, %v8029
    %8063 = vmatprep.subr.bf16.mxu0 0
    %8064 = vmatpush1.bf16.msra.mxu0 %v8031
    %8065 = vmatprep.subr.bf16.mxu0 0
    %8066 = vmatpush1.bf16.msra.mxu0 %v8032
    %8067 = vmatprep.subr.bf16.mxu0 0
    %8068 = vmatpush1.bf16.msra.mxu0 %v8033
    %8069 = vmatprep.subr.bf16.mxu0 0
    %8070 = vmatpush1.bf16.msra.mxu0 %v8034
    %8071 = vmatprep.subr.bf16.mxu0 0
    %8072 = vmatpush1.bf16.msra.mxu0 %v8035
    %8073 = vmatprep.subr.bf16.mxu0 0
    %8074 = vmatpush1.bf16.msra.mxu0 %v8036
    %8075 = vmatprep.subr.bf16.mxu0 0
    %8076 = vmatpush1.bf16.msra.mxu0 %v8037
    %8077 = vmatprep.subr.bf16.mxu0 0
    %8078 = vmatpush1.bf16.msra.mxu0 %v8038
    %8079 = vmatprep.subr.bf16.mxu0 0
    %8080 = vmatpush1.bf16.msra.mxu0 %v8039
    %8081 = vmatprep.subr.bf16.mxu0 0
    %8082 = vmatpush1.bf16.msra.mxu0 %v8040
    %8083 = vmatprep.subr.bf16.mxu0 0
    %8084 = vmatpush1.bf16.msra.mxu0 %v8041
    %8085 = vmatprep.subr.bf16.mxu0 0
    %8086 = vmatpush1.bf16.msra.mxu0 %v8042
    %8087 = vmatprep.subr.bf16.mxu0 0
    %8088 = vmatpush1.bf16.msra.mxu0 %v8043
    %8089 = vmatprep.subr.bf16.mxu0 0
    %8090 = vmatpush1.bf16.msra.mxu0 %v8044
    %8091 = vmatprep.subr.bf16.mxu0 0
    %8092 = vmatpush1.bf16.msra.mxu0 %v8045
    %8093 = vmatprep.subr.bf16.mxu0 0
    %8094 = vmatpush1.bf16.msra.mxu0 %v8046
    %8095 = vmatprep.mubr.bf16.mxu0 %v7927
    %8096 = vmatmul.mubr.bf16.gmra.mrb[0].mxu0 %v7926
    %v8097 = vpop.f32.mrb[0].mxu0
    %v8098 = vadd.f32 %v7965, %v8097
    %v8099 = vpop.f32.mrb[0].mxu0
    %v8100 = vpop.f32.mrb[0].mxu0
    %v8101 = vpop.f32.mrb[0].mxu0
    %8102 = vdwg.mxu0
    %8103 = vst [vmem:[#allocation11] sm:$0x3] %v8098
    // Predicated region
    $region54: #{tpu_custom_call.1} parent=1 // pred_check
      _
    $region55: #{tpu_custom_call.1} parent=1 // pred_check_branch
      %8105 = sbr.rel (0) target = $region57
    $region56: #{tpu_custom_call.1} parent=1 // pred_region
      %s8107 = ssub.s32 32, 32
      %8108 = vsyncadd [#allocation4], %s8107
      %s8110 = sshll.u32 [#allocation11], 4
      %s8111 = int_to_ptr.vmem [resolvable:$true] %s8110
      %8113 = dma.vmem_to_hbm [thread:$0]  %s8111, 32, %s8, [#allocation4]
    $region57: #{tpu_custom_call.1} parent=1 // pred_fallthru
      _
    // Predicated region
    $region58: #{tpu_custom_call.1} parent=1 // pred_check
      _
    $region59: #{tpu_custom_call.1} parent=1 // pred_check_branch
      %8115 = sbr.rel (0) target = $region61
    $region60: #{tpu_custom_call.1} parent=1 // pred_region
      %8116 = dma.done [#allocation4], 32
    $region61: #{tpu_custom_call.1} parent=1 // pred_fallthru
      _
    %8117 = vsyncpa [#allocation3], 1
    %8118 = vsyncpa [#allocation6], 1
    %8119 = vsyncpa [#allocation9], 1
    %8120 = vsyncpa [#allocation4], 1

</llo_original>
